<compile_context>
chip_gen: v6e
topology: v6e:2x2x1
jax: 0.10.0
libtpu: 0.0.40
codegen_flags: <defaults>
</compile_context>

<pallas_src>
import jax
import jax.numpy as jnp
from jax import lax
from jax.experimental import pallas as pl
from jax.experimental.pallas import tpu as pltpu
from math import log

INPUT_DIM = 150          # must equal 150 so that `out += identity` is valid
HIDDEN = 1024
MID = 150
OUTPUT_DIM = 8           # even: chunks into mu / std
HALF = OUTPUT_DIM // 2
N_CHUNKS = 30            # norm() splits the 150-dim input into 30 chunks of 5

F_PAD = 256              # 150 -> lane-aligned 2*128 (zero-padded, exact)
OUT_PAD = 128            # 8  -> one full lane width (single unmasked store)

LOG_MAX = log(1.0e7)
LOG_MIN = log(1.0e4)


def _tpu_generation():
    """Best-effort TPU generation from device_kind; 0 if unknown (conservative)."""
    try:
        kind = jax.devices()[0].device_kind.lower()
    except Exception:
        return 0
    for g in (7, 6, 5, 4, 3):
        if f"v{g}" in kind:
            return g
    return 0


def _round_up(x, m):
    return ((x + m - 1) // m) * m


def _make_kernel(act_dtype):
    """act_dtype: precision of tanh/ReLU epilogues (bf16 on v6e/v7x, f32 on v5e)."""

    def kernel(s_ref, mean_ref, inv_std_ref,
               w1_ref, b1_ref, w2_ref, b2_ref, w3_ref, b3_ref,
               w5_ref, b5_ref, w4_ref, b4_ref,
               out_ref):
        # norm(): per-chunk (x - mean) * (1/std); padded lanes have inv_std == 0,
        # so the padded part of x is exactly 0 and the residual stays exact.
        x = (s_ref[...] - mean_ref[...]) * inv_std_ref[...]
        identity = x

        def mm(a, w_ref, b_ref):
            return jnp.dot(a.astype(jnp.bfloat16), w_ref[...],
                           preferred_element_type=jnp.float32) + b_ref[...]

        h = jnp.tanh(mm(x, w1_ref, b1_ref).astype(act_dtype))
        h = jnp.tanh(mm(h, w2_ref, b2_ref).astype(act_dtype))
        h = jnp.tanh((mm(h, w3_ref, b3_ref) + identity).astype(act_dtype))  # residual
        h = jnp.maximum(mm(h, w5_ref, b5_ref).astype(act_dtype), 0.0)       # ReLU
        out = mm(h, w4_ref, b4_ref)                                         # f32 head

        # mu  = exp(sigmoid(o) * (log 1e7 - log 1e4) + log 1e4)  on lanes [0, HALF)
        # std = 5 + 0.5 * (200 - 5) * (tanh(o) + 1)              on lanes [HALF, ..)
        # Apply both elementwise on the full lane-dense tile and select by lane,
        # avoiding lane-slicing relayouts; one unmasked (BT, 128) store.
        mu_path = jnp.exp(jax.nn.sigmoid(out) * (LOG_MAX - LOG_MIN) + LOG_MIN)
        sd_path = 5.0 + 0.5 * (200.0 - 5.0) * (jnp.tanh(out) + 1.0)
        lane = lax.broadcasted_iota(jnp.int32, out.shape, 1)
        out_ref[...] = jnp.where(lane < HALF, mu_path, sd_path)

    return kernel


def resnet_forward(s, h, c, kp):
    B = s.shape[0]
    gen = _tpu_generation()
    bf16_epilogue = gen >= 6               # bf16 VPU/EUP only on v6e/v7x
    bt_max = 256 if gen >= 6 else 128      # 256-wide MXU on v6e/v7x, 128 on v5e

    if B <= bt_max:
        b_pad = _round_up(max(B, 8), 8)    # sublane-aligned single tile
        bt = b_pad
    else:
        b_pad = _round_up(B, bt_max)       # pad batch; grid over full tiles
        bt = bt_max
    grid = (b_pad // bt,)

    s_pad = jnp.zeros((b_pad, F_PAD), jnp.float32).at[:B, :INPUT_DIM].set(
        s.astype(jnp.float32))

    act_dtype = jnp.bfloat16 if bf16_epilogue else jnp.float32
    kernel = _make_kernel(act_dtype)

    def build_call(single_buffer_weights):
        def const(shape):
            # Constant block index -> fetched once, VMEM-resident across all
            # batch tiles.  Buffered(1): no pointless double buffer.
            if single_buffer_weights:
                return pl.BlockSpec(shape, lambda i: (0, 0),
                                    pipeline_mode=pl.Buffered(1))
            return pl.BlockSpec(shape, lambda i: (0, 0))

        in_specs = [
            pl.BlockSpec((bt, F_PAD), lambda i: (i, 0)),   # s (tiled over batch)
            const((1, F_PAD)),                             # mean
            const((1, F_PAD)),                             # inv_std
            const((F_PAD, HIDDEN)),                        # w1 (bf16)
            const((1, HIDDEN)),                            # b1
            const((HIDDEN, HIDDEN)),                       # w2 (bf16)
            const((1, HIDDEN)),                            # b2
            const((HIDDEN, F_PAD)),                        # w3 (bf16)
            const((1, F_PAD)),                             # b3
            const((F_PAD, F_PAD)),                         # w5 (bf16)
            const((1, F_PAD)),                             # b5
            const((F_PAD, OUT_PAD)),                       # w4 (bf16)
            const((1, OUT_PAD)),                           # b4
        ]
        return pl.pallas_call(
            kernel,
            out_shape=jax.ShapeDtypeStruct((b_pad, OUT_PAD), jnp.float32),
            grid_spec=pltpu.PrefetchScalarGridSpec(
                num_scalar_prefetch=0,
                grid=grid,
                in_specs=in_specs,
                out_specs=pl.BlockSpec((bt, OUT_PAD), lambda i: (i, 0)),
            ),
            compiler_params=pltpu.CompilerParams(
                # Safe now that every input is a regular BlockSpec (no
                # grid-step-0 scratch fill); shards batch tiles across both
                # TensorCores on v7x.
                dimension_semantics=("parallel",)),
        )

    args = (s_pad, kp["mean"], kp["inv_std"],
            kp["w1"], kp["b1"], kp["w2"], kp["b2"], kp["w3"], kp["b3"],
            kp["w5"], kp["b5"], kp["w4"], kp["b4"])

    try:
        out = build_call(single_buffer_weights=True)(*args)
        out = jax.block_until_ready(out)
    except Exception:
        # Older Pallas without pipeline_mode / Buffered(1) support: identical
        # semantics, just default double buffering of the constant blocks.
        out = build_call(single_buffer_weights=False)(*args)

    mu = out[:B, :HALF]
    sd = out[:B, HALF:OUTPUT_DIM]
    # torch: mu.unsqueeze(2), std.unsqueeze(2), cat(dim=2) -> (B, HALF, 2)
    output = jnp.stack([mu, sd], axis=2)
    return output, h, c


def make_params(key):
    ks = jax.random.split(key, 10)

    def linear(kw, kb, n_in, n_out):
        scale = 1.0 / jnp.sqrt(jnp.float32(n_in))
        w = jax.random.uniform(kw, (n_in, n_out), jnp.float32, -scale, scale)
        b = jax.random.uniform(kb, (1, n_out), jnp.float32, -scale, scale)
        return w, b

    w1, b1 = linear(ks[0], ks[1], INPUT_DIM, HIDDEN)
    w2, b2 = linear(ks[2], ks[3], HIDDEN, HIDDEN)
    w3, b3 = linear(ks[4], ks[5], HIDDEN, MID)
    w5, b5 = linear(ks[6], ks[7], MID, MID)
    w4, b4 = linear(ks[8], ks[9], MID, OUTPUT_DIM)

    # deterministic stand-in for the '30new_guiyi_data.json' normalization stats
    chunk_mean = 0.1 * jnp.arange(N_CHUNKS, dtype=jnp.float32)
    chunk_std = 1.0 + 0.05 * jnp.arange(N_CHUNKS, dtype=jnp.float32)
    feat = INPUT_DIM // N_CHUNKS
    mean = jnp.repeat(chunk_mean, feat).reshape(1, INPUT_DIM)
    std = jnp.repeat(chunk_std, feat).reshape(1, INPUT_DIM)

    return dict(w1=w1, b1=b1, w2=w2, b2=b2, w3=w3, b3=b3,
                w5=w5, b5=b5, w4=w4, b4=b4, mean=mean, std=std)


def _pad2(x, rows, cols):
    return jnp.pad(x, ((0, rows - x.shape[0]), (0, cols - x.shape[1])))


def prepare_kernel_params(p):
    """Zero-pad feature dims to lane-aligned sizes, cast weights to bf16,
    precompute 1/std.  Padding is mathematically exact (padded rows/cols are
    zero, padded activations are zero)."""
    bf16 = jnp.bfloat16
    return dict(
        mean=_pad2(p["mean"], 1, F_PAD),
        inv_std=_pad2(1.0 / p["std"], 1, F_PAD),     # padded lanes -> 0 -> x == 0
        w1=_pad2(p["w1"], F_PAD, HIDDEN).astype(bf16),
        b1=p["b1"],
        w2=p["w2"].astype(bf16),
        b2=p["b2"],
        w3=_pad2(p["w3"], HIDDEN, F_PAD).astype(bf16),
        b3=_pad2(p["b3"], 1, F_PAD),
        w5=_pad2(p["w5"], F_PAD, F_PAD).astype(bf16),
        b5=_pad2(p["b5"], 1, F_PAD),
        w4=_pad2(p["w4"], F_PAD, OUT_PAD).astype(bf16),
        b4=_pad2(p["b4"], 1, OUT_PAD),
    )


def resnet_reference(s, h, c, p, *, bf16_epilogue):
    """Pure-JAX reference using the same bf16-weight / f32-accumulate (and,
    where enabled, bf16-epilogue) numerics as the kernel, unpadded shapes."""
    bf16 = jnp.bfloat16
    act = bf16 if bf16_epilogue else jnp.float32

    def d(x, w):
        return jnp.dot(x.astype(bf16), w.astype(bf16),
                       preferred_element_type=jnp.float32)

    x = (s - p["mean"]) * (1.0 / p["std"])
    identity = x
    o = jnp.tanh((d(x, p["w1"]) + p["b1"]).astype(act)).astype(jnp.float32)
    o = jnp.tanh((d(o, p["w2"]) + p["b2"]).astype(act)).astype(jnp.float32)
    o = jnp.tanh((d(o, p["w3"]) + p["b3"] + identity).astype(act)).astype(jnp.float32)
    o = jnp.maximum((d(o, p["w5"]) + p["b5"]).astype(act), 0.0).astype(jnp.float32)
    o = d(o, p["w4"]) + p["b4"]
    mu, sd = o[:, :HALF], o[:, HALF:]
    mu = jnp.exp(jax.nn.sigmoid(mu) * (LOG_MAX - LOG_MIN) + LOG_MIN)
    sd = 5.0 + 0.5 * (200.0 - 5.0) * (jnp.tanh(sd) + 1.0)
    return jnp.stack([mu, sd], axis=2), h, c


if __name__ == "__main__":
    key = jax.random.PRNGKey(0)
    k_param, k_s, k_h, k_c = jax.random.split(key, 4)

    B = 8
    LSTM_HIDDEN = 32
    raw_params = make_params(k_param)
    kernel_params = prepare_kernel_params(raw_params)

    s = jax.random.normal(k_s, (B, INPUT_DIM), jnp.float32)
    h = jax.random.normal(k_h, (B, LSTM_HIDDEN), jnp.float32)
    c = jax.random.normal(k_c, (B, LSTM_HIDDEN), jnp.float32)

    out, h_out, c_out = resnet_forward(s, h, c, kernel_params)
    jax.block_until_ready((out, h_out, c_out))

    bf16_epi = _tpu_generation() >= 6
    ref_out, _, _ = resnet_reference(s, h, c, raw_params, bf16_epilogue=bf16_epi)
    assert out.shape == (B, HALF, 2)
    # bf16 weights (and, on v6e/v7x, bf16 epilogues) on both sides; mu spans
    # 1e4..1e7 so the relative term dominates there, atol covers std (5..200).
    rtol, atol = (5e-2, 1.0) if bf16_epi else (5e-3, 1e-1)
    assert jnp.allclose(out, ref_out, rtol=rtol, atol=atol), (
        float(jnp.max(jnp.abs(out - ref_out))))
    assert jnp.array_equal(h_out, h) and jnp.array_equal(c_out, c)

    print("KERNEL_OK")
</pallas_src>

<mosaic_0001>
module attributes {stable_mosaic.version = 11 : i64} {
  func.func @kernel(%arg0: i32, %arg1: memref<8x256xf32, #tpu.memory_space<vmem>>, %arg2: memref<1x256xf32, #tpu.memory_space<vmem>>, %arg3: memref<1x256xf32, #tpu.memory_space<vmem>>, %arg4: memref<256x1024xbf16, #tpu.memory_space<vmem>>, %arg5: memref<1x1024xf32, #tpu.memory_space<vmem>>, %arg6: memref<1024x1024xbf16, #tpu.memory_space<vmem>>, %arg7: memref<1x1024xf32, #tpu.memory_space<vmem>>, %arg8: memref<1024x256xbf16, #tpu.memory_space<vmem>>, %arg9: memref<1x256xf32, #tpu.memory_space<vmem>>, %arg10: memref<256x256xbf16, #tpu.memory_space<vmem>>, %arg11: memref<1x256xf32, #tpu.memory_space<vmem>>, %arg12: memref<256x128xbf16, #tpu.memory_space<vmem>>, %arg13: memref<1x128xf32, #tpu.memory_space<vmem>>, %arg14: memref<8x128xf32, #tpu.memory_space<vmem>>) attributes {dimension_semantics = [#tpu.dimension_semantics<parallel>], iteration_bounds = array<i64: 1>, scalar_prefetch = 0 : i64, scratch_operands = 0 : i64, tpu.core_type = #tpu.core_type<tc>, window_params = [{transform_indices = @transform_0, window_bounds = array<i64: 8, 256>}, {pipeline_mode = #tpu.pipeline_mode<synchronous>, transform_indices = @transform_1, window_bounds = array<i64: 1, 256>}, {pipeline_mode = #tpu.pipeline_mode<synchronous>, transform_indices = @transform_2, window_bounds = array<i64: 1, 256>}, {pipeline_mode = #tpu.pipeline_mode<synchronous>, transform_indices = @transform_3, window_bounds = array<i64: 256, 1024>}, {pipeline_mode = #tpu.pipeline_mode<synchronous>, transform_indices = @transform_4, window_bounds = array<i64: 1, 1024>}, {pipeline_mode = #tpu.pipeline_mode<synchronous>, transform_indices = @transform_5, window_bounds = array<i64: 1024, 1024>}, {pipeline_mode = #tpu.pipeline_mode<synchronous>, transform_indices = @transform_6, window_bounds = array<i64: 1, 1024>}, {pipeline_mode = #tpu.pipeline_mode<synchronous>, transform_indices = @transform_7, window_bounds = array<i64: 1024, 256>}, {pipeline_mode = #tpu.pipeline_mode<synchronous>, transform_indices = @transform_8, window_bounds = array<i64: 1, 256>}, {pipeline_mode = #tpu.pipeline_mode<synchronous>, transform_indices = @transform_9, window_bounds = array<i64: 256, 256>}, {pipeline_mode = #tpu.pipeline_mode<synchronous>, transform_indices = @transform_10, window_bounds = array<i64: 1, 256>}, {pipeline_mode = #tpu.pipeline_mode<synchronous>, transform_indices = @transform_11, window_bounds = array<i64: 256, 128>}, {pipeline_mode = #tpu.pipeline_mode<synchronous>, transform_indices = @transform_12, window_bounds = array<i64: 1, 128>}, {transform_indices = @transform_13, window_bounds = array<i64: 8, 128>}]} {
    %c0 = arith.constant 0 : index
    %c0_0 = arith.constant 0 : index
    %0 = vector.load %arg1[%c0, %c0_0] : memref<8x256xf32, #tpu.memory_space<vmem>>, vector<8x256xf32>
    %c0_1 = arith.constant 0 : index
    %c0_2 = arith.constant 0 : index
    %1 = vector.load %arg2[%c0_1, %c0_2] : memref<1x256xf32, #tpu.memory_space<vmem>>, vector<1x256xf32>
    %2 = vector.broadcast %1 : vector<1x256xf32> to vector<8x256xf32>
    %3 = arith.subf %0, %2 : vector<8x256xf32>
    %c0_3 = arith.constant 0 : index
    %c0_4 = arith.constant 0 : index
    %4 = vector.load %arg3[%c0_3, %c0_4] : memref<1x256xf32, #tpu.memory_space<vmem>>, vector<1x256xf32>
    %5 = vector.broadcast %4 : vector<1x256xf32> to vector<8x256xf32>
    %6 = arith.mulf %3, %5 : vector<8x256xf32>
    %7 = arith.truncf %6 : vector<8x256xf32> to vector<8x256xbf16>
    %c0_5 = arith.constant 0 : index
    %c0_6 = arith.constant 0 : index
    %8 = vector.load %arg4[%c0_5, %c0_6] : memref<256x1024xbf16, #tpu.memory_space<vmem>>, vector<256x1024xbf16>
    %cst = arith.constant dense<0.000000e+00> : vector<8x1024xf32>
    %9 = tpu.matmul %7, %8, %cst {dimension_numbers = #tpu.dot_dimension_numbers<[1], [0], [0], [1], [0, 0, 1, 1], [], []>} : vector<8x256xbf16>, vector<256x1024xbf16>, vector<8x1024xf32> -> vector<8x1024xf32>
    %c0_7 = arith.constant 0 : index
    %c0_8 = arith.constant 0 : index
    %10 = vector.load %arg5[%c0_7, %c0_8] : memref<1x1024xf32, #tpu.memory_space<vmem>>, vector<1x1024xf32>
    %11 = vector.broadcast %10 : vector<1x1024xf32> to vector<8x1024xf32>
    %12 = arith.addf %9, %11 : vector<8x1024xf32>
    %13 = math.tanh %12 : vector<8x1024xf32>
    %14 = arith.truncf %13 : vector<8x1024xf32> to vector<8x1024xbf16>
    %c0_9 = arith.constant 0 : index
    %c0_10 = arith.constant 0 : index
    %15 = vector.load %arg6[%c0_9, %c0_10] : memref<1024x1024xbf16, #tpu.memory_space<vmem>>, vector<1024x1024xbf16>
    %cst_11 = arith.constant dense<0.000000e+00> : vector<8x1024xf32>
    %16 = tpu.matmul %14, %15, %cst_11 {dimension_numbers = #tpu.dot_dimension_numbers<[1], [0], [0], [1], [0, 0, 1, 1], [], []>} : vector<8x1024xbf16>, vector<1024x1024xbf16>, vector<8x1024xf32> -> vector<8x1024xf32>
    %c0_12 = arith.constant 0 : index
    %c0_13 = arith.constant 0 : index
    %17 = vector.load %arg7[%c0_12, %c0_13] : memref<1x1024xf32, #tpu.memory_space<vmem>>, vector<1x1024xf32>
    %18 = vector.broadcast %17 : vector<1x1024xf32> to vector<8x1024xf32>
    %19 = arith.addf %16, %18 : vector<8x1024xf32>
    %20 = math.tanh %19 : vector<8x1024xf32>
    %21 = arith.truncf %20 : vector<8x1024xf32> to vector<8x1024xbf16>
    %c0_14 = arith.constant 0 : index
    %c0_15 = arith.constant 0 : index
    %22 = vector.load %arg8[%c0_14, %c0_15] : memref<1024x256xbf16, #tpu.memory_space<vmem>>, vector<1024x256xbf16>
    %cst_16 = arith.constant dense<0.000000e+00> : vector<8x256xf32>
    %23 = tpu.matmul %21, %22, %cst_16 {dimension_numbers = #tpu.dot_dimension_numbers<[1], [0], [0], [1], [0, 0, 1, 1], [], []>} : vector<8x1024xbf16>, vector<1024x256xbf16>, vector<8x256xf32> -> vector<8x256xf32>
    %c0_17 = arith.constant 0 : index
    %c0_18 = arith.constant 0 : index
    %24 = vector.load %arg9[%c0_17, %c0_18] : memref<1x256xf32, #tpu.memory_space<vmem>>, vector<1x256xf32>
    %25 = vector.broadcast %24 : vector<1x256xf32> to vector<8x256xf32>
    %26 = arith.addf %23, %25 : vector<8x256xf32>
    %27 = arith.addf %26, %6 : vector<8x256xf32>
    %28 = math.tanh %27 : vector<8x256xf32>
    %29 = arith.truncf %28 : vector<8x256xf32> to vector<8x256xbf16>
    %c0_19 = arith.constant 0 : index
    %c0_20 = arith.constant 0 : index
    %30 = vector.load %arg10[%c0_19, %c0_20] : memref<256x256xbf16, #tpu.memory_space<vmem>>, vector<256x256xbf16>
    %cst_21 = arith.constant dense<0.000000e+00> : vector<8x256xf32>
    %31 = tpu.matmul %29, %30, %cst_21 {dimension_numbers = #tpu.dot_dimension_numbers<[1], [0], [0], [1], [0, 0, 1, 1], [], []>} : vector<8x256xbf16>, vector<256x256xbf16>, vector<8x256xf32> -> vector<8x256xf32>
    %c0_22 = arith.constant 0 : index
    %c0_23 = arith.constant 0 : index
    %32 = vector.load %arg11[%c0_22, %c0_23] : memref<1x256xf32, #tpu.memory_space<vmem>>, vector<1x256xf32>
    %33 = vector.broadcast %32 : vector<1x256xf32> to vector<8x256xf32>
    %34 = arith.addf %31, %33 : vector<8x256xf32>
    %cst_24 = arith.constant 0.000000e+00 : f32
    %35 = vector.broadcast %cst_24 : f32 to vector<8x256xf32>
    %36 = arith.maximumf %34, %35 : vector<8x256xf32>
    %37 = arith.truncf %36 : vector<8x256xf32> to vector<8x256xbf16>
    %c0_25 = arith.constant 0 : index
    %c0_26 = arith.constant 0 : index
    %38 = vector.load %arg12[%c0_25, %c0_26] : memref<256x128xbf16, #tpu.memory_space<vmem>>, vector<256x128xbf16>
    %cst_27 = arith.constant dense<0.000000e+00> : vector<8x128xf32>
    %39 = tpu.matmul %37, %38, %cst_27 {dimension_numbers = #tpu.dot_dimension_numbers<[1], [0], [0], [1], [0, 0, 1, 1], [], []>} : vector<8x256xbf16>, vector<256x128xbf16>, vector<8x128xf32> -> vector<8x128xf32>
    %c0_28 = arith.constant 0 : index
    %c0_29 = arith.constant 0 : index
    %40 = vector.load %arg13[%c0_28, %c0_29] : memref<1x128xf32, #tpu.memory_space<vmem>>, vector<1x128xf32>
    %41 = vector.broadcast %40 : vector<1x128xf32> to vector<8x128xf32>
    %42 = arith.addf %39, %41 : vector<8x128xf32>
    %43 = arith.negf %42 : vector<8x128xf32>
    %44 = math.exp %43 : vector<8x128xf32>
    %cst_30 = arith.constant 1.000000e+00 : f32
    %45 = vector.broadcast %cst_30 : f32 to vector<8x128xf32>
    %46 = arith.addf %45, %44 : vector<8x128xf32>
    %47 = arith.divf %45, %46 : vector<8x128xf32>
    %cst_31 = arith.constant 6.90775537 : f32
    %48 = vector.broadcast %cst_31 : f32 to vector<8x128xf32>
    %49 = arith.mulf %47, %48 : vector<8x128xf32>
    %cst_32 = arith.constant 9.21034049 : f32
    %50 = vector.broadcast %cst_32 : f32 to vector<8x128xf32>
    %51 = arith.addf %49, %50 : vector<8x128xf32>
    %52 = math.exp %51 : vector<8x128xf32>
    %53 = math.tanh %42 : vector<8x128xf32>
    %cst_33 = arith.constant 1.000000e+00 : f32
    %54 = vector.broadcast %cst_33 : f32 to vector<8x128xf32>
    %55 = arith.addf %53, %54 : vector<8x128xf32>
    %cst_34 = arith.constant 9.750000e+01 : f32
    %56 = vector.broadcast %cst_34 : f32 to vector<8x128xf32>
    %57 = arith.mulf %56, %55 : vector<8x128xf32>
    %cst_35 = arith.constant 5.000000e+00 : f32
    %58 = vector.broadcast %cst_35 : f32 to vector<8x128xf32>
    %59 = arith.addf %58, %57 : vector<8x128xf32>
    %60 = tpu.iota {dimensions = array<i32: 1>} : vector<8x128xi32>
    %c4_i32 = arith.constant 4 : i32
    %61 = vector.broadcast %c4_i32 : i32 to vector<8x128xi32>
    %62 = arith.cmpi slt, %60, %61 : vector<8x128xi32>
    %63 = arith.select %62, %52, %59 : vector<8x128xi1>, vector<8x128xf32>
    %c0_36 = arith.constant 0 : index
    %c0_37 = arith.constant 0 : index
    %64 = vector.load %arg14[%c0_36, %c0_37] : memref<8x128xf32, #tpu.memory_space<vmem>>, vector<8x128xf32>
    tpu.vector_store %arg14[%c0_36, %c0_37], %63 {strides = array<i32>} : memref<8x128xf32, #tpu.memory_space<vmem>>, vector<8x128xf32>,
    return
  }
  func.func @transform_0(%arg0: i32) -> (i32, i32) {
    %c0_i32 = arith.constant 0 : i32
    %c0_i32_0 = arith.constant 0 : i32
    return %arg0, %c0_i32 : i32, i32
  }
  func.func @transform_1(%arg0: i32) -> (i32, i32) {
    %c0_i32 = arith.constant 0 : i32
    %c0_i32_0 = arith.constant 0 : i32
    %c0_i32_1 = arith.constant 0 : i32
    return %c0_i32, %c0_i32_0 : i32, i32
  }
  func.func @transform_2(%arg0: i32) -> (i32, i32) {
    %c0_i32 = arith.constant 0 : i32
    %c0_i32_0 = arith.constant 0 : i32
    %c0_i32_1 = arith.constant 0 : i32
    return %c0_i32, %c0_i32_0 : i32, i32
  }
  func.func @transform_3(%arg0: i32) -> (i32, i32) {
    %c0_i32 = arith.constant 0 : i32
    %c0_i32_0 = arith.constant 0 : i32
    %c0_i32_1 = arith.constant 0 : i32
    return %c0_i32, %c0_i32_0 : i32, i32
  }
  func.func @transform_4(%arg0: i32) -> (i32, i32) {
    %c0_i32 = arith.constant 0 : i32
    %c0_i32_0 = arith.constant 0 : i32
    %c0_i32_1 = arith.constant 0 : i32
    return %c0_i32, %c0_i32_0 : i32, i32
  }
  func.func @transform_5(%arg0: i32) -> (i32, i32) {
    %c0_i32 = arith.constant 0 : i32
    %c0_i32_0 = arith.constant 0 : i32
    %c0_i32_1 = arith.constant 0 : i32
    return %c0_i32, %c0_i32_0 : i32, i32
  }
  func.func @transform_6(%arg0: i32) -> (i32, i32) {
    %c0_i32 = arith.constant 0 : i32
    %c0_i32_0 = arith.constant 0 : i32
    %c0_i32_1 = arith.constant 0 : i32
    return %c0_i32, %c0_i32_0 : i32, i32
  }
  func.func @transform_7(%arg0: i32) -> (i32, i32) {
    %c0_i32 = arith.constant 0 : i32
    %c0_i32_0 = arith.constant 0 : i32
    %c0_i32_1 = arith.constant 0 : i32
    return %c0_i32, %c0_i32_0 : i32, i32
  }
  func.func @transform_8(%arg0: i32) -> (i32, i32) {
    %c0_i32 = arith.constant 0 : i32
    %c0_i32_0 = arith.constant 0 : i32
    %c0_i32_1 = arith.constant 0 : i32
    return %c0_i32, %c0_i32_0 : i32, i32
  }
  func.func @transform_9(%arg0: i32) -> (i32, i32) {
    %c0_i32 = arith.constant 0 : i32
    %c0_i32_0 = arith.constant 0 : i32
    %c0_i32_1 = arith.constant 0 : i32
    return %c0_i32, %c0_i32_0 : i32, i32
  }
  func.func @transform_10(%arg0: i32) -> (i32, i32) {
    %c0_i32 = arith.constant 0 : i32
    %c0_i32_0 = arith.constant 0 : i32
    %c0_i32_1 = arith.constant 0 : i32
    return %c0_i32, %c0_i32_0 : i32, i32
  }
  func.func @transform_11(%arg0: i32) -> (i32, i32) {
    %c0_i32 = arith.constant 0 : i32
    %c0_i32_0 = arith.constant 0 : i32
    %c0_i32_1 = arith.constant 0 : i32
    return %c0_i32, %c0_i32_0 : i32, i32
  }
  func.func @transform_12(%arg0: i32) -> (i32, i32) {
    %c0_i32 = arith.constant 0 : i32
    %c0_i32_0 = arith.constant 0 : i32
    %c0_i32_1 = arith.constant 0 : i32
    return %c0_i32, %c0_i32_0 : i32, i32
  }
  func.func @transform_13(%arg0: i32) -> (i32, i32) {
    %c0_i32 = arith.constant 0 : i32
    %c0_i32_0 = arith.constant 0 : i32
    return %arg0, %c0_i32 : i32, i32
  }
}

module attributes {stable_mosaic.version = 11 : i64} {
  func.func @kernel(%arg0: i32, %arg1: memref<8x256xf32, #tpu.memory_space<vmem>>, %arg2: memref<1x256xf32, #tpu.memory_space<vmem>>, %arg3: memref<1x256xf32, #tpu.memory_space<vmem>>, %arg4: memref<256x1024xbf16, #tpu.memory_space<vmem>>, %arg5: memref<1x1024xf32, #tpu.memory_space<vmem>>, %arg6: memref<1024x1024xbf16, #tpu.memory_space<vmem>>, %arg7: memref<1x1024xf32, #tpu.memory_space<vmem>>, %arg8: memref<1024x256xbf16, #tpu.memory_space<vmem>>, %arg9: memref<1x256xf32, #tpu.memory_space<vmem>>, %arg10: memref<256x256xbf16, #tpu.memory_space<vmem>>, %arg11: memref<1x256xf32, #tpu.memory_space<vmem>>, %arg12: memref<256x128xbf16, #tpu.memory_space<vmem>>, %arg13: memref<1x128xf32, #tpu.memory_space<vmem>>, %arg14: memref<8x128xf32, #tpu.memory_space<vmem>>) attributes {dimension_semantics = [#tpu.dimension_semantics<parallel>], iteration_bounds = array<i64: 1>, scalar_prefetch = 0 : i64, scratch_operands = 0 : i64, tpu.core_type = #tpu.core_type<tc>, window_params = [{transform_indices = @transform_0, window_bounds = array<i64: 8, 256>}, {pipeline_mode = #tpu.pipeline_mode<synchronous>, transform_indices = @transform_1, window_bounds = array<i64: 1, 256>}, {pipeline_mode = #tpu.pipeline_mode<synchronous>, transform_indices = @transform_2, window_bounds = array<i64: 1, 256>}, {pipeline_mode = #tpu.pipeline_mode<synchronous>, transform_indices = @transform_3, window_bounds = array<i64: 256, 1024>}, {pipeline_mode = #tpu.pipeline_mode<synchronous>, transform_indices = @transform_4, window_bounds = array<i64: 1, 1024>}, {pipeline_mode = #tpu.pipeline_mode<synchronous>, transform_indices = @transform_5, window_bounds = array<i64: 1024, 1024>}, {pipeline_mode = #tpu.pipeline_mode<synchronous>, transform_indices = @transform_6, window_bounds = array<i64: 1, 1024>}, {pipeline_mode = #tpu.pipeline_mode<synchronous>, transform_indices = @transform_7, window_bounds = array<i64: 1024, 256>}, {pipeline_mode = #tpu.pipeline_mode<synchronous>, transform_indices = @transform_8, window_bounds = array<i64: 1, 256>}, {pipeline_mode = #tpu.pipeline_mode<synchronous>, transform_indices = @transform_9, window_bounds = array<i64: 256, 256>}, {pipeline_mode = #tpu.pipeline_mode<synchronous>, transform_indices = @transform_10, window_bounds = array<i64: 1, 256>}, {pipeline_mode = #tpu.pipeline_mode<synchronous>, transform_indices = @transform_11, window_bounds = array<i64: 256, 128>}, {pipeline_mode = #tpu.pipeline_mode<synchronous>, transform_indices = @transform_12, window_bounds = array<i64: 1, 128>}, {transform_indices = @transform_13, window_bounds = array<i64: 8, 128>}]} {
    %c0 = arith.constant 0 : index
    %c0_0 = arith.constant 0 : index
    %0 = vector.load %arg1[%c0, %c0_0] : memref<8x256xf32, #tpu.memory_space<vmem>>, vector<8x256xf32>
    %c0_1 = arith.constant 0 : index
    %c0_2 = arith.constant 0 : index
    %1 = vector.load %arg2[%c0_1, %c0_2] : memref<1x256xf32, #tpu.memory_space<vmem>>, vector<1x256xf32>
    %2 = vector.broadcast %1 : vector<1x256xf32> to vector<8x256xf32>
    %3 = arith.subf %0, %2 : vector<8x256xf32>
    %c0_3 = arith.constant 0 : index
    %c0_4 = arith.constant 0 : index
    %4 = vector.load %arg3[%c0_3, %c0_4] : memref<1x256xf32, #tpu.memory_space<vmem>>, vector<1x256xf32>
    %5 = vector.broadcast %4 : vector<1x256xf32> to vector<8x256xf32>
    %6 = arith.mulf %3, %5 : vector<8x256xf32>
    %7 = arith.truncf %6 : vector<8x256xf32> to vector<8x256xbf16>
    %c0_5 = arith.constant 0 : index
    %c0_6 = arith.constant 0 : index
    %8 = vector.load %arg4[%c0_5, %c0_6] : memref<256x1024xbf16, #tpu.memory_space<vmem>>, vector<256x1024xbf16>
    %cst = arith.constant dense<0.000000e+00> : vector<8x1024xf32>
    %9 = tpu.matmul %7, %8, %cst {dimension_numbers = #tpu.dot_dimension_numbers<[1], [0], [0], [1], [0, 0, 1, 1], [], []>} : vector<8x256xbf16>, vector<256x1024xbf16>, vector<8x1024xf32> -> vector<8x1024xf32>
    %c0_7 = arith.constant 0 : index
    %c0_8 = arith.constant 0 : index
    %10 = vector.load %arg5[%c0_7, %c0_8] : memref<1x1024xf32, #tpu.memory_space<vmem>>, vector<1x1024xf32>
    %11 = vector.broadcast %10 : vector<1x1024xf32> to vector<8x1024xf32>
    %12 = arith.addf %9, %11 : vector<8x1024xf32>
    %13 = math.tanh %12 : vector<8x1024xf32>
    %14 = arith.truncf %13 : vector<8x1024xf32> to vector<8x1024xbf16>
    %c0_9 = arith.constant 0 : index
    %c0_10 = arith.constant 0 : index
    %15 = vector.load %arg6[%c0_9, %c0_10] : memref<1024x1024xbf16, #tpu.memory_space<vmem>>, vector<1024x1024xbf16>
    %cst_11 = arith.constant dense<0.000000e+00> : vector<8x1024xf32>
    %16 = tpu.matmul %14, %15, %cst_11 {dimension_numbers = #tpu.dot_dimension_numbers<[1], [0], [0], [1], [0, 0, 1, 1], [], []>} : vector<8x1024xbf16>, vector<1024x1024xbf16>, vector<8x1024xf32> -> vector<8x1024xf32>
    %c0_12 = arith.constant 0 : index
    %c0_13 = arith.constant 0 : index
    %17 = vector.load %arg7[%c0_12, %c0_13] : memref<1x1024xf32, #tpu.memory_space<vmem>>, vector<1x1024xf32>
    %18 = vector.broadcast %17 : vector<1x1024xf32> to vector<8x1024xf32>
    %19 = arith.addf %16, %18 : vector<8x1024xf32>
    %20 = math.tanh %19 : vector<8x1024xf32>
    %21 = arith.truncf %20 : vector<8x1024xf32> to vector<8x1024xbf16>
    %c0_14 = arith.constant 0 : index
    %c0_15 = arith.constant 0 : index
    %22 = vector.load %arg8[%c0_14, %c0_15] : memref<1024x256xbf16, #tpu.memory_space<vmem>>, vector<1024x256xbf16>
    %cst_16 = arith.constant dense<0.000000e+00> : vector<8x256xf32>
    %23 = tpu.matmul %21, %22, %cst_16 {dimension_numbers = #tpu.dot_dimension_numbers<[1], [0], [0], [1], [0, 0, 1, 1], [], []>} : vector<8x1024xbf16>, vector<1024x256xbf16>, vector<8x256xf32> -> vector<8x256xf32>
    %c0_17 = arith.constant 0 : index
    %c0_18 = arith.constant 0 : index
    %24 = vector.load %arg9[%c0_17, %c0_18] : memref<1x256xf32, #tpu.memory_space<vmem>>, vector<1x256xf32>
    %25 = vector.broadcast %24 : vector<1x256xf32> to vector<8x256xf32>
    %26 = arith.addf %23, %25 : vector<8x256xf32>
    %27 = arith.addf %26, %6 : vector<8x256xf32>
    %28 = math.tanh %27 : vector<8x256xf32>
    %29 = arith.truncf %28 : vector<8x256xf32> to vector<8x256xbf16>
    %c0_19 = arith.constant 0 : index
    %c0_20 = arith.constant 0 : index
    %30 = vector.load %arg10[%c0_19, %c0_20] : memref<256x256xbf16, #tpu.memory_space<vmem>>, vector<256x256xbf16>
    %cst_21 = arith.constant dense<0.000000e+00> : vector<8x256xf32>
    %31 = tpu.matmul %29, %30, %cst_21 {dimension_numbers = #tpu.dot_dimension_numbers<[1], [0], [0], [1], [0, 0, 1, 1], [], []>} : vector<8x256xbf16>, vector<256x256xbf16>, vector<8x256xf32> -> vector<8x256xf32>
    %c0_22 = arith.constant 0 : index
    %c0_23 = arith.constant 0 : index
    %32 = vector.load %arg11[%c0_22, %c0_23] : memref<1x256xf32, #tpu.memory_space<vmem>>, vector<1x256xf32>
    %33 = vector.broadcast %32 : vector<1x256xf32> to vector<8x256xf32>
    %34 = arith.addf %31, %33 : vector<8x256xf32>
    %cst_24 = arith.constant 0.000000e+00 : f32
    %35 = vector.broadcast %cst_24 : f32 to vector<8x256xf32>
    %36 = arith.maximumf %34, %35 : vector<8x256xf32>
    %37 = arith.truncf %36 : vector<8x256xf32> to vector<8x256xbf16>
    %c0_25 = arith.constant 0 : index
    %c0_26 = arith.constant 0 : index
    %38 = vector.load %arg12[%c0_25, %c0_26] : memref<256x128xbf16, #tpu.memory_space<vmem>>, vector<256x128xbf16>
    %cst_27 = arith.constant dense<0.000000e+00> : vector<8x128xf32>
    %39 = tpu.matmul %37, %38, %cst_27 {dimension_numbers = #tpu.dot_dimension_numbers<[1], [0], [0], [1], [0, 0, 1, 1], [], []>} : vector<8x256xbf16>, vector<256x128xbf16>, vector<8x128xf32> -> vector<8x128xf32>
    %c0_28 = arith.constant 0 : index
    %c0_29 = arith.constant 0 : index
    %40 = vector.load %arg13[%c0_28, %c0_29] : memref<1x128xf32, #tpu.memory_space<vmem>>, vector<1x128xf32>
    %41 = vector.broadcast %40 : vector<1x128xf32> to vector<8x128xf32>
    %42 = arith.addf %39, %41 : vector<8x128xf32>
    %43 = arith.negf %42 : vector<8x128xf32>
    %44 = math.exp %43 : vector<8x128xf32>
    %cst_30 = arith.constant 1.000000e+00 : f32
    %45 = vector.broadcast %cst_30 : f32 to vector<8x128xf32>
    %46 = arith.addf %45, %44 : vector<8x128xf32>
    %47 = arith.divf %45, %46 : vector<8x128xf32>
    %cst_31 = arith.constant 6.90775537 : f32
    %48 = vector.broadcast %cst_31 : f32 to vector<8x128xf32>
    %49 = arith.mulf %47, %48 : vector<8x128xf32>
    %cst_32 = arith.constant 9.21034049 : f32
    %50 = vector.broadcast %cst_32 : f32 to vector<8x128xf32>
    %51 = arith.addf %49, %50 : vector<8x128xf32>
    %52 = math.exp %51 : vector<8x128xf32>
    %53 = math.tanh %42 : vector<8x128xf32>
    %cst_33 = arith.constant 1.000000e+00 : f32
    %54 = vector.broadcast %cst_33 : f32 to vector<8x128xf32>
    %55 = arith.addf %53, %54 : vector<8x128xf32>
    %cst_34 = arith.constant 9.750000e+01 : f32
    %56 = vector.broadcast %cst_34 : f32 to vector<8x128xf32>
    %57 = arith.mulf %56, %55 : vector<8x128xf32>
    %cst_35 = arith.constant 5.000000e+00 : f32
    %58 = vector.broadcast %cst_35 : f32 to vector<8x128xf32>
    %59 = arith.addf %58, %57 : vector<8x128xf32>
    %60 = tpu.iota {dimensions = array<i32: 1>} : vector<8x128xi32>
    %c4_i32 = arith.constant 4 : i32
    %61 = vector.broadcast %c4_i32 : i32 to vector<8x128xi32>
    %62 = arith.cmpi slt, %60, %61 : vector<8x128xi32>
    %63 = arith.select %62, %52, %59 : vector<8x128xi1>, vector<8x128xf32>
    %c0_36 = arith.constant 0 : index
    %c0_37 = arith.constant 0 : index
    %64 = vector.load %arg14[%c0_36, %c0_37] : memref<8x128xf32, #tpu.memory_space<vmem>>, vector<8x128xf32>
    tpu.vector_store %arg14[%c0_36, %c0_37], %63 {strides = array<i32>} : memref<8x128xf32, #tpu.memory_space<vmem>>, vector<8x128xf32>,
    return
  }
  func.func @transform_0(%arg0: i32) -> (i32, i32) {
    %c0_i32 = arith.constant 0 : i32
    %c0_i32_0 = arith.constant 0 : i32
    return %arg0, %c0_i32 : i32, i32
  }
  func.func @transform_1(%arg0: i32) -> (i32, i32) {
    %c0_i32 = arith.constant 0 : i32
    %c0_i32_0 = arith.constant 0 : i32
    %c0_i32_1 = arith.constant 0 : i32
    return %c0_i32, %c0_i32_0 : i32, i32
  }
  func.func @transform_2(%arg0: i32) -> (i32, i32) {
    %c0_i32 = arith.constant 0 : i32
    %c0_i32_0 = arith.constant 0 : i32
    %c0_i32_1 = arith.constant 0 : i32
    return %c0_i32, %c0_i32_0 : i32, i32
  }
  func.func @transform_3(%arg0: i32) -> (i32, i32) {
    %c0_i32 = arith.constant 0 : i32
    %c0_i32_0 = arith.constant 0 : i32
    %c0_i32_1 = arith.constant 0 : i32
    return %c0_i32, %c0_i32_0 : i32, i32
  }
  func.func @transform_4(%arg0: i32) -> (i32, i32) {
    %c0_i32 = arith.constant 0 : i32
    %c0_i32_0 = arith.constant 0 : i32
    %c0_i32_1 = arith.constant 0 : i32
    return %c0_i32, %c0_i32_0 : i32, i32
  }
  func.func @transform_5(%arg0: i32) -> (i32, i32) {
    %c0_i32 = arith.constant 0 : i32
    %c0_i32_0 = arith.constant 0 : i32
    %c0_i32_1 = arith.constant 0 : i32
    return %c0_i32, %c0_i32_0 : i32, i32
  }
  func.func @transform_6(%arg0: i32) -> (i32, i32) {
    %c0_i32 = arith.constant 0 : i32
    %c0_i32_0 = arith.constant 0 : i32
    %c0_i32_1 = arith.constant 0 : i32
    return %c0_i32, %c0_i32_0 : i32, i32
  }
  func.func @transform_7(%arg0: i32) -> (i32, i32) {
    %c0_i32 = arith.constant 0 : i32
    %c0_i32_0 = arith.constant 0 : i32
    %c0_i32_1 = arith.constant 0 : i32
    return %c0_i32, %c0_i32_0 : i32, i32
  }
  func.func @transform_8(%arg0: i32) -> (i32, i32) {
    %c0_i32 = arith.constant 0 : i32
    %c0_i32_0 = arith.constant 0 : i32
    %c0_i32_1 = arith.constant 0 : i32
    return %c0_i32, %c0_i32_0 : i32, i32
  }
  func.func @transform_9(%arg0: i32) -> (i32, i32) {
    %c0_i32 = arith.constant 0 : i32
    %c0_i32_0 = arith.constant 0 : i32
    %c0_i32_1 = arith.constant 0 : i32
    return %c0_i32, %c0_i32_0 : i32, i32
  }
  func.func @transform_10(%arg0: i32) -> (i32, i32) {
    %c0_i32 = arith.constant 0 : i32
    %c0_i32_0 = arith.constant 0 : i32
    %c0_i32_1 = arith.constant 0 : i32
    return %c0_i32, %c0_i32_0 : i32, i32
  }
  func.func @transform_11(%arg0: i32) -> (i32, i32) {
    %c0_i32 = arith.constant 0 : i32
    %c0_i32_0 = arith.constant 0 : i32
    %c0_i32_1 = arith.constant 0 : i32
    return %c0_i32, %c0_i32_0 : i32, i32
  }
  func.func @transform_12(%arg0: i32) -> (i32, i32) {
    %c0_i32 = arith.constant 0 : i32
    %c0_i32_0 = arith.constant 0 : i32
    %c0_i32_1 = arith.constant 0 : i32
    return %c0_i32, %c0_i32_0 : i32, i32
  }
  func.func @transform_13(%arg0: i32) -> (i32, i32) {
    %c0_i32 = arith.constant 0 : i32
    %c0_i32_0 = arith.constant 0 : i32
    return %arg0, %c0_i32 : i32, i32
  }
}

</mosaic_0001>

<llo_original>
// kernel: tpu_custom_call.1
$region0: #{tpu_custom_call.1}
  #allocation0 [shape = 'u32[]', space=smem, size = 0x4, offset = 0x4, fixed_abs, tag = 'smem constant byte address 0x4 - core index']
  #allocation1 [shape = 'u32[144,128]{1,0:T(1,128)}', space=vmem, size = 0x12000, scoped, tag = 'internal scratch']
  %s0 = inlined_call_operand.hbm [shape: f32[8,256], index: 0, kind: input, shape index: {}]
  %s1 = inlined_call_operand.hbm [shape: f32[1,256], index: 1, kind: input, shape index: {}]
  %s2 = inlined_call_operand.hbm [shape: f32[1,256], index: 2, kind: input, shape index: {}]
  %s3 = inlined_call_operand.hbm [shape: bf16[256,1024], index: 3, kind: input, shape index: {}]
  %s4 = inlined_call_operand.hbm [shape: f32[1,1024], index: 4, kind: input, shape index: {}]
  %s5 = inlined_call_operand.hbm [shape: bf16[1024,1024], index: 5, kind: input, shape index: {}]
  %s6 = inlined_call_operand.hbm [shape: f32[1,1024], index: 6, kind: input, shape index: {}]
  %s7 = inlined_call_operand.hbm [shape: bf16[1024,256], index: 7, kind: input, shape index: {}]
  %s8 = inlined_call_operand.hbm [shape: f32[1,256], index: 8, kind: input, shape index: {}]
  %s9 = inlined_call_operand.hbm [shape: bf16[256,256], index: 9, kind: input, shape index: {}]
  %s10 = inlined_call_operand.hbm [shape: f32[1,256], index: 10, kind: input, shape index: {}]
  %s11 = inlined_call_operand.hbm [shape: bf16[256,128], index: 11, kind: input, shape index: {}]
  %s12 = inlined_call_operand.hbm [shape: f32[1,128], index: 12, kind: input, shape index: {}]
  %s13 = inlined_call_operand.hbm [shape: f32[8,128], index: 13, kind: output, shape index: {}]
  %s14 = sld [smem:[#allocation0]]
  $region114: #{tpu_custom_call.1} parent=0
    _
  %s16 = ssub.s32 1, %s14
  %s17 = scalar_select 0, %s16, %s14
  $region1: #{tpu_custom_call.1} parent=0
    #allocation2 [shape = 'u8[8192]{0}', space=vmem, size = 0x2000, scoped, tag = 'input window, operand 0, single buffered']
    #allocation3 [shape = 's32[1]{0}', space=sflag, size = 0x4, scoped, tag = 'scoped memory for tpu_custom_call.1']
    #allocation4 [shape = 's32[1]{0}', space=sflag, size = 0x4, scoped, tag = 'scoped memory for tpu_custom_call.1']
    #allocation5 [shape = 'u8[1024]{0}', space=vmem, size = 0x400, scoped, tag = 'input window, operand 1, single buffered']
    #allocation6 [shape = 's32[1]{0}', space=sflag, size = 0x4, scoped, tag = 'scoped memory for tpu_custom_call.1']
    #allocation7 [shape = 'u8[1024]{0}', space=vmem, size = 0x400, scoped, tag = 'input window, operand 2, single buffered']
    #allocation8 [shape = 'u8[524288]{0}', space=vmem, size = 0x80000, scoped, tag = 'input window, operand 3, single buffered']
    #allocation9 [shape = 's32[1]{0}', space=sflag, size = 0x4, scoped, tag = 'scoped memory for tpu_custom_call.1']
    #allocation10 [shape = 'u8[4096]{0}', space=vmem, size = 0x1000, scoped, tag = 'input window, operand 4, single buffered']
    #allocation11 [shape = 'u8[2097152]{0}', space=vmem, size = 0x200000, scoped, tag = 'input window, operand 5, single buffered']
    #allocation12 [shape = 's32[1]{0}', space=sflag, size = 0x4, scoped, tag = 'scoped memory for tpu_custom_call.1']
    #allocation13 [shape = 'u8[4096]{0}', space=vmem, size = 0x1000, scoped, tag = 'input window, operand 6, single buffered']
    #allocation14 [shape = 'u8[524288]{0}', space=vmem, size = 0x80000, scoped, tag = 'input window, operand 7, single buffered']
    #allocation15 [shape = 's32[1]{0}', space=sflag, size = 0x4, scoped, tag = 'scoped memory for tpu_custom_call.1']
    #allocation16 [shape = 'u8[1024]{0}', space=vmem, size = 0x400, scoped, tag = 'input window, operand 8, single buffered']
    #allocation17 [shape = 'u8[131072]{0}', space=vmem, size = 0x20000, scoped, tag = 'input window, operand 9, single buffered']
    #allocation18 [shape = 's32[1]{0}', space=sflag, size = 0x4, scoped, tag = 'scoped memory for tpu_custom_call.1']
    #allocation19 [shape = 'u8[1024]{0}', space=vmem, size = 0x400, scoped, tag = 'input window, operand 10, single buffered']
    #allocation20 [shape = 'u8[65536]{0}', space=vmem, size = 0x10000, scoped, tag = 'input window, operand 11, single buffered']
    #allocation21 [shape = 's32[1]{0}', space=sflag, size = 0x4, scoped, tag = 'scoped memory for tpu_custom_call.1']
    #allocation22 [shape = 'u8[512]{0}', space=vmem, size = 0x400, scoped, tag = 'input window, operand 12, single buffered']
    #allocation23 [shape = 'u8[4096]{0}', space=vmem, size = 0x1000, scoped, tag = 'output window, operand 0, single buffered']
    %18 = vsyncpa [#allocation3], 0
    %19 = vsyncpa [#allocation6], 0
    %20 = vsyncpa [#allocation9], 0
    %21 = vsyncpa [#allocation12], 0
    %22 = vsyncpa [#allocation15], 0
    %23 = vsyncpa [#allocation18], 0
    %24 = vsyncpa [#allocation21], 0
    %25 = vsyncpa [#allocation4], 0
    // Predicated region
    $region2: #{tpu_custom_call.1} parent=1 // pred_check
      _
    $region3: #{tpu_custom_call.1} parent=1 // pred_check_branch
      %27 = sbr.rel (0) target = $region5
    $region4: #{tpu_custom_call.1} parent=1 // pred_region
      %s29 = ssub.s32 256, 256
      %30 = vsyncadd [#allocation3], %s29
      %s32 = sshll.u32 [#allocation2], 4
      %s33 = int_to_ptr.vmem [resolvable:$true] %s32
      %35 = dma.hbm_to_vmem [thread:$0]  %s0, 256, %s33, [#allocation3]
    $region5: #{tpu_custom_call.1} parent=1 // pred_fallthru
      _
    // Predicated region
    $region6: #{tpu_custom_call.1} parent=1 // pred_check
      _
    $region7: #{tpu_custom_call.1} parent=1 // pred_check_branch
      %37 = sbr.rel (0) target = $region9
    $region8: #{tpu_custom_call.1} parent=1 // pred_region
      %s39 = ssub.s32 32, 32
      %40 = vsyncadd [#allocation6], %s39
      %s42 = sshll.u32 [#allocation5], 4
      %s43 = int_to_ptr.vmem [resolvable:$true] %s42
      %45 = dma.hbm_to_vmem [thread:$0]  %s1, 32, %s43, [#allocation6]
    $region9: #{tpu_custom_call.1} parent=1 // pred_fallthru
      _
    // Predicated region
    $region10: #{tpu_custom_call.1} parent=1 // pred_check
      _
    $region11: #{tpu_custom_call.1} parent=1 // pred_check_branch
      %47 = sbr.rel (0) target = $region13
    $region12: #{tpu_custom_call.1} parent=1 // pred_region
      %s49 = ssub.s32 32, 32
      %50 = vsyncadd [#allocation6], %s49
      %s52 = sshll.u32 [#allocation7], 4
      %s53 = int_to_ptr.vmem [resolvable:$true] %s52
      %55 = dma.hbm_to_vmem [thread:$0]  %s2, 32, %s53, [#allocation6]
    $region13: #{tpu_custom_call.1} parent=1 // pred_fallthru
      _
    // Predicated region
    $region14: #{tpu_custom_call.1} parent=1 // pred_check
      _
    $region15: #{tpu_custom_call.1} parent=1 // pred_check_branch
      %57 = sbr.rel (0) target = $region17
    $region16: #{tpu_custom_call.1} parent=1 // pred_region
      %s59 = ssub.s32 16384, 16384
      %60 = vsyncadd [#allocation9], %s59
      %s61 = sshll.u32 [#allocation8], 4
      %s62 = int_to_ptr.vmem [resolvable:$true] %s61
      %67 = dma.hbm_to_vmem [thread:$0]  %s3, 16384, %s62, [#allocation9], 512, 512, 32
    $region17: #{tpu_custom_call.1} parent=1 // pred_fallthru
      _
    // Predicated region
    $region18: #{tpu_custom_call.1} parent=1 // pred_check
      _
    $region19: #{tpu_custom_call.1} parent=1 // pred_check_branch
      %69 = sbr.rel (0) target = $region21
    $region20: #{tpu_custom_call.1} parent=1 // pred_region
      %s71 = ssub.s32 128, 128
      %72 = vsyncadd [#allocation9], %s71
      %s74 = sshll.u32 [#allocation10], 4
      %s75 = int_to_ptr.vmem [resolvable:$true] %s74
      %77 = dma.hbm_to_vmem [thread:$0]  %s4, 128, %s75, [#allocation9]
    $region21: #{tpu_custom_call.1} parent=1 // pred_fallthru
      _
    // Predicated region
    $region22: #{tpu_custom_call.1} parent=1 // pred_check
      _
    $region23: #{tpu_custom_call.1} parent=1 // pred_check_branch
      %79 = sbr.rel (0) target = $region25
    $region24: #{tpu_custom_call.1} parent=1 // pred_region
      %s81 = ssub.s32 65536, 65536
      %82 = vsyncadd [#allocation12], %s81
      %s83 = sshll.u32 [#allocation11], 4
      %s84 = int_to_ptr.vmem [resolvable:$true] %s83
      %89 = dma.hbm_to_vmem [thread:$0]  %s5, 65536, %s84, [#allocation12], 512, 512, 32
    $region25: #{tpu_custom_call.1} parent=1 // pred_fallthru
      _
    // Predicated region
    $region26: #{tpu_custom_call.1} parent=1 // pred_check
      _
    $region27: #{tpu_custom_call.1} parent=1 // pred_check_branch
      %91 = sbr.rel (0) target = $region29
    $region28: #{tpu_custom_call.1} parent=1 // pred_region
      %s93 = ssub.s32 128, 128
      %94 = vsyncadd [#allocation12], %s93
      %s96 = sshll.u32 [#allocation13], 4
      %s97 = int_to_ptr.vmem [resolvable:$true] %s96
      %99 = dma.hbm_to_vmem [thread:$0]  %s6, 128, %s97, [#allocation12]
    $region29: #{tpu_custom_call.1} parent=1 // pred_fallthru
      _
    // Predicated region
    $region30: #{tpu_custom_call.1} parent=1 // pred_check
      _
    $region31: #{tpu_custom_call.1} parent=1 // pred_check_branch
      %101 = sbr.rel (0) target = $region33
    $region32: #{tpu_custom_call.1} parent=1 // pred_region
      %s103 = ssub.s32 16384, 16384
      %104 = vsyncadd [#allocation15], %s103
      %s105 = sshll.u32 [#allocation14], 4
      %s106 = int_to_ptr.vmem [resolvable:$true] %s105
      %111 = dma.hbm_to_vmem [thread:$0]  %s7, 16384, %s106, [#allocation15], 128, 128, 8
    $region33: #{tpu_custom_call.1} parent=1 // pred_fallthru
      _
    // Predicated region
    $region34: #{tpu_custom_call.1} parent=1 // pred_check
      _
    $region35: #{tpu_custom_call.1} parent=1 // pred_check_branch
      %113 = sbr.rel (0) target = $region37
    $region36: #{tpu_custom_call.1} parent=1 // pred_region
      %s115 = ssub.s32 32, 32
      %116 = vsyncadd [#allocation15], %s115
      %s118 = sshll.u32 [#allocation16], 4
      %s119 = int_to_ptr.vmem [resolvable:$true] %s118
      %121 = dma.hbm_to_vmem [thread:$0]  %s8, 32, %s119, [#allocation15]
    $region37: #{tpu_custom_call.1} parent=1 // pred_fallthru
      _
    // Predicated region
    $region38: #{tpu_custom_call.1} parent=1 // pred_check
      _
    $region39: #{tpu_custom_call.1} parent=1 // pred_check_branch
      %123 = sbr.rel (0) target = $region41
    $region40: #{tpu_custom_call.1} parent=1 // pred_region
      %s125 = ssub.s32 4096, 4096
      %126 = vsyncadd [#allocation18], %s125
      %s127 = sshll.u32 [#allocation17], 4
      %s128 = int_to_ptr.vmem [resolvable:$true] %s127
      %133 = dma.hbm_to_vmem [thread:$0]  %s9, 4096, %s128, [#allocation18], 128, 128, 8
    $region41: #{tpu_custom_call.1} parent=1 // pred_fallthru
      _
    // Predicated region
    $region42: #{tpu_custom_call.1} parent=1 // pred_check
      _
    $region43: #{tpu_custom_call.1} parent=1 // pred_check_branch
      %135 = sbr.rel (0) target = $region45
    $region44: #{tpu_custom_call.1} parent=1 // pred_region
      %s137 = ssub.s32 32, 32
      %138 = vsyncadd [#allocation18], %s137
      %s140 = sshll.u32 [#allocation19], 4
      %s141 = int_to_ptr.vmem [resolvable:$true] %s140
      %143 = dma.hbm_to_vmem [thread:$0]  %s10, 32, %s141, [#allocation18]
    $region45: #{tpu_custom_call.1} parent=1 // pred_fallthru
      _
    // Predicated region
    $region46: #{tpu_custom_call.1} parent=1 // pred_check
      _
    $region47: #{tpu_custom_call.1} parent=1 // pred_check_branch
      %145 = sbr.rel (0) target = $region49
    $region48: #{tpu_custom_call.1} parent=1 // pred_region
      %s147 = ssub.s32 2048, 2048
      %148 = vsyncadd [#allocation21], %s147
      %s149 = sshll.u32 [#allocation20], 4
      %s150 = int_to_ptr.vmem [resolvable:$true] %s149
      %155 = dma.hbm_to_vmem [thread:$0]  %s11, 2048, %s150, [#allocation21], 64, 64, 4
    $region49: #{tpu_custom_call.1} parent=1 // pred_fallthru
      _
    // Predicated region
    $region50: #{tpu_custom_call.1} parent=1 // pred_check
      _
    $region51: #{tpu_custom_call.1} parent=1 // pred_check_branch
      %157 = sbr.rel (0) target = $region53
    $region52: #{tpu_custom_call.1} parent=1 // pred_region
      %s159 = ssub.s32 16, 16
      %160 = vsyncadd [#allocation21], %s159
      %s162 = sshll.u32 [#allocation22], 4
      %s163 = int_to_ptr.vmem [resolvable:$true] %s162
      %165 = dma.hbm_to_vmem [thread:$0]  %s12, 16, %s163, [#allocation21]
    $region53: #{tpu_custom_call.1} parent=1 // pred_fallthru
      _
    // Predicated region
    $region54: #{tpu_custom_call.1} parent=1 // pred_check
      _
    $region55: #{tpu_custom_call.1} parent=1 // pred_check_branch
      %167 = sbr.rel (0) target = $region57
    $region56: #{tpu_custom_call.1} parent=1 // pred_region
      %168 = dma.done [#allocation3], 256
    $region57: #{tpu_custom_call.1} parent=1 // pred_fallthru
      _
    // Predicated region
    $region58: #{tpu_custom_call.1} parent=1 // pred_check
      _
    $region59: #{tpu_custom_call.1} parent=1 // pred_check_branch
      %170 = sbr.rel (0) target = $region61
    $region60: #{tpu_custom_call.1} parent=1 // pred_region
      %171 = dma.done [#allocation6], 32
    $region61: #{tpu_custom_call.1} parent=1 // pred_fallthru
      _
    // Predicated region
    $region62: #{tpu_custom_call.1} parent=1 // pred_check
      _
    $region63: #{tpu_custom_call.1} parent=1 // pred_check_branch
      %173 = sbr.rel (0) target = $region65
    $region64: #{tpu_custom_call.1} parent=1 // pred_region
      %174 = dma.done [#allocation6], 32
    $region65: #{tpu_custom_call.1} parent=1 // pred_fallthru
      _
    // Predicated region
    $region66: #{tpu_custom_call.1} parent=1 // pred_check
      _
    $region67: #{tpu_custom_call.1} parent=1 // pred_check_branch
      %176 = sbr.rel (0) target = $region69
    $region68: #{tpu_custom_call.1} parent=1 // pred_region
      %177 = dma.done [#allocation9], 16384
    $region69: #{tpu_custom_call.1} parent=1 // pred_fallthru
      _
    // Predicated region
    $region70: #{tpu_custom_call.1} parent=1 // pred_check
      _
    $region71: #{tpu_custom_call.1} parent=1 // pred_check_branch
      %179 = sbr.rel (0) target = $region73
    $region72: #{tpu_custom_call.1} parent=1 // pred_region
      %180 = dma.done [#allocation9], 128
    $region73: #{tpu_custom_call.1} parent=1 // pred_fallthru
      _
    // Predicated region
    $region74: #{tpu_custom_call.1} parent=1 // pred_check
      _
    $region75: #{tpu_custom_call.1} parent=1 // pred_check_branch
      %182 = sbr.rel (0) target = $region77
    $region76: #{tpu_custom_call.1} parent=1 // pred_region
      %183 = dma.done [#allocation12], 65536
    $region77: #{tpu_custom_call.1} parent=1 // pred_fallthru
      _
    // Predicated region
    $region78: #{tpu_custom_call.1} parent=1 // pred_check
      _
    $region79: #{tpu_custom_call.1} parent=1 // pred_check_branch
      %185 = sbr.rel (0) target = $region81
    $region80: #{tpu_custom_call.1} parent=1 // pred_region
      %186 = dma.done [#allocation12], 128
    $region81: #{tpu_custom_call.1} parent=1 // pred_fallthru
      _
    // Predicated region
    $region82: #{tpu_custom_call.1} parent=1 // pred_check
      _
    $region83: #{tpu_custom_call.1} parent=1 // pred_check_branch
      %188 = sbr.rel (0) target = $region85
    $region84: #{tpu_custom_call.1} parent=1 // pred_region
      %189 = dma.done [#allocation15], 16384
    $region85: #{tpu_custom_call.1} parent=1 // pred_fallthru
      _
    // Predicated region
    $region86: #{tpu_custom_call.1} parent=1 // pred_check
      _
    $region87: #{tpu_custom_call.1} parent=1 // pred_check_branch
      %191 = sbr.rel (0) target = $region89
    $region88: #{tpu_custom_call.1} parent=1 // pred_region
      %192 = dma.done [#allocation15], 32
    $region89: #{tpu_custom_call.1} parent=1 // pred_fallthru
      _
    // Predicated region
    $region90: #{tpu_custom_call.1} parent=1 // pred_check
      _
    $region91: #{tpu_custom_call.1} parent=1 // pred_check_branch
      %194 = sbr.rel (0) target = $region93
    $region92: #{tpu_custom_call.1} parent=1 // pred_region
      %195 = dma.done [#allocation18], 4096
    $region93: #{tpu_custom_call.1} parent=1 // pred_fallthru
      _
    // Predicated region
    $region94: #{tpu_custom_call.1} parent=1 // pred_check
      _
    $region95: #{tpu_custom_call.1} parent=1 // pred_check_branch
      %197 = sbr.rel (0) target = $region97
    $region96: #{tpu_custom_call.1} parent=1 // pred_region
      %198 = dma.done [#allocation18], 32
    $region97: #{tpu_custom_call.1} parent=1 // pred_fallthru
      _
    // Predicated region
    $region98: #{tpu_custom_call.1} parent=1 // pred_check
      _
    $region99: #{tpu_custom_call.1} parent=1 // pred_check_branch
      %200 = sbr.rel (0) target = $region101
    $region100: #{tpu_custom_call.1} parent=1 // pred_region
      %201 = dma.done [#allocation21], 2048
    $region101: #{tpu_custom_call.1} parent=1 // pred_fallthru
      _
    // Predicated region
    $region102: #{tpu_custom_call.1} parent=1 // pred_check
      _
    $region103: #{tpu_custom_call.1} parent=1 // pred_check_branch
      %203 = sbr.rel (0) target = $region105
    $region104: #{tpu_custom_call.1} parent=1 // pred_region
      %204 = dma.done [#allocation21], 16
    $region105: #{tpu_custom_call.1} parent=1 // pred_fallthru
      _
    %v206 = vld [vmem:[#allocation2] sm:$0xff]
    %v207 = vld [vmem:[#allocation2 + $0x8] sm:$0xff]
    %v208 = vld [vmem:[#allocation5] sm:$0x3]
    %v210 = vlaneseq
    %v211 = vshrl.u32 %v210, 7
    %v212 = vsub.s32 0, %v211
    %v213 = vrot.slane %v208, %v212
    %v214 = vlaneseq
    %v215 = vshrl.u32 %v214, 7
    %v216 = vsub.s32 1, %v215
    %v217 = vrot.slane %v208, %v216
    %v220 = vsub.f32 %v206, %v213
    %v221 = vsub.f32 %v207, %v217
    %v222 = vld [vmem:[#allocation7] sm:$0x3]
    %v224 = vlaneseq
    %v225 = vshrl.u32 %v224, 7
    %v226 = vsub.s32 0, %v225
    %v227 = vrot.slane %v222, %v226
    %v228 = vlaneseq
    %v229 = vshrl.u32 %v228, 7
    %v230 = vsub.s32 1, %v229
    %v231 = vrot.slane %v222, %v230
    %v234 = vmul.f32 %v220, %v227
    %v235 = vmul.f32 %v221, %v231
    %v236 = vpack.c.bf16 %v234, %v234
    %v237 = vpack.c.bf16 %v235, %v235
    %v238 = vld [vmem:[#allocation8] sm:$0xff]
    %v239 = vld [vmem:[#allocation8 + $0x8] sm:$0xff]
    %v240 = vld [vmem:[#allocation8 + $0x10] sm:$0xff]
    %v241 = vld [vmem:[#allocation8 + $0x18] sm:$0xff]
    %v242 = vld [vmem:[#allocation8 + $0x20] sm:$0xff]
    %v243 = vld [vmem:[#allocation8 + $0x28] sm:$0xff]
    %v244 = vld [vmem:[#allocation8 + $0x30] sm:$0xff]
    %v245 = vld [vmem:[#allocation8 + $0x38] sm:$0xff]
    %v246 = vld [vmem:[#allocation8 + $0x40] sm:$0xff]
    %v247 = vld [vmem:[#allocation8 + $0x48] sm:$0xff]
    %v248 = vld [vmem:[#allocation8 + $0x50] sm:$0xff]
    %v249 = vld [vmem:[#allocation8 + $0x58] sm:$0xff]
    %v250 = vld [vmem:[#allocation8 + $0x60] sm:$0xff]
    %v251 = vld [vmem:[#allocation8 + $0x68] sm:$0xff]
    %v252 = vld [vmem:[#allocation8 + $0x70] sm:$0xff]
    %v253 = vld [vmem:[#allocation8 + $0x78] sm:$0xff]
    %v254 = vld [vmem:[#allocation8 + $0x80] sm:$0xff]
    %v255 = vld [vmem:[#allocation8 + $0x88] sm:$0xff]
    %v256 = vld [vmem:[#allocation8 + $0x90] sm:$0xff]
    %v257 = vld [vmem:[#allocation8 + $0x98] sm:$0xff]
    %v258 = vld [vmem:[#allocation8 + $0xa0] sm:$0xff]
    %v259 = vld [vmem:[#allocation8 + $0xa8] sm:$0xff]
    %v260 = vld [vmem:[#allocation8 + $0xb0] sm:$0xff]
    %v261 = vld [vmem:[#allocation8 + $0xb8] sm:$0xff]
    %v262 = vld [vmem:[#allocation8 + $0xc0] sm:$0xff]
    %v263 = vld [vmem:[#allocation8 + $0xc8] sm:$0xff]
    %v264 = vld [vmem:[#allocation8 + $0xd0] sm:$0xff]
    %v265 = vld [vmem:[#allocation8 + $0xd8] sm:$0xff]
    %v266 = vld [vmem:[#allocation8 + $0xe0] sm:$0xff]
    %v267 = vld [vmem:[#allocation8 + $0xe8] sm:$0xff]
    %v268 = vld [vmem:[#allocation8 + $0xf0] sm:$0xff]
    %v269 = vld [vmem:[#allocation8 + $0xf8] sm:$0xff]
    %v270 = vld [vmem:[#allocation8 + $0x100] sm:$0xff]
    %v271 = vld [vmem:[#allocation8 + $0x108] sm:$0xff]
    %v272 = vld [vmem:[#allocation8 + $0x110] sm:$0xff]
    %v273 = vld [vmem:[#allocation8 + $0x118] sm:$0xff]
    %v274 = vld [vmem:[#allocation8 + $0x120] sm:$0xff]
    %v275 = vld [vmem:[#allocation8 + $0x128] sm:$0xff]
    %v276 = vld [vmem:[#allocation8 + $0x130] sm:$0xff]
    %v277 = vld [vmem:[#allocation8 + $0x138] sm:$0xff]
    %v278 = vld [vmem:[#allocation8 + $0x140] sm:$0xff]
    %v279 = vld [vmem:[#allocation8 + $0x148] sm:$0xff]
    %v280 = vld [vmem:[#allocation8 + $0x150] sm:$0xff]
    %v281 = vld [vmem:[#allocation8 + $0x158] sm:$0xff]
    %v282 = vld [vmem:[#allocation8 + $0x160] sm:$0xff]
    %v283 = vld [vmem:[#allocation8 + $0x168] sm:$0xff]
    %v284 = vld [vmem:[#allocation8 + $0x170] sm:$0xff]
    %v285 = vld [vmem:[#allocation8 + $0x178] sm:$0xff]
    %v286 = vld [vmem:[#allocation8 + $0x180] sm:$0xff]
    %v287 = vld [vmem:[#allocation8 + $0x188] sm:$0xff]
    %v288 = vld [vmem:[#allocation8 + $0x190] sm:$0xff]
    %v289 = vld [vmem:[#allocation8 + $0x198] sm:$0xff]
    %v290 = vld [vmem:[#allocation8 + $0x1a0] sm:$0xff]
    %v291 = vld [vmem:[#allocation8 + $0x1a8] sm:$0xff]
    %v292 = vld [vmem:[#allocation8 + $0x1b0] sm:$0xff]
    %v293 = vld [vmem:[#allocation8 + $0x1b8] sm:$0xff]
    %v294 = vld [vmem:[#allocation8 + $0x1c0] sm:$0xff]
    %v295 = vld [vmem:[#allocation8 + $0x1c8] sm:$0xff]
    %v296 = vld [vmem:[#allocation8 + $0x1d0] sm:$0xff]
    %v297 = vld [vmem:[#allocation8 + $0x1d8] sm:$0xff]
    %v298 = vld [vmem:[#allocation8 + $0x1e0] sm:$0xff]
    %v299 = vld [vmem:[#allocation8 + $0x1e8] sm:$0xff]
    %v300 = vld [vmem:[#allocation8 + $0x1f0] sm:$0xff]
    %v301 = vld [vmem:[#allocation8 + $0x1f8] sm:$0xff]
    %v302 = vld [vmem:[#allocation8 + $0x200] sm:$0xff]
    %v303 = vld [vmem:[#allocation8 + $0x208] sm:$0xff]
    %v304 = vld [vmem:[#allocation8 + $0x210] sm:$0xff]
    %v305 = vld [vmem:[#allocation8 + $0x218] sm:$0xff]
    %v306 = vld [vmem:[#allocation8 + $0x220] sm:$0xff]
    %v307 = vld [vmem:[#allocation8 + $0x228] sm:$0xff]
    %v308 = vld [vmem:[#allocation8 + $0x230] sm:$0xff]
    %v309 = vld [vmem:[#allocation8 + $0x238] sm:$0xff]
    %v310 = vld [vmem:[#allocation8 + $0x240] sm:$0xff]
    %v311 = vld [vmem:[#allocation8 + $0x248] sm:$0xff]
    %v312 = vld [vmem:[#allocation8 + $0x250] sm:$0xff]
    %v313 = vld [vmem:[#allocation8 + $0x258] sm:$0xff]
    %v314 = vld [vmem:[#allocation8 + $0x260] sm:$0xff]
    %v315 = vld [vmem:[#allocation8 + $0x268] sm:$0xff]
    %v316 = vld [vmem:[#allocation8 + $0x270] sm:$0xff]
    %v317 = vld [vmem:[#allocation8 + $0x278] sm:$0xff]
    %v318 = vld [vmem:[#allocation8 + $0x280] sm:$0xff]
    %v319 = vld [vmem:[#allocation8 + $0x288] sm:$0xff]
    %v320 = vld [vmem:[#allocation8 + $0x290] sm:$0xff]
    %v321 = vld [vmem:[#allocation8 + $0x298] sm:$0xff]
    %v322 = vld [vmem:[#allocation8 + $0x2a0] sm:$0xff]
    %v323 = vld [vmem:[#allocation8 + $0x2a8] sm:$0xff]
    %v324 = vld [vmem:[#allocation8 + $0x2b0] sm:$0xff]
    %v325 = vld [vmem:[#allocation8 + $0x2b8] sm:$0xff]
    %v326 = vld [vmem:[#allocation8 + $0x2c0] sm:$0xff]
    %v327 = vld [vmem:[#allocation8 + $0x2c8] sm:$0xff]
    %v328 = vld [vmem:[#allocation8 + $0x2d0] sm:$0xff]
    %v329 = vld [vmem:[#allocation8 + $0x2d8] sm:$0xff]
    %v330 = vld [vmem:[#allocation8 + $0x2e0] sm:$0xff]
    %v331 = vld [vmem:[#allocation8 + $0x2e8] sm:$0xff]
    %v332 = vld [vmem:[#allocation8 + $0x2f0] sm:$0xff]
    %v333 = vld [vmem:[#allocation8 + $0x2f8] sm:$0xff]
    %v334 = vld [vmem:[#allocation8 + $0x300] sm:$0xff]
    %v335 = vld [vmem:[#allocation8 + $0x308] sm:$0xff]
    %v336 = vld [vmem:[#allocation8 + $0x310] sm:$0xff]
    %v337 = vld [vmem:[#allocation8 + $0x318] sm:$0xff]
    %v338 = vld [vmem:[#allocation8 + $0x320] sm:$0xff]
    %v339 = vld [vmem:[#allocation8 + $0x328] sm:$0xff]
    %v340 = vld [vmem:[#allocation8 + $0x330] sm:$0xff]
    %v341 = vld [vmem:[#allocation8 + $0x338] sm:$0xff]
    %v342 = vld [vmem:[#allocation8 + $0x340] sm:$0xff]
    %v343 = vld [vmem:[#allocation8 + $0x348] sm:$0xff]
    %v344 = vld [vmem:[#allocation8 + $0x350] sm:$0xff]
    %v345 = vld [vmem:[#allocation8 + $0x358] sm:$0xff]
    %v346 = vld [vmem:[#allocation8 + $0x360] sm:$0xff]
    %v347 = vld [vmem:[#allocation8 + $0x368] sm:$0xff]
    %v348 = vld [vmem:[#allocation8 + $0x370] sm:$0xff]
    %v349 = vld [vmem:[#allocation8 + $0x378] sm:$0xff]
    %v350 = vld [vmem:[#allocation8 + $0x380] sm:$0xff]
    %v351 = vld [vmem:[#allocation8 + $0x388] sm:$0xff]
    %v352 = vld [vmem:[#allocation8 + $0x390] sm:$0xff]
    %v353 = vld [vmem:[#allocation8 + $0x398] sm:$0xff]
    %v354 = vld [vmem:[#allocation8 + $0x3a0] sm:$0xff]
    %v355 = vld [vmem:[#allocation8 + $0x3a8] sm:$0xff]
    %v356 = vld [vmem:[#allocation8 + $0x3b0] sm:$0xff]
    %v357 = vld [vmem:[#allocation8 + $0x3b8] sm:$0xff]
    %v358 = vld [vmem:[#allocation8 + $0x3c0] sm:$0xff]
    %v359 = vld [vmem:[#allocation8 + $0x3c8] sm:$0xff]
    %v360 = vld [vmem:[#allocation8 + $0x3d0] sm:$0xff]
    %v361 = vld [vmem:[#allocation8 + $0x3d8] sm:$0xff]
    %v362 = vld [vmem:[#allocation8 + $0x3e0] sm:$0xff]
    %v363 = vld [vmem:[#allocation8 + $0x3e8] sm:$0xff]
    %v364 = vld [vmem:[#allocation8 + $0x3f0] sm:$0xff]
    %v365 = vld [vmem:[#allocation8 + $0x3f8] sm:$0xff]
    %v366 = vld [vmem:[#allocation10] sm:$0xff]
    %v368 = vlaneseq
    %v369 = vshrl.u32 %v368, 7
    %v370 = vsub.s32 0, %v369
    %v371 = vrot.slane %v366, %v370
    %v372 = vlaneseq
    %v373 = vshrl.u32 %v372, 7
    %v374 = vsub.s32 1, %v373
    %v375 = vrot.slane %v366, %v374
    %v376 = vlaneseq
    %v377 = vshrl.u32 %v376, 7
    %v378 = vsub.s32 2, %v377
    %v379 = vrot.slane %v366, %v378
    %v380 = vlaneseq
    %v381 = vshrl.u32 %v380, 7
    %v382 = vsub.s32 3, %v381
    %v383 = vrot.slane %v366, %v382
    %v384 = vlaneseq
    %v385 = vshrl.u32 %v384, 7
    %v386 = vsub.s32 4, %v385
    %v387 = vrot.slane %v366, %v386
    %v388 = vlaneseq
    %v389 = vshrl.u32 %v388, 7
    %v390 = vsub.s32 5, %v389
    %v391 = vrot.slane %v366, %v390
    %v392 = vlaneseq
    %v393 = vshrl.u32 %v392, 7
    %v394 = vsub.s32 6, %v393
    %v395 = vrot.slane %v366, %v394
    %v396 = vlaneseq
    %v397 = vshrl.u32 %v396, 7
    %v398 = vsub.s32 7, %v397
    %v399 = vrot.slane %v366, %v398
    %v536 = vunpack.c.l.b16 %v238
    %v537 = vunpack.c.h.b16 %v238
    %v538 = vunpack.c.l.b16 %v239
    %v539 = vunpack.c.h.b16 %v239
    %v540 = vunpack.c.l.b16 %v240
    %v541 = vunpack.c.h.b16 %v240
    %v542 = vunpack.c.l.b16 %v241
    %v543 = vunpack.c.h.b16 %v241
    %v544 = vunpack.c.l.b16 %v242
    %v545 = vunpack.c.h.b16 %v242
    %v546 = vunpack.c.l.b16 %v243
    %v547 = vunpack.c.h.b16 %v243
    %v548 = vunpack.c.l.b16 %v244
    %v549 = vunpack.c.h.b16 %v244
    %v550 = vunpack.c.l.b16 %v245
    %v551 = vunpack.c.h.b16 %v245
    %v552 = vunpack.c.l.b16 %v246
    %v553 = vunpack.c.h.b16 %v246
    %v554 = vunpack.c.l.b16 %v247
    %v555 = vunpack.c.h.b16 %v247
    %v556 = vunpack.c.l.b16 %v248
    %v557 = vunpack.c.h.b16 %v248
    %v558 = vunpack.c.l.b16 %v249
    %v559 = vunpack.c.h.b16 %v249
    %v560 = vunpack.c.l.b16 %v250
    %v561 = vunpack.c.h.b16 %v250
    %v562 = vunpack.c.l.b16 %v251
    %v563 = vunpack.c.h.b16 %v251
    %v564 = vunpack.c.l.b16 %v252
    %v565 = vunpack.c.h.b16 %v252
    %v566 = vunpack.c.l.b16 %v253
    %v567 = vunpack.c.h.b16 %v253
    %v568 = vunpack.c.l.b16 %v254
    %v569 = vunpack.c.h.b16 %v254
    %v570 = vunpack.c.l.b16 %v255
    %v571 = vunpack.c.h.b16 %v255
    %v572 = vunpack.c.l.b16 %v256
    %v573 = vunpack.c.h.b16 %v256
    %v574 = vunpack.c.l.b16 %v257
    %v575 = vunpack.c.h.b16 %v257
    %v576 = vunpack.c.l.b16 %v258
    %v577 = vunpack.c.h.b16 %v258
    %v578 = vunpack.c.l.b16 %v259
    %v579 = vunpack.c.h.b16 %v259
    %v580 = vunpack.c.l.b16 %v260
    %v581 = vunpack.c.h.b16 %v260
    %v582 = vunpack.c.l.b16 %v261
    %v583 = vunpack.c.h.b16 %v261
    %v584 = vunpack.c.l.b16 %v262
    %v585 = vunpack.c.h.b16 %v262
    %v586 = vunpack.c.l.b16 %v263
    %v587 = vunpack.c.h.b16 %v263
    %v588 = vunpack.c.l.b16 %v264
    %v589 = vunpack.c.h.b16 %v264
    %v590 = vunpack.c.l.b16 %v265
    %v591 = vunpack.c.h.b16 %v265
    %v592 = vunpack.c.l.b16 %v266
    %v593 = vunpack.c.h.b16 %v266
    %v594 = vunpack.c.l.b16 %v267
    %v595 = vunpack.c.h.b16 %v267
    %v596 = vunpack.c.l.b16 %v268
    %v597 = vunpack.c.h.b16 %v268
    %v598 = vunpack.c.l.b16 %v269
    %v599 = vunpack.c.h.b16 %v269
    %v600 = vunpack.c.l.b16 %v270
    %v601 = vunpack.c.h.b16 %v270
    %v602 = vunpack.c.l.b16 %v271
    %v603 = vunpack.c.h.b16 %v271
    %v604 = vunpack.c.l.b16 %v272
    %v605 = vunpack.c.h.b16 %v272
    %v606 = vunpack.c.l.b16 %v273
    %v607 = vunpack.c.h.b16 %v273
    %v608 = vunpack.c.l.b16 %v274
    %v609 = vunpack.c.h.b16 %v274
    %v610 = vunpack.c.l.b16 %v275
    %v611 = vunpack.c.h.b16 %v275
    %v612 = vunpack.c.l.b16 %v276
    %v613 = vunpack.c.h.b16 %v276
    %v614 = vunpack.c.l.b16 %v277
    %v615 = vunpack.c.h.b16 %v277
    %v616 = vunpack.c.l.b16 %v278
    %v617 = vunpack.c.h.b16 %v278
    %v618 = vunpack.c.l.b16 %v279
    %v619 = vunpack.c.h.b16 %v279
    %v620 = vunpack.c.l.b16 %v280
    %v621 = vunpack.c.h.b16 %v280
    %v622 = vunpack.c.l.b16 %v281
    %v623 = vunpack.c.h.b16 %v281
    %v624 = vunpack.c.l.b16 %v282
    %v625 = vunpack.c.h.b16 %v282
    %v626 = vunpack.c.l.b16 %v283
    %v627 = vunpack.c.h.b16 %v283
    %v628 = vunpack.c.l.b16 %v284
    %v629 = vunpack.c.h.b16 %v284
    %v630 = vunpack.c.l.b16 %v285
    %v631 = vunpack.c.h.b16 %v285
    %v632 = vunpack.c.l.b16 %v286
    %v633 = vunpack.c.h.b16 %v286
    %v634 = vunpack.c.l.b16 %v287
    %v635 = vunpack.c.h.b16 %v287
    %v636 = vunpack.c.l.b16 %v288
    %v637 = vunpack.c.h.b16 %v288
    %v638 = vunpack.c.l.b16 %v289
    %v639 = vunpack.c.h.b16 %v289
    %v640 = vunpack.c.l.b16 %v290
    %v641 = vunpack.c.h.b16 %v290
    %v642 = vunpack.c.l.b16 %v291
    %v643 = vunpack.c.h.b16 %v291
    %v644 = vunpack.c.l.b16 %v292
    %v645 = vunpack.c.h.b16 %v292
    %v646 = vunpack.c.l.b16 %v293
    %v647 = vunpack.c.h.b16 %v293
    %v648 = vunpack.c.l.b16 %v294
    %v649 = vunpack.c.h.b16 %v294
    %v650 = vunpack.c.l.b16 %v295
    %v651 = vunpack.c.h.b16 %v295
    %v652 = vunpack.c.l.b16 %v296
    %v653 = vunpack.c.h.b16 %v296
    %v654 = vunpack.c.l.b16 %v297
    %v655 = vunpack.c.h.b16 %v297
    %v656 = vunpack.c.l.b16 %v298
    %v657 = vunpack.c.h.b16 %v298
    %v658 = vunpack.c.l.b16 %v299
    %v659 = vunpack.c.h.b16 %v299
    %v660 = vunpack.c.l.b16 %v300
    %v661 = vunpack.c.h.b16 %v300
    %v662 = vunpack.c.l.b16 %v301
    %v663 = vunpack.c.h.b16 %v301
    %v664 = vunpack.c.l.b16 %v302
    %v665 = vunpack.c.h.b16 %v302
    %v666 = vunpack.c.l.b16 %v303
    %v667 = vunpack.c.h.b16 %v303
    %v668 = vunpack.c.l.b16 %v304
    %v669 = vunpack.c.h.b16 %v304
    %v670 = vunpack.c.l.b16 %v305
    %v671 = vunpack.c.h.b16 %v305
    %v672 = vunpack.c.l.b16 %v306
    %v673 = vunpack.c.h.b16 %v306
    %v674 = vunpack.c.l.b16 %v307
    %v675 = vunpack.c.h.b16 %v307
    %v676 = vunpack.c.l.b16 %v308
    %v677 = vunpack.c.h.b16 %v308
    %v678 = vunpack.c.l.b16 %v309
    %v679 = vunpack.c.h.b16 %v309
    %v680 = vunpack.c.l.b16 %v310
    %v681 = vunpack.c.h.b16 %v310
    %v682 = vunpack.c.l.b16 %v311
    %v683 = vunpack.c.h.b16 %v311
    %v684 = vunpack.c.l.b16 %v312
    %v685 = vunpack.c.h.b16 %v312
    %v686 = vunpack.c.l.b16 %v313
    %v687 = vunpack.c.h.b16 %v313
    %v688 = vunpack.c.l.b16 %v314
    %v689 = vunpack.c.h.b16 %v314
    %v690 = vunpack.c.l.b16 %v315
    %v691 = vunpack.c.h.b16 %v315
    %v692 = vunpack.c.l.b16 %v316
    %v693 = vunpack.c.h.b16 %v316
    %v694 = vunpack.c.l.b16 %v317
    %v695 = vunpack.c.h.b16 %v317
    %v696 = vunpack.c.l.b16 %v318
    %v697 = vunpack.c.h.b16 %v318
    %v698 = vunpack.c.l.b16 %v319
    %v699 = vunpack.c.h.b16 %v319
    %v700 = vunpack.c.l.b16 %v320
    %v701 = vunpack.c.h.b16 %v320
    %v702 = vunpack.c.l.b16 %v321
    %v703 = vunpack.c.h.b16 %v321
    %v704 = vunpack.c.l.b16 %v322
    %v705 = vunpack.c.h.b16 %v322
    %v706 = vunpack.c.l.b16 %v323
    %v707 = vunpack.c.h.b16 %v323
    %v708 = vunpack.c.l.b16 %v324
    %v709 = vunpack.c.h.b16 %v324
    %v710 = vunpack.c.l.b16 %v325
    %v711 = vunpack.c.h.b16 %v325
    %v712 = vunpack.c.l.b16 %v326
    %v713 = vunpack.c.h.b16 %v326
    %v714 = vunpack.c.l.b16 %v327
    %v715 = vunpack.c.h.b16 %v327
    %v716 = vunpack.c.l.b16 %v328
    %v717 = vunpack.c.h.b16 %v328
    %v718 = vunpack.c.l.b16 %v329
    %v719 = vunpack.c.h.b16 %v329
    %v720 = vunpack.c.l.b16 %v330
    %v721 = vunpack.c.h.b16 %v330
    %v722 = vunpack.c.l.b16 %v331
    %v723 = vunpack.c.h.b16 %v331
    %v724 = vunpack.c.l.b16 %v332
    %v725 = vunpack.c.h.b16 %v332
    %v726 = vunpack.c.l.b16 %v333
    %v727 = vunpack.c.h.b16 %v333
    %v728 = vunpack.c.l.b16 %v334
    %v729 = vunpack.c.h.b16 %v334
    %v730 = vunpack.c.l.b16 %v335
    %v731 = vunpack.c.h.b16 %v335
    %v732 = vunpack.c.l.b16 %v336
    %v733 = vunpack.c.h.b16 %v336
    %v734 = vunpack.c.l.b16 %v337
    %v735 = vunpack.c.h.b16 %v337
    %v736 = vunpack.c.l.b16 %v338
    %v737 = vunpack.c.h.b16 %v338
    %v738 = vunpack.c.l.b16 %v339
    %v739 = vunpack.c.h.b16 %v339
    %v740 = vunpack.c.l.b16 %v340
    %v741 = vunpack.c.h.b16 %v340
    %v742 = vunpack.c.l.b16 %v341
    %v743 = vunpack.c.h.b16 %v341
    %v744 = vunpack.c.l.b16 %v342
    %v745 = vunpack.c.h.b16 %v342
    %v746 = vunpack.c.l.b16 %v343
    %v747 = vunpack.c.h.b16 %v343
    %v748 = vunpack.c.l.b16 %v344
    %v749 = vunpack.c.h.b16 %v344
    %v750 = vunpack.c.l.b16 %v345
    %v751 = vunpack.c.h.b16 %v345
    %v752 = vunpack.c.l.b16 %v346
    %v753 = vunpack.c.h.b16 %v346
    %v754 = vunpack.c.l.b16 %v347
    %v755 = vunpack.c.h.b16 %v347
    %v756 = vunpack.c.l.b16 %v348
    %v757 = vunpack.c.h.b16 %v348
    %v758 = vunpack.c.l.b16 %v349
    %v759 = vunpack.c.h.b16 %v349
    %v760 = vunpack.c.l.b16 %v350
    %v761 = vunpack.c.h.b16 %v350
    %v762 = vunpack.c.l.b16 %v351
    %v763 = vunpack.c.h.b16 %v351
    %v764 = vunpack.c.l.b16 %v352
    %v765 = vunpack.c.h.b16 %v352
    %v766 = vunpack.c.l.b16 %v353
    %v767 = vunpack.c.h.b16 %v353
    %v768 = vunpack.c.l.b16 %v354
    %v769 = vunpack.c.h.b16 %v354
    %v770 = vunpack.c.l.b16 %v355
    %v771 = vunpack.c.h.b16 %v355
    %v772 = vunpack.c.l.b16 %v356
    %v773 = vunpack.c.h.b16 %v356
    %v774 = vunpack.c.l.b16 %v357
    %v775 = vunpack.c.h.b16 %v357
    %v776 = vunpack.c.l.b16 %v358
    %v777 = vunpack.c.h.b16 %v358
    %v778 = vunpack.c.l.b16 %v359
    %v779 = vunpack.c.h.b16 %v359
    %v780 = vunpack.c.l.b16 %v360
    %v781 = vunpack.c.h.b16 %v360
    %v782 = vunpack.c.l.b16 %v361
    %v783 = vunpack.c.h.b16 %v361
    %v784 = vunpack.c.l.b16 %v362
    %v785 = vunpack.c.h.b16 %v362
    %v786 = vunpack.c.l.b16 %v363
    %v787 = vunpack.c.h.b16 %v363
    %v788 = vunpack.c.l.b16 %v364
    %v789 = vunpack.c.h.b16 %v364
    %v790 = vunpack.c.l.b16 %v365
    %v791 = vunpack.c.h.b16 %v365
    %v792 = vpack.c.b16 %v544, %v536
    %v793 = vpack.c.b16 %v545, %v537
    %v794 = vpack.c.b16 %v546, %v538
    %v795 = vpack.c.b16 %v547, %v539
    %v796 = vpack.c.b16 %v548, %v540
    %v797 = vpack.c.b16 %v549, %v541
    %v798 = vpack.c.b16 %v550, %v542
    %v799 = vpack.c.b16 %v551, %v543
    %v800 = vpack.c.b16 %v560, %v552
    %v801 = vpack.c.b16 %v561, %v553
    %v802 = vpack.c.b16 %v562, %v554
    %v803 = vpack.c.b16 %v563, %v555
    %v804 = vpack.c.b16 %v564, %v556
    %v805 = vpack.c.b16 %v565, %v557
    %v806 = vpack.c.b16 %v566, %v558
    %v807 = vpack.c.b16 %v567, %v559
    %v808 = vpack.c.b16 %v576, %v568
    %v809 = vpack.c.b16 %v577, %v569
    %v810 = vpack.c.b16 %v578, %v570
    %v811 = vpack.c.b16 %v579, %v571
    %v812 = vpack.c.b16 %v580, %v572
    %v813 = vpack.c.b16 %v581, %v573
    %v814 = vpack.c.b16 %v582, %v574
    %v815 = vpack.c.b16 %v583, %v575
    %v816 = vpack.c.b16 %v592, %v584
    %v817 = vpack.c.b16 %v593, %v585
    %v818 = vpack.c.b16 %v594, %v586
    %v819 = vpack.c.b16 %v595, %v587
    %v820 = vpack.c.b16 %v596, %v588
    %v821 = vpack.c.b16 %v597, %v589
    %v822 = vpack.c.b16 %v598, %v590
    %v823 = vpack.c.b16 %v599, %v591
    %v824 = vpack.c.b16 %v608, %v600
    %v825 = vpack.c.b16 %v609, %v601
    %v826 = vpack.c.b16 %v610, %v602
    %v827 = vpack.c.b16 %v611, %v603
    %v828 = vpack.c.b16 %v612, %v604
    %v829 = vpack.c.b16 %v613, %v605
    %v830 = vpack.c.b16 %v614, %v606
    %v831 = vpack.c.b16 %v615, %v607
    %v832 = vpack.c.b16 %v624, %v616
    %v833 = vpack.c.b16 %v625, %v617
    %v834 = vpack.c.b16 %v626, %v618
    %v835 = vpack.c.b16 %v627, %v619
    %v836 = vpack.c.b16 %v628, %v620
    %v837 = vpack.c.b16 %v629, %v621
    %v838 = vpack.c.b16 %v630, %v622
    %v839 = vpack.c.b16 %v631, %v623
    %v840 = vpack.c.b16 %v640, %v632
    %v841 = vpack.c.b16 %v641, %v633
    %v842 = vpack.c.b16 %v642, %v634
    %v843 = vpack.c.b16 %v643, %v635
    %v844 = vpack.c.b16 %v644, %v636
    %v845 = vpack.c.b16 %v645, %v637
    %v846 = vpack.c.b16 %v646, %v638
    %v847 = vpack.c.b16 %v647, %v639
    %v848 = vpack.c.b16 %v656, %v648
    %v849 = vpack.c.b16 %v657, %v649
    %v850 = vpack.c.b16 %v658, %v650
    %v851 = vpack.c.b16 %v659, %v651
    %v852 = vpack.c.b16 %v660, %v652
    %v853 = vpack.c.b16 %v661, %v653
    %v854 = vpack.c.b16 %v662, %v654
    %v855 = vpack.c.b16 %v663, %v655
    %v856 = vpack.c.b16 %v672, %v664
    %v857 = vpack.c.b16 %v673, %v665
    %v858 = vpack.c.b16 %v674, %v666
    %v859 = vpack.c.b16 %v675, %v667
    %v860 = vpack.c.b16 %v676, %v668
    %v861 = vpack.c.b16 %v677, %v669
    %v862 = vpack.c.b16 %v678, %v670
    %v863 = vpack.c.b16 %v679, %v671
    %v864 = vpack.c.b16 %v688, %v680
    %v865 = vpack.c.b16 %v689, %v681
    %v866 = vpack.c.b16 %v690, %v682
    %v867 = vpack.c.b16 %v691, %v683
    %v868 = vpack.c.b16 %v692, %v684
    %v869 = vpack.c.b16 %v693, %v685
    %v870 = vpack.c.b16 %v694, %v686
    %v871 = vpack.c.b16 %v695, %v687
    %v872 = vpack.c.b16 %v704, %v696
    %v873 = vpack.c.b16 %v705, %v697
    %v874 = vpack.c.b16 %v706, %v698
    %v875 = vpack.c.b16 %v707, %v699
    %v876 = vpack.c.b16 %v708, %v700
    %v877 = vpack.c.b16 %v709, %v701
    %v878 = vpack.c.b16 %v710, %v702
    %v879 = vpack.c.b16 %v711, %v703
    %v880 = vpack.c.b16 %v720, %v712
    %v881 = vpack.c.b16 %v721, %v713
    %v882 = vpack.c.b16 %v722, %v714
    %v883 = vpack.c.b16 %v723, %v715
    %v884 = vpack.c.b16 %v724, %v716
    %v885 = vpack.c.b16 %v725, %v717
    %v886 = vpack.c.b16 %v726, %v718
    %v887 = vpack.c.b16 %v727, %v719
    %v888 = vpack.c.b16 %v736, %v728
    %v889 = vpack.c.b16 %v737, %v729
    %v890 = vpack.c.b16 %v738, %v730
    %v891 = vpack.c.b16 %v739, %v731
    %v892 = vpack.c.b16 %v740, %v732
    %v893 = vpack.c.b16 %v741, %v733
    %v894 = vpack.c.b16 %v742, %v734
    %v895 = vpack.c.b16 %v743, %v735
    %v896 = vpack.c.b16 %v752, %v744
    %v897 = vpack.c.b16 %v753, %v745
    %v898 = vpack.c.b16 %v754, %v746
    %v899 = vpack.c.b16 %v755, %v747
    %v900 = vpack.c.b16 %v756, %v748
    %v901 = vpack.c.b16 %v757, %v749
    %v902 = vpack.c.b16 %v758, %v750
    %v903 = vpack.c.b16 %v759, %v751
    %v904 = vpack.c.b16 %v768, %v760
    %v905 = vpack.c.b16 %v769, %v761
    %v906 = vpack.c.b16 %v770, %v762
    %v907 = vpack.c.b16 %v771, %v763
    %v908 = vpack.c.b16 %v772, %v764
    %v909 = vpack.c.b16 %v773, %v765
    %v910 = vpack.c.b16 %v774, %v766
    %v911 = vpack.c.b16 %v775, %v767
    %v912 = vpack.c.b16 %v784, %v776
    %v913 = vpack.c.b16 %v785, %v777
    %v914 = vpack.c.b16 %v786, %v778
    %v915 = vpack.c.b16 %v787, %v779
    %v916 = vpack.c.b16 %v788, %v780
    %v917 = vpack.c.b16 %v789, %v781
    %v918 = vpack.c.b16 %v790, %v782
    %v919 = vpack.c.b16 %v791, %v783
    %1048 = vmatprep.subr.bf16.mxu0 %v849
    %1049 = vmatpush1.bf16.msra.mxu0 %v848
    %1050 = vmatprep.subr.bf16.mxu0 %v841
    %1051 = vmatpush1.bf16.msra.mxu0 %v840
    %1052 = vmatprep.subr.bf16.mxu0 %v833
    %1053 = vmatpush1.bf16.msra.mxu0 %v832
    %1054 = vmatprep.subr.bf16.mxu0 %v825
    %1055 = vmatpush1.bf16.msra.mxu0 %v824
    %1056 = vmatprep.subr.bf16.mxu0 %v817
    %1057 = vmatpush1.bf16.msra.mxu0 %v816
    %1058 = vmatprep.subr.bf16.mxu0 %v809
    %1059 = vmatpush1.bf16.msra.mxu0 %v808
    %1060 = vmatprep.subr.bf16.mxu0 %v801
    %1061 = vmatpush1.bf16.msra.mxu0 %v800
    %1062 = vmatprep.subr.bf16.mxu0 %v793
    %1063 = vmatpush1.bf16.msra.mxu0 %v792
    %1064 = vmatprep.subr.bf16.mxu0 %v913
    %1065 = vmatpush2.bf16.msra.mxu0 %v912
    %1066 = vmatprep.subr.bf16.mxu0 %v905
    %1067 = vmatpush2.bf16.msra.mxu0 %v904
    %1068 = vmatprep.subr.bf16.mxu0 %v897
    %1069 = vmatpush2.bf16.msra.mxu0 %v896
    %1070 = vmatprep.subr.bf16.mxu0 %v889
    %1071 = vmatpush2.bf16.msra.mxu0 %v888
    %1072 = vmatprep.subr.bf16.mxu0 %v881
    %1073 = vmatpush2.bf16.msra.mxu0 %v880
    %1074 = vmatprep.subr.bf16.mxu0 %v873
    %1075 = vmatpush2.bf16.msra.mxu0 %v872
    %1076 = vmatprep.subr.bf16.mxu0 %v865
    %1077 = vmatpush2.bf16.msra.mxu0 %v864
    %1078 = vmatprep.subr.bf16.mxu0 %v857
    %1079 = vmatpush2.bf16.msra.mxu0 %v856
    %1080 = vmatprep.mubr.bf16.mxu0 %v237
    %1081 = vmatmul.mubr.bf16.gmra.mxu0 %v236
    %v1082 = vpop.f32.mrf.mxu0
    %v1083 = vadd.f32 %v371, %v1082
    %v1084 = vpop.f32.mrf.mxu0
    %v1085 = vadd.f32 %v375, %v1084
    %v1086 = vpop.f32.mrf.mxu0
    %v1087 = vpop.f32.mrf.mxu0
    %1088 = vdwg.mxu0
    %1089 = vmatprep.subr.bf16.mxu0 %v851
    %1090 = vmatpush1.bf16.msra.mxu0 %v850
    %1091 = vmatprep.subr.bf16.mxu0 %v843
    %1092 = vmatpush1.bf16.msra.mxu0 %v842
    %1093 = vmatprep.subr.bf16.mxu0 %v835
    %1094 = vmatpush1.bf16.msra.mxu0 %v834
    %1095 = vmatprep.subr.bf16.mxu0 %v827
    %1096 = vmatpush1.bf16.msra.mxu0 %v826
    %1097 = vmatprep.subr.bf16.mxu0 %v819
    %1098 = vmatpush1.bf16.msra.mxu0 %v818
    %1099 = vmatprep.subr.bf16.mxu0 %v811
    %1100 = vmatpush1.bf16.msra.mxu0 %v810
    %1101 = vmatprep.subr.bf16.mxu0 %v803
    %1102 = vmatpush1.bf16.msra.mxu0 %v802
    %1103 = vmatprep.subr.bf16.mxu0 %v795
    %1104 = vmatpush1.bf16.msra.mxu0 %v794
    %1105 = vmatprep.subr.bf16.mxu0 %v915
    %1106 = vmatpush2.bf16.msra.mxu0 %v914
    %1107 = vmatprep.subr.bf16.mxu0 %v907
    %1108 = vmatpush2.bf16.msra.mxu0 %v906
    %1109 = vmatprep.subr.bf16.mxu0 %v899
    %1110 = vmatpush2.bf16.msra.mxu0 %v898
    %1111 = vmatprep.subr.bf16.mxu0 %v891
    %1112 = vmatpush2.bf16.msra.mxu0 %v890
    %1113 = vmatprep.subr.bf16.mxu0 %v883
    %1114 = vmatpush2.bf16.msra.mxu0 %v882
    %1115 = vmatprep.subr.bf16.mxu0 %v875
    %1116 = vmatpush2.bf16.msra.mxu0 %v874
    %1117 = vmatprep.subr.bf16.mxu0 %v867
    %1118 = vmatpush2.bf16.msra.mxu0 %v866
    %1119 = vmatprep.subr.bf16.mxu0 %v859
    %1120 = vmatpush2.bf16.msra.mxu0 %v858
    %1121 = vmatprep.mubr.bf16.mxu0 %v237
    %1122 = vmatmul.mubr.bf16.gmra.mxu0 %v236
    %v1123 = vpop.f32.mrf.mxu0
    %v1124 = vadd.f32 %v379, %v1123
    %v1125 = vpop.f32.mrf.mxu0
    %v1126 = vadd.f32 %v383, %v1125
    %v1127 = vpop.f32.mrf.mxu0
    %v1128 = vpop.f32.mrf.mxu0
    %1129 = vdwg.mxu0
    %1130 = vmatprep.subr.bf16.mxu0 %v853
    %1131 = vmatpush1.bf16.msra.mxu0 %v852
    %1132 = vmatprep.subr.bf16.mxu0 %v845
    %1133 = vmatpush1.bf16.msra.mxu0 %v844
    %1134 = vmatprep.subr.bf16.mxu0 %v837
    %1135 = vmatpush1.bf16.msra.mxu0 %v836
    %1136 = vmatprep.subr.bf16.mxu0 %v829
    %1137 = vmatpush1.bf16.msra.mxu0 %v828
    %1138 = vmatprep.subr.bf16.mxu0 %v821
    %1139 = vmatpush1.bf16.msra.mxu0 %v820
    %1140 = vmatprep.subr.bf16.mxu0 %v813
    %1141 = vmatpush1.bf16.msra.mxu0 %v812
    %1142 = vmatprep.subr.bf16.mxu0 %v805
    %1143 = vmatpush1.bf16.msra.mxu0 %v804
    %1144 = vmatprep.subr.bf16.mxu0 %v797
    %1145 = vmatpush1.bf16.msra.mxu0 %v796
    %1146 = vmatprep.subr.bf16.mxu0 %v917
    %1147 = vmatpush2.bf16.msra.mxu0 %v916
    %1148 = vmatprep.subr.bf16.mxu0 %v909
    %1149 = vmatpush2.bf16.msra.mxu0 %v908
    %1150 = vmatprep.subr.bf16.mxu0 %v901
    %1151 = vmatpush2.bf16.msra.mxu0 %v900
    %1152 = vmatprep.subr.bf16.mxu0 %v893
    %1153 = vmatpush2.bf16.msra.mxu0 %v892
    %1154 = vmatprep.subr.bf16.mxu0 %v885
    %1155 = vmatpush2.bf16.msra.mxu0 %v884
    %1156 = vmatprep.subr.bf16.mxu0 %v877
    %1157 = vmatpush2.bf16.msra.mxu0 %v876
    %1158 = vmatprep.subr.bf16.mxu0 %v869
    %1159 = vmatpush2.bf16.msra.mxu0 %v868
    %1160 = vmatprep.subr.bf16.mxu0 %v861
    %1161 = vmatpush2.bf16.msra.mxu0 %v860
    %1162 = vmatprep.mubr.bf16.mxu0 %v237
    %1163 = vmatmul.mubr.bf16.gmra.mxu0 %v236
    %v1164 = vpop.f32.mrf.mxu0
    %v1165 = vadd.f32 %v387, %v1164
    %v1166 = vpop.f32.mrf.mxu0
    %v1167 = vadd.f32 %v391, %v1166
    %v1168 = vpop.f32.mrf.mxu0
    %v1169 = vpop.f32.mrf.mxu0
    %1170 = vdwg.mxu0
    %1171 = vmatprep.subr.bf16.mxu0 %v855
    %1172 = vmatpush1.bf16.msra.mxu0 %v854
    %1173 = vmatprep.subr.bf16.mxu0 %v847
    %1174 = vmatpush1.bf16.msra.mxu0 %v846
    %1175 = vmatprep.subr.bf16.mxu0 %v839
    %1176 = vmatpush1.bf16.msra.mxu0 %v838
    %1177 = vmatprep.subr.bf16.mxu0 %v831
    %1178 = vmatpush1.bf16.msra.mxu0 %v830
    %1179 = vmatprep.subr.bf16.mxu0 %v823
    %1180 = vmatpush1.bf16.msra.mxu0 %v822
    %1181 = vmatprep.subr.bf16.mxu0 %v815
    %1182 = vmatpush1.bf16.msra.mxu0 %v814
    %1183 = vmatprep.subr.bf16.mxu0 %v807
    %1184 = vmatpush1.bf16.msra.mxu0 %v806
    %1185 = vmatprep.subr.bf16.mxu0 %v799
    %1186 = vmatpush1.bf16.msra.mxu0 %v798
    %1187 = vmatprep.subr.bf16.mxu0 %v919
    %1188 = vmatpush2.bf16.msra.mxu0 %v918
    %1189 = vmatprep.subr.bf16.mxu0 %v911
    %1190 = vmatpush2.bf16.msra.mxu0 %v910
    %1191 = vmatprep.subr.bf16.mxu0 %v903
    %1192 = vmatpush2.bf16.msra.mxu0 %v902
    %1193 = vmatprep.subr.bf16.mxu0 %v895
    %1194 = vmatpush2.bf16.msra.mxu0 %v894
    %1195 = vmatprep.subr.bf16.mxu0 %v887
    %1196 = vmatpush2.bf16.msra.mxu0 %v886
    %1197 = vmatprep.subr.bf16.mxu0 %v879
    %1198 = vmatpush2.bf16.msra.mxu0 %v878
    %1199 = vmatprep.subr.bf16.mxu0 %v871
    %1200 = vmatpush2.bf16.msra.mxu0 %v870
    %1201 = vmatprep.subr.bf16.mxu0 %v863
    %1202 = vmatpush2.bf16.msra.mxu0 %v862
    %1203 = vmatprep.mubr.bf16.mxu0 %v237
    %1204 = vmatmul.mubr.bf16.gmra.mxu0 %v236
    %v1205 = vpop.f32.mrf.mxu0
    %v1206 = vadd.f32 %v395, %v1205
    %v1207 = vpop.f32.mrf.mxu0
    %v1208 = vadd.f32 %v399, %v1207
    %v1209 = vpop.f32.mrf.mxu0
    %v1210 = vpop.f32.mrf.mxu0
    %1211 = vdwg.mxu0
    %v1212 = vtanh.pop %v1083
    %v1213 = vtanh.pop %v1085
    %v1214 = vtanh.pop %v1124
    %v1215 = vtanh.pop %v1126
    %v1216 = vtanh.pop %v1165
    %v1217 = vtanh.pop %v1167
    %v1218 = vtanh.pop %v1206
    %v1219 = vtanh.pop %v1208
    %v1220 = vpack.c.bf16 %v1212, %v1212
    %v1221 = vpack.c.bf16 %v1213, %v1213
    %v1222 = vpack.c.bf16 %v1214, %v1214
    %v1223 = vpack.c.bf16 %v1215, %v1215
    %v1224 = vpack.c.bf16 %v1216, %v1216
    %v1225 = vpack.c.bf16 %v1217, %v1217
    %v1226 = vpack.c.bf16 %v1218, %v1218
    %v1227 = vpack.c.bf16 %v1219, %v1219
    %v1228 = vld [vmem:[#allocation11] sm:$0xff]
    %v1229 = vld [vmem:[#allocation11 + $0x8] sm:$0xff]
    %v1230 = vld [vmem:[#allocation11 + $0x10] sm:$0xff]
    %v1231 = vld [vmem:[#allocation11 + $0x18] sm:$0xff]
    %v1232 = vld [vmem:[#allocation11 + $0x20] sm:$0xff]
    %v1233 = vld [vmem:[#allocation11 + $0x28] sm:$0xff]
    %v1234 = vld [vmem:[#allocation11 + $0x30] sm:$0xff]
    %v1235 = vld [vmem:[#allocation11 + $0x38] sm:$0xff]
    %v1236 = vld [vmem:[#allocation11 + $0x40] sm:$0xff]
    %v1237 = vld [vmem:[#allocation11 + $0x48] sm:$0xff]
    %v1238 = vld [vmem:[#allocation11 + $0x50] sm:$0xff]
    %v1239 = vld [vmem:[#allocation11 + $0x58] sm:$0xff]
    %v1240 = vld [vmem:[#allocation11 + $0x60] sm:$0xff]
    %v1241 = vld [vmem:[#allocation11 + $0x68] sm:$0xff]
    %v1242 = vld [vmem:[#allocation11 + $0x70] sm:$0xff]
    %v1243 = vld [vmem:[#allocation11 + $0x78] sm:$0xff]
    %v1244 = vld [vmem:[#allocation11 + $0x80] sm:$0xff]
    %v1245 = vld [vmem:[#allocation11 + $0x88] sm:$0xff]
    %v1246 = vld [vmem:[#allocation11 + $0x90] sm:$0xff]
    %v1247 = vld [vmem:[#allocation11 + $0x98] sm:$0xff]
    %v1248 = vld [vmem:[#allocation11 + $0xa0] sm:$0xff]
    %v1249 = vld [vmem:[#allocation11 + $0xa8] sm:$0xff]
    %v1250 = vld [vmem:[#allocation11 + $0xb0] sm:$0xff]
    %v1251 = vld [vmem:[#allocation11 + $0xb8] sm:$0xff]
    %v1252 = vld [vmem:[#allocation11 + $0xc0] sm:$0xff]
    %v1253 = vld [vmem:[#allocation11 + $0xc8] sm:$0xff]
    %v1254 = vld [vmem:[#allocation11 + $0xd0] sm:$0xff]
    %v1255 = vld [vmem:[#allocation11 + $0xd8] sm:$0xff]
    %v1256 = vld [vmem:[#allocation11 + $0xe0] sm:$0xff]
    %v1257 = vld [vmem:[#allocation11 + $0xe8] sm:$0xff]
    %v1258 = vld [vmem:[#allocation11 + $0xf0] sm:$0xff]
    %v1259 = vld [vmem:[#allocation11 + $0xf8] sm:$0xff]
    %v1260 = vld [vmem:[#allocation11 + $0x100] sm:$0xff]
    %v1261 = vld [vmem:[#allocation11 + $0x108] sm:$0xff]
    %v1262 = vld [vmem:[#allocation11 + $0x110] sm:$0xff]
    %v1263 = vld [vmem:[#allocation11 + $0x118] sm:$0xff]
    %v1264 = vld [vmem:[#allocation11 + $0x120] sm:$0xff]
    %v1265 = vld [vmem:[#allocation11 + $0x128] sm:$0xff]
    %v1266 = vld [vmem:[#allocation11 + $0x130] sm:$0xff]
    %v1267 = vld [vmem:[#allocation11 + $0x138] sm:$0xff]
    %v1268 = vld [vmem:[#allocation11 + $0x140] sm:$0xff]
    %v1269 = vld [vmem:[#allocation11 + $0x148] sm:$0xff]
    %v1270 = vld [vmem:[#allocation11 + $0x150] sm:$0xff]
    %v1271 = vld [vmem:[#allocation11 + $0x158] sm:$0xff]
    %v1272 = vld [vmem:[#allocation11 + $0x160] sm:$0xff]
    %v1273 = vld [vmem:[#allocation11 + $0x168] sm:$0xff]
    %v1274 = vld [vmem:[#allocation11 + $0x170] sm:$0xff]
    %v1275 = vld [vmem:[#allocation11 + $0x178] sm:$0xff]
    %v1276 = vld [vmem:[#allocation11 + $0x180] sm:$0xff]
    %v1277 = vld [vmem:[#allocation11 + $0x188] sm:$0xff]
    %v1278 = vld [vmem:[#allocation11 + $0x190] sm:$0xff]
    %v1279 = vld [vmem:[#allocation11 + $0x198] sm:$0xff]
    %v1280 = vld [vmem:[#allocation11 + $0x1a0] sm:$0xff]
    %v1281 = vld [vmem:[#allocation11 + $0x1a8] sm:$0xff]
    %v1282 = vld [vmem:[#allocation11 + $0x1b0] sm:$0xff]
    %v1283 = vld [vmem:[#allocation11 + $0x1b8] sm:$0xff]
    %v1284 = vld [vmem:[#allocation11 + $0x1c0] sm:$0xff]
    %v1285 = vld [vmem:[#allocation11 + $0x1c8] sm:$0xff]
    %v1286 = vld [vmem:[#allocation11 + $0x1d0] sm:$0xff]
    %v1287 = vld [vmem:[#allocation11 + $0x1d8] sm:$0xff]
    %v1288 = vld [vmem:[#allocation11 + $0x1e0] sm:$0xff]
    %v1289 = vld [vmem:[#allocation11 + $0x1e8] sm:$0xff]
    %v1290 = vld [vmem:[#allocation11 + $0x1f0] sm:$0xff]
    %v1291 = vld [vmem:[#allocation11 + $0x1f8] sm:$0xff]
    %v1292 = vld [vmem:[#allocation11 + $0x200] sm:$0xff]
    %v1293 = vld [vmem:[#allocation11 + $0x208] sm:$0xff]
    %v1294 = vld [vmem:[#allocation11 + $0x210] sm:$0xff]
    %v1295 = vld [vmem:[#allocation11 + $0x218] sm:$0xff]
    %v1296 = vld [vmem:[#allocation11 + $0x220] sm:$0xff]
    %v1297 = vld [vmem:[#allocation11 + $0x228] sm:$0xff]
    %v1298 = vld [vmem:[#allocation11 + $0x230] sm:$0xff]
    %v1299 = vld [vmem:[#allocation11 + $0x238] sm:$0xff]
    %v1300 = vld [vmem:[#allocation11 + $0x240] sm:$0xff]
    %v1301 = vld [vmem:[#allocation11 + $0x248] sm:$0xff]
    %v1302 = vld [vmem:[#allocation11 + $0x250] sm:$0xff]
    %v1303 = vld [vmem:[#allocation11 + $0x258] sm:$0xff]
    %v1304 = vld [vmem:[#allocation11 + $0x260] sm:$0xff]
    %v1305 = vld [vmem:[#allocation11 + $0x268] sm:$0xff]
    %v1306 = vld [vmem:[#allocation11 + $0x270] sm:$0xff]
    %v1307 = vld [vmem:[#allocation11 + $0x278] sm:$0xff]
    %v1308 = vld [vmem:[#allocation11 + $0x280] sm:$0xff]
    %v1309 = vld [vmem:[#allocation11 + $0x288] sm:$0xff]
    %v1310 = vld [vmem:[#allocation11 + $0x290] sm:$0xff]
    %v1311 = vld [vmem:[#allocation11 + $0x298] sm:$0xff]
    %v1312 = vld [vmem:[#allocation11 + $0x2a0] sm:$0xff]
    %v1313 = vld [vmem:[#allocation11 + $0x2a8] sm:$0xff]
    %v1314 = vld [vmem:[#allocation11 + $0x2b0] sm:$0xff]
    %v1315 = vld [vmem:[#allocation11 + $0x2b8] sm:$0xff]
    %v1316 = vld [vmem:[#allocation11 + $0x2c0] sm:$0xff]
    %v1317 = vld [vmem:[#allocation11 + $0x2c8] sm:$0xff]
    %v1318 = vld [vmem:[#allocation11 + $0x2d0] sm:$0xff]
    %v1319 = vld [vmem:[#allocation11 + $0x2d8] sm:$0xff]
    %v1320 = vld [vmem:[#allocation11 + $0x2e0] sm:$0xff]
    %v1321 = vld [vmem:[#allocation11 + $0x2e8] sm:$0xff]
    %v1322 = vld [vmem:[#allocation11 + $0x2f0] sm:$0xff]
    %v1323 = vld [vmem:[#allocation11 + $0x2f8] sm:$0xff]
    %v1324 = vld [vmem:[#allocation11 + $0x300] sm:$0xff]
    %v1325 = vld [vmem:[#allocation11 + $0x308] sm:$0xff]
    %v1326 = vld [vmem:[#allocation11 + $0x310] sm:$0xff]
    %v1327 = vld [vmem:[#allocation11 + $0x318] sm:$0xff]
    %v1328 = vld [vmem:[#allocation11 + $0x320] sm:$0xff]
    %v1329 = vld [vmem:[#allocation11 + $0x328] sm:$0xff]
    %v1330 = vld [vmem:[#allocation11 + $0x330] sm:$0xff]
    %v1331 = vld [vmem:[#allocation11 + $0x338] sm:$0xff]
    %v1332 = vld [vmem:[#allocation11 + $0x340] sm:$0xff]
    %v1333 = vld [vmem:[#allocation11 + $0x348] sm:$0xff]
    %v1334 = vld [vmem:[#allocation11 + $0x350] sm:$0xff]
    %v1335 = vld [vmem:[#allocation11 + $0x358] sm:$0xff]
    %v1336 = vld [vmem:[#allocation11 + $0x360] sm:$0xff]
    %v1337 = vld [vmem:[#allocation11 + $0x368] sm:$0xff]
    %v1338 = vld [vmem:[#allocation11 + $0x370] sm:$0xff]
    %v1339 = vld [vmem:[#allocation11 + $0x378] sm:$0xff]
    %v1340 = vld [vmem:[#allocation11 + $0x380] sm:$0xff]
    %v1341 = vld [vmem:[#allocation11 + $0x388] sm:$0xff]
    %v1342 = vld [vmem:[#allocation11 + $0x390] sm:$0xff]
    %v1343 = vld [vmem:[#allocation11 + $0x398] sm:$0xff]
    %v1344 = vld [vmem:[#allocation11 + $0x3a0] sm:$0xff]
    %v1345 = vld [vmem:[#allocation11 + $0x3a8] sm:$0xff]
    %v1346 = vld [vmem:[#allocation11 + $0x3b0] sm:$0xff]
    %v1347 = vld [vmem:[#allocation11 + $0x3b8] sm:$0xff]
    %v1348 = vld [vmem:[#allocation11 + $0x3c0] sm:$0xff]
    %v1349 = vld [vmem:[#allocation11 + $0x3c8] sm:$0xff]
    %v1350 = vld [vmem:[#allocation11 + $0x3d0] sm:$0xff]
    %v1351 = vld [vmem:[#allocation11 + $0x3d8] sm:$0xff]
    %v1352 = vld [vmem:[#allocation11 + $0x3e0] sm:$0xff]
    %v1353 = vld [vmem:[#allocation11 + $0x3e8] sm:$0xff]
    %v1354 = vld [vmem:[#allocation11 + $0x3f0] sm:$0xff]
    %v1355 = vld [vmem:[#allocation11 + $0x3f8] sm:$0xff]
    %v1356 = vld [vmem:[#allocation11 + $0x400] sm:$0xff]
    %v1357 = vld [vmem:[#allocation11 + $0x408] sm:$0xff]
    %v1358 = vld [vmem:[#allocation11 + $0x410] sm:$0xff]
    %v1359 = vld [vmem:[#allocation11 + $0x418] sm:$0xff]
    %v1360 = vld [vmem:[#allocation11 + $0x420] sm:$0xff]
    %v1361 = vld [vmem:[#allocation11 + $0x428] sm:$0xff]
    %v1362 = vld [vmem:[#allocation11 + $0x430] sm:$0xff]
    %v1363 = vld [vmem:[#allocation11 + $0x438] sm:$0xff]
    %v1364 = vld [vmem:[#allocation11 + $0x440] sm:$0xff]
    %v1365 = vld [vmem:[#allocation11 + $0x448] sm:$0xff]
    %v1366 = vld [vmem:[#allocation11 + $0x450] sm:$0xff]
    %v1367 = vld [vmem:[#allocation11 + $0x458] sm:$0xff]
    %v1368 = vld [vmem:[#allocation11 + $0x460] sm:$0xff]
    %v1369 = vld [vmem:[#allocation11 + $0x468] sm:$0xff]
    %v1370 = vld [vmem:[#allocation11 + $0x470] sm:$0xff]
    %v1371 = vld [vmem:[#allocation11 + $0x478] sm:$0xff]
    %v1372 = vld [vmem:[#allocation11 + $0x480] sm:$0xff]
    %v1373 = vld [vmem:[#allocation11 + $0x488] sm:$0xff]
    %v1374 = vld [vmem:[#allocation11 + $0x490] sm:$0xff]
    %v1375 = vld [vmem:[#allocation11 + $0x498] sm:$0xff]
    %v1376 = vld [vmem:[#allocation11 + $0x4a0] sm:$0xff]
    %v1377 = vld [vmem:[#allocation11 + $0x4a8] sm:$0xff]
    %v1378 = vld [vmem:[#allocation11 + $0x4b0] sm:$0xff]
    %v1379 = vld [vmem:[#allocation11 + $0x4b8] sm:$0xff]
    %v1380 = vld [vmem:[#allocation11 + $0x4c0] sm:$0xff]
    %v1381 = vld [vmem:[#allocation11 + $0x4c8] sm:$0xff]
    %v1382 = vld [vmem:[#allocation11 + $0x4d0] sm:$0xff]
    %v1383 = vld [vmem:[#allocation11 + $0x4d8] sm:$0xff]
    %v1384 = vld [vmem:[#allocation11 + $0x4e0] sm:$0xff]
    %v1385 = vld [vmem:[#allocation11 + $0x4e8] sm:$0xff]
    %v1386 = vld [vmem:[#allocation11 + $0x4f0] sm:$0xff]
    %v1387 = vld [vmem:[#allocation11 + $0x4f8] sm:$0xff]
    %v1388 = vld [vmem:[#allocation11 + $0x500] sm:$0xff]
    %v1389 = vld [vmem:[#allocation11 + $0x508] sm:$0xff]
    %v1390 = vld [vmem:[#allocation11 + $0x510] sm:$0xff]
    %v1391 = vld [vmem:[#allocation11 + $0x518] sm:$0xff]
    %v1392 = vld [vmem:[#allocation11 + $0x520] sm:$0xff]
    %v1393 = vld [vmem:[#allocation11 + $0x528] sm:$0xff]
    %v1394 = vld [vmem:[#allocation11 + $0x530] sm:$0xff]
    %v1395 = vld [vmem:[#allocation11 + $0x538] sm:$0xff]
    %v1396 = vld [vmem:[#allocation11 + $0x540] sm:$0xff]
    %v1397 = vld [vmem:[#allocation11 + $0x548] sm:$0xff]
    %v1398 = vld [vmem:[#allocation11 + $0x550] sm:$0xff]
    %v1399 = vld [vmem:[#allocation11 + $0x558] sm:$0xff]
    %v1400 = vld [vmem:[#allocation11 + $0x560] sm:$0xff]
    %v1401 = vld [vmem:[#allocation11 + $0x568] sm:$0xff]
    %v1402 = vld [vmem:[#allocation11 + $0x570] sm:$0xff]
    %v1403 = vld [vmem:[#allocation11 + $0x578] sm:$0xff]
    %v1404 = vld [vmem:[#allocation11 + $0x580] sm:$0xff]
    %v1405 = vld [vmem:[#allocation11 + $0x588] sm:$0xff]
    %v1406 = vld [vmem:[#allocation11 + $0x590] sm:$0xff]
    %v1407 = vld [vmem:[#allocation11 + $0x598] sm:$0xff]
    %v1408 = vld [vmem:[#allocation11 + $0x5a0] sm:$0xff]
    %v1409 = vld [vmem:[#allocation11 + $0x5a8] sm:$0xff]
    %v1410 = vld [vmem:[#allocation11 + $0x5b0] sm:$0xff]
    %v1411 = vld [vmem:[#allocation11 + $0x5b8] sm:$0xff]
    %v1412 = vld [vmem:[#allocation11 + $0x5c0] sm:$0xff]
    %v1413 = vld [vmem:[#allocation11 + $0x5c8] sm:$0xff]
    %v1414 = vld [vmem:[#allocation11 + $0x5d0] sm:$0xff]
    %v1415 = vld [vmem:[#allocation11 + $0x5d8] sm:$0xff]
    %v1416 = vld [vmem:[#allocation11 + $0x5e0] sm:$0xff]
    %v1417 = vld [vmem:[#allocation11 + $0x5e8] sm:$0xff]
    %v1418 = vld [vmem:[#allocation11 + $0x5f0] sm:$0xff]
    %v1419 = vld [vmem:[#allocation11 + $0x5f8] sm:$0xff]
    %v1420 = vld [vmem:[#allocation11 + $0x600] sm:$0xff]
    %v1421 = vld [vmem:[#allocation11 + $0x608] sm:$0xff]
    %v1422 = vld [vmem:[#allocation11 + $0x610] sm:$0xff]
    %v1423 = vld [vmem:[#allocation11 + $0x618] sm:$0xff]
    %v1424 = vld [vmem:[#allocation11 + $0x620] sm:$0xff]
    %v1425 = vld [vmem:[#allocation11 + $0x628] sm:$0xff]
    %v1426 = vld [vmem:[#allocation11 + $0x630] sm:$0xff]
    %v1427 = vld [vmem:[#allocation11 + $0x638] sm:$0xff]
    %v1428 = vld [vmem:[#allocation11 + $0x640] sm:$0xff]
    %v1429 = vld [vmem:[#allocation11 + $0x648] sm:$0xff]
    %v1430 = vld [vmem:[#allocation11 + $0x650] sm:$0xff]
    %v1431 = vld [vmem:[#allocation11 + $0x658] sm:$0xff]
    %v1432 = vld [vmem:[#allocation11 + $0x660] sm:$0xff]
    %v1433 = vld [vmem:[#allocation11 + $0x668] sm:$0xff]
    %v1434 = vld [vmem:[#allocation11 + $0x670] sm:$0xff]
    %v1435 = vld [vmem:[#allocation11 + $0x678] sm:$0xff]
    %v1436 = vld [vmem:[#allocation11 + $0x680] sm:$0xff]
    %v1437 = vld [vmem:[#allocation11 + $0x688] sm:$0xff]
    %v1438 = vld [vmem:[#allocation11 + $0x690] sm:$0xff]
    %v1439 = vld [vmem:[#allocation11 + $0x698] sm:$0xff]
    %v1440 = vld [vmem:[#allocation11 + $0x6a0] sm:$0xff]
    %v1441 = vld [vmem:[#allocation11 + $0x6a8] sm:$0xff]
    %v1442 = vld [vmem:[#allocation11 + $0x6b0] sm:$0xff]
    %v1443 = vld [vmem:[#allocation11 + $0x6b8] sm:$0xff]
    %v1444 = vld [vmem:[#allocation11 + $0x6c0] sm:$0xff]
    %v1445 = vld [vmem:[#allocation11 + $0x6c8] sm:$0xff]
    %v1446 = vld [vmem:[#allocation11 + $0x6d0] sm:$0xff]
    %v1447 = vld [vmem:[#allocation11 + $0x6d8] sm:$0xff]
    %v1448 = vld [vmem:[#allocation11 + $0x6e0] sm:$0xff]
    %v1449 = vld [vmem:[#allocation11 + $0x6e8] sm:$0xff]
    %v1450 = vld [vmem:[#allocation11 + $0x6f0] sm:$0xff]
    %v1451 = vld [vmem:[#allocation11 + $0x6f8] sm:$0xff]
    %v1452 = vld [vmem:[#allocation11 + $0x700] sm:$0xff]
    %v1453 = vld [vmem:[#allocation11 + $0x708] sm:$0xff]
    %v1454 = vld [vmem:[#allocation11 + $0x710] sm:$0xff]
    %v1455 = vld [vmem:[#allocation11 + $0x718] sm:$0xff]
    %v1456 = vld [vmem:[#allocation11 + $0x720] sm:$0xff]
    %v1457 = vld [vmem:[#allocation11 + $0x728] sm:$0xff]
    %v1458 = vld [vmem:[#allocation11 + $0x730] sm:$0xff]
    %v1459 = vld [vmem:[#allocation11 + $0x738] sm:$0xff]
    %v1460 = vld [vmem:[#allocation11 + $0x740] sm:$0xff]
    %v1461 = vld [vmem:[#allocation11 + $0x748] sm:$0xff]
    %v1462 = vld [vmem:[#allocation11 + $0x750] sm:$0xff]
    %v1463 = vld [vmem:[#allocation11 + $0x758] sm:$0xff]
    %v1464 = vld [vmem:[#allocation11 + $0x760] sm:$0xff]
    %v1465 = vld [vmem:[#allocation11 + $0x768] sm:$0xff]
    %v1466 = vld [vmem:[#allocation11 + $0x770] sm:$0xff]
    %v1467 = vld [vmem:[#allocation11 + $0x778] sm:$0xff]
    %v1468 = vld [vmem:[#allocation11 + $0x780] sm:$0xff]
    %v1469 = vld [vmem:[#allocation11 + $0x788] sm:$0xff]
    %v1470 = vld [vmem:[#allocation11 + $0x790] sm:$0xff]
    %v1471 = vld [vmem:[#allocation11 + $0x798] sm:$0xff]
    %v1472 = vld [vmem:[#allocation11 + $0x7a0] sm:$0xff]
    %v1473 = vld [vmem:[#allocation11 + $0x7a8] sm:$0xff]
    %v1474 = vld [vmem:[#allocation11 + $0x7b0] sm:$0xff]
    %v1475 = vld [vmem:[#allocation11 + $0x7b8] sm:$0xff]
    %v1476 = vld [vmem:[#allocation11 + $0x7c0] sm:$0xff]
    %v1477 = vld [vmem:[#allocation11 + $0x7c8] sm:$0xff]
    %v1478 = vld [vmem:[#allocation11 + $0x7d0] sm:$0xff]
    %v1479 = vld [vmem:[#allocation11 + $0x7d8] sm:$0xff]
    %v1480 = vld [vmem:[#allocation11 + $0x7e0] sm:$0xff]
    %v1481 = vld [vmem:[#allocation11 + $0x7e8] sm:$0xff]
    %v1482 = vld [vmem:[#allocation11 + $0x7f0] sm:$0xff]
    %v1483 = vld [vmem:[#allocation11 + $0x7f8] sm:$0xff]
    %v1484 = vld [vmem:[#allocation11 + $0x800] sm:$0xff]
    %v1485 = vld [vmem:[#allocation11 + $0x808] sm:$0xff]
    %v1486 = vld [vmem:[#allocation11 + $0x810] sm:$0xff]
    %v1487 = vld [vmem:[#allocation11 + $0x818] sm:$0xff]
    %v1488 = vld [vmem:[#allocation11 + $0x820] sm:$0xff]
    %v1489 = vld [vmem:[#allocation11 + $0x828] sm:$0xff]
    %v1490 = vld [vmem:[#allocation11 + $0x830] sm:$0xff]
    %v1491 = vld [vmem:[#allocation11 + $0x838] sm:$0xff]
    %v1492 = vld [vmem:[#allocation11 + $0x840] sm:$0xff]
    %v1493 = vld [vmem:[#allocation11 + $0x848] sm:$0xff]
    %v1494 = vld [vmem:[#allocation11 + $0x850] sm:$0xff]
    %v1495 = vld [vmem:[#allocation11 + $0x858] sm:$0xff]
    %v1496 = vld [vmem:[#allocation11 + $0x860] sm:$0xff]
    %v1497 = vld [vmem:[#allocation11 + $0x868] sm:$0xff]
    %v1498 = vld [vmem:[#allocation11 + $0x870] sm:$0xff]
    %v1499 = vld [vmem:[#allocation11 + $0x878] sm:$0xff]
    %v1500 = vld [vmem:[#allocation11 + $0x880] sm:$0xff]
    %v1501 = vld [vmem:[#allocation11 + $0x888] sm:$0xff]
    %v1502 = vld [vmem:[#allocation11 + $0x890] sm:$0xff]
    %v1503 = vld [vmem:[#allocation11 + $0x898] sm:$0xff]
    %v1504 = vld [vmem:[#allocation11 + $0x8a0] sm:$0xff]
    %v1505 = vld [vmem:[#allocation11 + $0x8a8] sm:$0xff]
    %v1506 = vld [vmem:[#allocation11 + $0x8b0] sm:$0xff]
    %v1507 = vld [vmem:[#allocation11 + $0x8b8] sm:$0xff]
    %v1508 = vld [vmem:[#allocation11 + $0x8c0] sm:$0xff]
    %v1509 = vld [vmem:[#allocation11 + $0x8c8] sm:$0xff]
    %v1510 = vld [vmem:[#allocation11 + $0x8d0] sm:$0xff]
    %v1511 = vld [vmem:[#allocation11 + $0x8d8] sm:$0xff]
    %v1512 = vld [vmem:[#allocation11 + $0x8e0] sm:$0xff]
    %v1513 = vld [vmem:[#allocation11 + $0x8e8] sm:$0xff]
    %v1514 = vld [vmem:[#allocation11 + $0x8f0] sm:$0xff]
    %v1515 = vld [vmem:[#allocation11 + $0x8f8] sm:$0xff]
    %v1516 = vld [vmem:[#allocation11 + $0x900] sm:$0xff]
    %v1517 = vld [vmem:[#allocation11 + $0x908] sm:$0xff]
    %v1518 = vld [vmem:[#allocation11 + $0x910] sm:$0xff]
    %v1519 = vld [vmem:[#allocation11 + $0x918] sm:$0xff]
    %v1520 = vld [vmem:[#allocation11 + $0x920] sm:$0xff]
    %v1521 = vld [vmem:[#allocation11 + $0x928] sm:$0xff]
    %v1522 = vld [vmem:[#allocation11 + $0x930] sm:$0xff]
    %v1523 = vld [vmem:[#allocation11 + $0x938] sm:$0xff]
    %v1524 = vld [vmem:[#allocation11 + $0x940] sm:$0xff]
    %v1525 = vld [vmem:[#allocation11 + $0x948] sm:$0xff]
    %v1526 = vld [vmem:[#allocation11 + $0x950] sm:$0xff]
    %v1527 = vld [vmem:[#allocation11 + $0x958] sm:$0xff]
    %v1528 = vld [vmem:[#allocation11 + $0x960] sm:$0xff]
    %v1529 = vld [vmem:[#allocation11 + $0x968] sm:$0xff]
    %v1530 = vld [vmem:[#allocation11 + $0x970] sm:$0xff]
    %v1531 = vld [vmem:[#allocation11 + $0x978] sm:$0xff]
    %v1532 = vld [vmem:[#allocation11 + $0x980] sm:$0xff]
    %v1533 = vld [vmem:[#allocation11 + $0x988] sm:$0xff]
    %v1534 = vld [vmem:[#allocation11 + $0x990] sm:$0xff]
    %v1535 = vld [vmem:[#allocation11 + $0x998] sm:$0xff]
    %v1536 = vld [vmem:[#allocation11 + $0x9a0] sm:$0xff]
    %v1537 = vld [vmem:[#allocation11 + $0x9a8] sm:$0xff]
    %v1538 = vld [vmem:[#allocation11 + $0x9b0] sm:$0xff]
    %v1539 = vld [vmem:[#allocation11 + $0x9b8] sm:$0xff]
    %v1540 = vld [vmem:[#allocation11 + $0x9c0] sm:$0xff]
    %v1541 = vld [vmem:[#allocation11 + $0x9c8] sm:$0xff]
    %v1542 = vld [vmem:[#allocation11 + $0x9d0] sm:$0xff]
    %v1543 = vld [vmem:[#allocation11 + $0x9d8] sm:$0xff]
    %v1544 = vld [vmem:[#allocation11 + $0x9e0] sm:$0xff]
    %v1545 = vld [vmem:[#allocation11 + $0x9e8] sm:$0xff]
    %v1546 = vld [vmem:[#allocation11 + $0x9f0] sm:$0xff]
    %v1547 = vld [vmem:[#allocation11 + $0x9f8] sm:$0xff]
    %v1548 = vld [vmem:[#allocation11 + $0xa00] sm:$0xff]
    %v1549 = vld [vmem:[#allocation11 + $0xa08] sm:$0xff]
    %v1550 = vld [vmem:[#allocation11 + $0xa10] sm:$0xff]
    %v1551 = vld [vmem:[#allocation11 + $0xa18] sm:$0xff]
    %v1552 = vld [vmem:[#allocation11 + $0xa20] sm:$0xff]
    %v1553 = vld [vmem:[#allocation11 + $0xa28] sm:$0xff]
    %v1554 = vld [vmem:[#allocation11 + $0xa30] sm:$0xff]
    %v1555 = vld [vmem:[#allocation11 + $0xa38] sm:$0xff]
    %v1556 = vld [vmem:[#allocation11 + $0xa40] sm:$0xff]
    %v1557 = vld [vmem:[#allocation11 + $0xa48] sm:$0xff]
    %v1558 = vld [vmem:[#allocation11 + $0xa50] sm:$0xff]
    %v1559 = vld [vmem:[#allocation11 + $0xa58] sm:$0xff]
    %v1560 = vld [vmem:[#allocation11 + $0xa60] sm:$0xff]
    %v1561 = vld [vmem:[#allocation11 + $0xa68] sm:$0xff]
    %v1562 = vld [vmem:[#allocation11 + $0xa70] sm:$0xff]
    %v1563 = vld [vmem:[#allocation11 + $0xa78] sm:$0xff]
    %v1564 = vld [vmem:[#allocation11 + $0xa80] sm:$0xff]
    %v1565 = vld [vmem:[#allocation11 + $0xa88] sm:$0xff]
    %v1566 = vld [vmem:[#allocation11 + $0xa90] sm:$0xff]
    %v1567 = vld [vmem:[#allocation11 + $0xa98] sm:$0xff]
    %v1568 = vld [vmem:[#allocation11 + $0xaa0] sm:$0xff]
    %v1569 = vld [vmem:[#allocation11 + $0xaa8] sm:$0xff]
    %v1570 = vld [vmem:[#allocation11 + $0xab0] sm:$0xff]
    %v1571 = vld [vmem:[#allocation11 + $0xab8] sm:$0xff]
    %v1572 = vld [vmem:[#allocation11 + $0xac0] sm:$0xff]
    %v1573 = vld [vmem:[#allocation11 + $0xac8] sm:$0xff]
    %v1574 = vld [vmem:[#allocation11 + $0xad0] sm:$0xff]
    %v1575 = vld [vmem:[#allocation11 + $0xad8] sm:$0xff]
    %v1576 = vld [vmem:[#allocation11 + $0xae0] sm:$0xff]
    %v1577 = vld [vmem:[#allocation11 + $0xae8] sm:$0xff]
    %v1578 = vld [vmem:[#allocation11 + $0xaf0] sm:$0xff]
    %v1579 = vld [vmem:[#allocation11 + $0xaf8] sm:$0xff]
    %v1580 = vld [vmem:[#allocation11 + $0xb00] sm:$0xff]
    %v1581 = vld [vmem:[#allocation11 + $0xb08] sm:$0xff]
    %v1582 = vld [vmem:[#allocation11 + $0xb10] sm:$0xff]
    %v1583 = vld [vmem:[#allocation11 + $0xb18] sm:$0xff]
    %v1584 = vld [vmem:[#allocation11 + $0xb20] sm:$0xff]
    %v1585 = vld [vmem:[#allocation11 + $0xb28] sm:$0xff]
    %v1586 = vld [vmem:[#allocation11 + $0xb30] sm:$0xff]
    %v1587 = vld [vmem:[#allocation11 + $0xb38] sm:$0xff]
    %v1588 = vld [vmem:[#allocation11 + $0xb40] sm:$0xff]
    %v1589 = vld [vmem:[#allocation11 + $0xb48] sm:$0xff]
    %v1590 = vld [vmem:[#allocation11 + $0xb50] sm:$0xff]
    %v1591 = vld [vmem:[#allocation11 + $0xb58] sm:$0xff]
    %v1592 = vld [vmem:[#allocation11 + $0xb60] sm:$0xff]
    %v1593 = vld [vmem:[#allocation11 + $0xb68] sm:$0xff]
    %v1594 = vld [vmem:[#allocation11 + $0xb70] sm:$0xff]
    %v1595 = vld [vmem:[#allocation11 + $0xb78] sm:$0xff]
    %v1596 = vld [vmem:[#allocation11 + $0xb80] sm:$0xff]
    %v1597 = vld [vmem:[#allocation11 + $0xb88] sm:$0xff]
    %v1598 = vld [vmem:[#allocation11 + $0xb90] sm:$0xff]
    %v1599 = vld [vmem:[#allocation11 + $0xb98] sm:$0xff]
    %v1600 = vld [vmem:[#allocation11 + $0xba0] sm:$0xff]
    %v1601 = vld [vmem:[#allocation11 + $0xba8] sm:$0xff]
    %v1602 = vld [vmem:[#allocation11 + $0xbb0] sm:$0xff]
    %v1603 = vld [vmem:[#allocation11 + $0xbb8] sm:$0xff]
    %v1604 = vld [vmem:[#allocation11 + $0xbc0] sm:$0xff]
    %v1605 = vld [vmem:[#allocation11 + $0xbc8] sm:$0xff]
    %v1606 = vld [vmem:[#allocation11 + $0xbd0] sm:$0xff]
    %v1607 = vld [vmem:[#allocation11 + $0xbd8] sm:$0xff]
    %v1608 = vld [vmem:[#allocation11 + $0xbe0] sm:$0xff]
    %v1609 = vld [vmem:[#allocation11 + $0xbe8] sm:$0xff]
    %v1610 = vld [vmem:[#allocation11 + $0xbf0] sm:$0xff]
    %v1611 = vld [vmem:[#allocation11 + $0xbf8] sm:$0xff]
    %v1612 = vld [vmem:[#allocation11 + $0xc00] sm:$0xff]
    %v1613 = vld [vmem:[#allocation11 + $0xc08] sm:$0xff]
    %v1614 = vld [vmem:[#allocation11 + $0xc10] sm:$0xff]
    %v1615 = vld [vmem:[#allocation11 + $0xc18] sm:$0xff]
    %v1616 = vld [vmem:[#allocation11 + $0xc20] sm:$0xff]
    %v1617 = vld [vmem:[#allocation11 + $0xc28] sm:$0xff]
    %v1618 = vld [vmem:[#allocation11 + $0xc30] sm:$0xff]
    %v1619 = vld [vmem:[#allocation11 + $0xc38] sm:$0xff]
    %v1620 = vld [vmem:[#allocation11 + $0xc40] sm:$0xff]
    %v1621 = vld [vmem:[#allocation11 + $0xc48] sm:$0xff]
    %v1622 = vld [vmem:[#allocation11 + $0xc50] sm:$0xff]
    %v1623 = vld [vmem:[#allocation11 + $0xc58] sm:$0xff]
    %v1624 = vld [vmem:[#allocation11 + $0xc60] sm:$0xff]
    %v1625 = vld [vmem:[#allocation11 + $0xc68] sm:$0xff]
    %v1626 = vld [vmem:[#allocation11 + $0xc70] sm:$0xff]
    %v1627 = vld [vmem:[#allocation11 + $0xc78] sm:$0xff]
    %v1628 = vld [vmem:[#allocation11 + $0xc80] sm:$0xff]
    %v1629 = vld [vmem:[#allocation11 + $0xc88] sm:$0xff]
    %v1630 = vld [vmem:[#allocation11 + $0xc90] sm:$0xff]
    %v1631 = vld [vmem:[#allocation11 + $0xc98] sm:$0xff]
    %v1632 = vld [vmem:[#allocation11 + $0xca0] sm:$0xff]
    %v1633 = vld [vmem:[#allocation11 + $0xca8] sm:$0xff]
    %v1634 = vld [vmem:[#allocation11 + $0xcb0] sm:$0xff]
    %v1635 = vld [vmem:[#allocation11 + $0xcb8] sm:$0xff]
    %v1636 = vld [vmem:[#allocation11 + $0xcc0] sm:$0xff]
    %v1637 = vld [vmem:[#allocation11 + $0xcc8] sm:$0xff]
    %v1638 = vld [vmem:[#allocation11 + $0xcd0] sm:$0xff]
    %v1639 = vld [vmem:[#allocation11 + $0xcd8] sm:$0xff]
    %v1640 = vld [vmem:[#allocation11 + $0xce0] sm:$0xff]
    %v1641 = vld [vmem:[#allocation11 + $0xce8] sm:$0xff]
    %v1642 = vld [vmem:[#allocation11 + $0xcf0] sm:$0xff]
    %v1643 = vld [vmem:[#allocation11 + $0xcf8] sm:$0xff]
    %v1644 = vld [vmem:[#allocation11 + $0xd00] sm:$0xff]
    %v1645 = vld [vmem:[#allocation11 + $0xd08] sm:$0xff]
    %v1646 = vld [vmem:[#allocation11 + $0xd10] sm:$0xff]
    %v1647 = vld [vmem:[#allocation11 + $0xd18] sm:$0xff]
    %v1648 = vld [vmem:[#allocation11 + $0xd20] sm:$0xff]
    %v1649 = vld [vmem:[#allocation11 + $0xd28] sm:$0xff]
    %v1650 = vld [vmem:[#allocation11 + $0xd30] sm:$0xff]
    %v1651 = vld [vmem:[#allocation11 + $0xd38] sm:$0xff]
    %v1652 = vld [vmem:[#allocation11 + $0xd40] sm:$0xff]
    %v1653 = vld [vmem:[#allocation11 + $0xd48] sm:$0xff]
    %v1654 = vld [vmem:[#allocation11 + $0xd50] sm:$0xff]
    %v1655 = vld [vmem:[#allocation11 + $0xd58] sm:$0xff]
    %v1656 = vld [vmem:[#allocation11 + $0xd60] sm:$0xff]
    %v1657 = vld [vmem:[#allocation11 + $0xd68] sm:$0xff]
    %v1658 = vld [vmem:[#allocation11 + $0xd70] sm:$0xff]
    %v1659 = vld [vmem:[#allocation11 + $0xd78] sm:$0xff]
    %v1660 = vld [vmem:[#allocation11 + $0xd80] sm:$0xff]
    %v1661 = vld [vmem:[#allocation11 + $0xd88] sm:$0xff]
    %v1662 = vld [vmem:[#allocation11 + $0xd90] sm:$0xff]
    %v1663 = vld [vmem:[#allocation11 + $0xd98] sm:$0xff]
    %v1664 = vld [vmem:[#allocation11 + $0xda0] sm:$0xff]
    %v1665 = vld [vmem:[#allocation11 + $0xda8] sm:$0xff]
    %v1666 = vld [vmem:[#allocation11 + $0xdb0] sm:$0xff]
    %v1667 = vld [vmem:[#allocation11 + $0xdb8] sm:$0xff]
    %v1668 = vld [vmem:[#allocation11 + $0xdc0] sm:$0xff]
    %v1669 = vld [vmem:[#allocation11 + $0xdc8] sm:$0xff]
    %v1670 = vld [vmem:[#allocation11 + $0xdd0] sm:$0xff]
    %v1671 = vld [vmem:[#allocation11 + $0xdd8] sm:$0xff]
    %v1672 = vld [vmem:[#allocation11 + $0xde0] sm:$0xff]
    %v1673 = vld [vmem:[#allocation11 + $0xde8] sm:$0xff]
    %v1674 = vld [vmem:[#allocation11 + $0xdf0] sm:$0xff]
    %v1675 = vld [vmem:[#allocation11 + $0xdf8] sm:$0xff]
    %v1676 = vld [vmem:[#allocation11 + $0xe00] sm:$0xff]
    %v1677 = vld [vmem:[#allocation11 + $0xe08] sm:$0xff]
    %v1678 = vld [vmem:[#allocation11 + $0xe10] sm:$0xff]
    %v1679 = vld [vmem:[#allocation11 + $0xe18] sm:$0xff]
    %v1680 = vld [vmem:[#allocation11 + $0xe20] sm:$0xff]
    %v1681 = vld [vmem:[#allocation11 + $0xe28] sm:$0xff]
    %v1682 = vld [vmem:[#allocation11 + $0xe30] sm:$0xff]
    %v1683 = vld [vmem:[#allocation11 + $0xe38] sm:$0xff]
    %v1684 = vld [vmem:[#allocation11 + $0xe40] sm:$0xff]
    %v1685 = vld [vmem:[#allocation11 + $0xe48] sm:$0xff]
    %v1686 = vld [vmem:[#allocation11 + $0xe50] sm:$0xff]
    %v1687 = vld [vmem:[#allocation11 + $0xe58] sm:$0xff]
    %v1688 = vld [vmem:[#allocation11 + $0xe60] sm:$0xff]
    %v1689 = vld [vmem:[#allocation11 + $0xe68] sm:$0xff]
    %v1690 = vld [vmem:[#allocation11 + $0xe70] sm:$0xff]
    %v1691 = vld [vmem:[#allocation11 + $0xe78] sm:$0xff]
    %v1692 = vld [vmem:[#allocation11 + $0xe80] sm:$0xff]
    %v1693 = vld [vmem:[#allocation11 + $0xe88] sm:$0xff]
    %v1694 = vld [vmem:[#allocation11 + $0xe90] sm:$0xff]
    %v1695 = vld [vmem:[#allocation11 + $0xe98] sm:$0xff]
    %v1696 = vld [vmem:[#allocation11 + $0xea0] sm:$0xff]
    %v1697 = vld [vmem:[#allocation11 + $0xea8] sm:$0xff]
    %v1698 = vld [vmem:[#allocation11 + $0xeb0] sm:$0xff]
    %v1699 = vld [vmem:[#allocation11 + $0xeb8] sm:$0xff]
    %v1700 = vld [vmem:[#allocation11 + $0xec0] sm:$0xff]
    %v1701 = vld [vmem:[#allocation11 + $0xec8] sm:$0xff]
    %v1702 = vld [vmem:[#allocation11 + $0xed0] sm:$0xff]
    %v1703 = vld [vmem:[#allocation11 + $0xed8] sm:$0xff]
    %v1704 = vld [vmem:[#allocation11 + $0xee0] sm:$0xff]
    %v1705 = vld [vmem:[#allocation11 + $0xee8] sm:$0xff]
    %v1706 = vld [vmem:[#allocation11 + $0xef0] sm:$0xff]
    %v1707 = vld [vmem:[#allocation11 + $0xef8] sm:$0xff]
    %v1708 = vld [vmem:[#allocation11 + $0xf00] sm:$0xff]
    %v1709 = vld [vmem:[#allocation11 + $0xf08] sm:$0xff]
    %v1710 = vld [vmem:[#allocation11 + $0xf10] sm:$0xff]
    %v1711 = vld [vmem:[#allocation11 + $0xf18] sm:$0xff]
    %v1712 = vld [vmem:[#allocation11 + $0xf20] sm:$0xff]
    %v1713 = vld [vmem:[#allocation11 + $0xf28] sm:$0xff]
    %v1714 = vld [vmem:[#allocation11 + $0xf30] sm:$0xff]
    %v1715 = vld [vmem:[#allocation11 + $0xf38] sm:$0xff]
    %v1716 = vld [vmem:[#allocation11 + $0xf40] sm:$0xff]
    %v1717 = vld [vmem:[#allocation11 + $0xf48] sm:$0xff]
    %v1718 = vld [vmem:[#allocation11 + $0xf50] sm:$0xff]
    %v1719 = vld [vmem:[#allocation11 + $0xf58] sm:$0xff]
    %v1720 = vld [vmem:[#allocation11 + $0xf60] sm:$0xff]
    %v1721 = vld [vmem:[#allocation11 + $0xf68] sm:$0xff]
    %v1722 = vld [vmem:[#allocation11 + $0xf70] sm:$0xff]
    %v1723 = vld [vmem:[#allocation11 + $0xf78] sm:$0xff]
    %v1724 = vld [vmem:[#allocation11 + $0xf80] sm:$0xff]
    %v1725 = vld [vmem:[#allocation11 + $0xf88] sm:$0xff]
    %v1726 = vld [vmem:[#allocation11 + $0xf90] sm:$0xff]
    %v1727 = vld [vmem:[#allocation11 + $0xf98] sm:$0xff]
    %v1728 = vld [vmem:[#allocation11 + $0xfa0] sm:$0xff]
    %v1729 = vld [vmem:[#allocation11 + $0xfa8] sm:$0xff]
    %v1730 = vld [vmem:[#allocation11 + $0xfb0] sm:$0xff]
    %v1731 = vld [vmem:[#allocation11 + $0xfb8] sm:$0xff]
    %v1732 = vld [vmem:[#allocation11 + $0xfc0] sm:$0xff]
    %v1733 = vld [vmem:[#allocation11 + $0xfc8] sm:$0xff]
    %v1734 = vld [vmem:[#allocation11 + $0xfd0] sm:$0xff]
    %v1735 = vld [vmem:[#allocation11 + $0xfd8] sm:$0xff]
    %v1736 = vld [vmem:[#allocation11 + $0xfe0] sm:$0xff]
    %v1737 = vld [vmem:[#allocation11 + $0xfe8] sm:$0xff]
    %v1738 = vld [vmem:[#allocation11 + $0xff0] sm:$0xff]
    %v1739 = vld [vmem:[#allocation11 + $0xff8] sm:$0xff]
    %v1740 = vld [vmem:[#allocation13] sm:$0xff]
    %v1742 = vlaneseq
    %v1743 = vshrl.u32 %v1742, 7
    %v1744 = vsub.s32 0, %v1743
    %v1745 = vrot.slane %v1740, %v1744
    %v1746 = vlaneseq
    %v1747 = vshrl.u32 %v1746, 7
    %v1748 = vsub.s32 1, %v1747
    %v1749 = vrot.slane %v1740, %v1748
    %v1750 = vlaneseq
    %v1751 = vshrl.u32 %v1750, 7
    %v1752 = vsub.s32 2, %v1751
    %v1753 = vrot.slane %v1740, %v1752
    %v1754 = vlaneseq
    %v1755 = vshrl.u32 %v1754, 7
    %v1756 = vsub.s32 3, %v1755
    %v1757 = vrot.slane %v1740, %v1756
    %v1758 = vlaneseq
    %v1759 = vshrl.u32 %v1758, 7
    %v1760 = vsub.s32 4, %v1759
    %v1761 = vrot.slane %v1740, %v1760
    %v1762 = vlaneseq
    %v1763 = vshrl.u32 %v1762, 7
    %v1764 = vsub.s32 5, %v1763
    %v1765 = vrot.slane %v1740, %v1764
    %v1766 = vlaneseq
    %v1767 = vshrl.u32 %v1766, 7
    %v1768 = vsub.s32 6, %v1767
    %v1769 = vrot.slane %v1740, %v1768
    %v1770 = vlaneseq
    %v1771 = vshrl.u32 %v1770, 7
    %v1772 = vsub.s32 7, %v1771
    %v1773 = vrot.slane %v1740, %v1772
    %v2294 = vunpack.c.l.b16 %v1228
    %v2295 = vunpack.c.h.b16 %v1228
    %v2296 = vunpack.c.l.b16 %v1229
    %v2297 = vunpack.c.h.b16 %v1229
    %v2298 = vunpack.c.l.b16 %v1230
    %v2299 = vunpack.c.h.b16 %v1230
    %v2300 = vunpack.c.l.b16 %v1231
    %v2301 = vunpack.c.h.b16 %v1231
    %v2302 = vunpack.c.l.b16 %v1232
    %v2303 = vunpack.c.h.b16 %v1232
    %v2304 = vunpack.c.l.b16 %v1233
    %v2305 = vunpack.c.h.b16 %v1233
    %v2306 = vunpack.c.l.b16 %v1234
    %v2307 = vunpack.c.h.b16 %v1234
    %v2308 = vunpack.c.l.b16 %v1235
    %v2309 = vunpack.c.h.b16 %v1235
    %v2310 = vunpack.c.l.b16 %v1236
    %v2311 = vunpack.c.h.b16 %v1236
    %v2312 = vunpack.c.l.b16 %v1237
    %v2313 = vunpack.c.h.b16 %v1237
    %v2314 = vunpack.c.l.b16 %v1238
    %v2315 = vunpack.c.h.b16 %v1238
    %v2316 = vunpack.c.l.b16 %v1239
    %v2317 = vunpack.c.h.b16 %v1239
    %v2318 = vunpack.c.l.b16 %v1240
    %v2319 = vunpack.c.h.b16 %v1240
    %v2320 = vunpack.c.l.b16 %v1241
    %v2321 = vunpack.c.h.b16 %v1241
    %v2322 = vunpack.c.l.b16 %v1242
    %v2323 = vunpack.c.h.b16 %v1242
    %v2324 = vunpack.c.l.b16 %v1243
    %v2325 = vunpack.c.h.b16 %v1243
    %v2326 = vunpack.c.l.b16 %v1244
    %v2327 = vunpack.c.h.b16 %v1244
    %v2328 = vunpack.c.l.b16 %v1245
    %v2329 = vunpack.c.h.b16 %v1245
    %v2330 = vunpack.c.l.b16 %v1246
    %v2331 = vunpack.c.h.b16 %v1246
    %v2332 = vunpack.c.l.b16 %v1247
    %v2333 = vunpack.c.h.b16 %v1247
    %v2334 = vunpack.c.l.b16 %v1248
    %v2335 = vunpack.c.h.b16 %v1248
    %v2336 = vunpack.c.l.b16 %v1249
    %v2337 = vunpack.c.h.b16 %v1249
    %v2338 = vunpack.c.l.b16 %v1250
    %v2339 = vunpack.c.h.b16 %v1250
    %v2340 = vunpack.c.l.b16 %v1251
    %v2341 = vunpack.c.h.b16 %v1251
    %v2342 = vunpack.c.l.b16 %v1252
    %v2343 = vunpack.c.h.b16 %v1252
    %v2344 = vunpack.c.l.b16 %v1253
    %v2345 = vunpack.c.h.b16 %v1253
    %v2346 = vunpack.c.l.b16 %v1254
    %v2347 = vunpack.c.h.b16 %v1254
    %v2348 = vunpack.c.l.b16 %v1255
    %v2349 = vunpack.c.h.b16 %v1255
    %v2350 = vunpack.c.l.b16 %v1256
    %v2351 = vunpack.c.h.b16 %v1256
    %v2352 = vunpack.c.l.b16 %v1257
    %v2353 = vunpack.c.h.b16 %v1257
    %v2354 = vunpack.c.l.b16 %v1258
    %v2355 = vunpack.c.h.b16 %v1258
    %v2356 = vunpack.c.l.b16 %v1259
    %v2357 = vunpack.c.h.b16 %v1259
    %v2358 = vunpack.c.l.b16 %v1260
    %v2359 = vunpack.c.h.b16 %v1260
    %v2360 = vunpack.c.l.b16 %v1261
    %v2361 = vunpack.c.h.b16 %v1261
    %v2362 = vunpack.c.l.b16 %v1262
    %v2363 = vunpack.c.h.b16 %v1262
    %v2364 = vunpack.c.l.b16 %v1263
    %v2365 = vunpack.c.h.b16 %v1263
    %v2366 = vunpack.c.l.b16 %v1264
    %v2367 = vunpack.c.h.b16 %v1264
    %v2368 = vunpack.c.l.b16 %v1265
    %v2369 = vunpack.c.h.b16 %v1265
    %v2370 = vunpack.c.l.b16 %v1266
    %v2371 = vunpack.c.h.b16 %v1266
    %v2372 = vunpack.c.l.b16 %v1267
    %v2373 = vunpack.c.h.b16 %v1267
    %v2374 = vunpack.c.l.b16 %v1268
    %v2375 = vunpack.c.h.b16 %v1268
    %v2376 = vunpack.c.l.b16 %v1269
    %v2377 = vunpack.c.h.b16 %v1269
    %v2378 = vunpack.c.l.b16 %v1270
    %v2379 = vunpack.c.h.b16 %v1270
    %v2380 = vunpack.c.l.b16 %v1271
    %v2381 = vunpack.c.h.b16 %v1271
    %v2382 = vunpack.c.l.b16 %v1272
    %v2383 = vunpack.c.h.b16 %v1272
    %v2384 = vunpack.c.l.b16 %v1273
    %v2385 = vunpack.c.h.b16 %v1273
    %v2386 = vunpack.c.l.b16 %v1274
    %v2387 = vunpack.c.h.b16 %v1274
    %v2388 = vunpack.c.l.b16 %v1275
    %v2389 = vunpack.c.h.b16 %v1275
    %v2390 = vunpack.c.l.b16 %v1276
    %v2391 = vunpack.c.h.b16 %v1276
    %v2392 = vunpack.c.l.b16 %v1277
    %v2393 = vunpack.c.h.b16 %v1277
    %v2394 = vunpack.c.l.b16 %v1278
    %v2395 = vunpack.c.h.b16 %v1278
    %v2396 = vunpack.c.l.b16 %v1279
    %v2397 = vunpack.c.h.b16 %v1279
    %v2398 = vunpack.c.l.b16 %v1280
    %v2399 = vunpack.c.h.b16 %v1280
    %v2400 = vunpack.c.l.b16 %v1281
    %v2401 = vunpack.c.h.b16 %v1281
    %v2402 = vunpack.c.l.b16 %v1282
    %v2403 = vunpack.c.h.b16 %v1282
    %v2404 = vunpack.c.l.b16 %v1283
    %v2405 = vunpack.c.h.b16 %v1283
    %v2406 = vunpack.c.l.b16 %v1284
    %v2407 = vunpack.c.h.b16 %v1284
    %v2408 = vunpack.c.l.b16 %v1285
    %v2409 = vunpack.c.h.b16 %v1285
    %v2410 = vunpack.c.l.b16 %v1286
    %v2411 = vunpack.c.h.b16 %v1286
    %v2412 = vunpack.c.l.b16 %v1287
    %v2413 = vunpack.c.h.b16 %v1287
    %v2414 = vunpack.c.l.b16 %v1288
    %v2415 = vunpack.c.h.b16 %v1288
    %v2416 = vunpack.c.l.b16 %v1289
    %v2417 = vunpack.c.h.b16 %v1289
    %v2418 = vunpack.c.l.b16 %v1290
    %v2419 = vunpack.c.h.b16 %v1290
    %v2420 = vunpack.c.l.b16 %v1291
    %v2421 = vunpack.c.h.b16 %v1291
    %v2422 = vunpack.c.l.b16 %v1292
    %v2423 = vunpack.c.h.b16 %v1292
    %v2424 = vunpack.c.l.b16 %v1293
    %v2425 = vunpack.c.h.b16 %v1293
    %v2426 = vunpack.c.l.b16 %v1294
    %v2427 = vunpack.c.h.b16 %v1294
    %v2428 = vunpack.c.l.b16 %v1295
    %v2429 = vunpack.c.h.b16 %v1295
    %v2430 = vunpack.c.l.b16 %v1296
    %v2431 = vunpack.c.h.b16 %v1296
    %v2432 = vunpack.c.l.b16 %v1297
    %v2433 = vunpack.c.h.b16 %v1297
    %v2434 = vunpack.c.l.b16 %v1298
    %v2435 = vunpack.c.h.b16 %v1298
    %v2436 = vunpack.c.l.b16 %v1299
    %v2437 = vunpack.c.h.b16 %v1299
    %v2438 = vunpack.c.l.b16 %v1300
    %v2439 = vunpack.c.h.b16 %v1300
    %v2440 = vunpack.c.l.b16 %v1301
    %v2441 = vunpack.c.h.b16 %v1301
    %v2442 = vunpack.c.l.b16 %v1302
    %v2443 = vunpack.c.h.b16 %v1302
    %v2444 = vunpack.c.l.b16 %v1303
    %v2445 = vunpack.c.h.b16 %v1303
    %v2446 = vunpack.c.l.b16 %v1304
    %v2447 = vunpack.c.h.b16 %v1304
    %v2448 = vunpack.c.l.b16 %v1305
    %v2449 = vunpack.c.h.b16 %v1305
    %v2450 = vunpack.c.l.b16 %v1306
    %v2451 = vunpack.c.h.b16 %v1306
    %v2452 = vunpack.c.l.b16 %v1307
    %v2453 = vunpack.c.h.b16 %v1307
    %v2454 = vunpack.c.l.b16 %v1308
    %v2455 = vunpack.c.h.b16 %v1308
    %v2456 = vunpack.c.l.b16 %v1309
    %v2457 = vunpack.c.h.b16 %v1309
    %v2458 = vunpack.c.l.b16 %v1310
    %v2459 = vunpack.c.h.b16 %v1310
    %v2460 = vunpack.c.l.b16 %v1311
    %v2461 = vunpack.c.h.b16 %v1311
    %v2462 = vunpack.c.l.b16 %v1312
    %v2463 = vunpack.c.h.b16 %v1312
    %v2464 = vunpack.c.l.b16 %v1313
    %v2465 = vunpack.c.h.b16 %v1313
    %v2466 = vunpack.c.l.b16 %v1314
    %v2467 = vunpack.c.h.b16 %v1314
    %v2468 = vunpack.c.l.b16 %v1315
    %v2469 = vunpack.c.h.b16 %v1315
    %v2470 = vunpack.c.l.b16 %v1316
    %v2471 = vunpack.c.h.b16 %v1316
    %v2472 = vunpack.c.l.b16 %v1317
    %v2473 = vunpack.c.h.b16 %v1317
    %v2474 = vunpack.c.l.b16 %v1318
    %v2475 = vunpack.c.h.b16 %v1318
    %v2476 = vunpack.c.l.b16 %v1319
    %v2477 = vunpack.c.h.b16 %v1319
    %v2478 = vunpack.c.l.b16 %v1320
    %v2479 = vunpack.c.h.b16 %v1320
    %v2480 = vunpack.c.l.b16 %v1321
    %v2481 = vunpack.c.h.b16 %v1321
    %v2482 = vunpack.c.l.b16 %v1322
    %v2483 = vunpack.c.h.b16 %v1322
    %v2484 = vunpack.c.l.b16 %v1323
    %v2485 = vunpack.c.h.b16 %v1323
    %v2486 = vunpack.c.l.b16 %v1324
    %v2487 = vunpack.c.h.b16 %v1324
    %v2488 = vunpack.c.l.b16 %v1325
    %v2489 = vunpack.c.h.b16 %v1325
    %v2490 = vunpack.c.l.b16 %v1326
    %v2491 = vunpack.c.h.b16 %v1326
    %v2492 = vunpack.c.l.b16 %v1327
    %v2493 = vunpack.c.h.b16 %v1327
    %v2494 = vunpack.c.l.b16 %v1328
    %v2495 = vunpack.c.h.b16 %v1328
    %v2496 = vunpack.c.l.b16 %v1329
    %v2497 = vunpack.c.h.b16 %v1329
    %v2498 = vunpack.c.l.b16 %v1330
    %v2499 = vunpack.c.h.b16 %v1330
    %v2500 = vunpack.c.l.b16 %v1331
    %v2501 = vunpack.c.h.b16 %v1331
    %v2502 = vunpack.c.l.b16 %v1332
    %v2503 = vunpack.c.h.b16 %v1332
    %v2504 = vunpack.c.l.b16 %v1333
    %v2505 = vunpack.c.h.b16 %v1333
    %v2506 = vunpack.c.l.b16 %v1334
    %v2507 = vunpack.c.h.b16 %v1334
    %v2508 = vunpack.c.l.b16 %v1335
    %v2509 = vunpack.c.h.b16 %v1335
    %v2510 = vunpack.c.l.b16 %v1336
    %v2511 = vunpack.c.h.b16 %v1336
    %v2512 = vunpack.c.l.b16 %v1337
    %v2513 = vunpack.c.h.b16 %v1337
    %v2514 = vunpack.c.l.b16 %v1338
    %v2515 = vunpack.c.h.b16 %v1338
    %v2516 = vunpack.c.l.b16 %v1339
    %v2517 = vunpack.c.h.b16 %v1339
    %v2518 = vunpack.c.l.b16 %v1340
    %v2519 = vunpack.c.h.b16 %v1340
    %v2520 = vunpack.c.l.b16 %v1341
    %v2521 = vunpack.c.h.b16 %v1341
    %v2522 = vunpack.c.l.b16 %v1342
    %v2523 = vunpack.c.h.b16 %v1342
    %v2524 = vunpack.c.l.b16 %v1343
    %v2525 = vunpack.c.h.b16 %v1343
    %v2526 = vunpack.c.l.b16 %v1344
    %v2527 = vunpack.c.h.b16 %v1344
    %v2528 = vunpack.c.l.b16 %v1345
    %v2529 = vunpack.c.h.b16 %v1345
    %v2530 = vunpack.c.l.b16 %v1346
    %v2531 = vunpack.c.h.b16 %v1346
    %v2532 = vunpack.c.l.b16 %v1347
    %v2533 = vunpack.c.h.b16 %v1347
    %v2534 = vunpack.c.l.b16 %v1348
    %v2535 = vunpack.c.h.b16 %v1348
    %v2536 = vunpack.c.l.b16 %v1349
    %v2537 = vunpack.c.h.b16 %v1349
    %v2538 = vunpack.c.l.b16 %v1350
    %v2539 = vunpack.c.h.b16 %v1350
    %v2540 = vunpack.c.l.b16 %v1351
    %v2541 = vunpack.c.h.b16 %v1351
    %v2542 = vunpack.c.l.b16 %v1352
    %v2543 = vunpack.c.h.b16 %v1352
    %v2544 = vunpack.c.l.b16 %v1353
    %v2545 = vunpack.c.h.b16 %v1353
    %v2546 = vunpack.c.l.b16 %v1354
    %v2547 = vunpack.c.h.b16 %v1354
    %v2548 = vunpack.c.l.b16 %v1355
    %v2549 = vunpack.c.h.b16 %v1355
    %v2550 = vunpack.c.l.b16 %v1356
    %v2551 = vunpack.c.h.b16 %v1356
    %v2552 = vunpack.c.l.b16 %v1357
    %v2553 = vunpack.c.h.b16 %v1357
    %v2554 = vunpack.c.l.b16 %v1358
    %v2555 = vunpack.c.h.b16 %v1358
    %v2556 = vunpack.c.l.b16 %v1359
    %v2557 = vunpack.c.h.b16 %v1359
    %v2558 = vunpack.c.l.b16 %v1360
    %v2559 = vunpack.c.h.b16 %v1360
    %v2560 = vunpack.c.l.b16 %v1361
    %v2561 = vunpack.c.h.b16 %v1361
    %v2562 = vunpack.c.l.b16 %v1362
    %v2563 = vunpack.c.h.b16 %v1362
    %v2564 = vunpack.c.l.b16 %v1363
    %v2565 = vunpack.c.h.b16 %v1363
    %v2566 = vunpack.c.l.b16 %v1364
    %v2567 = vunpack.c.h.b16 %v1364
    %v2568 = vunpack.c.l.b16 %v1365
    %v2569 = vunpack.c.h.b16 %v1365
    %v2570 = vunpack.c.l.b16 %v1366
    %v2571 = vunpack.c.h.b16 %v1366
    %v2572 = vunpack.c.l.b16 %v1367
    %v2573 = vunpack.c.h.b16 %v1367
    %v2574 = vunpack.c.l.b16 %v1368
    %v2575 = vunpack.c.h.b16 %v1368
    %v2576 = vunpack.c.l.b16 %v1369
    %v2577 = vunpack.c.h.b16 %v1369
    %v2578 = vunpack.c.l.b16 %v1370
    %v2579 = vunpack.c.h.b16 %v1370
    %v2580 = vunpack.c.l.b16 %v1371
    %v2581 = vunpack.c.h.b16 %v1371
    %v2582 = vunpack.c.l.b16 %v1372
    %v2583 = vunpack.c.h.b16 %v1372
    %v2584 = vunpack.c.l.b16 %v1373
    %v2585 = vunpack.c.h.b16 %v1373
    %v2586 = vunpack.c.l.b16 %v1374
    %v2587 = vunpack.c.h.b16 %v1374
    %v2588 = vunpack.c.l.b16 %v1375
    %v2589 = vunpack.c.h.b16 %v1375
    %v2590 = vunpack.c.l.b16 %v1376
    %v2591 = vunpack.c.h.b16 %v1376
    %v2592 = vunpack.c.l.b16 %v1377
    %v2593 = vunpack.c.h.b16 %v1377
    %v2594 = vunpack.c.l.b16 %v1378
    %v2595 = vunpack.c.h.b16 %v1378
    %v2596 = vunpack.c.l.b16 %v1379
    %v2597 = vunpack.c.h.b16 %v1379
    %v2598 = vunpack.c.l.b16 %v1380
    %v2599 = vunpack.c.h.b16 %v1380
    %v2600 = vunpack.c.l.b16 %v1381
    %v2601 = vunpack.c.h.b16 %v1381
    %v2602 = vunpack.c.l.b16 %v1382
    %v2603 = vunpack.c.h.b16 %v1382
    %v2604 = vunpack.c.l.b16 %v1383
    %v2605 = vunpack.c.h.b16 %v1383
    %v2606 = vunpack.c.l.b16 %v1384
    %v2607 = vunpack.c.h.b16 %v1384
    %v2608 = vunpack.c.l.b16 %v1385
    %v2609 = vunpack.c.h.b16 %v1385
    %v2610 = vunpack.c.l.b16 %v1386
    %v2611 = vunpack.c.h.b16 %v1386
    %v2612 = vunpack.c.l.b16 %v1387
    %v2613 = vunpack.c.h.b16 %v1387
    %v2614 = vunpack.c.l.b16 %v1388
    %v2615 = vunpack.c.h.b16 %v1388
    %v2616 = vunpack.c.l.b16 %v1389
    %v2617 = vunpack.c.h.b16 %v1389
    %v2618 = vunpack.c.l.b16 %v1390
    %v2619 = vunpack.c.h.b16 %v1390
    %v2620 = vunpack.c.l.b16 %v1391
    %v2621 = vunpack.c.h.b16 %v1391
    %v2622 = vunpack.c.l.b16 %v1392
    %v2623 = vunpack.c.h.b16 %v1392
    %v2624 = vunpack.c.l.b16 %v1393
    %v2625 = vunpack.c.h.b16 %v1393
    %v2626 = vunpack.c.l.b16 %v1394
    %v2627 = vunpack.c.h.b16 %v1394
    %v2628 = vunpack.c.l.b16 %v1395
    %v2629 = vunpack.c.h.b16 %v1395
    %v2630 = vunpack.c.l.b16 %v1396
    %v2631 = vunpack.c.h.b16 %v1396
    %v2632 = vunpack.c.l.b16 %v1397
    %v2633 = vunpack.c.h.b16 %v1397
    %v2634 = vunpack.c.l.b16 %v1398
    %v2635 = vunpack.c.h.b16 %v1398
    %v2636 = vunpack.c.l.b16 %v1399
    %v2637 = vunpack.c.h.b16 %v1399
    %v2638 = vunpack.c.l.b16 %v1400
    %v2639 = vunpack.c.h.b16 %v1400
    %v2640 = vunpack.c.l.b16 %v1401
    %v2641 = vunpack.c.h.b16 %v1401
    %v2642 = vunpack.c.l.b16 %v1402
    %v2643 = vunpack.c.h.b16 %v1402
    %v2644 = vunpack.c.l.b16 %v1403
    %v2645 = vunpack.c.h.b16 %v1403
    %v2646 = vunpack.c.l.b16 %v1404
    %v2647 = vunpack.c.h.b16 %v1404
    %v2648 = vunpack.c.l.b16 %v1405
    %v2649 = vunpack.c.h.b16 %v1405
    %v2650 = vunpack.c.l.b16 %v1406
    %v2651 = vunpack.c.h.b16 %v1406
    %v2652 = vunpack.c.l.b16 %v1407
    %v2653 = vunpack.c.h.b16 %v1407
    %v2654 = vunpack.c.l.b16 %v1408
    %v2655 = vunpack.c.h.b16 %v1408
    %v2656 = vunpack.c.l.b16 %v1409
    %v2657 = vunpack.c.h.b16 %v1409
    %v2658 = vunpack.c.l.b16 %v1410
    %v2659 = vunpack.c.h.b16 %v1410
    %v2660 = vunpack.c.l.b16 %v1411
    %v2661 = vunpack.c.h.b16 %v1411
    %v2662 = vunpack.c.l.b16 %v1412
    %v2663 = vunpack.c.h.b16 %v1412
    %v2664 = vunpack.c.l.b16 %v1413
    %v2665 = vunpack.c.h.b16 %v1413
    %v2666 = vunpack.c.l.b16 %v1414
    %v2667 = vunpack.c.h.b16 %v1414
    %v2668 = vunpack.c.l.b16 %v1415
    %v2669 = vunpack.c.h.b16 %v1415
    %v2670 = vunpack.c.l.b16 %v1416
    %v2671 = vunpack.c.h.b16 %v1416
    %v2672 = vunpack.c.l.b16 %v1417
    %v2673 = vunpack.c.h.b16 %v1417
    %v2674 = vunpack.c.l.b16 %v1418
    %v2675 = vunpack.c.h.b16 %v1418
    %v2676 = vunpack.c.l.b16 %v1419
    %v2677 = vunpack.c.h.b16 %v1419
    %v2678 = vunpack.c.l.b16 %v1420
    %v2679 = vunpack.c.h.b16 %v1420
    %v2680 = vunpack.c.l.b16 %v1421
    %v2681 = vunpack.c.h.b16 %v1421
    %v2682 = vunpack.c.l.b16 %v1422
    %v2683 = vunpack.c.h.b16 %v1422
    %v2684 = vunpack.c.l.b16 %v1423
    %v2685 = vunpack.c.h.b16 %v1423
    %v2686 = vunpack.c.l.b16 %v1424
    %v2687 = vunpack.c.h.b16 %v1424
    %v2688 = vunpack.c.l.b16 %v1425
    %v2689 = vunpack.c.h.b16 %v1425
    %v2690 = vunpack.c.l.b16 %v1426
    %v2691 = vunpack.c.h.b16 %v1426
    %v2692 = vunpack.c.l.b16 %v1427
    %v2693 = vunpack.c.h.b16 %v1427
    %v2694 = vunpack.c.l.b16 %v1428
    %v2695 = vunpack.c.h.b16 %v1428
    %v2696 = vunpack.c.l.b16 %v1429
    %v2697 = vunpack.c.h.b16 %v1429
    %v2698 = vunpack.c.l.b16 %v1430
    %v2699 = vunpack.c.h.b16 %v1430
    %v2700 = vunpack.c.l.b16 %v1431
    %v2701 = vunpack.c.h.b16 %v1431
    %v2702 = vunpack.c.l.b16 %v1432
    %v2703 = vunpack.c.h.b16 %v1432
    %v2704 = vunpack.c.l.b16 %v1433
    %v2705 = vunpack.c.h.b16 %v1433
    %v2706 = vunpack.c.l.b16 %v1434
    %v2707 = vunpack.c.h.b16 %v1434
    %v2708 = vunpack.c.l.b16 %v1435
    %v2709 = vunpack.c.h.b16 %v1435
    %v2710 = vunpack.c.l.b16 %v1436
    %v2711 = vunpack.c.h.b16 %v1436
    %v2712 = vunpack.c.l.b16 %v1437
    %v2713 = vunpack.c.h.b16 %v1437
    %v2714 = vunpack.c.l.b16 %v1438
    %v2715 = vunpack.c.h.b16 %v1438
    %v2716 = vunpack.c.l.b16 %v1439
    %v2717 = vunpack.c.h.b16 %v1439
    %v2718 = vunpack.c.l.b16 %v1440
    %v2719 = vunpack.c.h.b16 %v1440
    %v2720 = vunpack.c.l.b16 %v1441
    %v2721 = vunpack.c.h.b16 %v1441
    %v2722 = vunpack.c.l.b16 %v1442
    %v2723 = vunpack.c.h.b16 %v1442
    %v2724 = vunpack.c.l.b16 %v1443
    %v2725 = vunpack.c.h.b16 %v1443
    %v2726 = vunpack.c.l.b16 %v1444
    %v2727 = vunpack.c.h.b16 %v1444
    %v2728 = vunpack.c.l.b16 %v1445
    %v2729 = vunpack.c.h.b16 %v1445
    %v2730 = vunpack.c.l.b16 %v1446
    %v2731 = vunpack.c.h.b16 %v1446
    %v2732 = vunpack.c.l.b16 %v1447
    %v2733 = vunpack.c.h.b16 %v1447
    %v2734 = vunpack.c.l.b16 %v1448
    %v2735 = vunpack.c.h.b16 %v1448
    %v2736 = vunpack.c.l.b16 %v1449
    %v2737 = vunpack.c.h.b16 %v1449
    %v2738 = vunpack.c.l.b16 %v1450
    %v2739 = vunpack.c.h.b16 %v1450
    %v2740 = vunpack.c.l.b16 %v1451
    %v2741 = vunpack.c.h.b16 %v1451
    %v2742 = vunpack.c.l.b16 %v1452
    %v2743 = vunpack.c.h.b16 %v1452
    %v2744 = vunpack.c.l.b16 %v1453
    %v2745 = vunpack.c.h.b16 %v1453
    %v2746 = vunpack.c.l.b16 %v1454
    %v2747 = vunpack.c.h.b16 %v1454
    %v2748 = vunpack.c.l.b16 %v1455
    %v2749 = vunpack.c.h.b16 %v1455
    %v2750 = vunpack.c.l.b16 %v1456
    %v2751 = vunpack.c.h.b16 %v1456
    %v2752 = vunpack.c.l.b16 %v1457
    %v2753 = vunpack.c.h.b16 %v1457
    %v2754 = vunpack.c.l.b16 %v1458
    %v2755 = vunpack.c.h.b16 %v1458
    %v2756 = vunpack.c.l.b16 %v1459
    %v2757 = vunpack.c.h.b16 %v1459
    %v2758 = vunpack.c.l.b16 %v1460
    %v2759 = vunpack.c.h.b16 %v1460
    %v2760 = vunpack.c.l.b16 %v1461
    %v2761 = vunpack.c.h.b16 %v1461
    %v2762 = vunpack.c.l.b16 %v1462
    %v2763 = vunpack.c.h.b16 %v1462
    %v2764 = vunpack.c.l.b16 %v1463
    %v2765 = vunpack.c.h.b16 %v1463
    %v2766 = vunpack.c.l.b16 %v1464
    %v2767 = vunpack.c.h.b16 %v1464
    %v2768 = vunpack.c.l.b16 %v1465
    %v2769 = vunpack.c.h.b16 %v1465
    %v2770 = vunpack.c.l.b16 %v1466
    %v2771 = vunpack.c.h.b16 %v1466
    %v2772 = vunpack.c.l.b16 %v1467
    %v2773 = vunpack.c.h.b16 %v1467
    %v2774 = vunpack.c.l.b16 %v1468
    %v2775 = vunpack.c.h.b16 %v1468
    %v2776 = vunpack.c.l.b16 %v1469
    %v2777 = vunpack.c.h.b16 %v1469
    %v2778 = vunpack.c.l.b16 %v1470
    %v2779 = vunpack.c.h.b16 %v1470
    %v2780 = vunpack.c.l.b16 %v1471
    %v2781 = vunpack.c.h.b16 %v1471
    %v2782 = vunpack.c.l.b16 %v1472
    %v2783 = vunpack.c.h.b16 %v1472
    %v2784 = vunpack.c.l.b16 %v1473
    %v2785 = vunpack.c.h.b16 %v1473
    %v2786 = vunpack.c.l.b16 %v1474
    %v2787 = vunpack.c.h.b16 %v1474
    %v2788 = vunpack.c.l.b16 %v1475
    %v2789 = vunpack.c.h.b16 %v1475
    %v2790 = vunpack.c.l.b16 %v1476
    %v2791 = vunpack.c.h.b16 %v1476
    %v2792 = vunpack.c.l.b16 %v1477
    %v2793 = vunpack.c.h.b16 %v1477
    %v2794 = vunpack.c.l.b16 %v1478
    %v2795 = vunpack.c.h.b16 %v1478
    %v2796 = vunpack.c.l.b16 %v1479
    %v2797 = vunpack.c.h.b16 %v1479
    %v2798 = vunpack.c.l.b16 %v1480
    %v2799 = vunpack.c.h.b16 %v1480
    %v2800 = vunpack.c.l.b16 %v1481
    %v2801 = vunpack.c.h.b16 %v1481
    %v2802 = vunpack.c.l.b16 %v1482
    %v2803 = vunpack.c.h.b16 %v1482
    %v2804 = vunpack.c.l.b16 %v1483
    %v2805 = vunpack.c.h.b16 %v1483
    %v2806 = vunpack.c.l.b16 %v1484
    %v2807 = vunpack.c.h.b16 %v1484
    %v2808 = vunpack.c.l.b16 %v1485
    %v2809 = vunpack.c.h.b16 %v1485
    %v2810 = vunpack.c.l.b16 %v1486
    %v2811 = vunpack.c.h.b16 %v1486
    %v2812 = vunpack.c.l.b16 %v1487
    %v2813 = vunpack.c.h.b16 %v1487
    %v2814 = vunpack.c.l.b16 %v1488
    %v2815 = vunpack.c.h.b16 %v1488
    %v2816 = vunpack.c.l.b16 %v1489
    %v2817 = vunpack.c.h.b16 %v1489
    %v2818 = vunpack.c.l.b16 %v1490
    %v2819 = vunpack.c.h.b16 %v1490
    %v2820 = vunpack.c.l.b16 %v1491
    %v2821 = vunpack.c.h.b16 %v1491
    %v2822 = vunpack.c.l.b16 %v1492
    %v2823 = vunpack.c.h.b16 %v1492
    %v2824 = vunpack.c.l.b16 %v1493
    %v2825 = vunpack.c.h.b16 %v1493
    %v2826 = vunpack.c.l.b16 %v1494
    %v2827 = vunpack.c.h.b16 %v1494
    %v2828 = vunpack.c.l.b16 %v1495
    %v2829 = vunpack.c.h.b16 %v1495
    %v2830 = vunpack.c.l.b16 %v1496
    %v2831 = vunpack.c.h.b16 %v1496
    %v2832 = vunpack.c.l.b16 %v1497
    %v2833 = vunpack.c.h.b16 %v1497
    %v2834 = vunpack.c.l.b16 %v1498
    %v2835 = vunpack.c.h.b16 %v1498
    %v2836 = vunpack.c.l.b16 %v1499
    %v2837 = vunpack.c.h.b16 %v1499
    %v2838 = vunpack.c.l.b16 %v1500
    %v2839 = vunpack.c.h.b16 %v1500
    %v2840 = vunpack.c.l.b16 %v1501
    %v2841 = vunpack.c.h.b16 %v1501
    %v2842 = vunpack.c.l.b16 %v1502
    %v2843 = vunpack.c.h.b16 %v1502
    %v2844 = vunpack.c.l.b16 %v1503
    %v2845 = vunpack.c.h.b16 %v1503
    %v2846 = vunpack.c.l.b16 %v1504
    %v2847 = vunpack.c.h.b16 %v1504
    %v2848 = vunpack.c.l.b16 %v1505
    %v2849 = vunpack.c.h.b16 %v1505
    %v2850 = vunpack.c.l.b16 %v1506
    %v2851 = vunpack.c.h.b16 %v1506
    %v2852 = vunpack.c.l.b16 %v1507
    %v2853 = vunpack.c.h.b16 %v1507
    %v2854 = vunpack.c.l.b16 %v1508
    %v2855 = vunpack.c.h.b16 %v1508
    %v2856 = vunpack.c.l.b16 %v1509
    %v2857 = vunpack.c.h.b16 %v1509
    %v2858 = vunpack.c.l.b16 %v1510
    %v2859 = vunpack.c.h.b16 %v1510
    %v2860 = vunpack.c.l.b16 %v1511
    %v2861 = vunpack.c.h.b16 %v1511
    %v2862 = vunpack.c.l.b16 %v1512
    %v2863 = vunpack.c.h.b16 %v1512
    %v2864 = vunpack.c.l.b16 %v1513
    %v2865 = vunpack.c.h.b16 %v1513
    %v2866 = vunpack.c.l.b16 %v1514
    %v2867 = vunpack.c.h.b16 %v1514
    %v2868 = vunpack.c.l.b16 %v1515
    %v2869 = vunpack.c.h.b16 %v1515
    %v2870 = vunpack.c.l.b16 %v1516
    %v2871 = vunpack.c.h.b16 %v1516
    %v2872 = vunpack.c.l.b16 %v1517
    %v2873 = vunpack.c.h.b16 %v1517
    %v2874 = vunpack.c.l.b16 %v1518
    %v2875 = vunpack.c.h.b16 %v1518
    %v2876 = vunpack.c.l.b16 %v1519
    %v2877 = vunpack.c.h.b16 %v1519
    %v2878 = vunpack.c.l.b16 %v1520
    %v2879 = vunpack.c.h.b16 %v1520
    %v2880 = vunpack.c.l.b16 %v1521
    %v2881 = vunpack.c.h.b16 %v1521
    %v2882 = vunpack.c.l.b16 %v1522
    %v2883 = vunpack.c.h.b16 %v1522
    %v2884 = vunpack.c.l.b16 %v1523
    %v2885 = vunpack.c.h.b16 %v1523
    %v2886 = vunpack.c.l.b16 %v1524
    %v2887 = vunpack.c.h.b16 %v1524
    %v2888 = vunpack.c.l.b16 %v1525
    %v2889 = vunpack.c.h.b16 %v1525
    %v2890 = vunpack.c.l.b16 %v1526
    %v2891 = vunpack.c.h.b16 %v1526
    %v2892 = vunpack.c.l.b16 %v1527
    %v2893 = vunpack.c.h.b16 %v1527
    %v2894 = vunpack.c.l.b16 %v1528
    %v2895 = vunpack.c.h.b16 %v1528
    %v2896 = vunpack.c.l.b16 %v1529
    %v2897 = vunpack.c.h.b16 %v1529
    %v2898 = vunpack.c.l.b16 %v1530
    %v2899 = vunpack.c.h.b16 %v1530
    %v2900 = vunpack.c.l.b16 %v1531
    %v2901 = vunpack.c.h.b16 %v1531
    %v2902 = vunpack.c.l.b16 %v1532
    %v2903 = vunpack.c.h.b16 %v1532
    %v2904 = vunpack.c.l.b16 %v1533
    %v2905 = vunpack.c.h.b16 %v1533
    %v2906 = vunpack.c.l.b16 %v1534
    %v2907 = vunpack.c.h.b16 %v1534
    %v2908 = vunpack.c.l.b16 %v1535
    %v2909 = vunpack.c.h.b16 %v1535
    %v2910 = vunpack.c.l.b16 %v1536
    %v2911 = vunpack.c.h.b16 %v1536
    %v2912 = vunpack.c.l.b16 %v1537
    %v2913 = vunpack.c.h.b16 %v1537
    %v2914 = vunpack.c.l.b16 %v1538
    %v2915 = vunpack.c.h.b16 %v1538
    %v2916 = vunpack.c.l.b16 %v1539
    %v2917 = vunpack.c.h.b16 %v1539
    %v2918 = vunpack.c.l.b16 %v1540
    %v2919 = vunpack.c.h.b16 %v1540
    %v2920 = vunpack.c.l.b16 %v1541
    %v2921 = vunpack.c.h.b16 %v1541
    %v2922 = vunpack.c.l.b16 %v1542
    %v2923 = vunpack.c.h.b16 %v1542
    %v2924 = vunpack.c.l.b16 %v1543
    %v2925 = vunpack.c.h.b16 %v1543
    %v2926 = vunpack.c.l.b16 %v1544
    %v2927 = vunpack.c.h.b16 %v1544
    %v2928 = vunpack.c.l.b16 %v1545
    %v2929 = vunpack.c.h.b16 %v1545
    %v2930 = vunpack.c.l.b16 %v1546
    %v2931 = vunpack.c.h.b16 %v1546
    %v2932 = vunpack.c.l.b16 %v1547
    %v2933 = vunpack.c.h.b16 %v1547
    %v2934 = vunpack.c.l.b16 %v1548
    %v2935 = vunpack.c.h.b16 %v1548
    %v2936 = vunpack.c.l.b16 %v1549
    %v2937 = vunpack.c.h.b16 %v1549
    %v2938 = vunpack.c.l.b16 %v1550
    %v2939 = vunpack.c.h.b16 %v1550
    %v2940 = vunpack.c.l.b16 %v1551
    %v2941 = vunpack.c.h.b16 %v1551
    %v2942 = vunpack.c.l.b16 %v1552
    %v2943 = vunpack.c.h.b16 %v1552
    %v2944 = vunpack.c.l.b16 %v1553
    %v2945 = vunpack.c.h.b16 %v1553
    %v2946 = vunpack.c.l.b16 %v1554
    %v2947 = vunpack.c.h.b16 %v1554
    %v2948 = vunpack.c.l.b16 %v1555
    %v2949 = vunpack.c.h.b16 %v1555
    %v2950 = vunpack.c.l.b16 %v1556
    %v2951 = vunpack.c.h.b16 %v1556
    %v2952 = vunpack.c.l.b16 %v1557
    %v2953 = vunpack.c.h.b16 %v1557
    %v2954 = vunpack.c.l.b16 %v1558
    %v2955 = vunpack.c.h.b16 %v1558
    %v2956 = vunpack.c.l.b16 %v1559
    %v2957 = vunpack.c.h.b16 %v1559
    %v2958 = vunpack.c.l.b16 %v1560
    %v2959 = vunpack.c.h.b16 %v1560
    %v2960 = vunpack.c.l.b16 %v1561
    %v2961 = vunpack.c.h.b16 %v1561
    %v2962 = vunpack.c.l.b16 %v1562
    %v2963 = vunpack.c.h.b16 %v1562
    %v2964 = vunpack.c.l.b16 %v1563
    %v2965 = vunpack.c.h.b16 %v1563
    %v2966 = vunpack.c.l.b16 %v1564
    %v2967 = vunpack.c.h.b16 %v1564
    %v2968 = vunpack.c.l.b16 %v1565
    %v2969 = vunpack.c.h.b16 %v1565
    %v2970 = vunpack.c.l.b16 %v1566
    %v2971 = vunpack.c.h.b16 %v1566
    %v2972 = vunpack.c.l.b16 %v1567
    %v2973 = vunpack.c.h.b16 %v1567
    %v2974 = vunpack.c.l.b16 %v1568
    %v2975 = vunpack.c.h.b16 %v1568
    %v2976 = vunpack.c.l.b16 %v1569
    %v2977 = vunpack.c.h.b16 %v1569
    %v2978 = vunpack.c.l.b16 %v1570
    %v2979 = vunpack.c.h.b16 %v1570
    %v2980 = vunpack.c.l.b16 %v1571
    %v2981 = vunpack.c.h.b16 %v1571
    %v2982 = vunpack.c.l.b16 %v1572
    %v2983 = vunpack.c.h.b16 %v1572
    %v2984 = vunpack.c.l.b16 %v1573
    %v2985 = vunpack.c.h.b16 %v1573
    %v2986 = vunpack.c.l.b16 %v1574
    %v2987 = vunpack.c.h.b16 %v1574
    %v2988 = vunpack.c.l.b16 %v1575
    %v2989 = vunpack.c.h.b16 %v1575
    %v2990 = vunpack.c.l.b16 %v1576
    %v2991 = vunpack.c.h.b16 %v1576
    %v2992 = vunpack.c.l.b16 %v1577
    %v2993 = vunpack.c.h.b16 %v1577
    %v2994 = vunpack.c.l.b16 %v1578
    %v2995 = vunpack.c.h.b16 %v1578
    %v2996 = vunpack.c.l.b16 %v1579
    %v2997 = vunpack.c.h.b16 %v1579
    %v2998 = vunpack.c.l.b16 %v1580
    %v2999 = vunpack.c.h.b16 %v1580
    %v3000 = vunpack.c.l.b16 %v1581
    %v3001 = vunpack.c.h.b16 %v1581
    %v3002 = vunpack.c.l.b16 %v1582
    %v3003 = vunpack.c.h.b16 %v1582
    %v3004 = vunpack.c.l.b16 %v1583
    %v3005 = vunpack.c.h.b16 %v1583
    %v3006 = vunpack.c.l.b16 %v1584
    %v3007 = vunpack.c.h.b16 %v1584
    %v3008 = vunpack.c.l.b16 %v1585
    %v3009 = vunpack.c.h.b16 %v1585
    %v3010 = vunpack.c.l.b16 %v1586
    %v3011 = vunpack.c.h.b16 %v1586
    %v3012 = vunpack.c.l.b16 %v1587
    %v3013 = vunpack.c.h.b16 %v1587
    %v3014 = vunpack.c.l.b16 %v1588
    %v3015 = vunpack.c.h.b16 %v1588
    %v3016 = vunpack.c.l.b16 %v1589
    %v3017 = vunpack.c.h.b16 %v1589
    %v3018 = vunpack.c.l.b16 %v1590
    %v3019 = vunpack.c.h.b16 %v1590
    %v3020 = vunpack.c.l.b16 %v1591
    %v3021 = vunpack.c.h.b16 %v1591
    %v3022 = vunpack.c.l.b16 %v1592
    %v3023 = vunpack.c.h.b16 %v1592
    %v3024 = vunpack.c.l.b16 %v1593
    %v3025 = vunpack.c.h.b16 %v1593
    %v3026 = vunpack.c.l.b16 %v1594
    %v3027 = vunpack.c.h.b16 %v1594
    %v3028 = vunpack.c.l.b16 %v1595
    %v3029 = vunpack.c.h.b16 %v1595
    %v3030 = vunpack.c.l.b16 %v1596
    %v3031 = vunpack.c.h.b16 %v1596
    %v3032 = vunpack.c.l.b16 %v1597
    %v3033 = vunpack.c.h.b16 %v1597
    %v3034 = vunpack.c.l.b16 %v1598
    %v3035 = vunpack.c.h.b16 %v1598
    %v3036 = vunpack.c.l.b16 %v1599
    %v3037 = vunpack.c.h.b16 %v1599
    %v3038 = vunpack.c.l.b16 %v1600
    %v3039 = vunpack.c.h.b16 %v1600
    %v3040 = vunpack.c.l.b16 %v1601
    %v3041 = vunpack.c.h.b16 %v1601
    %v3042 = vunpack.c.l.b16 %v1602
    %v3043 = vunpack.c.h.b16 %v1602
    %v3044 = vunpack.c.l.b16 %v1603
    %v3045 = vunpack.c.h.b16 %v1603
    %v3046 = vunpack.c.l.b16 %v1604
    %v3047 = vunpack.c.h.b16 %v1604
    %v3048 = vunpack.c.l.b16 %v1605
    %v3049 = vunpack.c.h.b16 %v1605
    %v3050 = vunpack.c.l.b16 %v1606
    %v3051 = vunpack.c.h.b16 %v1606
    %v3052 = vunpack.c.l.b16 %v1607
    %v3053 = vunpack.c.h.b16 %v1607
    %v3054 = vunpack.c.l.b16 %v1608
    %v3055 = vunpack.c.h.b16 %v1608
    %v3056 = vunpack.c.l.b16 %v1609
    %v3057 = vunpack.c.h.b16 %v1609
    %v3058 = vunpack.c.l.b16 %v1610
    %v3059 = vunpack.c.h.b16 %v1610
    %v3060 = vunpack.c.l.b16 %v1611
    %v3061 = vunpack.c.h.b16 %v1611
    %v3062 = vunpack.c.l.b16 %v1612
    %v3063 = vunpack.c.h.b16 %v1612
    %v3064 = vunpack.c.l.b16 %v1613
    %v3065 = vunpack.c.h.b16 %v1613
    %v3066 = vunpack.c.l.b16 %v1614
    %v3067 = vunpack.c.h.b16 %v1614
    %v3068 = vunpack.c.l.b16 %v1615
    %v3069 = vunpack.c.h.b16 %v1615
    %v3070 = vunpack.c.l.b16 %v1616
    %v3071 = vunpack.c.h.b16 %v1616
    %v3072 = vunpack.c.l.b16 %v1617
    %v3073 = vunpack.c.h.b16 %v1617
    %v3074 = vunpack.c.l.b16 %v1618
    %v3075 = vunpack.c.h.b16 %v1618
    %v3076 = vunpack.c.l.b16 %v1619
    %v3077 = vunpack.c.h.b16 %v1619
    %v3078 = vunpack.c.l.b16 %v1620
    %v3079 = vunpack.c.h.b16 %v1620
    %v3080 = vunpack.c.l.b16 %v1621
    %v3081 = vunpack.c.h.b16 %v1621
    %v3082 = vunpack.c.l.b16 %v1622
    %v3083 = vunpack.c.h.b16 %v1622
    %v3084 = vunpack.c.l.b16 %v1623
    %v3085 = vunpack.c.h.b16 %v1623
    %v3086 = vunpack.c.l.b16 %v1624
    %v3087 = vunpack.c.h.b16 %v1624
    %v3088 = vunpack.c.l.b16 %v1625
    %v3089 = vunpack.c.h.b16 %v1625
    %v3090 = vunpack.c.l.b16 %v1626
    %v3091 = vunpack.c.h.b16 %v1626
    %v3092 = vunpack.c.l.b16 %v1627
    %v3093 = vunpack.c.h.b16 %v1627
    %v3094 = vunpack.c.l.b16 %v1628
    %v3095 = vunpack.c.h.b16 %v1628
    %v3096 = vunpack.c.l.b16 %v1629
    %v3097 = vunpack.c.h.b16 %v1629
    %v3098 = vunpack.c.l.b16 %v1630
    %v3099 = vunpack.c.h.b16 %v1630
    %v3100 = vunpack.c.l.b16 %v1631
    %v3101 = vunpack.c.h.b16 %v1631
    %v3102 = vunpack.c.l.b16 %v1632
    %v3103 = vunpack.c.h.b16 %v1632
    %v3104 = vunpack.c.l.b16 %v1633
    %v3105 = vunpack.c.h.b16 %v1633
    %v3106 = vunpack.c.l.b16 %v1634
    %v3107 = vunpack.c.h.b16 %v1634
    %v3108 = vunpack.c.l.b16 %v1635
    %v3109 = vunpack.c.h.b16 %v1635
    %v3110 = vunpack.c.l.b16 %v1636
    %v3111 = vunpack.c.h.b16 %v1636
    %v3112 = vunpack.c.l.b16 %v1637
    %v3113 = vunpack.c.h.b16 %v1637
    %v3114 = vunpack.c.l.b16 %v1638
    %v3115 = vunpack.c.h.b16 %v1638
    %v3116 = vunpack.c.l.b16 %v1639
    %v3117 = vunpack.c.h.b16 %v1639
    %v3118 = vunpack.c.l.b16 %v1640
    %v3119 = vunpack.c.h.b16 %v1640
    %v3120 = vunpack.c.l.b16 %v1641
    %v3121 = vunpack.c.h.b16 %v1641
    %v3122 = vunpack.c.l.b16 %v1642
    %v3123 = vunpack.c.h.b16 %v1642
    %v3124 = vunpack.c.l.b16 %v1643
    %v3125 = vunpack.c.h.b16 %v1643
    %v3126 = vunpack.c.l.b16 %v1644
    %v3127 = vunpack.c.h.b16 %v1644
    %v3128 = vunpack.c.l.b16 %v1645
    %v3129 = vunpack.c.h.b16 %v1645
    %v3130 = vunpack.c.l.b16 %v1646
    %v3131 = vunpack.c.h.b16 %v1646
    %v3132 = vunpack.c.l.b16 %v1647
    %v3133 = vunpack.c.h.b16 %v1647
    %v3134 = vunpack.c.l.b16 %v1648
    %v3135 = vunpack.c.h.b16 %v1648
    %v3136 = vunpack.c.l.b16 %v1649
    %v3137 = vunpack.c.h.b16 %v1649
    %v3138 = vunpack.c.l.b16 %v1650
    %v3139 = vunpack.c.h.b16 %v1650
    %v3140 = vunpack.c.l.b16 %v1651
    %v3141 = vunpack.c.h.b16 %v1651
    %v3142 = vunpack.c.l.b16 %v1652
    %v3143 = vunpack.c.h.b16 %v1652
    %v3144 = vunpack.c.l.b16 %v1653
    %v3145 = vunpack.c.h.b16 %v1653
    %v3146 = vunpack.c.l.b16 %v1654
    %v3147 = vunpack.c.h.b16 %v1654
    %v3148 = vunpack.c.l.b16 %v1655
    %v3149 = vunpack.c.h.b16 %v1655
    %v3150 = vunpack.c.l.b16 %v1656
    %v3151 = vunpack.c.h.b16 %v1656
    %v3152 = vunpack.c.l.b16 %v1657
    %v3153 = vunpack.c.h.b16 %v1657
    %v3154 = vunpack.c.l.b16 %v1658
    %v3155 = vunpack.c.h.b16 %v1658
    %v3156 = vunpack.c.l.b16 %v1659
    %v3157 = vunpack.c.h.b16 %v1659
    %v3158 = vunpack.c.l.b16 %v1660
    %v3159 = vunpack.c.h.b16 %v1660
    %v3160 = vunpack.c.l.b16 %v1661
    %v3161 = vunpack.c.h.b16 %v1661
    %v3162 = vunpack.c.l.b16 %v1662
    %v3163 = vunpack.c.h.b16 %v1662
    %v3164 = vunpack.c.l.b16 %v1663
    %v3165 = vunpack.c.h.b16 %v1663
    %v3166 = vunpack.c.l.b16 %v1664
    %v3167 = vunpack.c.h.b16 %v1664
    %v3168 = vunpack.c.l.b16 %v1665
    %v3169 = vunpack.c.h.b16 %v1665
    %v3170 = vunpack.c.l.b16 %v1666
    %v3171 = vunpack.c.h.b16 %v1666
    %v3172 = vunpack.c.l.b16 %v1667
    %v3173 = vunpack.c.h.b16 %v1667
    %v3174 = vunpack.c.l.b16 %v1668
    %v3175 = vunpack.c.h.b16 %v1668
    %v3176 = vunpack.c.l.b16 %v1669
    %v3177 = vunpack.c.h.b16 %v1669
    %v3178 = vunpack.c.l.b16 %v1670
    %v3179 = vunpack.c.h.b16 %v1670
    %v3180 = vunpack.c.l.b16 %v1671
    %v3181 = vunpack.c.h.b16 %v1671
    %v3182 = vunpack.c.l.b16 %v1672
    %v3183 = vunpack.c.h.b16 %v1672
    %v3184 = vunpack.c.l.b16 %v1673
    %v3185 = vunpack.c.h.b16 %v1673
    %v3186 = vunpack.c.l.b16 %v1674
    %v3187 = vunpack.c.h.b16 %v1674
    %v3188 = vunpack.c.l.b16 %v1675
    %v3189 = vunpack.c.h.b16 %v1675
    %v3190 = vunpack.c.l.b16 %v1676
    %v3191 = vunpack.c.h.b16 %v1676
    %v3192 = vunpack.c.l.b16 %v1677
    %v3193 = vunpack.c.h.b16 %v1677
    %v3194 = vunpack.c.l.b16 %v1678
    %v3195 = vunpack.c.h.b16 %v1678
    %v3196 = vunpack.c.l.b16 %v1679
    %v3197 = vunpack.c.h.b16 %v1679
    %v3198 = vunpack.c.l.b16 %v1680
    %v3199 = vunpack.c.h.b16 %v1680
    %v3200 = vunpack.c.l.b16 %v1681
    %v3201 = vunpack.c.h.b16 %v1681
    %v3202 = vunpack.c.l.b16 %v1682
    %v3203 = vunpack.c.h.b16 %v1682
    %v3204 = vunpack.c.l.b16 %v1683
    %v3205 = vunpack.c.h.b16 %v1683
    %v3206 = vunpack.c.l.b16 %v1684
    %v3207 = vunpack.c.h.b16 %v1684
    %v3208 = vunpack.c.l.b16 %v1685
    %v3209 = vunpack.c.h.b16 %v1685
    %v3210 = vunpack.c.l.b16 %v1686
    %v3211 = vunpack.c.h.b16 %v1686
    %v3212 = vunpack.c.l.b16 %v1687
    %v3213 = vunpack.c.h.b16 %v1687
    %v3214 = vunpack.c.l.b16 %v1688
    %v3215 = vunpack.c.h.b16 %v1688
    %v3216 = vunpack.c.l.b16 %v1689
    %v3217 = vunpack.c.h.b16 %v1689
    %v3218 = vunpack.c.l.b16 %v1690
    %v3219 = vunpack.c.h.b16 %v1690
    %v3220 = vunpack.c.l.b16 %v1691
    %v3221 = vunpack.c.h.b16 %v1691
    %v3222 = vunpack.c.l.b16 %v1692
    %v3223 = vunpack.c.h.b16 %v1692
    %v3224 = vunpack.c.l.b16 %v1693
    %v3225 = vunpack.c.h.b16 %v1693
    %v3226 = vunpack.c.l.b16 %v1694
    %v3227 = vunpack.c.h.b16 %v1694
    %v3228 = vunpack.c.l.b16 %v1695
    %v3229 = vunpack.c.h.b16 %v1695
    %v3230 = vunpack.c.l.b16 %v1696
    %v3231 = vunpack.c.h.b16 %v1696
    %v3232 = vunpack.c.l.b16 %v1697
    %v3233 = vunpack.c.h.b16 %v1697
    %v3234 = vunpack.c.l.b16 %v1698
    %v3235 = vunpack.c.h.b16 %v1698
    %v3236 = vunpack.c.l.b16 %v1699
    %v3237 = vunpack.c.h.b16 %v1699
    %v3238 = vunpack.c.l.b16 %v1700
    %v3239 = vunpack.c.h.b16 %v1700
    %v3240 = vunpack.c.l.b16 %v1701
    %v3241 = vunpack.c.h.b16 %v1701
    %v3242 = vunpack.c.l.b16 %v1702
    %v3243 = vunpack.c.h.b16 %v1702
    %v3244 = vunpack.c.l.b16 %v1703
    %v3245 = vunpack.c.h.b16 %v1703
    %v3246 = vunpack.c.l.b16 %v1704
    %v3247 = vunpack.c.h.b16 %v1704
    %v3248 = vunpack.c.l.b16 %v1705
    %v3249 = vunpack.c.h.b16 %v1705
    %v3250 = vunpack.c.l.b16 %v1706
    %v3251 = vunpack.c.h.b16 %v1706
    %v3252 = vunpack.c.l.b16 %v1707
    %v3253 = vunpack.c.h.b16 %v1707
    %v3254 = vunpack.c.l.b16 %v1708
    %v3255 = vunpack.c.h.b16 %v1708
    %v3256 = vunpack.c.l.b16 %v1709
    %v3257 = vunpack.c.h.b16 %v1709
    %v3258 = vunpack.c.l.b16 %v1710
    %v3259 = vunpack.c.h.b16 %v1710
    %v3260 = vunpack.c.l.b16 %v1711
    %v3261 = vunpack.c.h.b16 %v1711
    %v3262 = vunpack.c.l.b16 %v1712
    %v3263 = vunpack.c.h.b16 %v1712
    %v3264 = vunpack.c.l.b16 %v1713
    %v3265 = vunpack.c.h.b16 %v1713
    %v3266 = vunpack.c.l.b16 %v1714
    %v3267 = vunpack.c.h.b16 %v1714
    %v3268 = vunpack.c.l.b16 %v1715
    %v3269 = vunpack.c.h.b16 %v1715
    %v3270 = vunpack.c.l.b16 %v1716
    %v3271 = vunpack.c.h.b16 %v1716
    %v3272 = vunpack.c.l.b16 %v1717
    %v3273 = vunpack.c.h.b16 %v1717
    %v3274 = vunpack.c.l.b16 %v1718
    %v3275 = vunpack.c.h.b16 %v1718
    %v3276 = vunpack.c.l.b16 %v1719
    %v3277 = vunpack.c.h.b16 %v1719
    %v3278 = vunpack.c.l.b16 %v1720
    %v3279 = vunpack.c.h.b16 %v1720
    %v3280 = vunpack.c.l.b16 %v1721
    %v3281 = vunpack.c.h.b16 %v1721
    %v3282 = vunpack.c.l.b16 %v1722
    %v3283 = vunpack.c.h.b16 %v1722
    %v3284 = vunpack.c.l.b16 %v1723
    %v3285 = vunpack.c.h.b16 %v1723
    %v3286 = vunpack.c.l.b16 %v1724
    %v3287 = vunpack.c.h.b16 %v1724
    %v3288 = vunpack.c.l.b16 %v1725
    %v3289 = vunpack.c.h.b16 %v1725
    %v3290 = vunpack.c.l.b16 %v1726
    %v3291 = vunpack.c.h.b16 %v1726
    %v3292 = vunpack.c.l.b16 %v1727
    %v3293 = vunpack.c.h.b16 %v1727
    %v3294 = vunpack.c.l.b16 %v1728
    %v3295 = vunpack.c.h.b16 %v1728
    %v3296 = vunpack.c.l.b16 %v1729
    %v3297 = vunpack.c.h.b16 %v1729
    %v3298 = vunpack.c.l.b16 %v1730
    %v3299 = vunpack.c.h.b16 %v1730
    %v3300 = vunpack.c.l.b16 %v1731
    %v3301 = vunpack.c.h.b16 %v1731
    %v3302 = vunpack.c.l.b16 %v1732
    %v3303 = vunpack.c.h.b16 %v1732
    %v3304 = vunpack.c.l.b16 %v1733
    %v3305 = vunpack.c.h.b16 %v1733
    %v3306 = vunpack.c.l.b16 %v1734
    %v3307 = vunpack.c.h.b16 %v1734
    %v3308 = vunpack.c.l.b16 %v1735
    %v3309 = vunpack.c.h.b16 %v1735
    %v3310 = vunpack.c.l.b16 %v1736
    %v3311 = vunpack.c.h.b16 %v1736
    %v3312 = vunpack.c.l.b16 %v1737
    %v3313 = vunpack.c.h.b16 %v1737
    %v3314 = vunpack.c.l.b16 %v1738
    %v3315 = vunpack.c.h.b16 %v1738
    %v3316 = vunpack.c.l.b16 %v1739
    %v3317 = vunpack.c.h.b16 %v1739
    %v3318 = vpack.c.b16 %v2302, %v2294
    %v3319 = vpack.c.b16 %v2303, %v2295
    %v3320 = vpack.c.b16 %v2304, %v2296
    %v3321 = vpack.c.b16 %v2305, %v2297
    %v3322 = vpack.c.b16 %v2306, %v2298
    %v3323 = vpack.c.b16 %v2307, %v2299
    %v3324 = vpack.c.b16 %v2308, %v2300
    %v3325 = vpack.c.b16 %v2309, %v2301
    %v3326 = vpack.c.b16 %v2318, %v2310
    %v3327 = vpack.c.b16 %v2319, %v2311
    %v3328 = vpack.c.b16 %v2320, %v2312
    %v3329 = vpack.c.b16 %v2321, %v2313
    %v3330 = vpack.c.b16 %v2322, %v2314
    %v3331 = vpack.c.b16 %v2323, %v2315
    %v3332 = vpack.c.b16 %v2324, %v2316
    %v3333 = vpack.c.b16 %v2325, %v2317
    %v3334 = vpack.c.b16 %v2334, %v2326
    %v3335 = vpack.c.b16 %v2335, %v2327
    %v3336 = vpack.c.b16 %v2336, %v2328
    %v3337 = vpack.c.b16 %v2337, %v2329
    %v3338 = vpack.c.b16 %v2338, %v2330
    %v3339 = vpack.c.b16 %v2339, %v2331
    %v3340 = vpack.c.b16 %v2340, %v2332
    %v3341 = vpack.c.b16 %v2341, %v2333
    %v3342 = vpack.c.b16 %v2350, %v2342
    %v3343 = vpack.c.b16 %v2351, %v2343
    %v3344 = vpack.c.b16 %v2352, %v2344
    %v3345 = vpack.c.b16 %v2353, %v2345
    %v3346 = vpack.c.b16 %v2354, %v2346
    %v3347 = vpack.c.b16 %v2355, %v2347
    %v3348 = vpack.c.b16 %v2356, %v2348
    %v3349 = vpack.c.b16 %v2357, %v2349
    %v3350 = vpack.c.b16 %v2366, %v2358
    %v3351 = vpack.c.b16 %v2367, %v2359
    %v3352 = vpack.c.b16 %v2368, %v2360
    %v3353 = vpack.c.b16 %v2369, %v2361
    %v3354 = vpack.c.b16 %v2370, %v2362
    %v3355 = vpack.c.b16 %v2371, %v2363
    %v3356 = vpack.c.b16 %v2372, %v2364
    %v3357 = vpack.c.b16 %v2373, %v2365
    %v3358 = vpack.c.b16 %v2382, %v2374
    %v3359 = vpack.c.b16 %v2383, %v2375
    %v3360 = vpack.c.b16 %v2384, %v2376
    %v3361 = vpack.c.b16 %v2385, %v2377
    %v3362 = vpack.c.b16 %v2386, %v2378
    %v3363 = vpack.c.b16 %v2387, %v2379
    %v3364 = vpack.c.b16 %v2388, %v2380
    %v3365 = vpack.c.b16 %v2389, %v2381
    %v3366 = vpack.c.b16 %v2398, %v2390
    %v3367 = vpack.c.b16 %v2399, %v2391
    %v3368 = vpack.c.b16 %v2400, %v2392
    %v3369 = vpack.c.b16 %v2401, %v2393
    %v3370 = vpack.c.b16 %v2402, %v2394
    %v3371 = vpack.c.b16 %v2403, %v2395
    %v3372 = vpack.c.b16 %v2404, %v2396
    %v3373 = vpack.c.b16 %v2405, %v2397
    %v3374 = vpack.c.b16 %v2414, %v2406
    %v3375 = vpack.c.b16 %v2415, %v2407
    %v3376 = vpack.c.b16 %v2416, %v2408
    %v3377 = vpack.c.b16 %v2417, %v2409
    %v3378 = vpack.c.b16 %v2418, %v2410
    %v3379 = vpack.c.b16 %v2419, %v2411
    %v3380 = vpack.c.b16 %v2420, %v2412
    %v3381 = vpack.c.b16 %v2421, %v2413
    %v3382 = vpack.c.b16 %v2430, %v2422
    %v3383 = vpack.c.b16 %v2431, %v2423
    %v3384 = vpack.c.b16 %v2432, %v2424
    %v3385 = vpack.c.b16 %v2433, %v2425
    %v3386 = vpack.c.b16 %v2434, %v2426
    %v3387 = vpack.c.b16 %v2435, %v2427
    %v3388 = vpack.c.b16 %v2436, %v2428
    %v3389 = vpack.c.b16 %v2437, %v2429
    %v3390 = vpack.c.b16 %v2446, %v2438
    %v3391 = vpack.c.b16 %v2447, %v2439
    %v3392 = vpack.c.b16 %v2448, %v2440
    %v3393 = vpack.c.b16 %v2449, %v2441
    %v3394 = vpack.c.b16 %v2450, %v2442
    %v3395 = vpack.c.b16 %v2451, %v2443
    %v3396 = vpack.c.b16 %v2452, %v2444
    %v3397 = vpack.c.b16 %v2453, %v2445
    %v3398 = vpack.c.b16 %v2462, %v2454
    %v3399 = vpack.c.b16 %v2463, %v2455
    %v3400 = vpack.c.b16 %v2464, %v2456
    %v3401 = vpack.c.b16 %v2465, %v2457
    %v3402 = vpack.c.b16 %v2466, %v2458
    %v3403 = vpack.c.b16 %v2467, %v2459
    %v3404 = vpack.c.b16 %v2468, %v2460
    %v3405 = vpack.c.b16 %v2469, %v2461
    %v3406 = vpack.c.b16 %v2478, %v2470
    %v3407 = vpack.c.b16 %v2479, %v2471
    %v3408 = vpack.c.b16 %v2480, %v2472
    %v3409 = vpack.c.b16 %v2481, %v2473
    %v3410 = vpack.c.b16 %v2482, %v2474
    %v3411 = vpack.c.b16 %v2483, %v2475
    %v3412 = vpack.c.b16 %v2484, %v2476
    %v3413 = vpack.c.b16 %v2485, %v2477
    %v3414 = vpack.c.b16 %v2494, %v2486
    %v3415 = vpack.c.b16 %v2495, %v2487
    %v3416 = vpack.c.b16 %v2496, %v2488
    %v3417 = vpack.c.b16 %v2497, %v2489
    %v3418 = vpack.c.b16 %v2498, %v2490
    %v3419 = vpack.c.b16 %v2499, %v2491
    %v3420 = vpack.c.b16 %v2500, %v2492
    %v3421 = vpack.c.b16 %v2501, %v2493
    %v3422 = vpack.c.b16 %v2510, %v2502
    %v3423 = vpack.c.b16 %v2511, %v2503
    %v3424 = vpack.c.b16 %v2512, %v2504
    %v3425 = vpack.c.b16 %v2513, %v2505
    %v3426 = vpack.c.b16 %v2514, %v2506
    %v3427 = vpack.c.b16 %v2515, %v2507
    %v3428 = vpack.c.b16 %v2516, %v2508
    %v3429 = vpack.c.b16 %v2517, %v2509
    %v3430 = vpack.c.b16 %v2526, %v2518
    %v3431 = vpack.c.b16 %v2527, %v2519
    %v3432 = vpack.c.b16 %v2528, %v2520
    %v3433 = vpack.c.b16 %v2529, %v2521
    %v3434 = vpack.c.b16 %v2530, %v2522
    %v3435 = vpack.c.b16 %v2531, %v2523
    %v3436 = vpack.c.b16 %v2532, %v2524
    %v3437 = vpack.c.b16 %v2533, %v2525
    %v3438 = vpack.c.b16 %v2542, %v2534
    %v3439 = vpack.c.b16 %v2543, %v2535
    %v3440 = vpack.c.b16 %v2544, %v2536
    %v3441 = vpack.c.b16 %v2545, %v2537
    %v3442 = vpack.c.b16 %v2546, %v2538
    %v3443 = vpack.c.b16 %v2547, %v2539
    %v3444 = vpack.c.b16 %v2548, %v2540
    %v3445 = vpack.c.b16 %v2549, %v2541
    %v3446 = vpack.c.b16 %v2558, %v2550
    %v3447 = vpack.c.b16 %v2559, %v2551
    %v3448 = vpack.c.b16 %v2560, %v2552
    %v3449 = vpack.c.b16 %v2561, %v2553
    %v3450 = vpack.c.b16 %v2562, %v2554
    %v3451 = vpack.c.b16 %v2563, %v2555
    %v3452 = vpack.c.b16 %v2564, %v2556
    %v3453 = vpack.c.b16 %v2565, %v2557
    %v3454 = vpack.c.b16 %v2574, %v2566
    %v3455 = vpack.c.b16 %v2575, %v2567
    %v3456 = vpack.c.b16 %v2576, %v2568
    %v3457 = vpack.c.b16 %v2577, %v2569
    %v3458 = vpack.c.b16 %v2578, %v2570
    %v3459 = vpack.c.b16 %v2579, %v2571
    %v3460 = vpack.c.b16 %v2580, %v2572
    %v3461 = vpack.c.b16 %v2581, %v2573
    %v3462 = vpack.c.b16 %v2590, %v2582
    %v3463 = vpack.c.b16 %v2591, %v2583
    %v3464 = vpack.c.b16 %v2592, %v2584
    %v3465 = vpack.c.b16 %v2593, %v2585
    %v3466 = vpack.c.b16 %v2594, %v2586
    %v3467 = vpack.c.b16 %v2595, %v2587
    %v3468 = vpack.c.b16 %v2596, %v2588
    %v3469 = vpack.c.b16 %v2597, %v2589
    %v3470 = vpack.c.b16 %v2606, %v2598
    %v3471 = vpack.c.b16 %v2607, %v2599
    %v3472 = vpack.c.b16 %v2608, %v2600
    %v3473 = vpack.c.b16 %v2609, %v2601
    %v3474 = vpack.c.b16 %v2610, %v2602
    %v3475 = vpack.c.b16 %v2611, %v2603
    %v3476 = vpack.c.b16 %v2612, %v2604
    %v3477 = vpack.c.b16 %v2613, %v2605
    %v3478 = vpack.c.b16 %v2622, %v2614
    %v3479 = vpack.c.b16 %v2623, %v2615
    %v3480 = vpack.c.b16 %v2624, %v2616
    %v3481 = vpack.c.b16 %v2625, %v2617
    %v3482 = vpack.c.b16 %v2626, %v2618
    %v3483 = vpack.c.b16 %v2627, %v2619
    %v3484 = vpack.c.b16 %v2628, %v2620
    %v3485 = vpack.c.b16 %v2629, %v2621
    %v3486 = vpack.c.b16 %v2638, %v2630
    %v3487 = vpack.c.b16 %v2639, %v2631
    %v3488 = vpack.c.b16 %v2640, %v2632
    %v3489 = vpack.c.b16 %v2641, %v2633
    %v3490 = vpack.c.b16 %v2642, %v2634
    %v3491 = vpack.c.b16 %v2643, %v2635
    %v3492 = vpack.c.b16 %v2644, %v2636
    %v3493 = vpack.c.b16 %v2645, %v2637
    %v3494 = vpack.c.b16 %v2654, %v2646
    %v3495 = vpack.c.b16 %v2655, %v2647
    %v3496 = vpack.c.b16 %v2656, %v2648
    %v3497 = vpack.c.b16 %v2657, %v2649
    %v3498 = vpack.c.b16 %v2658, %v2650
    %v3499 = vpack.c.b16 %v2659, %v2651
    %v3500 = vpack.c.b16 %v2660, %v2652
    %v3501 = vpack.c.b16 %v2661, %v2653
    %v3502 = vpack.c.b16 %v2670, %v2662
    %v3503 = vpack.c.b16 %v2671, %v2663
    %v3504 = vpack.c.b16 %v2672, %v2664
    %v3505 = vpack.c.b16 %v2673, %v2665
    %v3506 = vpack.c.b16 %v2674, %v2666
    %v3507 = vpack.c.b16 %v2675, %v2667
    %v3508 = vpack.c.b16 %v2676, %v2668
    %v3509 = vpack.c.b16 %v2677, %v2669
    %v3510 = vpack.c.b16 %v2686, %v2678
    %v3511 = vpack.c.b16 %v2687, %v2679
    %v3512 = vpack.c.b16 %v2688, %v2680
    %v3513 = vpack.c.b16 %v2689, %v2681
    %v3514 = vpack.c.b16 %v2690, %v2682
    %v3515 = vpack.c.b16 %v2691, %v2683
    %v3516 = vpack.c.b16 %v2692, %v2684
    %v3517 = vpack.c.b16 %v2693, %v2685
    %v3518 = vpack.c.b16 %v2702, %v2694
    %v3519 = vpack.c.b16 %v2703, %v2695
    %v3520 = vpack.c.b16 %v2704, %v2696
    %v3521 = vpack.c.b16 %v2705, %v2697
    %v3522 = vpack.c.b16 %v2706, %v2698
    %v3523 = vpack.c.b16 %v2707, %v2699
    %v3524 = vpack.c.b16 %v2708, %v2700
    %v3525 = vpack.c.b16 %v2709, %v2701
    %v3526 = vpack.c.b16 %v2718, %v2710
    %v3527 = vpack.c.b16 %v2719, %v2711
    %v3528 = vpack.c.b16 %v2720, %v2712
    %v3529 = vpack.c.b16 %v2721, %v2713
    %v3530 = vpack.c.b16 %v2722, %v2714
    %v3531 = vpack.c.b16 %v2723, %v2715
    %v3532 = vpack.c.b16 %v2724, %v2716
    %v3533 = vpack.c.b16 %v2725, %v2717
    %v3534 = vpack.c.b16 %v2734, %v2726
    %v3535 = vpack.c.b16 %v2735, %v2727
    %v3536 = vpack.c.b16 %v2736, %v2728
    %v3537 = vpack.c.b16 %v2737, %v2729
    %v3538 = vpack.c.b16 %v2738, %v2730
    %v3539 = vpack.c.b16 %v2739, %v2731
    %v3540 = vpack.c.b16 %v2740, %v2732
    %v3541 = vpack.c.b16 %v2741, %v2733
    %v3542 = vpack.c.b16 %v2750, %v2742
    %v3543 = vpack.c.b16 %v2751, %v2743
    %v3544 = vpack.c.b16 %v2752, %v2744
    %v3545 = vpack.c.b16 %v2753, %v2745
    %v3546 = vpack.c.b16 %v2754, %v2746
    %v3547 = vpack.c.b16 %v2755, %v2747
    %v3548 = vpack.c.b16 %v2756, %v2748
    %v3549 = vpack.c.b16 %v2757, %v2749
    %v3550 = vpack.c.b16 %v2766, %v2758
    %v3551 = vpack.c.b16 %v2767, %v2759
    %v3552 = vpack.c.b16 %v2768, %v2760
    %v3553 = vpack.c.b16 %v2769, %v2761
    %v3554 = vpack.c.b16 %v2770, %v2762
    %v3555 = vpack.c.b16 %v2771, %v2763
    %v3556 = vpack.c.b16 %v2772, %v2764
    %v3557 = vpack.c.b16 %v2773, %v2765
    %v3558 = vpack.c.b16 %v2782, %v2774
    %v3559 = vpack.c.b16 %v2783, %v2775
    %v3560 = vpack.c.b16 %v2784, %v2776
    %v3561 = vpack.c.b16 %v2785, %v2777
    %v3562 = vpack.c.b16 %v2786, %v2778
    %v3563 = vpack.c.b16 %v2787, %v2779
    %v3564 = vpack.c.b16 %v2788, %v2780
    %v3565 = vpack.c.b16 %v2789, %v2781
    %v3566 = vpack.c.b16 %v2798, %v2790
    %v3567 = vpack.c.b16 %v2799, %v2791
    %v3568 = vpack.c.b16 %v2800, %v2792
    %v3569 = vpack.c.b16 %v2801, %v2793
    %v3570 = vpack.c.b16 %v2802, %v2794
    %v3571 = vpack.c.b16 %v2803, %v2795
    %v3572 = vpack.c.b16 %v2804, %v2796
    %v3573 = vpack.c.b16 %v2805, %v2797
    %v3574 = vpack.c.b16 %v2814, %v2806
    %v3575 = vpack.c.b16 %v2815, %v2807
    %v3576 = vpack.c.b16 %v2816, %v2808
    %v3577 = vpack.c.b16 %v2817, %v2809
    %v3578 = vpack.c.b16 %v2818, %v2810
    %v3579 = vpack.c.b16 %v2819, %v2811
    %v3580 = vpack.c.b16 %v2820, %v2812
    %v3581 = vpack.c.b16 %v2821, %v2813
    %v3582 = vpack.c.b16 %v2830, %v2822
    %v3583 = vpack.c.b16 %v2831, %v2823
    %v3584 = vpack.c.b16 %v2832, %v2824
    %v3585 = vpack.c.b16 %v2833, %v2825
    %v3586 = vpack.c.b16 %v2834, %v2826
    %v3587 = vpack.c.b16 %v2835, %v2827
    %v3588 = vpack.c.b16 %v2836, %v2828
    %v3589 = vpack.c.b16 %v2837, %v2829
    %v3590 = vpack.c.b16 %v2846, %v2838
    %v3591 = vpack.c.b16 %v2847, %v2839
    %v3592 = vpack.c.b16 %v2848, %v2840
    %v3593 = vpack.c.b16 %v2849, %v2841
    %v3594 = vpack.c.b16 %v2850, %v2842
    %v3595 = vpack.c.b16 %v2851, %v2843
    %v3596 = vpack.c.b16 %v2852, %v2844
    %v3597 = vpack.c.b16 %v2853, %v2845
    %v3598 = vpack.c.b16 %v2862, %v2854
    %v3599 = vpack.c.b16 %v2863, %v2855
    %v3600 = vpack.c.b16 %v2864, %v2856
    %v3601 = vpack.c.b16 %v2865, %v2857
    %v3602 = vpack.c.b16 %v2866, %v2858
    %v3603 = vpack.c.b16 %v2867, %v2859
    %v3604 = vpack.c.b16 %v2868, %v2860
    %v3605 = vpack.c.b16 %v2869, %v2861
    %v3606 = vpack.c.b16 %v2878, %v2870
    %v3607 = vpack.c.b16 %v2879, %v2871
    %v3608 = vpack.c.b16 %v2880, %v2872
    %v3609 = vpack.c.b16 %v2881, %v2873
    %v3610 = vpack.c.b16 %v2882, %v2874
    %v3611 = vpack.c.b16 %v2883, %v2875
    %v3612 = vpack.c.b16 %v2884, %v2876
    %v3613 = vpack.c.b16 %v2885, %v2877
    %v3614 = vpack.c.b16 %v2894, %v2886
    %v3615 = vpack.c.b16 %v2895, %v2887
    %v3616 = vpack.c.b16 %v2896, %v2888
    %v3617 = vpack.c.b16 %v2897, %v2889
    %v3618 = vpack.c.b16 %v2898, %v2890
    %v3619 = vpack.c.b16 %v2899, %v2891
    %v3620 = vpack.c.b16 %v2900, %v2892
    %v3621 = vpack.c.b16 %v2901, %v2893
    %v3622 = vpack.c.b16 %v2910, %v2902
    %v3623 = vpack.c.b16 %v2911, %v2903
    %v3624 = vpack.c.b16 %v2912, %v2904
    %v3625 = vpack.c.b16 %v2913, %v2905
    %v3626 = vpack.c.b16 %v2914, %v2906
    %v3627 = vpack.c.b16 %v2915, %v2907
    %v3628 = vpack.c.b16 %v2916, %v2908
    %v3629 = vpack.c.b16 %v2917, %v2909
    %v3630 = vpack.c.b16 %v2926, %v2918
    %v3631 = vpack.c.b16 %v2927, %v2919
    %v3632 = vpack.c.b16 %v2928, %v2920
    %v3633 = vpack.c.b16 %v2929, %v2921
    %v3634 = vpack.c.b16 %v2930, %v2922
    %v3635 = vpack.c.b16 %v2931, %v2923
    %v3636 = vpack.c.b16 %v2932, %v2924
    %v3637 = vpack.c.b16 %v2933, %v2925
    %v3638 = vpack.c.b16 %v2942, %v2934
    %v3639 = vpack.c.b16 %v2943, %v2935
    %v3640 = vpack.c.b16 %v2944, %v2936
    %v3641 = vpack.c.b16 %v2945, %v2937
    %v3642 = vpack.c.b16 %v2946, %v2938
    %v3643 = vpack.c.b16 %v2947, %v2939
    %v3644 = vpack.c.b16 %v2948, %v2940
    %v3645 = vpack.c.b16 %v2949, %v2941
    %v3646 = vpack.c.b16 %v2958, %v2950
    %v3647 = vpack.c.b16 %v2959, %v2951
    %v3648 = vpack.c.b16 %v2960, %v2952
    %v3649 = vpack.c.b16 %v2961, %v2953
    %v3650 = vpack.c.b16 %v2962, %v2954
    %v3651 = vpack.c.b16 %v2963, %v2955
    %v3652 = vpack.c.b16 %v2964, %v2956
    %v3653 = vpack.c.b16 %v2965, %v2957
    %v3654 = vpack.c.b16 %v2974, %v2966
    %v3655 = vpack.c.b16 %v2975, %v2967
    %v3656 = vpack.c.b16 %v2976, %v2968
    %v3657 = vpack.c.b16 %v2977, %v2969
    %v3658 = vpack.c.b16 %v2978, %v2970
    %v3659 = vpack.c.b16 %v2979, %v2971
    %v3660 = vpack.c.b16 %v2980, %v2972
    %v3661 = vpack.c.b16 %v2981, %v2973
    %v3662 = vpack.c.b16 %v2990, %v2982
    %v3663 = vpack.c.b16 %v2991, %v2983
    %v3664 = vpack.c.b16 %v2992, %v2984
    %v3665 = vpack.c.b16 %v2993, %v2985
    %v3666 = vpack.c.b16 %v2994, %v2986
    %v3667 = vpack.c.b16 %v2995, %v2987
    %v3668 = vpack.c.b16 %v2996, %v2988
    %v3669 = vpack.c.b16 %v2997, %v2989
    %v3670 = vpack.c.b16 %v3006, %v2998
    %v3671 = vpack.c.b16 %v3007, %v2999
    %v3672 = vpack.c.b16 %v3008, %v3000
    %v3673 = vpack.c.b16 %v3009, %v3001
    %v3674 = vpack.c.b16 %v3010, %v3002
    %v3675 = vpack.c.b16 %v3011, %v3003
    %v3676 = vpack.c.b16 %v3012, %v3004
    %v3677 = vpack.c.b16 %v3013, %v3005
    %v3678 = vpack.c.b16 %v3022, %v3014
    %v3679 = vpack.c.b16 %v3023, %v3015
    %v3680 = vpack.c.b16 %v3024, %v3016
    %v3681 = vpack.c.b16 %v3025, %v3017
    %v3682 = vpack.c.b16 %v3026, %v3018
    %v3683 = vpack.c.b16 %v3027, %v3019
    %v3684 = vpack.c.b16 %v3028, %v3020
    %v3685 = vpack.c.b16 %v3029, %v3021
    %v3686 = vpack.c.b16 %v3038, %v3030
    %v3687 = vpack.c.b16 %v3039, %v3031
    %v3688 = vpack.c.b16 %v3040, %v3032
    %v3689 = vpack.c.b16 %v3041, %v3033
    %v3690 = vpack.c.b16 %v3042, %v3034
    %v3691 = vpack.c.b16 %v3043, %v3035
    %v3692 = vpack.c.b16 %v3044, %v3036
    %v3693 = vpack.c.b16 %v3045, %v3037
    %v3694 = vpack.c.b16 %v3054, %v3046
    %v3695 = vpack.c.b16 %v3055, %v3047
    %v3696 = vpack.c.b16 %v3056, %v3048
    %v3697 = vpack.c.b16 %v3057, %v3049
    %v3698 = vpack.c.b16 %v3058, %v3050
    %v3699 = vpack.c.b16 %v3059, %v3051
    %v3700 = vpack.c.b16 %v3060, %v3052
    %v3701 = vpack.c.b16 %v3061, %v3053
    %v3702 = vpack.c.b16 %v3070, %v3062
    %v3703 = vpack.c.b16 %v3071, %v3063
    %v3704 = vpack.c.b16 %v3072, %v3064
    %v3705 = vpack.c.b16 %v3073, %v3065
    %v3706 = vpack.c.b16 %v3074, %v3066
    %v3707 = vpack.c.b16 %v3075, %v3067
    %v3708 = vpack.c.b16 %v3076, %v3068
    %v3709 = vpack.c.b16 %v3077, %v3069
    %v3710 = vpack.c.b16 %v3086, %v3078
    %v3711 = vpack.c.b16 %v3087, %v3079
    %v3712 = vpack.c.b16 %v3088, %v3080
    %v3713 = vpack.c.b16 %v3089, %v3081
    %v3714 = vpack.c.b16 %v3090, %v3082
    %v3715 = vpack.c.b16 %v3091, %v3083
    %v3716 = vpack.c.b16 %v3092, %v3084
    %v3717 = vpack.c.b16 %v3093, %v3085
    %v3718 = vpack.c.b16 %v3102, %v3094
    %v3719 = vpack.c.b16 %v3103, %v3095
    %v3720 = vpack.c.b16 %v3104, %v3096
    %v3721 = vpack.c.b16 %v3105, %v3097
    %v3722 = vpack.c.b16 %v3106, %v3098
    %v3723 = vpack.c.b16 %v3107, %v3099
    %v3724 = vpack.c.b16 %v3108, %v3100
    %v3725 = vpack.c.b16 %v3109, %v3101
    %v3726 = vpack.c.b16 %v3118, %v3110
    %v3727 = vpack.c.b16 %v3119, %v3111
    %v3728 = vpack.c.b16 %v3120, %v3112
    %v3729 = vpack.c.b16 %v3121, %v3113
    %v3730 = vpack.c.b16 %v3122, %v3114
    %v3731 = vpack.c.b16 %v3123, %v3115
    %v3732 = vpack.c.b16 %v3124, %v3116
    %v3733 = vpack.c.b16 %v3125, %v3117
    %v3734 = vpack.c.b16 %v3134, %v3126
    %v3735 = vpack.c.b16 %v3135, %v3127
    %v3736 = vpack.c.b16 %v3136, %v3128
    %v3737 = vpack.c.b16 %v3137, %v3129
    %v3738 = vpack.c.b16 %v3138, %v3130
    %v3739 = vpack.c.b16 %v3139, %v3131
    %v3740 = vpack.c.b16 %v3140, %v3132
    %v3741 = vpack.c.b16 %v3141, %v3133
    %v3742 = vpack.c.b16 %v3150, %v3142
    %v3743 = vpack.c.b16 %v3151, %v3143
    %v3744 = vpack.c.b16 %v3152, %v3144
    %v3745 = vpack.c.b16 %v3153, %v3145
    %v3746 = vpack.c.b16 %v3154, %v3146
    %v3747 = vpack.c.b16 %v3155, %v3147
    %v3748 = vpack.c.b16 %v3156, %v3148
    %v3749 = vpack.c.b16 %v3157, %v3149
    %v3750 = vpack.c.b16 %v3166, %v3158
    %v3751 = vpack.c.b16 %v3167, %v3159
    %v3752 = vpack.c.b16 %v3168, %v3160
    %v3753 = vpack.c.b16 %v3169, %v3161
    %v3754 = vpack.c.b16 %v3170, %v3162
    %v3755 = vpack.c.b16 %v3171, %v3163
    %v3756 = vpack.c.b16 %v3172, %v3164
    %v3757 = vpack.c.b16 %v3173, %v3165
    %v3758 = vpack.c.b16 %v3182, %v3174
    %v3759 = vpack.c.b16 %v3183, %v3175
    %v3760 = vpack.c.b16 %v3184, %v3176
    %v3761 = vpack.c.b16 %v3185, %v3177
    %v3762 = vpack.c.b16 %v3186, %v3178
    %v3763 = vpack.c.b16 %v3187, %v3179
    %v3764 = vpack.c.b16 %v3188, %v3180
    %v3765 = vpack.c.b16 %v3189, %v3181
    %v3766 = vpack.c.b16 %v3198, %v3190
    %v3767 = vpack.c.b16 %v3199, %v3191
    %v3768 = vpack.c.b16 %v3200, %v3192
    %v3769 = vpack.c.b16 %v3201, %v3193
    %v3770 = vpack.c.b16 %v3202, %v3194
    %v3771 = vpack.c.b16 %v3203, %v3195
    %v3772 = vpack.c.b16 %v3204, %v3196
    %v3773 = vpack.c.b16 %v3205, %v3197
    %v3774 = vpack.c.b16 %v3214, %v3206
    %v3775 = vpack.c.b16 %v3215, %v3207
    %v3776 = vpack.c.b16 %v3216, %v3208
    %v3777 = vpack.c.b16 %v3217, %v3209
    %v3778 = vpack.c.b16 %v3218, %v3210
    %v3779 = vpack.c.b16 %v3219, %v3211
    %v3780 = vpack.c.b16 %v3220, %v3212
    %v3781 = vpack.c.b16 %v3221, %v3213
    %v3782 = vpack.c.b16 %v3230, %v3222
    %v3783 = vpack.c.b16 %v3231, %v3223
    %v3784 = vpack.c.b16 %v3232, %v3224
    %v3785 = vpack.c.b16 %v3233, %v3225
    %v3786 = vpack.c.b16 %v3234, %v3226
    %v3787 = vpack.c.b16 %v3235, %v3227
    %v3788 = vpack.c.b16 %v3236, %v3228
    %v3789 = vpack.c.b16 %v3237, %v3229
    %v3790 = vpack.c.b16 %v3246, %v3238
    %v3791 = vpack.c.b16 %v3247, %v3239
    %v3792 = vpack.c.b16 %v3248, %v3240
    %v3793 = vpack.c.b16 %v3249, %v3241
    %v3794 = vpack.c.b16 %v3250, %v3242
    %v3795 = vpack.c.b16 %v3251, %v3243
    %v3796 = vpack.c.b16 %v3252, %v3244
    %v3797 = vpack.c.b16 %v3253, %v3245
    %v3798 = vpack.c.b16 %v3262, %v3254
    %v3799 = vpack.c.b16 %v3263, %v3255
    %v3800 = vpack.c.b16 %v3264, %v3256
    %v3801 = vpack.c.b16 %v3265, %v3257
    %v3802 = vpack.c.b16 %v3266, %v3258
    %v3803 = vpack.c.b16 %v3267, %v3259
    %v3804 = vpack.c.b16 %v3268, %v3260
    %v3805 = vpack.c.b16 %v3269, %v3261
    %v3806 = vpack.c.b16 %v3278, %v3270
    %v3807 = vpack.c.b16 %v3279, %v3271
    %v3808 = vpack.c.b16 %v3280, %v3272
    %v3809 = vpack.c.b16 %v3281, %v3273
    %v3810 = vpack.c.b16 %v3282, %v3274
    %v3811 = vpack.c.b16 %v3283, %v3275
    %v3812 = vpack.c.b16 %v3284, %v3276
    %v3813 = vpack.c.b16 %v3285, %v3277
    %v3814 = vpack.c.b16 %v3294, %v3286
    %v3815 = vpack.c.b16 %v3295, %v3287
    %v3816 = vpack.c.b16 %v3296, %v3288
    %v3817 = vpack.c.b16 %v3297, %v3289
    %v3818 = vpack.c.b16 %v3298, %v3290
    %v3819 = vpack.c.b16 %v3299, %v3291
    %v3820 = vpack.c.b16 %v3300, %v3292
    %v3821 = vpack.c.b16 %v3301, %v3293
    %v3822 = vpack.c.b16 %v3310, %v3302
    %v3823 = vpack.c.b16 %v3311, %v3303
    %v3824 = vpack.c.b16 %v3312, %v3304
    %v3825 = vpack.c.b16 %v3313, %v3305
    %v3826 = vpack.c.b16 %v3314, %v3306
    %v3827 = vpack.c.b16 %v3315, %v3307
    %v3828 = vpack.c.b16 %v3316, %v3308
    %v3829 = vpack.c.b16 %v3317, %v3309
    %4342 = vmatprep.subr.bf16.mxu0 %v3375
    %4343 = vmatpush1.bf16.msra.mxu0 %v3374
    %4344 = vmatprep.subr.bf16.mxu0 %v3367
    %4345 = vmatpush1.bf16.msra.mxu0 %v3366
    %4346 = vmatprep.subr.bf16.mxu0 %v3359
    %4347 = vmatpush1.bf16.msra.mxu0 %v3358
    %4348 = vmatprep.subr.bf16.mxu0 %v3351
    %4349 = vmatpush1.bf16.msra.mxu0 %v3350
    %4350 = vmatprep.subr.bf16.mxu0 %v3343
    %4351 = vmatpush1.bf16.msra.mxu0 %v3342
    %4352 = vmatprep.subr.bf16.mxu0 %v3335
    %4353 = vmatpush1.bf16.msra.mxu0 %v3334
    %4354 = vmatprep.subr.bf16.mxu0 %v3327
    %4355 = vmatpush1.bf16.msra.mxu0 %v3326
    %4356 = vmatprep.subr.bf16.mxu0 %v3319
    %4357 = vmatpush1.bf16.msra.mxu0 %v3318
    %4358 = vmatprep.subr.bf16.mxu0 %v3439
    %4359 = vmatpush2.bf16.msra.mxu0 %v3438
    %4360 = vmatprep.subr.bf16.mxu0 %v3431
    %4361 = vmatpush2.bf16.msra.mxu0 %v3430
    %4362 = vmatprep.subr.bf16.mxu0 %v3423
    %4363 = vmatpush2.bf16.msra.mxu0 %v3422
    %4364 = vmatprep.subr.bf16.mxu0 %v3415
    %4365 = vmatpush2.bf16.msra.mxu0 %v3414
    %4366 = vmatprep.subr.bf16.mxu0 %v3407
    %4367 = vmatpush2.bf16.msra.mxu0 %v3406
    %4368 = vmatprep.subr.bf16.mxu0 %v3399
    %4369 = vmatpush2.bf16.msra.mxu0 %v3398
    %4370 = vmatprep.subr.bf16.mxu0 %v3391
    %4371 = vmatpush2.bf16.msra.mxu0 %v3390
    %4372 = vmatprep.subr.bf16.mxu0 %v3383
    %4373 = vmatpush2.bf16.msra.mxu0 %v3382
    %4374 = vmatprep.mubr.bf16.mxu0 %v1221
    %4375 = vmatmul.mubr.bf16.gmra.mxu0 %v1220
    %v4376 = vpop.f32.mrf.mxu0
    %v4377 = vadd.f32 %v1745, %v4376
    %v4378 = vpop.f32.mrf.mxu0
    %v4379 = vadd.f32 %v1749, %v4378
    %v4380 = vpop.f32.mrf.mxu0
    %v4381 = vpop.f32.mrf.mxu0
    %4382 = vdwg.mxu0
    %4383 = vmatprep.subr.bf16.mxu0 %v3503
    %4384 = vmatpush1.bf16.msra.mxu0 %v3502
    %4385 = vmatprep.subr.bf16.mxu0 %v3495
    %4386 = vmatpush1.bf16.msra.mxu0 %v3494
    %4387 = vmatprep.subr.bf16.mxu0 %v3487
    %4388 = vmatpush1.bf16.msra.mxu0 %v3486
    %4389 = vmatprep.subr.bf16.mxu0 %v3479
    %4390 = vmatpush1.bf16.msra.mxu0 %v3478
    %4391 = vmatprep.subr.bf16.mxu0 %v3471
    %4392 = vmatpush1.bf16.msra.mxu0 %v3470
    %4393 = vmatprep.subr.bf16.mxu0 %v3463
    %4394 = vmatpush1.bf16.msra.mxu0 %v3462
    %4395 = vmatprep.subr.bf16.mxu0 %v3455
    %4396 = vmatpush1.bf16.msra.mxu0 %v3454
    %4397 = vmatprep.subr.bf16.mxu0 %v3447
    %4398 = vmatpush1.bf16.msra.mxu0 %v3446
    %4399 = vmatprep.subr.bf16.mxu0 %v3567
    %4400 = vmatpush2.bf16.msra.mxu0 %v3566
    %4401 = vmatprep.subr.bf16.mxu0 %v3559
    %4402 = vmatpush2.bf16.msra.mxu0 %v3558
    %4403 = vmatprep.subr.bf16.mxu0 %v3551
    %4404 = vmatpush2.bf16.msra.mxu0 %v3550
    %4405 = vmatprep.subr.bf16.mxu0 %v3543
    %4406 = vmatpush2.bf16.msra.mxu0 %v3542
    %4407 = vmatprep.subr.bf16.mxu0 %v3535
    %4408 = vmatpush2.bf16.msra.mxu0 %v3534
    %4409 = vmatprep.subr.bf16.mxu0 %v3527
    %4410 = vmatpush2.bf16.msra.mxu0 %v3526
    %4411 = vmatprep.subr.bf16.mxu0 %v3519
    %4412 = vmatpush2.bf16.msra.mxu0 %v3518
    %4413 = vmatprep.subr.bf16.mxu0 %v3511
    %4414 = vmatpush2.bf16.msra.mxu0 %v3510
    %4415 = vmatprep.mubr.bf16.mxu0 %v1223
    %4416 = vmatmul.mubr.bf16.gmra.mxu0 %v1222
    %v4417 = vpop.f32.mrf.mxu0
    %v4418 = vadd.f32 %v4377, %v4417
    %v4419 = vpop.f32.mrf.mxu0
    %v4420 = vadd.f32 %v4379, %v4419
    %v4421 = vpop.f32.mrf.mxu0
    %v4422 = vpop.f32.mrf.mxu0
    %4423 = vdwg.mxu0
    %4424 = vmatprep.subr.bf16.mxu0 %v3631
    %4425 = vmatpush1.bf16.msra.mxu0 %v3630
    %4426 = vmatprep.subr.bf16.mxu0 %v3623
    %4427 = vmatpush1.bf16.msra.mxu0 %v3622
    %4428 = vmatprep.subr.bf16.mxu0 %v3615
    %4429 = vmatpush1.bf16.msra.mxu0 %v3614
    %4430 = vmatprep.subr.bf16.mxu0 %v3607
    %4431 = vmatpush1.bf16.msra.mxu0 %v3606
    %4432 = vmatprep.subr.bf16.mxu0 %v3599
    %4433 = vmatpush1.bf16.msra.mxu0 %v3598
    %4434 = vmatprep.subr.bf16.mxu0 %v3591
    %4435 = vmatpush1.bf16.msra.mxu0 %v3590
    %4436 = vmatprep.subr.bf16.mxu0 %v3583
    %4437 = vmatpush1.bf16.msra.mxu0 %v3582
    %4438 = vmatprep.subr.bf16.mxu0 %v3575
    %4439 = vmatpush1.bf16.msra.mxu0 %v3574
    %4440 = vmatprep.subr.bf16.mxu0 %v3695
    %4441 = vmatpush2.bf16.msra.mxu0 %v3694
    %4442 = vmatprep.subr.bf16.mxu0 %v3687
    %4443 = vmatpush2.bf16.msra.mxu0 %v3686
    %4444 = vmatprep.subr.bf16.mxu0 %v3679
    %4445 = vmatpush2.bf16.msra.mxu0 %v3678
    %4446 = vmatprep.subr.bf16.mxu0 %v3671
    %4447 = vmatpush2.bf16.msra.mxu0 %v3670
    %4448 = vmatprep.subr.bf16.mxu0 %v3663
    %4449 = vmatpush2.bf16.msra.mxu0 %v3662
    %4450 = vmatprep.subr.bf16.mxu0 %v3655
    %4451 = vmatpush2.bf16.msra.mxu0 %v3654
    %4452 = vmatprep.subr.bf16.mxu0 %v3647
    %4453 = vmatpush2.bf16.msra.mxu0 %v3646
    %4454 = vmatprep.subr.bf16.mxu0 %v3639
    %4455 = vmatpush2.bf16.msra.mxu0 %v3638
    %4456 = vmatprep.mubr.bf16.mxu0 %v1225
    %4457 = vmatmul.mubr.bf16.gmra.mxu0 %v1224
    %v4458 = vpop.f32.mrf.mxu0
    %v4459 = vadd.f32 %v4418, %v4458
    %v4460 = vpop.f32.mrf.mxu0
    %v4461 = vadd.f32 %v4420, %v4460
    %v4462 = vpop.f32.mrf.mxu0
    %v4463 = vpop.f32.mrf.mxu0
    %4464 = vdwg.mxu0
    %4465 = vmatprep.subr.bf16.mxu0 %v3759
    %4466 = vmatpush1.bf16.msra.mxu0 %v3758
    %4467 = vmatprep.subr.bf16.mxu0 %v3751
    %4468 = vmatpush1.bf16.msra.mxu0 %v3750
    %4469 = vmatprep.subr.bf16.mxu0 %v3743
    %4470 = vmatpush1.bf16.msra.mxu0 %v3742
    %4471 = vmatprep.subr.bf16.mxu0 %v3735
    %4472 = vmatpush1.bf16.msra.mxu0 %v3734
    %4473 = vmatprep.subr.bf16.mxu0 %v3727
    %4474 = vmatpush1.bf16.msra.mxu0 %v3726
    %4475 = vmatprep.subr.bf16.mxu0 %v3719
    %4476 = vmatpush1.bf16.msra.mxu0 %v3718
    %4477 = vmatprep.subr.bf16.mxu0 %v3711
    %4478 = vmatpush1.bf16.msra.mxu0 %v3710
    %4479 = vmatprep.subr.bf16.mxu0 %v3703
    %4480 = vmatpush1.bf16.msra.mxu0 %v3702
    %4481 = vmatprep.subr.bf16.mxu0 %v3823
    %4482 = vmatpush2.bf16.msra.mxu0 %v3822
    %4483 = vmatprep.subr.bf16.mxu0 %v3815
    %4484 = vmatpush2.bf16.msra.mxu0 %v3814
    %4485 = vmatprep.subr.bf16.mxu0 %v3807
    %4486 = vmatpush2.bf16.msra.mxu0 %v3806
    %4487 = vmatprep.subr.bf16.mxu0 %v3799
    %4488 = vmatpush2.bf16.msra.mxu0 %v3798
    %4489 = vmatprep.subr.bf16.mxu0 %v3791
    %4490 = vmatpush2.bf16.msra.mxu0 %v3790
    %4491 = vmatprep.subr.bf16.mxu0 %v3783
    %4492 = vmatpush2.bf16.msra.mxu0 %v3782
    %4493 = vmatprep.subr.bf16.mxu0 %v3775
    %4494 = vmatpush2.bf16.msra.mxu0 %v3774
    %4495 = vmatprep.subr.bf16.mxu0 %v3767
    %4496 = vmatpush2.bf16.msra.mxu0 %v3766
    %4497 = vmatprep.mubr.bf16.mxu0 %v1227
    %4498 = vmatmul.mubr.bf16.gmra.mxu0 %v1226
    %v4499 = vpop.f32.mrf.mxu0
    %v4500 = vadd.f32 %v4459, %v4499
    %v4501 = vpop.f32.mrf.mxu0
    %v4502 = vadd.f32 %v4461, %v4501
    %v4503 = vpop.f32.mrf.mxu0
    %v4504 = vpop.f32.mrf.mxu0
    %4505 = vdwg.mxu0
    %4506 = vmatprep.subr.bf16.mxu0 %v3377
    %4507 = vmatpush1.bf16.msra.mxu0 %v3376
    %4508 = vmatprep.subr.bf16.mxu0 %v3369
    %4509 = vmatpush1.bf16.msra.mxu0 %v3368
    %4510 = vmatprep.subr.bf16.mxu0 %v3361
    %4511 = vmatpush1.bf16.msra.mxu0 %v3360
    %4512 = vmatprep.subr.bf16.mxu0 %v3353
    %4513 = vmatpush1.bf16.msra.mxu0 %v3352
    %4514 = vmatprep.subr.bf16.mxu0 %v3345
    %4515 = vmatpush1.bf16.msra.mxu0 %v3344
    %4516 = vmatprep.subr.bf16.mxu0 %v3337
    %4517 = vmatpush1.bf16.msra.mxu0 %v3336
    %4518 = vmatprep.subr.bf16.mxu0 %v3329
    %4519 = vmatpush1.bf16.msra.mxu0 %v3328
    %4520 = vmatprep.subr.bf16.mxu0 %v3321
    %4521 = vmatpush1.bf16.msra.mxu0 %v3320
    %4522 = vmatprep.subr.bf16.mxu0 %v3441
    %4523 = vmatpush2.bf16.msra.mxu0 %v3440
    %4524 = vmatprep.subr.bf16.mxu0 %v3433
    %4525 = vmatpush2.bf16.msra.mxu0 %v3432
    %4526 = vmatprep.subr.bf16.mxu0 %v3425
    %4527 = vmatpush2.bf16.msra.mxu0 %v3424
    %4528 = vmatprep.subr.bf16.mxu0 %v3417
    %4529 = vmatpush2.bf16.msra.mxu0 %v3416
    %4530 = vmatprep.subr.bf16.mxu0 %v3409
    %4531 = vmatpush2.bf16.msra.mxu0 %v3408
    %4532 = vmatprep.subr.bf16.mxu0 %v3401
    %4533 = vmatpush2.bf16.msra.mxu0 %v3400
    %4534 = vmatprep.subr.bf16.mxu0 %v3393
    %4535 = vmatpush2.bf16.msra.mxu0 %v3392
    %4536 = vmatprep.subr.bf16.mxu0 %v3385
    %4537 = vmatpush2.bf16.msra.mxu0 %v3384
    %4538 = vmatprep.mubr.bf16.mxu0 %v1221
    %4539 = vmatmul.mubr.bf16.gmra.mxu0 %v1220
    %v4540 = vpop.f32.mrf.mxu0
    %v4541 = vadd.f32 %v1753, %v4540
    %v4542 = vpop.f32.mrf.mxu0
    %v4543 = vadd.f32 %v1757, %v4542
    %v4544 = vpop.f32.mrf.mxu0
    %v4545 = vpop.f32.mrf.mxu0
    %4546 = vdwg.mxu0
    %4547 = vmatprep.subr.bf16.mxu0 %v3505
    %4548 = vmatpush1.bf16.msra.mxu0 %v3504
    %4549 = vmatprep.subr.bf16.mxu0 %v3497
    %4550 = vmatpush1.bf16.msra.mxu0 %v3496
    %4551 = vmatprep.subr.bf16.mxu0 %v3489
    %4552 = vmatpush1.bf16.msra.mxu0 %v3488
    %4553 = vmatprep.subr.bf16.mxu0 %v3481
    %4554 = vmatpush1.bf16.msra.mxu0 %v3480
    %4555 = vmatprep.subr.bf16.mxu0 %v3473
    %4556 = vmatpush1.bf16.msra.mxu0 %v3472
    %4557 = vmatprep.subr.bf16.mxu0 %v3465
    %4558 = vmatpush1.bf16.msra.mxu0 %v3464
    %4559 = vmatprep.subr.bf16.mxu0 %v3457
    %4560 = vmatpush1.bf16.msra.mxu0 %v3456
    %4561 = vmatprep.subr.bf16.mxu0 %v3449
    %4562 = vmatpush1.bf16.msra.mxu0 %v3448
    %4563 = vmatprep.subr.bf16.mxu0 %v3569
    %4564 = vmatpush2.bf16.msra.mxu0 %v3568
    %4565 = vmatprep.subr.bf16.mxu0 %v3561
    %4566 = vmatpush2.bf16.msra.mxu0 %v3560
    %4567 = vmatprep.subr.bf16.mxu0 %v3553
    %4568 = vmatpush2.bf16.msra.mxu0 %v3552
    %4569 = vmatprep.subr.bf16.mxu0 %v3545
    %4570 = vmatpush2.bf16.msra.mxu0 %v3544
    %4571 = vmatprep.subr.bf16.mxu0 %v3537
    %4572 = vmatpush2.bf16.msra.mxu0 %v3536
    %4573 = vmatprep.subr.bf16.mxu0 %v3529
    %4574 = vmatpush2.bf16.msra.mxu0 %v3528
    %4575 = vmatprep.subr.bf16.mxu0 %v3521
    %4576 = vmatpush2.bf16.msra.mxu0 %v3520
    %4577 = vmatprep.subr.bf16.mxu0 %v3513
    %4578 = vmatpush2.bf16.msra.mxu0 %v3512
    %4579 = vmatprep.mubr.bf16.mxu0 %v1223
    %4580 = vmatmul.mubr.bf16.gmra.mxu0 %v1222
    %v4581 = vpop.f32.mrf.mxu0
    %v4582 = vadd.f32 %v4541, %v4581
    %v4583 = vpop.f32.mrf.mxu0
    %v4584 = vadd.f32 %v4543, %v4583
    %v4585 = vpop.f32.mrf.mxu0
    %v4586 = vpop.f32.mrf.mxu0
    %4587 = vdwg.mxu0
    %4588 = vmatprep.subr.bf16.mxu0 %v3633
    %4589 = vmatpush1.bf16.msra.mxu0 %v3632
    %4590 = vmatprep.subr.bf16.mxu0 %v3625
    %4591 = vmatpush1.bf16.msra.mxu0 %v3624
    %4592 = vmatprep.subr.bf16.mxu0 %v3617
    %4593 = vmatpush1.bf16.msra.mxu0 %v3616
    %4594 = vmatprep.subr.bf16.mxu0 %v3609
    %4595 = vmatpush1.bf16.msra.mxu0 %v3608
    %4596 = vmatprep.subr.bf16.mxu0 %v3601
    %4597 = vmatpush1.bf16.msra.mxu0 %v3600
    %4598 = vmatprep.subr.bf16.mxu0 %v3593
    %4599 = vmatpush1.bf16.msra.mxu0 %v3592
    %4600 = vmatprep.subr.bf16.mxu0 %v3585
    %4601 = vmatpush1.bf16.msra.mxu0 %v3584
    %4602 = vmatprep.subr.bf16.mxu0 %v3577
    %4603 = vmatpush1.bf16.msra.mxu0 %v3576
    %4604 = vmatprep.subr.bf16.mxu0 %v3697
    %4605 = vmatpush2.bf16.msra.mxu0 %v3696
    %4606 = vmatprep.subr.bf16.mxu0 %v3689
    %4607 = vmatpush2.bf16.msra.mxu0 %v3688
    %4608 = vmatprep.subr.bf16.mxu0 %v3681
    %4609 = vmatpush2.bf16.msra.mxu0 %v3680
    %4610 = vmatprep.subr.bf16.mxu0 %v3673
    %4611 = vmatpush2.bf16.msra.mxu0 %v3672
    %4612 = vmatprep.subr.bf16.mxu0 %v3665
    %4613 = vmatpush2.bf16.msra.mxu0 %v3664
    %4614 = vmatprep.subr.bf16.mxu0 %v3657
    %4615 = vmatpush2.bf16.msra.mxu0 %v3656
    %4616 = vmatprep.subr.bf16.mxu0 %v3649
    %4617 = vmatpush2.bf16.msra.mxu0 %v3648
    %4618 = vmatprep.subr.bf16.mxu0 %v3641
    %4619 = vmatpush2.bf16.msra.mxu0 %v3640
    %4620 = vmatprep.mubr.bf16.mxu0 %v1225
    %4621 = vmatmul.mubr.bf16.gmra.mxu0 %v1224
    %v4622 = vpop.f32.mrf.mxu0
    %v4623 = vadd.f32 %v4582, %v4622
    %v4624 = vpop.f32.mrf.mxu0
    %v4625 = vadd.f32 %v4584, %v4624
    %v4626 = vpop.f32.mrf.mxu0
    %v4627 = vpop.f32.mrf.mxu0
    %4628 = vdwg.mxu0
    %4629 = vmatprep.subr.bf16.mxu0 %v3761
    %4630 = vmatpush1.bf16.msra.mxu0 %v3760
    %4631 = vmatprep.subr.bf16.mxu0 %v3753
    %4632 = vmatpush1.bf16.msra.mxu0 %v3752
    %4633 = vmatprep.subr.bf16.mxu0 %v3745
    %4634 = vmatpush1.bf16.msra.mxu0 %v3744
    %4635 = vmatprep.subr.bf16.mxu0 %v3737
    %4636 = vmatpush1.bf16.msra.mxu0 %v3736
    %4637 = vmatprep.subr.bf16.mxu0 %v3729
    %4638 = vmatpush1.bf16.msra.mxu0 %v3728
    %4639 = vmatprep.subr.bf16.mxu0 %v3721
    %4640 = vmatpush1.bf16.msra.mxu0 %v3720
    %4641 = vmatprep.subr.bf16.mxu0 %v3713
    %4642 = vmatpush1.bf16.msra.mxu0 %v3712
    %4643 = vmatprep.subr.bf16.mxu0 %v3705
    %4644 = vmatpush1.bf16.msra.mxu0 %v3704
    %4645 = vmatprep.subr.bf16.mxu0 %v3825
    %4646 = vmatpush2.bf16.msra.mxu0 %v3824
    %4647 = vmatprep.subr.bf16.mxu0 %v3817
    %4648 = vmatpush2.bf16.msra.mxu0 %v3816
    %4649 = vmatprep.subr.bf16.mxu0 %v3809
    %4650 = vmatpush2.bf16.msra.mxu0 %v3808
    %4651 = vmatprep.subr.bf16.mxu0 %v3801
    %4652 = vmatpush2.bf16.msra.mxu0 %v3800
    %4653 = vmatprep.subr.bf16.mxu0 %v3793
    %4654 = vmatpush2.bf16.msra.mxu0 %v3792
    %4655 = vmatprep.subr.bf16.mxu0 %v3785
    %4656 = vmatpush2.bf16.msra.mxu0 %v3784
    %4657 = vmatprep.subr.bf16.mxu0 %v3777
    %4658 = vmatpush2.bf16.msra.mxu0 %v3776
    %4659 = vmatprep.subr.bf16.mxu0 %v3769
    %4660 = vmatpush2.bf16.msra.mxu0 %v3768
    %4661 = vmatprep.mubr.bf16.mxu0 %v1227
    %4662 = vmatmul.mubr.bf16.gmra.mxu0 %v1226
    %v4663 = vpop.f32.mrf.mxu0
    %v4664 = vadd.f32 %v4623, %v4663
    %v4665 = vpop.f32.mrf.mxu0
    %v4666 = vadd.f32 %v4625, %v4665
    %v4667 = vpop.f32.mrf.mxu0
    %v4668 = vpop.f32.mrf.mxu0
    %4669 = vdwg.mxu0
    %4670 = vmatprep.subr.bf16.mxu0 %v3379
    %4671 = vmatpush1.bf16.msra.mxu0 %v3378
    %4672 = vmatprep.subr.bf16.mxu0 %v3371
    %4673 = vmatpush1.bf16.msra.mxu0 %v3370
    %4674 = vmatprep.subr.bf16.mxu0 %v3363
    %4675 = vmatpush1.bf16.msra.mxu0 %v3362
    %4676 = vmatprep.subr.bf16.mxu0 %v3355
    %4677 = vmatpush1.bf16.msra.mxu0 %v3354
    %4678 = vmatprep.subr.bf16.mxu0 %v3347
    %4679 = vmatpush1.bf16.msra.mxu0 %v3346
    %4680 = vmatprep.subr.bf16.mxu0 %v3339
    %4681 = vmatpush1.bf16.msra.mxu0 %v3338
    %4682 = vmatprep.subr.bf16.mxu0 %v3331
    %4683 = vmatpush1.bf16.msra.mxu0 %v3330
    %4684 = vmatprep.subr.bf16.mxu0 %v3323
    %4685 = vmatpush1.bf16.msra.mxu0 %v3322
    %4686 = vmatprep.subr.bf16.mxu0 %v3443
    %4687 = vmatpush2.bf16.msra.mxu0 %v3442
    %4688 = vmatprep.subr.bf16.mxu0 %v3435
    %4689 = vmatpush2.bf16.msra.mxu0 %v3434
    %4690 = vmatprep.subr.bf16.mxu0 %v3427
    %4691 = vmatpush2.bf16.msra.mxu0 %v3426
    %4692 = vmatprep.subr.bf16.mxu0 %v3419
    %4693 = vmatpush2.bf16.msra.mxu0 %v3418
    %4694 = vmatprep.subr.bf16.mxu0 %v3411
    %4695 = vmatpush2.bf16.msra.mxu0 %v3410
    %4696 = vmatprep.subr.bf16.mxu0 %v3403
    %4697 = vmatpush2.bf16.msra.mxu0 %v3402
    %4698 = vmatprep.subr.bf16.mxu0 %v3395
    %4699 = vmatpush2.bf16.msra.mxu0 %v3394
    %4700 = vmatprep.subr.bf16.mxu0 %v3387
    %4701 = vmatpush2.bf16.msra.mxu0 %v3386
    %4702 = vmatprep.mubr.bf16.mxu0 %v1221
    %4703 = vmatmul.mubr.bf16.gmra.mxu0 %v1220
    %v4704 = vpop.f32.mrf.mxu0
    %v4705 = vadd.f32 %v1761, %v4704
    %v4706 = vpop.f32.mrf.mxu0
    %v4707 = vadd.f32 %v1765, %v4706
    %v4708 = vpop.f32.mrf.mxu0
    %v4709 = vpop.f32.mrf.mxu0
    %4710 = vdwg.mxu0
    %4711 = vmatprep.subr.bf16.mxu0 %v3507
    %4712 = vmatpush1.bf16.msra.mxu0 %v3506
    %4713 = vmatprep.subr.bf16.mxu0 %v3499
    %4714 = vmatpush1.bf16.msra.mxu0 %v3498
    %4715 = vmatprep.subr.bf16.mxu0 %v3491
    %4716 = vmatpush1.bf16.msra.mxu0 %v3490
    %4717 = vmatprep.subr.bf16.mxu0 %v3483
    %4718 = vmatpush1.bf16.msra.mxu0 %v3482
    %4719 = vmatprep.subr.bf16.mxu0 %v3475
    %4720 = vmatpush1.bf16.msra.mxu0 %v3474
    %4721 = vmatprep.subr.bf16.mxu0 %v3467
    %4722 = vmatpush1.bf16.msra.mxu0 %v3466
    %4723 = vmatprep.subr.bf16.mxu0 %v3459
    %4724 = vmatpush1.bf16.msra.mxu0 %v3458
    %4725 = vmatprep.subr.bf16.mxu0 %v3451
    %4726 = vmatpush1.bf16.msra.mxu0 %v3450
    %4727 = vmatprep.subr.bf16.mxu0 %v3571
    %4728 = vmatpush2.bf16.msra.mxu0 %v3570
    %4729 = vmatprep.subr.bf16.mxu0 %v3563
    %4730 = vmatpush2.bf16.msra.mxu0 %v3562
    %4731 = vmatprep.subr.bf16.mxu0 %v3555
    %4732 = vmatpush2.bf16.msra.mxu0 %v3554
    %4733 = vmatprep.subr.bf16.mxu0 %v3547
    %4734 = vmatpush2.bf16.msra.mxu0 %v3546
    %4735 = vmatprep.subr.bf16.mxu0 %v3539
    %4736 = vmatpush2.bf16.msra.mxu0 %v3538
    %4737 = vmatprep.subr.bf16.mxu0 %v3531
    %4738 = vmatpush2.bf16.msra.mxu0 %v3530
    %4739 = vmatprep.subr.bf16.mxu0 %v3523
    %4740 = vmatpush2.bf16.msra.mxu0 %v3522
    %4741 = vmatprep.subr.bf16.mxu0 %v3515
    %4742 = vmatpush2.bf16.msra.mxu0 %v3514
    %4743 = vmatprep.mubr.bf16.mxu0 %v1223
    %4744 = vmatmul.mubr.bf16.gmra.mxu0 %v1222
    %v4745 = vpop.f32.mrf.mxu0
    %v4746 = vadd.f32 %v4705, %v4745
    %v4747 = vpop.f32.mrf.mxu0
    %v4748 = vadd.f32 %v4707, %v4747
    %v4749 = vpop.f32.mrf.mxu0
    %v4750 = vpop.f32.mrf.mxu0
    %4751 = vdwg.mxu0
    %4752 = vmatprep.subr.bf16.mxu0 %v3635
    %4753 = vmatpush1.bf16.msra.mxu0 %v3634
    %4754 = vmatprep.subr.bf16.mxu0 %v3627
    %4755 = vmatpush1.bf16.msra.mxu0 %v3626
    %4756 = vmatprep.subr.bf16.mxu0 %v3619
    %4757 = vmatpush1.bf16.msra.mxu0 %v3618
    %4758 = vmatprep.subr.bf16.mxu0 %v3611
    %4759 = vmatpush1.bf16.msra.mxu0 %v3610
    %4760 = vmatprep.subr.bf16.mxu0 %v3603
    %4761 = vmatpush1.bf16.msra.mxu0 %v3602
    %4762 = vmatprep.subr.bf16.mxu0 %v3595
    %4763 = vmatpush1.bf16.msra.mxu0 %v3594
    %4764 = vmatprep.subr.bf16.mxu0 %v3587
    %4765 = vmatpush1.bf16.msra.mxu0 %v3586
    %4766 = vmatprep.subr.bf16.mxu0 %v3579
    %4767 = vmatpush1.bf16.msra.mxu0 %v3578
    %4768 = vmatprep.subr.bf16.mxu0 %v3699
    %4769 = vmatpush2.bf16.msra.mxu0 %v3698
    %4770 = vmatprep.subr.bf16.mxu0 %v3691
    %4771 = vmatpush2.bf16.msra.mxu0 %v3690
    %4772 = vmatprep.subr.bf16.mxu0 %v3683
    %4773 = vmatpush2.bf16.msra.mxu0 %v3682
    %4774 = vmatprep.subr.bf16.mxu0 %v3675
    %4775 = vmatpush2.bf16.msra.mxu0 %v3674
    %4776 = vmatprep.subr.bf16.mxu0 %v3667
    %4777 = vmatpush2.bf16.msra.mxu0 %v3666
    %4778 = vmatprep.subr.bf16.mxu0 %v3659
    %4779 = vmatpush2.bf16.msra.mxu0 %v3658
    %4780 = vmatprep.subr.bf16.mxu0 %v3651
    %4781 = vmatpush2.bf16.msra.mxu0 %v3650
    %4782 = vmatprep.subr.bf16.mxu0 %v3643
    %4783 = vmatpush2.bf16.msra.mxu0 %v3642
    %4784 = vmatprep.mubr.bf16.mxu0 %v1225
    %4785 = vmatmul.mubr.bf16.gmra.mxu0 %v1224
    %v4786 = vpop.f32.mrf.mxu0
    %v4787 = vadd.f32 %v4746, %v4786
    %v4788 = vpop.f32.mrf.mxu0
    %v4789 = vadd.f32 %v4748, %v4788
    %v4790 = vpop.f32.mrf.mxu0
    %v4791 = vpop.f32.mrf.mxu0
    %4792 = vdwg.mxu0
    %4793 = vmatprep.subr.bf16.mxu0 %v3763
    %4794 = vmatpush1.bf16.msra.mxu0 %v3762
    %4795 = vmatprep.subr.bf16.mxu0 %v3755
    %4796 = vmatpush1.bf16.msra.mxu0 %v3754
    %4797 = vmatprep.subr.bf16.mxu0 %v3747
    %4798 = vmatpush1.bf16.msra.mxu0 %v3746
    %4799 = vmatprep.subr.bf16.mxu0 %v3739
    %4800 = vmatpush1.bf16.msra.mxu0 %v3738
    %4801 = vmatprep.subr.bf16.mxu0 %v3731
    %4802 = vmatpush1.bf16.msra.mxu0 %v3730
    %4803 = vmatprep.subr.bf16.mxu0 %v3723
    %4804 = vmatpush1.bf16.msra.mxu0 %v3722
    %4805 = vmatprep.subr.bf16.mxu0 %v3715
    %4806 = vmatpush1.bf16.msra.mxu0 %v3714
    %4807 = vmatprep.subr.bf16.mxu0 %v3707
    %4808 = vmatpush1.bf16.msra.mxu0 %v3706
    %4809 = vmatprep.subr.bf16.mxu0 %v3827
    %4810 = vmatpush2.bf16.msra.mxu0 %v3826
    %4811 = vmatprep.subr.bf16.mxu0 %v3819
    %4812 = vmatpush2.bf16.msra.mxu0 %v3818
    %4813 = vmatprep.subr.bf16.mxu0 %v3811
    %4814 = vmatpush2.bf16.msra.mxu0 %v3810
    %4815 = vmatprep.subr.bf16.mxu0 %v3803
    %4816 = vmatpush2.bf16.msra.mxu0 %v3802
    %4817 = vmatprep.subr.bf16.mxu0 %v3795
    %4818 = vmatpush2.bf16.msra.mxu0 %v3794
    %4819 = vmatprep.subr.bf16.mxu0 %v3787
    %4820 = vmatpush2.bf16.msra.mxu0 %v3786
    %4821 = vmatprep.subr.bf16.mxu0 %v3779
    %4822 = vmatpush2.bf16.msra.mxu0 %v3778
    %4823 = vmatprep.subr.bf16.mxu0 %v3771
    %4824 = vmatpush2.bf16.msra.mxu0 %v3770
    %4825 = vmatprep.mubr.bf16.mxu0 %v1227
    %4826 = vmatmul.mubr.bf16.gmra.mxu0 %v1226
    %v4827 = vpop.f32.mrf.mxu0
    %v4828 = vadd.f32 %v4787, %v4827
    %v4829 = vpop.f32.mrf.mxu0
    %v4830 = vadd.f32 %v4789, %v4829
    %v4831 = vpop.f32.mrf.mxu0
    %v4832 = vpop.f32.mrf.mxu0
    %4833 = vdwg.mxu0
    %4834 = vmatprep.subr.bf16.mxu0 %v3381
    %4835 = vmatpush1.bf16.msra.mxu0 %v3380
    %4836 = vmatprep.subr.bf16.mxu0 %v3373
    %4837 = vmatpush1.bf16.msra.mxu0 %v3372
    %4838 = vmatprep.subr.bf16.mxu0 %v3365
    %4839 = vmatpush1.bf16.msra.mxu0 %v3364
    %4840 = vmatprep.subr.bf16.mxu0 %v3357
    %4841 = vmatpush1.bf16.msra.mxu0 %v3356
    %4842 = vmatprep.subr.bf16.mxu0 %v3349
    %4843 = vmatpush1.bf16.msra.mxu0 %v3348
    %4844 = vmatprep.subr.bf16.mxu0 %v3341
    %4845 = vmatpush1.bf16.msra.mxu0 %v3340
    %4846 = vmatprep.subr.bf16.mxu0 %v3333
    %4847 = vmatpush1.bf16.msra.mxu0 %v3332
    %4848 = vmatprep.subr.bf16.mxu0 %v3325
    %4849 = vmatpush1.bf16.msra.mxu0 %v3324
    %4850 = vmatprep.subr.bf16.mxu0 %v3445
    %4851 = vmatpush2.bf16.msra.mxu0 %v3444
    %4852 = vmatprep.subr.bf16.mxu0 %v3437
    %4853 = vmatpush2.bf16.msra.mxu0 %v3436
    %4854 = vmatprep.subr.bf16.mxu0 %v3429
    %4855 = vmatpush2.bf16.msra.mxu0 %v3428
    %4856 = vmatprep.subr.bf16.mxu0 %v3421
    %4857 = vmatpush2.bf16.msra.mxu0 %v3420
    %4858 = vmatprep.subr.bf16.mxu0 %v3413
    %4859 = vmatpush2.bf16.msra.mxu0 %v3412
    %4860 = vmatprep.subr.bf16.mxu0 %v3405
    %4861 = vmatpush2.bf16.msra.mxu0 %v3404
    %4862 = vmatprep.subr.bf16.mxu0 %v3397
    %4863 = vmatpush2.bf16.msra.mxu0 %v3396
    %4864 = vmatprep.subr.bf16.mxu0 %v3389
    %4865 = vmatpush2.bf16.msra.mxu0 %v3388
    %4866 = vmatprep.mubr.bf16.mxu0 %v1221
    %4867 = vmatmul.mubr.bf16.gmra.mxu0 %v1220
    %v4868 = vpop.f32.mrf.mxu0
    %v4869 = vadd.f32 %v1769, %v4868
    %v4870 = vpop.f32.mrf.mxu0
    %v4871 = vadd.f32 %v1773, %v4870
    %v4872 = vpop.f32.mrf.mxu0
    %v4873 = vpop.f32.mrf.mxu0
    %4874 = vdwg.mxu0
    %4875 = vmatprep.subr.bf16.mxu0 %v3509
    %4876 = vmatpush1.bf16.msra.mxu0 %v3508
    %4877 = vmatprep.subr.bf16.mxu0 %v3501
    %4878 = vmatpush1.bf16.msra.mxu0 %v3500
    %4879 = vmatprep.subr.bf16.mxu0 %v3493
    %4880 = vmatpush1.bf16.msra.mxu0 %v3492
    %4881 = vmatprep.subr.bf16.mxu0 %v3485
    %4882 = vmatpush1.bf16.msra.mxu0 %v3484
    %4883 = vmatprep.subr.bf16.mxu0 %v3477
    %4884 = vmatpush1.bf16.msra.mxu0 %v3476
    %4885 = vmatprep.subr.bf16.mxu0 %v3469
    %4886 = vmatpush1.bf16.msra.mxu0 %v3468
    %4887 = vmatprep.subr.bf16.mxu0 %v3461
    %4888 = vmatpush1.bf16.msra.mxu0 %v3460
    %4889 = vmatprep.subr.bf16.mxu0 %v3453
    %4890 = vmatpush1.bf16.msra.mxu0 %v3452
    %4891 = vmatprep.subr.bf16.mxu0 %v3573
    %4892 = vmatpush2.bf16.msra.mxu0 %v3572
    %4893 = vmatprep.subr.bf16.mxu0 %v3565
    %4894 = vmatpush2.bf16.msra.mxu0 %v3564
    %4895 = vmatprep.subr.bf16.mxu0 %v3557
    %4896 = vmatpush2.bf16.msra.mxu0 %v3556
    %4897 = vmatprep.subr.bf16.mxu0 %v3549
    %4898 = vmatpush2.bf16.msra.mxu0 %v3548
    %4899 = vmatprep.subr.bf16.mxu0 %v3541
    %4900 = vmatpush2.bf16.msra.mxu0 %v3540
    %4901 = vmatprep.subr.bf16.mxu0 %v3533
    %4902 = vmatpush2.bf16.msra.mxu0 %v3532
    %4903 = vmatprep.subr.bf16.mxu0 %v3525
    %4904 = vmatpush2.bf16.msra.mxu0 %v3524
    %4905 = vmatprep.subr.bf16.mxu0 %v3517
    %4906 = vmatpush2.bf16.msra.mxu0 %v3516
    %4907 = vmatprep.mubr.bf16.mxu0 %v1223
    %4908 = vmatmul.mubr.bf16.gmra.mxu0 %v1222
    %v4909 = vpop.f32.mrf.mxu0
    %v4910 = vadd.f32 %v4869, %v4909
    %v4911 = vpop.f32.mrf.mxu0
    %v4912 = vadd.f32 %v4871, %v4911
    %v4913 = vpop.f32.mrf.mxu0
    %v4914 = vpop.f32.mrf.mxu0
    %4915 = vdwg.mxu0
    %4916 = vmatprep.subr.bf16.mxu0 %v3637
    %4917 = vmatpush1.bf16.msra.mxu0 %v3636
    %4918 = vmatprep.subr.bf16.mxu0 %v3629
    %4919 = vmatpush1.bf16.msra.mxu0 %v3628
    %4920 = vmatprep.subr.bf16.mxu0 %v3621
    %4921 = vmatpush1.bf16.msra.mxu0 %v3620
    %4922 = vmatprep.subr.bf16.mxu0 %v3613
    %4923 = vmatpush1.bf16.msra.mxu0 %v3612
    %4924 = vmatprep.subr.bf16.mxu0 %v3605
    %4925 = vmatpush1.bf16.msra.mxu0 %v3604
    %4926 = vmatprep.subr.bf16.mxu0 %v3597
    %4927 = vmatpush1.bf16.msra.mxu0 %v3596
    %4928 = vmatprep.subr.bf16.mxu0 %v3589
    %4929 = vmatpush1.bf16.msra.mxu0 %v3588
    %4930 = vmatprep.subr.bf16.mxu0 %v3581
    %4931 = vmatpush1.bf16.msra.mxu0 %v3580
    %4932 = vmatprep.subr.bf16.mxu0 %v3701
    %4933 = vmatpush2.bf16.msra.mxu0 %v3700
    %4934 = vmatprep.subr.bf16.mxu0 %v3693
    %4935 = vmatpush2.bf16.msra.mxu0 %v3692
    %4936 = vmatprep.subr.bf16.mxu0 %v3685
    %4937 = vmatpush2.bf16.msra.mxu0 %v3684
    %4938 = vmatprep.subr.bf16.mxu0 %v3677
    %4939 = vmatpush2.bf16.msra.mxu0 %v3676
    %4940 = vmatprep.subr.bf16.mxu0 %v3669
    %4941 = vmatpush2.bf16.msra.mxu0 %v3668
    %4942 = vmatprep.subr.bf16.mxu0 %v3661
    %4943 = vmatpush2.bf16.msra.mxu0 %v3660
    %4944 = vmatprep.subr.bf16.mxu0 %v3653
    %4945 = vmatpush2.bf16.msra.mxu0 %v3652
    %4946 = vmatprep.subr.bf16.mxu0 %v3645
    %4947 = vmatpush2.bf16.msra.mxu0 %v3644
    %4948 = vmatprep.mubr.bf16.mxu0 %v1225
    %4949 = vmatmul.mubr.bf16.gmra.mxu0 %v1224
    %v4950 = vpop.f32.mrf.mxu0
    %v4951 = vadd.f32 %v4910, %v4950
    %v4952 = vpop.f32.mrf.mxu0
    %v4953 = vadd.f32 %v4912, %v4952
    %v4954 = vpop.f32.mrf.mxu0
    %v4955 = vpop.f32.mrf.mxu0
    %4956 = vdwg.mxu0
    %4957 = vmatprep.subr.bf16.mxu0 %v3765
    %4958 = vmatpush1.bf16.msra.mxu0 %v3764
    %4959 = vmatprep.subr.bf16.mxu0 %v3757
    %4960 = vmatpush1.bf16.msra.mxu0 %v3756
    %4961 = vmatprep.subr.bf16.mxu0 %v3749
    %4962 = vmatpush1.bf16.msra.mxu0 %v3748
    %4963 = vmatprep.subr.bf16.mxu0 %v3741
    %4964 = vmatpush1.bf16.msra.mxu0 %v3740
    %4965 = vmatprep.subr.bf16.mxu0 %v3733
    %4966 = vmatpush1.bf16.msra.mxu0 %v3732
    %4967 = vmatprep.subr.bf16.mxu0 %v3725
    %4968 = vmatpush1.bf16.msra.mxu0 %v3724
    %4969 = vmatprep.subr.bf16.mxu0 %v3717
    %4970 = vmatpush1.bf16.msra.mxu0 %v3716
    %4971 = vmatprep.subr.bf16.mxu0 %v3709
    %4972 = vmatpush1.bf16.msra.mxu0 %v3708
    %4973 = vmatprep.subr.bf16.mxu0 %v3829
    %4974 = vmatpush2.bf16.msra.mxu0 %v3828
    %4975 = vmatprep.subr.bf16.mxu0 %v3821
    %4976 = vmatpush2.bf16.msra.mxu0 %v3820
    %4977 = vmatprep.subr.bf16.mxu0 %v3813
    %4978 = vmatpush2.bf16.msra.mxu0 %v3812
    %4979 = vmatprep.subr.bf16.mxu0 %v3805
    %4980 = vmatpush2.bf16.msra.mxu0 %v3804
    %4981 = vmatprep.subr.bf16.mxu0 %v3797
    %4982 = vmatpush2.bf16.msra.mxu0 %v3796
    %4983 = vmatprep.subr.bf16.mxu0 %v3789
    %4984 = vmatpush2.bf16.msra.mxu0 %v3788
    %4985 = vmatprep.subr.bf16.mxu0 %v3781
    %4986 = vmatpush2.bf16.msra.mxu0 %v3780
    %4987 = vmatprep.subr.bf16.mxu0 %v3773
    %4988 = vmatpush2.bf16.msra.mxu0 %v3772
    %4989 = vmatprep.mubr.bf16.mxu0 %v1227
    %4990 = vmatmul.mubr.bf16.gmra.mxu0 %v1226
    %v4991 = vpop.f32.mrf.mxu0
    %v4992 = vadd.f32 %v4951, %v4991
    %v4993 = vpop.f32.mrf.mxu0
    %v4994 = vadd.f32 %v4953, %v4993
    %v4995 = vpop.f32.mrf.mxu0
    %v4996 = vpop.f32.mrf.mxu0
    %4997 = vdwg.mxu0
    %v4998 = vtanh.pop %v4500
    %v4999 = vtanh.pop %v4502
    %v5000 = vtanh.pop %v4664
    %v5001 = vtanh.pop %v4666
    %v5002 = vtanh.pop %v4828
    %v5003 = vtanh.pop %v4830
    %v5004 = vtanh.pop %v4992
    %v5005 = vtanh.pop %v4994
    %v5006 = vpack.c.bf16 %v4998, %v4998
    %v5007 = vpack.c.bf16 %v4999, %v4999
    %v5008 = vpack.c.bf16 %v5000, %v5000
    %v5009 = vpack.c.bf16 %v5001, %v5001
    %v5010 = vpack.c.bf16 %v5002, %v5002
    %v5011 = vpack.c.bf16 %v5003, %v5003
    %v5012 = vpack.c.bf16 %v5004, %v5004
    %v5013 = vpack.c.bf16 %v5005, %v5005
    %v5014 = vld [vmem:[#allocation14] sm:$0xff]
    %v5015 = vld [vmem:[#allocation14 + $0x8] sm:$0xff]
    %v5016 = vld [vmem:[#allocation14 + $0x10] sm:$0xff]
    %v5017 = vld [vmem:[#allocation14 + $0x18] sm:$0xff]
    %v5018 = vld [vmem:[#allocation14 + $0x20] sm:$0xff]
    %v5019 = vld [vmem:[#allocation14 + $0x28] sm:$0xff]
    %v5020 = vld [vmem:[#allocation14 + $0x30] sm:$0xff]
    %v5021 = vld [vmem:[#allocation14 + $0x38] sm:$0xff]
    %v5022 = vld [vmem:[#allocation14 + $0x40] sm:$0xff]
    %v5023 = vld [vmem:[#allocation14 + $0x48] sm:$0xff]
    %v5024 = vld [vmem:[#allocation14 + $0x50] sm:$0xff]
    %v5025 = vld [vmem:[#allocation14 + $0x58] sm:$0xff]
    %v5026 = vld [vmem:[#allocation14 + $0x60] sm:$0xff]
    %v5027 = vld [vmem:[#allocation14 + $0x68] sm:$0xff]
    %v5028 = vld [vmem:[#allocation14 + $0x70] sm:$0xff]
    %v5029 = vld [vmem:[#allocation14 + $0x78] sm:$0xff]
    %v5030 = vld [vmem:[#allocation14 + $0x80] sm:$0xff]
    %v5031 = vld [vmem:[#allocation14 + $0x88] sm:$0xff]
    %v5032 = vld [vmem:[#allocation14 + $0x90] sm:$0xff]
    %v5033 = vld [vmem:[#allocation14 + $0x98] sm:$0xff]
    %v5034 = vld [vmem:[#allocation14 + $0xa0] sm:$0xff]
    %v5035 = vld [vmem:[#allocation14 + $0xa8] sm:$0xff]
    %v5036 = vld [vmem:[#allocation14 + $0xb0] sm:$0xff]
    %v5037 = vld [vmem:[#allocation14 + $0xb8] sm:$0xff]
    %v5038 = vld [vmem:[#allocation14 + $0xc0] sm:$0xff]
    %v5039 = vld [vmem:[#allocation14 + $0xc8] sm:$0xff]
    %v5040 = vld [vmem:[#allocation14 + $0xd0] sm:$0xff]
    %v5041 = vld [vmem:[#allocation14 + $0xd8] sm:$0xff]
    %v5042 = vld [vmem:[#allocation14 + $0xe0] sm:$0xff]
    %v5043 = vld [vmem:[#allocation14 + $0xe8] sm:$0xff]
    %v5044 = vld [vmem:[#allocation14 + $0xf0] sm:$0xff]
    %v5045 = vld [vmem:[#allocation14 + $0xf8] sm:$0xff]
    %v5046 = vld [vmem:[#allocation14 + $0x100] sm:$0xff]
    %v5047 = vld [vmem:[#allocation14 + $0x108] sm:$0xff]
    %v5048 = vld [vmem:[#allocation14 + $0x110] sm:$0xff]
    %v5049 = vld [vmem:[#allocation14 + $0x118] sm:$0xff]
    %v5050 = vld [vmem:[#allocation14 + $0x120] sm:$0xff]
    %v5051 = vld [vmem:[#allocation14 + $0x128] sm:$0xff]
    %v5052 = vld [vmem:[#allocation14 + $0x130] sm:$0xff]
    %v5053 = vld [vmem:[#allocation14 + $0x138] sm:$0xff]
    %v5054 = vld [vmem:[#allocation14 + $0x140] sm:$0xff]
    %v5055 = vld [vmem:[#allocation14 + $0x148] sm:$0xff]
    %v5056 = vld [vmem:[#allocation14 + $0x150] sm:$0xff]
    %v5057 = vld [vmem:[#allocation14 + $0x158] sm:$0xff]
    %v5058 = vld [vmem:[#allocation14 + $0x160] sm:$0xff]
    %v5059 = vld [vmem:[#allocation14 + $0x168] sm:$0xff]
    %v5060 = vld [vmem:[#allocation14 + $0x170] sm:$0xff]
    %v5061 = vld [vmem:[#allocation14 + $0x178] sm:$0xff]
    %v5062 = vld [vmem:[#allocation14 + $0x180] sm:$0xff]
    %v5063 = vld [vmem:[#allocation14 + $0x188] sm:$0xff]
    %v5064 = vld [vmem:[#allocation14 + $0x190] sm:$0xff]
    %v5065 = vld [vmem:[#allocation14 + $0x198] sm:$0xff]
    %v5066 = vld [vmem:[#allocation14 + $0x1a0] sm:$0xff]
    %v5067 = vld [vmem:[#allocation14 + $0x1a8] sm:$0xff]
    %v5068 = vld [vmem:[#allocation14 + $0x1b0] sm:$0xff]
    %v5069 = vld [vmem:[#allocation14 + $0x1b8] sm:$0xff]
    %v5070 = vld [vmem:[#allocation14 + $0x1c0] sm:$0xff]
    %v5071 = vld [vmem:[#allocation14 + $0x1c8] sm:$0xff]
    %v5072 = vld [vmem:[#allocation14 + $0x1d0] sm:$0xff]
    %v5073 = vld [vmem:[#allocation14 + $0x1d8] sm:$0xff]
    %v5074 = vld [vmem:[#allocation14 + $0x1e0] sm:$0xff]
    %v5075 = vld [vmem:[#allocation14 + $0x1e8] sm:$0xff]
    %v5076 = vld [vmem:[#allocation14 + $0x1f0] sm:$0xff]
    %v5077 = vld [vmem:[#allocation14 + $0x1f8] sm:$0xff]
    %v5078 = vld [vmem:[#allocation14 + $0x200] sm:$0xff]
    %v5079 = vld [vmem:[#allocation14 + $0x208] sm:$0xff]
    %v5080 = vld [vmem:[#allocation14 + $0x210] sm:$0xff]
    %v5081 = vld [vmem:[#allocation14 + $0x218] sm:$0xff]
    %v5082 = vld [vmem:[#allocation14 + $0x220] sm:$0xff]
    %v5083 = vld [vmem:[#allocation14 + $0x228] sm:$0xff]
    %v5084 = vld [vmem:[#allocation14 + $0x230] sm:$0xff]
    %v5085 = vld [vmem:[#allocation14 + $0x238] sm:$0xff]
    %v5086 = vld [vmem:[#allocation14 + $0x240] sm:$0xff]
    %v5087 = vld [vmem:[#allocation14 + $0x248] sm:$0xff]
    %v5088 = vld [vmem:[#allocation14 + $0x250] sm:$0xff]
    %v5089 = vld [vmem:[#allocation14 + $0x258] sm:$0xff]
    %v5090 = vld [vmem:[#allocation14 + $0x260] sm:$0xff]
    %v5091 = vld [vmem:[#allocation14 + $0x268] sm:$0xff]
    %v5092 = vld [vmem:[#allocation14 + $0x270] sm:$0xff]
    %v5093 = vld [vmem:[#allocation14 + $0x278] sm:$0xff]
    %v5094 = vld [vmem:[#allocation14 + $0x280] sm:$0xff]
    %v5095 = vld [vmem:[#allocation14 + $0x288] sm:$0xff]
    %v5096 = vld [vmem:[#allocation14 + $0x290] sm:$0xff]
    %v5097 = vld [vmem:[#allocation14 + $0x298] sm:$0xff]
    %v5098 = vld [vmem:[#allocation14 + $0x2a0] sm:$0xff]
    %v5099 = vld [vmem:[#allocation14 + $0x2a8] sm:$0xff]
    %v5100 = vld [vmem:[#allocation14 + $0x2b0] sm:$0xff]
    %v5101 = vld [vmem:[#allocation14 + $0x2b8] sm:$0xff]
    %v5102 = vld [vmem:[#allocation14 + $0x2c0] sm:$0xff]
    %v5103 = vld [vmem:[#allocation14 + $0x2c8] sm:$0xff]
    %v5104 = vld [vmem:[#allocation14 + $0x2d0] sm:$0xff]
    %v5105 = vld [vmem:[#allocation14 + $0x2d8] sm:$0xff]
    %v5106 = vld [vmem:[#allocation14 + $0x2e0] sm:$0xff]
    %v5107 = vld [vmem:[#allocation14 + $0x2e8] sm:$0xff]
    %v5108 = vld [vmem:[#allocation14 + $0x2f0] sm:$0xff]
    %v5109 = vld [vmem:[#allocation14 + $0x2f8] sm:$0xff]
    %v5110 = vld [vmem:[#allocation14 + $0x300] sm:$0xff]
    %v5111 = vld [vmem:[#allocation14 + $0x308] sm:$0xff]
    %v5112 = vld [vmem:[#allocation14 + $0x310] sm:$0xff]
    %v5113 = vld [vmem:[#allocation14 + $0x318] sm:$0xff]
    %v5114 = vld [vmem:[#allocation14 + $0x320] sm:$0xff]
    %v5115 = vld [vmem:[#allocation14 + $0x328] sm:$0xff]
    %v5116 = vld [vmem:[#allocation14 + $0x330] sm:$0xff]
    %v5117 = vld [vmem:[#allocation14 + $0x338] sm:$0xff]
    %v5118 = vld [vmem:[#allocation14 + $0x340] sm:$0xff]
    %v5119 = vld [vmem:[#allocation14 + $0x348] sm:$0xff]
    %v5120 = vld [vmem:[#allocation14 + $0x350] sm:$0xff]
    %v5121 = vld [vmem:[#allocation14 + $0x358] sm:$0xff]
    %v5122 = vld [vmem:[#allocation14 + $0x360] sm:$0xff]
    %v5123 = vld [vmem:[#allocation14 + $0x368] sm:$0xff]
    %v5124 = vld [vmem:[#allocation14 + $0x370] sm:$0xff]
    %v5125 = vld [vmem:[#allocation14 + $0x378] sm:$0xff]
    %v5126 = vld [vmem:[#allocation14 + $0x380] sm:$0xff]
    %v5127 = vld [vmem:[#allocation14 + $0x388] sm:$0xff]
    %v5128 = vld [vmem:[#allocation14 + $0x390] sm:$0xff]
    %v5129 = vld [vmem:[#allocation14 + $0x398] sm:$0xff]
    %v5130 = vld [vmem:[#allocation14 + $0x3a0] sm:$0xff]
    %v5131 = vld [vmem:[#allocation14 + $0x3a8] sm:$0xff]
    %v5132 = vld [vmem:[#allocation14 + $0x3b0] sm:$0xff]
    %v5133 = vld [vmem:[#allocation14 + $0x3b8] sm:$0xff]
    %v5134 = vld [vmem:[#allocation14 + $0x3c0] sm:$0xff]
    %v5135 = vld [vmem:[#allocation14 + $0x3c8] sm:$0xff]
    %v5136 = vld [vmem:[#allocation14 + $0x3d0] sm:$0xff]
    %v5137 = vld [vmem:[#allocation14 + $0x3d8] sm:$0xff]
    %v5138 = vld [vmem:[#allocation14 + $0x3e0] sm:$0xff]
    %v5139 = vld [vmem:[#allocation14 + $0x3e8] sm:$0xff]
    %v5140 = vld [vmem:[#allocation14 + $0x3f0] sm:$0xff]
    %v5141 = vld [vmem:[#allocation14 + $0x3f8] sm:$0xff]
    %v5142 = vld [vmem:[#allocation16] sm:$0x3]
    %v5144 = vlaneseq
    %v5145 = vshrl.u32 %v5144, 7
    %v5146 = vsub.s32 0, %v5145
    %v5147 = vrot.slane %v5142, %v5146
    %v5148 = vlaneseq
    %v5149 = vshrl.u32 %v5148, 7
    %v5150 = vsub.s32 1, %v5149
    %v5151 = vrot.slane %v5142, %v5150
    %v5282 = vunpack.c.l.b16 %v5014
    %v5283 = vunpack.c.h.b16 %v5014
    %v5284 = vunpack.c.l.b16 %v5015
    %v5285 = vunpack.c.h.b16 %v5015
    %v5286 = vunpack.c.l.b16 %v5016
    %v5287 = vunpack.c.h.b16 %v5016
    %v5288 = vunpack.c.l.b16 %v5017
    %v5289 = vunpack.c.h.b16 %v5017
    %v5290 = vunpack.c.l.b16 %v5018
    %v5291 = vunpack.c.h.b16 %v5018
    %v5292 = vunpack.c.l.b16 %v5019
    %v5293 = vunpack.c.h.b16 %v5019
    %v5294 = vunpack.c.l.b16 %v5020
    %v5295 = vunpack.c.h.b16 %v5020
    %v5296 = vunpack.c.l.b16 %v5021
    %v5297 = vunpack.c.h.b16 %v5021
    %v5298 = vunpack.c.l.b16 %v5022
    %v5299 = vunpack.c.h.b16 %v5022
    %v5300 = vunpack.c.l.b16 %v5023
    %v5301 = vunpack.c.h.b16 %v5023
    %v5302 = vunpack.c.l.b16 %v5024
    %v5303 = vunpack.c.h.b16 %v5024
    %v5304 = vunpack.c.l.b16 %v5025
    %v5305 = vunpack.c.h.b16 %v5025
    %v5306 = vunpack.c.l.b16 %v5026
    %v5307 = vunpack.c.h.b16 %v5026
    %v5308 = vunpack.c.l.b16 %v5027
    %v5309 = vunpack.c.h.b16 %v5027
    %v5310 = vunpack.c.l.b16 %v5028
    %v5311 = vunpack.c.h.b16 %v5028
    %v5312 = vunpack.c.l.b16 %v5029
    %v5313 = vunpack.c.h.b16 %v5029
    %v5314 = vunpack.c.l.b16 %v5030
    %v5315 = vunpack.c.h.b16 %v5030
    %v5316 = vunpack.c.l.b16 %v5031
    %v5317 = vunpack.c.h.b16 %v5031
    %v5318 = vunpack.c.l.b16 %v5032
    %v5319 = vunpack.c.h.b16 %v5032
    %v5320 = vunpack.c.l.b16 %v5033
    %v5321 = vunpack.c.h.b16 %v5033
    %v5322 = vunpack.c.l.b16 %v5034
    %v5323 = vunpack.c.h.b16 %v5034
    %v5324 = vunpack.c.l.b16 %v5035
    %v5325 = vunpack.c.h.b16 %v5035
    %v5326 = vunpack.c.l.b16 %v5036
    %v5327 = vunpack.c.h.b16 %v5036
    %v5328 = vunpack.c.l.b16 %v5037
    %v5329 = vunpack.c.h.b16 %v5037
    %v5330 = vunpack.c.l.b16 %v5038
    %v5331 = vunpack.c.h.b16 %v5038
    %v5332 = vunpack.c.l.b16 %v5039
    %v5333 = vunpack.c.h.b16 %v5039
    %v5334 = vunpack.c.l.b16 %v5040
    %v5335 = vunpack.c.h.b16 %v5040
    %v5336 = vunpack.c.l.b16 %v5041
    %v5337 = vunpack.c.h.b16 %v5041
    %v5338 = vunpack.c.l.b16 %v5042
    %v5339 = vunpack.c.h.b16 %v5042
    %v5340 = vunpack.c.l.b16 %v5043
    %v5341 = vunpack.c.h.b16 %v5043
    %v5342 = vunpack.c.l.b16 %v5044
    %v5343 = vunpack.c.h.b16 %v5044
    %v5344 = vunpack.c.l.b16 %v5045
    %v5345 = vunpack.c.h.b16 %v5045
    %v5346 = vunpack.c.l.b16 %v5046
    %v5347 = vunpack.c.h.b16 %v5046
    %v5348 = vunpack.c.l.b16 %v5047
    %v5349 = vunpack.c.h.b16 %v5047
    %v5350 = vunpack.c.l.b16 %v5048
    %v5351 = vunpack.c.h.b16 %v5048
    %v5352 = vunpack.c.l.b16 %v5049
    %v5353 = vunpack.c.h.b16 %v5049
    %v5354 = vunpack.c.l.b16 %v5050
    %v5355 = vunpack.c.h.b16 %v5050
    %v5356 = vunpack.c.l.b16 %v5051
    %v5357 = vunpack.c.h.b16 %v5051
    %v5358 = vunpack.c.l.b16 %v5052
    %v5359 = vunpack.c.h.b16 %v5052
    %v5360 = vunpack.c.l.b16 %v5053
    %v5361 = vunpack.c.h.b16 %v5053
    %v5362 = vunpack.c.l.b16 %v5054
    %v5363 = vunpack.c.h.b16 %v5054
    %v5364 = vunpack.c.l.b16 %v5055
    %v5365 = vunpack.c.h.b16 %v5055
    %v5366 = vunpack.c.l.b16 %v5056
    %v5367 = vunpack.c.h.b16 %v5056
    %v5368 = vunpack.c.l.b16 %v5057
    %v5369 = vunpack.c.h.b16 %v5057
    %v5370 = vunpack.c.l.b16 %v5058
    %v5371 = vunpack.c.h.b16 %v5058
    %v5372 = vunpack.c.l.b16 %v5059
    %v5373 = vunpack.c.h.b16 %v5059
    %v5374 = vunpack.c.l.b16 %v5060
    %v5375 = vunpack.c.h.b16 %v5060
    %v5376 = vunpack.c.l.b16 %v5061
    %v5377 = vunpack.c.h.b16 %v5061
    %v5378 = vunpack.c.l.b16 %v5062
    %v5379 = vunpack.c.h.b16 %v5062
    %v5380 = vunpack.c.l.b16 %v5063
    %v5381 = vunpack.c.h.b16 %v5063
    %v5382 = vunpack.c.l.b16 %v5064
    %v5383 = vunpack.c.h.b16 %v5064
    %v5384 = vunpack.c.l.b16 %v5065
    %v5385 = vunpack.c.h.b16 %v5065
    %v5386 = vunpack.c.l.b16 %v5066
    %v5387 = vunpack.c.h.b16 %v5066
    %v5388 = vunpack.c.l.b16 %v5067
    %v5389 = vunpack.c.h.b16 %v5067
    %v5390 = vunpack.c.l.b16 %v5068
    %v5391 = vunpack.c.h.b16 %v5068
    %v5392 = vunpack.c.l.b16 %v5069
    %v5393 = vunpack.c.h.b16 %v5069
    %v5394 = vunpack.c.l.b16 %v5070
    %v5395 = vunpack.c.h.b16 %v5070
    %v5396 = vunpack.c.l.b16 %v5071
    %v5397 = vunpack.c.h.b16 %v5071
    %v5398 = vunpack.c.l.b16 %v5072
    %v5399 = vunpack.c.h.b16 %v5072
    %v5400 = vunpack.c.l.b16 %v5073
    %v5401 = vunpack.c.h.b16 %v5073
    %v5402 = vunpack.c.l.b16 %v5074
    %v5403 = vunpack.c.h.b16 %v5074
    %v5404 = vunpack.c.l.b16 %v5075
    %v5405 = vunpack.c.h.b16 %v5075
    %v5406 = vunpack.c.l.b16 %v5076
    %v5407 = vunpack.c.h.b16 %v5076
    %v5408 = vunpack.c.l.b16 %v5077
    %v5409 = vunpack.c.h.b16 %v5077
    %v5410 = vunpack.c.l.b16 %v5078
    %v5411 = vunpack.c.h.b16 %v5078
    %v5412 = vunpack.c.l.b16 %v5079
    %v5413 = vunpack.c.h.b16 %v5079
    %v5414 = vunpack.c.l.b16 %v5080
    %v5415 = vunpack.c.h.b16 %v5080
    %v5416 = vunpack.c.l.b16 %v5081
    %v5417 = vunpack.c.h.b16 %v5081
    %v5418 = vunpack.c.l.b16 %v5082
    %v5419 = vunpack.c.h.b16 %v5082
    %v5420 = vunpack.c.l.b16 %v5083
    %v5421 = vunpack.c.h.b16 %v5083
    %v5422 = vunpack.c.l.b16 %v5084
    %v5423 = vunpack.c.h.b16 %v5084
    %v5424 = vunpack.c.l.b16 %v5085
    %v5425 = vunpack.c.h.b16 %v5085
    %v5426 = vunpack.c.l.b16 %v5086
    %v5427 = vunpack.c.h.b16 %v5086
    %v5428 = vunpack.c.l.b16 %v5087
    %v5429 = vunpack.c.h.b16 %v5087
    %v5430 = vunpack.c.l.b16 %v5088
    %v5431 = vunpack.c.h.b16 %v5088
    %v5432 = vunpack.c.l.b16 %v5089
    %v5433 = vunpack.c.h.b16 %v5089
    %v5434 = vunpack.c.l.b16 %v5090
    %v5435 = vunpack.c.h.b16 %v5090
    %v5436 = vunpack.c.l.b16 %v5091
    %v5437 = vunpack.c.h.b16 %v5091
    %v5438 = vunpack.c.l.b16 %v5092
    %v5439 = vunpack.c.h.b16 %v5092
    %v5440 = vunpack.c.l.b16 %v5093
    %v5441 = vunpack.c.h.b16 %v5093
    %v5442 = vunpack.c.l.b16 %v5094
    %v5443 = vunpack.c.h.b16 %v5094
    %v5444 = vunpack.c.l.b16 %v5095
    %v5445 = vunpack.c.h.b16 %v5095
    %v5446 = vunpack.c.l.b16 %v5096
    %v5447 = vunpack.c.h.b16 %v5096
    %v5448 = vunpack.c.l.b16 %v5097
    %v5449 = vunpack.c.h.b16 %v5097
    %v5450 = vunpack.c.l.b16 %v5098
    %v5451 = vunpack.c.h.b16 %v5098
    %v5452 = vunpack.c.l.b16 %v5099
    %v5453 = vunpack.c.h.b16 %v5099
    %v5454 = vunpack.c.l.b16 %v5100
    %v5455 = vunpack.c.h.b16 %v5100
    %v5456 = vunpack.c.l.b16 %v5101
    %v5457 = vunpack.c.h.b16 %v5101
    %v5458 = vunpack.c.l.b16 %v5102
    %v5459 = vunpack.c.h.b16 %v5102
    %v5460 = vunpack.c.l.b16 %v5103
    %v5461 = vunpack.c.h.b16 %v5103
    %v5462 = vunpack.c.l.b16 %v5104
    %v5463 = vunpack.c.h.b16 %v5104
    %v5464 = vunpack.c.l.b16 %v5105
    %v5465 = vunpack.c.h.b16 %v5105
    %v5466 = vunpack.c.l.b16 %v5106
    %v5467 = vunpack.c.h.b16 %v5106
    %v5468 = vunpack.c.l.b16 %v5107
    %v5469 = vunpack.c.h.b16 %v5107
    %v5470 = vunpack.c.l.b16 %v5108
    %v5471 = vunpack.c.h.b16 %v5108
    %v5472 = vunpack.c.l.b16 %v5109
    %v5473 = vunpack.c.h.b16 %v5109
    %v5474 = vunpack.c.l.b16 %v5110
    %v5475 = vunpack.c.h.b16 %v5110
    %v5476 = vunpack.c.l.b16 %v5111
    %v5477 = vunpack.c.h.b16 %v5111
    %v5478 = vunpack.c.l.b16 %v5112
    %v5479 = vunpack.c.h.b16 %v5112
    %v5480 = vunpack.c.l.b16 %v5113
    %v5481 = vunpack.c.h.b16 %v5113
    %v5482 = vunpack.c.l.b16 %v5114
    %v5483 = vunpack.c.h.b16 %v5114
    %v5484 = vunpack.c.l.b16 %v5115
    %v5485 = vunpack.c.h.b16 %v5115
    %v5486 = vunpack.c.l.b16 %v5116
    %v5487 = vunpack.c.h.b16 %v5116
    %v5488 = vunpack.c.l.b16 %v5117
    %v5489 = vunpack.c.h.b16 %v5117
    %v5490 = vunpack.c.l.b16 %v5118
    %v5491 = vunpack.c.h.b16 %v5118
    %v5492 = vunpack.c.l.b16 %v5119
    %v5493 = vunpack.c.h.b16 %v5119
    %v5494 = vunpack.c.l.b16 %v5120
    %v5495 = vunpack.c.h.b16 %v5120
    %v5496 = vunpack.c.l.b16 %v5121
    %v5497 = vunpack.c.h.b16 %v5121
    %v5498 = vunpack.c.l.b16 %v5122
    %v5499 = vunpack.c.h.b16 %v5122
    %v5500 = vunpack.c.l.b16 %v5123
    %v5501 = vunpack.c.h.b16 %v5123
    %v5502 = vunpack.c.l.b16 %v5124
    %v5503 = vunpack.c.h.b16 %v5124
    %v5504 = vunpack.c.l.b16 %v5125
    %v5505 = vunpack.c.h.b16 %v5125
    %v5506 = vunpack.c.l.b16 %v5126
    %v5507 = vunpack.c.h.b16 %v5126
    %v5508 = vunpack.c.l.b16 %v5127
    %v5509 = vunpack.c.h.b16 %v5127
    %v5510 = vunpack.c.l.b16 %v5128
    %v5511 = vunpack.c.h.b16 %v5128
    %v5512 = vunpack.c.l.b16 %v5129
    %v5513 = vunpack.c.h.b16 %v5129
    %v5514 = vunpack.c.l.b16 %v5130
    %v5515 = vunpack.c.h.b16 %v5130
    %v5516 = vunpack.c.l.b16 %v5131
    %v5517 = vunpack.c.h.b16 %v5131
    %v5518 = vunpack.c.l.b16 %v5132
    %v5519 = vunpack.c.h.b16 %v5132
    %v5520 = vunpack.c.l.b16 %v5133
    %v5521 = vunpack.c.h.b16 %v5133
    %v5522 = vunpack.c.l.b16 %v5134
    %v5523 = vunpack.c.h.b16 %v5134
    %v5524 = vunpack.c.l.b16 %v5135
    %v5525 = vunpack.c.h.b16 %v5135
    %v5526 = vunpack.c.l.b16 %v5136
    %v5527 = vunpack.c.h.b16 %v5136
    %v5528 = vunpack.c.l.b16 %v5137
    %v5529 = vunpack.c.h.b16 %v5137
    %v5530 = vunpack.c.l.b16 %v5138
    %v5531 = vunpack.c.h.b16 %v5138
    %v5532 = vunpack.c.l.b16 %v5139
    %v5533 = vunpack.c.h.b16 %v5139
    %v5534 = vunpack.c.l.b16 %v5140
    %v5535 = vunpack.c.h.b16 %v5140
    %v5536 = vunpack.c.l.b16 %v5141
    %v5537 = vunpack.c.h.b16 %v5141
    %v5538 = vpack.c.b16 %v5284, %v5282
    %v5539 = vpack.c.b16 %v5285, %v5283
    %v5540 = vpack.c.b16 %v5288, %v5286
    %v5541 = vpack.c.b16 %v5289, %v5287
    %v5542 = vpack.c.b16 %v5292, %v5290
    %v5543 = vpack.c.b16 %v5293, %v5291
    %v5544 = vpack.c.b16 %v5296, %v5294
    %v5545 = vpack.c.b16 %v5297, %v5295
    %v5546 = vpack.c.b16 %v5300, %v5298
    %v5547 = vpack.c.b16 %v5301, %v5299
    %v5548 = vpack.c.b16 %v5304, %v5302
    %v5549 = vpack.c.b16 %v5305, %v5303
    %v5550 = vpack.c.b16 %v5308, %v5306
    %v5551 = vpack.c.b16 %v5309, %v5307
    %v5552 = vpack.c.b16 %v5312, %v5310
    %v5553 = vpack.c.b16 %v5313, %v5311
    %v5554 = vpack.c.b16 %v5316, %v5314
    %v5555 = vpack.c.b16 %v5317, %v5315
    %v5556 = vpack.c.b16 %v5320, %v5318
    %v5557 = vpack.c.b16 %v5321, %v5319
    %v5558 = vpack.c.b16 %v5324, %v5322
    %v5559 = vpack.c.b16 %v5325, %v5323
    %v5560 = vpack.c.b16 %v5328, %v5326
    %v5561 = vpack.c.b16 %v5329, %v5327
    %v5562 = vpack.c.b16 %v5332, %v5330
    %v5563 = vpack.c.b16 %v5333, %v5331
    %v5564 = vpack.c.b16 %v5336, %v5334
    %v5565 = vpack.c.b16 %v5337, %v5335
    %v5566 = vpack.c.b16 %v5340, %v5338
    %v5567 = vpack.c.b16 %v5341, %v5339
    %v5568 = vpack.c.b16 %v5344, %v5342
    %v5569 = vpack.c.b16 %v5345, %v5343
    %v5570 = vpack.c.b16 %v5348, %v5346
    %v5571 = vpack.c.b16 %v5349, %v5347
    %v5572 = vpack.c.b16 %v5352, %v5350
    %v5573 = vpack.c.b16 %v5353, %v5351
    %v5574 = vpack.c.b16 %v5356, %v5354
    %v5575 = vpack.c.b16 %v5357, %v5355
    %v5576 = vpack.c.b16 %v5360, %v5358
    %v5577 = vpack.c.b16 %v5361, %v5359
    %v5578 = vpack.c.b16 %v5364, %v5362
    %v5579 = vpack.c.b16 %v5365, %v5363
    %v5580 = vpack.c.b16 %v5368, %v5366
    %v5581 = vpack.c.b16 %v5369, %v5367
    %v5582 = vpack.c.b16 %v5372, %v5370
    %v5583 = vpack.c.b16 %v5373, %v5371
    %v5584 = vpack.c.b16 %v5376, %v5374
    %v5585 = vpack.c.b16 %v5377, %v5375
    %v5586 = vpack.c.b16 %v5380, %v5378
    %v5587 = vpack.c.b16 %v5381, %v5379
    %v5588 = vpack.c.b16 %v5384, %v5382
    %v5589 = vpack.c.b16 %v5385, %v5383
    %v5590 = vpack.c.b16 %v5388, %v5386
    %v5591 = vpack.c.b16 %v5389, %v5387
    %v5592 = vpack.c.b16 %v5392, %v5390
    %v5593 = vpack.c.b16 %v5393, %v5391
    %v5594 = vpack.c.b16 %v5396, %v5394
    %v5595 = vpack.c.b16 %v5397, %v5395
    %v5596 = vpack.c.b16 %v5400, %v5398
    %v5597 = vpack.c.b16 %v5401, %v5399
    %v5598 = vpack.c.b16 %v5404, %v5402
    %v5599 = vpack.c.b16 %v5405, %v5403
    %v5600 = vpack.c.b16 %v5408, %v5406
    %v5601 = vpack.c.b16 %v5409, %v5407
    %v5602 = vpack.c.b16 %v5412, %v5410
    %v5603 = vpack.c.b16 %v5413, %v5411
    %v5604 = vpack.c.b16 %v5416, %v5414
    %v5605 = vpack.c.b16 %v5417, %v5415
    %v5606 = vpack.c.b16 %v5420, %v5418
    %v5607 = vpack.c.b16 %v5421, %v5419
    %v5608 = vpack.c.b16 %v5424, %v5422
    %v5609 = vpack.c.b16 %v5425, %v5423
    %v5610 = vpack.c.b16 %v5428, %v5426
    %v5611 = vpack.c.b16 %v5429, %v5427
    %v5612 = vpack.c.b16 %v5432, %v5430
    %v5613 = vpack.c.b16 %v5433, %v5431
    %v5614 = vpack.c.b16 %v5436, %v5434
    %v5615 = vpack.c.b16 %v5437, %v5435
    %v5616 = vpack.c.b16 %v5440, %v5438
    %v5617 = vpack.c.b16 %v5441, %v5439
    %v5618 = vpack.c.b16 %v5444, %v5442
    %v5619 = vpack.c.b16 %v5445, %v5443
    %v5620 = vpack.c.b16 %v5448, %v5446
    %v5621 = vpack.c.b16 %v5449, %v5447
    %v5622 = vpack.c.b16 %v5452, %v5450
    %v5623 = vpack.c.b16 %v5453, %v5451
    %v5624 = vpack.c.b16 %v5456, %v5454
    %v5625 = vpack.c.b16 %v5457, %v5455
    %v5626 = vpack.c.b16 %v5460, %v5458
    %v5627 = vpack.c.b16 %v5461, %v5459
    %v5628 = vpack.c.b16 %v5464, %v5462
    %v5629 = vpack.c.b16 %v5465, %v5463
    %v5630 = vpack.c.b16 %v5468, %v5466
    %v5631 = vpack.c.b16 %v5469, %v5467
    %v5632 = vpack.c.b16 %v5472, %v5470
    %v5633 = vpack.c.b16 %v5473, %v5471
    %v5634 = vpack.c.b16 %v5476, %v5474
    %v5635 = vpack.c.b16 %v5477, %v5475
    %v5636 = vpack.c.b16 %v5480, %v5478
    %v5637 = vpack.c.b16 %v5481, %v5479
    %v5638 = vpack.c.b16 %v5484, %v5482
    %v5639 = vpack.c.b16 %v5485, %v5483
    %v5640 = vpack.c.b16 %v5488, %v5486
    %v5641 = vpack.c.b16 %v5489, %v5487
    %v5642 = vpack.c.b16 %v5492, %v5490
    %v5643 = vpack.c.b16 %v5493, %v5491
    %v5644 = vpack.c.b16 %v5496, %v5494
    %v5645 = vpack.c.b16 %v5497, %v5495
    %v5646 = vpack.c.b16 %v5500, %v5498
    %v5647 = vpack.c.b16 %v5501, %v5499
    %v5648 = vpack.c.b16 %v5504, %v5502
    %v5649 = vpack.c.b16 %v5505, %v5503
    %v5650 = vpack.c.b16 %v5508, %v5506
    %v5651 = vpack.c.b16 %v5509, %v5507
    %v5652 = vpack.c.b16 %v5512, %v5510
    %v5653 = vpack.c.b16 %v5513, %v5511
    %v5654 = vpack.c.b16 %v5516, %v5514
    %v5655 = vpack.c.b16 %v5517, %v5515
    %v5656 = vpack.c.b16 %v5520, %v5518
    %v5657 = vpack.c.b16 %v5521, %v5519
    %v5658 = vpack.c.b16 %v5524, %v5522
    %v5659 = vpack.c.b16 %v5525, %v5523
    %v5660 = vpack.c.b16 %v5528, %v5526
    %v5661 = vpack.c.b16 %v5529, %v5527
    %v5662 = vpack.c.b16 %v5532, %v5530
    %v5663 = vpack.c.b16 %v5533, %v5531
    %v5664 = vpack.c.b16 %v5536, %v5534
    %v5665 = vpack.c.b16 %v5537, %v5535
    %5794 = vmatprep.subr.bf16.mxu0 %v5553
    %5795 = vmatpush1.bf16.msra.mxu0 %v5552
    %5796 = vmatprep.subr.bf16.mxu0 %v5551
    %5797 = vmatpush1.bf16.msra.mxu0 %v5550
    %5798 = vmatprep.subr.bf16.mxu0 %v5549
    %5799 = vmatpush1.bf16.msra.mxu0 %v5548
    %5800 = vmatprep.subr.bf16.mxu0 %v5547
    %5801 = vmatpush1.bf16.msra.mxu0 %v5546
    %5802 = vmatprep.subr.bf16.mxu0 %v5545
    %5803 = vmatpush1.bf16.msra.mxu0 %v5544
    %5804 = vmatprep.subr.bf16.mxu0 %v5543
    %5805 = vmatpush1.bf16.msra.mxu0 %v5542
    %5806 = vmatprep.subr.bf16.mxu0 %v5541
    %5807 = vmatpush1.bf16.msra.mxu0 %v5540
    %5808 = vmatprep.subr.bf16.mxu0 %v5539
    %5809 = vmatpush1.bf16.msra.mxu0 %v5538
    %5810 = vmatprep.subr.bf16.mxu0 %v5569
    %5811 = vmatpush2.bf16.msra.mxu0 %v5568
    %5812 = vmatprep.subr.bf16.mxu0 %v5567
    %5813 = vmatpush2.bf16.msra.mxu0 %v5566
    %5814 = vmatprep.subr.bf16.mxu0 %v5565
    %5815 = vmatpush2.bf16.msra.mxu0 %v5564
    %5816 = vmatprep.subr.bf16.mxu0 %v5563
    %5817 = vmatpush2.bf16.msra.mxu0 %v5562
    %5818 = vmatprep.subr.bf16.mxu0 %v5561
    %5819 = vmatpush2.bf16.msra.mxu0 %v5560
    %5820 = vmatprep.subr.bf16.mxu0 %v5559
    %5821 = vmatpush2.bf16.msra.mxu0 %v5558
    %5822 = vmatprep.subr.bf16.mxu0 %v5557
    %5823 = vmatpush2.bf16.msra.mxu0 %v5556
    %5824 = vmatprep.subr.bf16.mxu0 %v5555
    %5825 = vmatpush2.bf16.msra.mxu0 %v5554
    %5826 = vmatprep.mubr.bf16.mxu0 %v5007
    %5827 = vmatmul.mubr.bf16.gmra.mxu0 %v5006
    %v5828 = vpop.f32.mrf.mxu0
    %v5829 = vadd.f32 %v5147, %v5828
    %v5830 = vpop.f32.mrf.mxu0
    %v5831 = vadd.f32 %v5151, %v5830
    %v5832 = vpop.f32.mrf.mxu0
    %v5833 = vpop.f32.mrf.mxu0
    %5834 = vdwg.mxu0
    %5835 = vmatprep.subr.bf16.mxu0 %v5585
    %5836 = vmatpush1.bf16.msra.mxu0 %v5584
    %5837 = vmatprep.subr.bf16.mxu0 %v5583
    %5838 = vmatpush1.bf16.msra.mxu0 %v5582
    %5839 = vmatprep.subr.bf16.mxu0 %v5581
    %5840 = vmatpush1.bf16.msra.mxu0 %v5580
    %5841 = vmatprep.subr.bf16.mxu0 %v5579
    %5842 = vmatpush1.bf16.msra.mxu0 %v5578
    %5843 = vmatprep.subr.bf16.mxu0 %v5577
    %5844 = vmatpush1.bf16.msra.mxu0 %v5576
    %5845 = vmatprep.subr.bf16.mxu0 %v5575
    %5846 = vmatpush1.bf16.msra.mxu0 %v5574
    %5847 = vmatprep.subr.bf16.mxu0 %v5573
    %5848 = vmatpush1.bf16.msra.mxu0 %v5572
    %5849 = vmatprep.subr.bf16.mxu0 %v5571
    %5850 = vmatpush1.bf16.msra.mxu0 %v5570
    %5851 = vmatprep.subr.bf16.mxu0 %v5601
    %5852 = vmatpush2.bf16.msra.mxu0 %v5600
    %5853 = vmatprep.subr.bf16.mxu0 %v5599
    %5854 = vmatpush2.bf16.msra.mxu0 %v5598
    %5855 = vmatprep.subr.bf16.mxu0 %v5597
    %5856 = vmatpush2.bf16.msra.mxu0 %v5596
    %5857 = vmatprep.subr.bf16.mxu0 %v5595
    %5858 = vmatpush2.bf16.msra.mxu0 %v5594
    %5859 = vmatprep.subr.bf16.mxu0 %v5593
    %5860 = vmatpush2.bf16.msra.mxu0 %v5592
    %5861 = vmatprep.subr.bf16.mxu0 %v5591
    %5862 = vmatpush2.bf16.msra.mxu0 %v5590
    %5863 = vmatprep.subr.bf16.mxu0 %v5589
    %5864 = vmatpush2.bf16.msra.mxu0 %v5588
    %5865 = vmatprep.subr.bf16.mxu0 %v5587
    %5866 = vmatpush2.bf16.msra.mxu0 %v5586
    %5867 = vmatprep.mubr.bf16.mxu0 %v5009
    %5868 = vmatmul.mubr.bf16.gmra.mxu0 %v5008
    %v5869 = vpop.f32.mrf.mxu0
    %v5870 = vadd.f32 %v5829, %v5869
    %v5871 = vpop.f32.mrf.mxu0
    %v5872 = vadd.f32 %v5831, %v5871
    %v5873 = vpop.f32.mrf.mxu0
    %v5874 = vpop.f32.mrf.mxu0
    %5875 = vdwg.mxu0
    %5876 = vmatprep.subr.bf16.mxu0 %v5617
    %5877 = vmatpush1.bf16.msra.mxu0 %v5616
    %5878 = vmatprep.subr.bf16.mxu0 %v5615
    %5879 = vmatpush1.bf16.msra.mxu0 %v5614
    %5880 = vmatprep.subr.bf16.mxu0 %v5613
    %5881 = vmatpush1.bf16.msra.mxu0 %v5612
    %5882 = vmatprep.subr.bf16.mxu0 %v5611
    %5883 = vmatpush1.bf16.msra.mxu0 %v5610
    %5884 = vmatprep.subr.bf16.mxu0 %v5609
    %5885 = vmatpush1.bf16.msra.mxu0 %v5608
    %5886 = vmatprep.subr.bf16.mxu0 %v5607
    %5887 = vmatpush1.bf16.msra.mxu0 %v5606
    %5888 = vmatprep.subr.bf16.mxu0 %v5605
    %5889 = vmatpush1.bf16.msra.mxu0 %v5604
    %5890 = vmatprep.subr.bf16.mxu0 %v5603
    %5891 = vmatpush1.bf16.msra.mxu0 %v5602
    %5892 = vmatprep.subr.bf16.mxu0 %v5633
    %5893 = vmatpush2.bf16.msra.mxu0 %v5632
    %5894 = vmatprep.subr.bf16.mxu0 %v5631
    %5895 = vmatpush2.bf16.msra.mxu0 %v5630
    %5896 = vmatprep.subr.bf16.mxu0 %v5629
    %5897 = vmatpush2.bf16.msra.mxu0 %v5628
    %5898 = vmatprep.subr.bf16.mxu0 %v5627
    %5899 = vmatpush2.bf16.msra.mxu0 %v5626
    %5900 = vmatprep.subr.bf16.mxu0 %v5625
    %5901 = vmatpush2.bf16.msra.mxu0 %v5624
    %5902 = vmatprep.subr.bf16.mxu0 %v5623
    %5903 = vmatpush2.bf16.msra.mxu0 %v5622
    %5904 = vmatprep.subr.bf16.mxu0 %v5621
    %5905 = vmatpush2.bf16.msra.mxu0 %v5620
    %5906 = vmatprep.subr.bf16.mxu0 %v5619
    %5907 = vmatpush2.bf16.msra.mxu0 %v5618
    %5908 = vmatprep.mubr.bf16.mxu0 %v5011
    %5909 = vmatmul.mubr.bf16.gmra.mxu0 %v5010
    %v5910 = vpop.f32.mrf.mxu0
    %v5911 = vadd.f32 %v5870, %v5910
    %v5912 = vpop.f32.mrf.mxu0
    %v5913 = vadd.f32 %v5872, %v5912
    %v5914 = vpop.f32.mrf.mxu0
    %v5915 = vpop.f32.mrf.mxu0
    %5916 = vdwg.mxu0
    %5917 = vmatprep.subr.bf16.mxu0 %v5649
    %5918 = vmatpush1.bf16.msra.mxu0 %v5648
    %5919 = vmatprep.subr.bf16.mxu0 %v5647
    %5920 = vmatpush1.bf16.msra.mxu0 %v5646
    %5921 = vmatprep.subr.bf16.mxu0 %v5645
    %5922 = vmatpush1.bf16.msra.mxu0 %v5644
    %5923 = vmatprep.subr.bf16.mxu0 %v5643
    %5924 = vmatpush1.bf16.msra.mxu0 %v5642
    %5925 = vmatprep.subr.bf16.mxu0 %v5641
    %5926 = vmatpush1.bf16.msra.mxu0 %v5640
    %5927 = vmatprep.subr.bf16.mxu0 %v5639
    %5928 = vmatpush1.bf16.msra.mxu0 %v5638
    %5929 = vmatprep.subr.bf16.mxu0 %v5637
    %5930 = vmatpush1.bf16.msra.mxu0 %v5636
    %5931 = vmatprep.subr.bf16.mxu0 %v5635
    %5932 = vmatpush1.bf16.msra.mxu0 %v5634
    %5933 = vmatprep.subr.bf16.mxu0 %v5665
    %5934 = vmatpush2.bf16.msra.mxu0 %v5664
    %5935 = vmatprep.subr.bf16.mxu0 %v5663
    %5936 = vmatpush2.bf16.msra.mxu0 %v5662
    %5937 = vmatprep.subr.bf16.mxu0 %v5661
    %5938 = vmatpush2.bf16.msra.mxu0 %v5660
    %5939 = vmatprep.subr.bf16.mxu0 %v5659
    %5940 = vmatpush2.bf16.msra.mxu0 %v5658
    %5941 = vmatprep.subr.bf16.mxu0 %v5657
    %5942 = vmatpush2.bf16.msra.mxu0 %v5656
    %5943 = vmatprep.subr.bf16.mxu0 %v5655
    %5944 = vmatpush2.bf16.msra.mxu0 %v5654
    %5945 = vmatprep.subr.bf16.mxu0 %v5653
    %5946 = vmatpush2.bf16.msra.mxu0 %v5652
    %5947 = vmatprep.subr.bf16.mxu0 %v5651
    %5948 = vmatpush2.bf16.msra.mxu0 %v5650
    %5949 = vmatprep.mubr.bf16.mxu0 %v5013
    %5950 = vmatmul.mubr.bf16.gmra.mxu0 %v5012
    %v5951 = vpop.f32.mrf.mxu0
    %v5952 = vadd.f32 %v5911, %v5951
    %v5953 = vpop.f32.mrf.mxu0
    %v5954 = vadd.f32 %v5913, %v5953
    %v5955 = vpop.f32.mrf.mxu0
    %v5956 = vpop.f32.mrf.mxu0
    %5957 = vdwg.mxu0
    %v5958 = vadd.f32 %v5952, %v234
    %v5959 = vadd.f32 %v5954, %v235
    %v5960 = vtanh.pop %v5958
    %v5961 = vtanh.pop %v5959
    %v5962 = vpack.c.bf16 %v5960, %v5960
    %v5963 = vpack.c.bf16 %v5961, %v5961
    %v5964 = vld [vmem:[#allocation17] sm:$0xff]
    %v5965 = vld [vmem:[#allocation17 + $0x8] sm:$0xff]
    %v5966 = vld [vmem:[#allocation17 + $0x10] sm:$0xff]
    %v5967 = vld [vmem:[#allocation17 + $0x18] sm:$0xff]
    %v5968 = vld [vmem:[#allocation17 + $0x20] sm:$0xff]
    %v5969 = vld [vmem:[#allocation17 + $0x28] sm:$0xff]
    %v5970 = vld [vmem:[#allocation17 + $0x30] sm:$0xff]
    %v5971 = vld [vmem:[#allocation17 + $0x38] sm:$0xff]
    %v5972 = vld [vmem:[#allocation17 + $0x40] sm:$0xff]
    %v5973 = vld [vmem:[#allocation17 + $0x48] sm:$0xff]
    %v5974 = vld [vmem:[#allocation17 + $0x50] sm:$0xff]
    %v5975 = vld [vmem:[#allocation17 + $0x58] sm:$0xff]
    %v5976 = vld [vmem:[#allocation17 + $0x60] sm:$0xff]
    %v5977 = vld [vmem:[#allocation17 + $0x68] sm:$0xff]
    %v5978 = vld [vmem:[#allocation17 + $0x70] sm:$0xff]
    %v5979 = vld [vmem:[#allocation17 + $0x78] sm:$0xff]
    %v5980 = vld [vmem:[#allocation17 + $0x80] sm:$0xff]
    %v5981 = vld [vmem:[#allocation17 + $0x88] sm:$0xff]
    %v5982 = vld [vmem:[#allocation17 + $0x90] sm:$0xff]
    %v5983 = vld [vmem:[#allocation17 + $0x98] sm:$0xff]
    %v5984 = vld [vmem:[#allocation17 + $0xa0] sm:$0xff]
    %v5985 = vld [vmem:[#allocation17 + $0xa8] sm:$0xff]
    %v5986 = vld [vmem:[#allocation17 + $0xb0] sm:$0xff]
    %v5987 = vld [vmem:[#allocation17 + $0xb8] sm:$0xff]
    %v5988 = vld [vmem:[#allocation17 + $0xc0] sm:$0xff]
    %v5989 = vld [vmem:[#allocation17 + $0xc8] sm:$0xff]
    %v5990 = vld [vmem:[#allocation17 + $0xd0] sm:$0xff]
    %v5991 = vld [vmem:[#allocation17 + $0xd8] sm:$0xff]
    %v5992 = vld [vmem:[#allocation17 + $0xe0] sm:$0xff]
    %v5993 = vld [vmem:[#allocation17 + $0xe8] sm:$0xff]
    %v5994 = vld [vmem:[#allocation17 + $0xf0] sm:$0xff]
    %v5995 = vld [vmem:[#allocation17 + $0xf8] sm:$0xff]
    %v5996 = vld [vmem:[#allocation19] sm:$0x3]
    %v5998 = vlaneseq
    %v5999 = vshrl.u32 %v5998, 7
    %v6000 = vsub.s32 0, %v5999
    %v6001 = vrot.slane %v5996, %v6000
    %v6002 = vlaneseq
    %v6003 = vshrl.u32 %v6002, 7
    %v6004 = vsub.s32 1, %v6003
    %v6005 = vrot.slane %v5996, %v6004
    %v6040 = vunpack.c.l.b16 %v5964
    %v6041 = vunpack.c.h.b16 %v5964
    %v6042 = vunpack.c.l.b16 %v5965
    %v6043 = vunpack.c.h.b16 %v5965
    %v6044 = vunpack.c.l.b16 %v5966
    %v6045 = vunpack.c.h.b16 %v5966
    %v6046 = vunpack.c.l.b16 %v5967
    %v6047 = vunpack.c.h.b16 %v5967
    %v6048 = vunpack.c.l.b16 %v5968
    %v6049 = vunpack.c.h.b16 %v5968
    %v6050 = vunpack.c.l.b16 %v5969
    %v6051 = vunpack.c.h.b16 %v5969
    %v6052 = vunpack.c.l.b16 %v5970
    %v6053 = vunpack.c.h.b16 %v5970
    %v6054 = vunpack.c.l.b16 %v5971
    %v6055 = vunpack.c.h.b16 %v5971
    %v6056 = vunpack.c.l.b16 %v5972
    %v6057 = vunpack.c.h.b16 %v5972
    %v6058 = vunpack.c.l.b16 %v5973
    %v6059 = vunpack.c.h.b16 %v5973
    %v6060 = vunpack.c.l.b16 %v5974
    %v6061 = vunpack.c.h.b16 %v5974
    %v6062 = vunpack.c.l.b16 %v5975
    %v6063 = vunpack.c.h.b16 %v5975
    %v6064 = vunpack.c.l.b16 %v5976
    %v6065 = vunpack.c.h.b16 %v5976
    %v6066 = vunpack.c.l.b16 %v5977
    %v6067 = vunpack.c.h.b16 %v5977
    %v6068 = vunpack.c.l.b16 %v5978
    %v6069 = vunpack.c.h.b16 %v5978
    %v6070 = vunpack.c.l.b16 %v5979
    %v6071 = vunpack.c.h.b16 %v5979
    %v6072 = vunpack.c.l.b16 %v5980
    %v6073 = vunpack.c.h.b16 %v5980
    %v6074 = vunpack.c.l.b16 %v5981
    %v6075 = vunpack.c.h.b16 %v5981
    %v6076 = vunpack.c.l.b16 %v5982
    %v6077 = vunpack.c.h.b16 %v5982
    %v6078 = vunpack.c.l.b16 %v5983
    %v6079 = vunpack.c.h.b16 %v5983
    %v6080 = vunpack.c.l.b16 %v5984
    %v6081 = vunpack.c.h.b16 %v5984
    %v6082 = vunpack.c.l.b16 %v5985
    %v6083 = vunpack.c.h.b16 %v5985
    %v6084 = vunpack.c.l.b16 %v5986
    %v6085 = vunpack.c.h.b16 %v5986
    %v6086 = vunpack.c.l.b16 %v5987
    %v6087 = vunpack.c.h.b16 %v5987
    %v6088 = vunpack.c.l.b16 %v5988
    %v6089 = vunpack.c.h.b16 %v5988
    %v6090 = vunpack.c.l.b16 %v5989
    %v6091 = vunpack.c.h.b16 %v5989
    %v6092 = vunpack.c.l.b16 %v5990
    %v6093 = vunpack.c.h.b16 %v5990
    %v6094 = vunpack.c.l.b16 %v5991
    %v6095 = vunpack.c.h.b16 %v5991
    %v6096 = vunpack.c.l.b16 %v5992
    %v6097 = vunpack.c.h.b16 %v5992
    %v6098 = vunpack.c.l.b16 %v5993
    %v6099 = vunpack.c.h.b16 %v5993
    %v6100 = vunpack.c.l.b16 %v5994
    %v6101 = vunpack.c.h.b16 %v5994
    %v6102 = vunpack.c.l.b16 %v5995
    %v6103 = vunpack.c.h.b16 %v5995
    %v6104 = vpack.c.b16 %v6042, %v6040
    %v6105 = vpack.c.b16 %v6043, %v6041
    %v6106 = vpack.c.b16 %v6046, %v6044
    %v6107 = vpack.c.b16 %v6047, %v6045
    %v6108 = vpack.c.b16 %v6050, %v6048
    %v6109 = vpack.c.b16 %v6051, %v6049
    %v6110 = vpack.c.b16 %v6054, %v6052
    %v6111 = vpack.c.b16 %v6055, %v6053
    %v6112 = vpack.c.b16 %v6058, %v6056
    %v6113 = vpack.c.b16 %v6059, %v6057
    %v6114 = vpack.c.b16 %v6062, %v6060
    %v6115 = vpack.c.b16 %v6063, %v6061
    %v6116 = vpack.c.b16 %v6066, %v6064
    %v6117 = vpack.c.b16 %v6067, %v6065
    %v6118 = vpack.c.b16 %v6070, %v6068
    %v6119 = vpack.c.b16 %v6071, %v6069
    %v6120 = vpack.c.b16 %v6074, %v6072
    %v6121 = vpack.c.b16 %v6075, %v6073
    %v6122 = vpack.c.b16 %v6078, %v6076
    %v6123 = vpack.c.b16 %v6079, %v6077
    %v6124 = vpack.c.b16 %v6082, %v6080
    %v6125 = vpack.c.b16 %v6083, %v6081
    %v6126 = vpack.c.b16 %v6086, %v6084
    %v6127 = vpack.c.b16 %v6087, %v6085
    %v6128 = vpack.c.b16 %v6090, %v6088
    %v6129 = vpack.c.b16 %v6091, %v6089
    %v6130 = vpack.c.b16 %v6094, %v6092
    %v6131 = vpack.c.b16 %v6095, %v6093
    %v6132 = vpack.c.b16 %v6098, %v6096
    %v6133 = vpack.c.b16 %v6099, %v6097
    %v6134 = vpack.c.b16 %v6102, %v6100
    %v6135 = vpack.c.b16 %v6103, %v6101
    %6168 = vmatprep.subr.bf16.mxu0 %v6119
    %6169 = vmatpush1.bf16.msra.mxu0 %v6118
    %6170 = vmatprep.subr.bf16.mxu0 %v6117
    %6171 = vmatpush1.bf16.msra.mxu0 %v6116
    %6172 = vmatprep.subr.bf16.mxu0 %v6115
    %6173 = vmatpush1.bf16.msra.mxu0 %v6114
    %6174 = vmatprep.subr.bf16.mxu0 %v6113
    %6175 = vmatpush1.bf16.msra.mxu0 %v6112
    %6176 = vmatprep.subr.bf16.mxu0 %v6111
    %6177 = vmatpush1.bf16.msra.mxu0 %v6110
    %6178 = vmatprep.subr.bf16.mxu0 %v6109
    %6179 = vmatpush1.bf16.msra.mxu0 %v6108
    %6180 = vmatprep.subr.bf16.mxu0 %v6107
    %6181 = vmatpush1.bf16.msra.mxu0 %v6106
    %6182 = vmatprep.subr.bf16.mxu0 %v6105
    %6183 = vmatpush1.bf16.msra.mxu0 %v6104
    %6184 = vmatprep.subr.bf16.mxu0 %v6135
    %6185 = vmatpush2.bf16.msra.mxu0 %v6134
    %6186 = vmatprep.subr.bf16.mxu0 %v6133
    %6187 = vmatpush2.bf16.msra.mxu0 %v6132
    %6188 = vmatprep.subr.bf16.mxu0 %v6131
    %6189 = vmatpush2.bf16.msra.mxu0 %v6130
    %6190 = vmatprep.subr.bf16.mxu0 %v6129
    %6191 = vmatpush2.bf16.msra.mxu0 %v6128
    %6192 = vmatprep.subr.bf16.mxu0 %v6127
    %6193 = vmatpush2.bf16.msra.mxu0 %v6126
    %6194 = vmatprep.subr.bf16.mxu0 %v6125
    %6195 = vmatpush2.bf16.msra.mxu0 %v6124
    %6196 = vmatprep.subr.bf16.mxu0 %v6123
    %6197 = vmatpush2.bf16.msra.mxu0 %v6122
    %6198 = vmatprep.subr.bf16.mxu0 %v6121
    %6199 = vmatpush2.bf16.msra.mxu0 %v6120
    %6200 = vmatprep.mubr.bf16.mxu0 %v5963
    %6201 = vmatmul.mubr.bf16.gmra.mxu0 %v5962
    %v6202 = vpop.f32.mrf.mxu0
    %v6203 = vadd.f32 %v6001, %v6202
    %v6204 = vpop.f32.mrf.mxu0
    %v6205 = vadd.f32 %v6005, %v6204
    %v6206 = vpop.f32.mrf.mxu0
    %v6207 = vpop.f32.mrf.mxu0
    %6208 = vdwg.mxu0
    %v6209 = vmax.f32 %v6203, 0.0
    %v6210 = vmax.f32 %v6205, 0.0
    %v6211 = vpack.c.bf16 %v6209, %v6209
    %v6212 = vpack.c.bf16 %v6210, %v6210
    %v6213 = vld [vmem:[#allocation20] sm:$0xf]
    %v6214 = vld [vmem:[#allocation20 + $0x4] sm:$0xf]
    %v6215 = vld [vmem:[#allocation20 + $0x8] sm:$0xf]
    %v6216 = vld [vmem:[#allocation20 + $0xc] sm:$0xf]
    %v6217 = vld [vmem:[#allocation20 + $0x10] sm:$0xf]
    %v6218 = vld [vmem:[#allocation20 + $0x14] sm:$0xf]
    %v6219 = vld [vmem:[#allocation20 + $0x18] sm:$0xf]
    %v6220 = vld [vmem:[#allocation20 + $0x1c] sm:$0xf]
    %v6221 = vld [vmem:[#allocation20 + $0x20] sm:$0xf]
    %v6222 = vld [vmem:[#allocation20 + $0x24] sm:$0xf]
    %v6223 = vld [vmem:[#allocation20 + $0x28] sm:$0xf]
    %v6224 = vld [vmem:[#allocation20 + $0x2c] sm:$0xf]
    %v6225 = vld [vmem:[#allocation20 + $0x30] sm:$0xf]
    %v6226 = vld [vmem:[#allocation20 + $0x34] sm:$0xf]
    %v6227 = vld [vmem:[#allocation20 + $0x38] sm:$0xf]
    %v6228 = vld [vmem:[#allocation20 + $0x3c] sm:$0xf]
    %v6229 = vld [vmem:[#allocation20 + $0x40] sm:$0xf]
    %v6230 = vld [vmem:[#allocation20 + $0x44] sm:$0xf]
    %v6231 = vld [vmem:[#allocation20 + $0x48] sm:$0xf]
    %v6232 = vld [vmem:[#allocation20 + $0x4c] sm:$0xf]
    %v6233 = vld [vmem:[#allocation20 + $0x50] sm:$0xf]
    %v6234 = vld [vmem:[#allocation20 + $0x54] sm:$0xf]
    %v6235 = vld [vmem:[#allocation20 + $0x58] sm:$0xf]
    %v6236 = vld [vmem:[#allocation20 + $0x5c] sm:$0xf]
    %v6237 = vld [vmem:[#allocation20 + $0x60] sm:$0xf]
    %v6238 = vld [vmem:[#allocation20 + $0x64] sm:$0xf]
    %v6239 = vld [vmem:[#allocation20 + $0x68] sm:$0xf]
    %v6240 = vld [vmem:[#allocation20 + $0x6c] sm:$0xf]
    %v6241 = vld [vmem:[#allocation20 + $0x70] sm:$0xf]
    %v6242 = vld [vmem:[#allocation20 + $0x74] sm:$0xf]
    %v6243 = vld [vmem:[#allocation20 + $0x78] sm:$0xf]
    %v6244 = vld [vmem:[#allocation20 + $0x7c] sm:$0xf]
    %v6245 = vld [vmem:[#allocation22] sm:$0x1]
    %v6247 = vlaneseq
    %v6248 = vshrl.u32 %v6247, 7
    %v6249 = vsub.s32 0, %v6248
    %v6250 = vrot.slane %v6245, %v6249
    %v6284 = vunpack.c.l.b16 %v6213
    %v6285 = vunpack.c.l.b16 %v6214
    %v6286 = vunpack.c.l.b16 %v6215
    %v6287 = vunpack.c.l.b16 %v6216
    %v6288 = vunpack.c.l.b16 %v6217
    %v6289 = vunpack.c.l.b16 %v6218
    %v6290 = vunpack.c.l.b16 %v6219
    %v6291 = vunpack.c.l.b16 %v6220
    %v6292 = vunpack.c.l.b16 %v6221
    %v6293 = vunpack.c.l.b16 %v6222
    %v6294 = vunpack.c.l.b16 %v6223
    %v6295 = vunpack.c.l.b16 %v6224
    %v6296 = vunpack.c.l.b16 %v6225
    %v6297 = vunpack.c.l.b16 %v6226
    %v6298 = vunpack.c.l.b16 %v6227
    %v6299 = vunpack.c.l.b16 %v6228
    %v6300 = vunpack.c.l.b16 %v6229
    %v6301 = vunpack.c.l.b16 %v6230
    %v6302 = vunpack.c.l.b16 %v6231
    %v6303 = vunpack.c.l.b16 %v6232
    %v6304 = vunpack.c.l.b16 %v6233
    %v6305 = vunpack.c.l.b16 %v6234
    %v6306 = vunpack.c.l.b16 %v6235
    %v6307 = vunpack.c.l.b16 %v6236
    %v6308 = vunpack.c.l.b16 %v6237
    %v6309 = vunpack.c.l.b16 %v6238
    %v6310 = vunpack.c.l.b16 %v6239
    %v6311 = vunpack.c.l.b16 %v6240
    %v6312 = vunpack.c.l.b16 %v6241
    %v6313 = vunpack.c.l.b16 %v6242
    %v6314 = vunpack.c.l.b16 %v6243
    %v6315 = vunpack.c.l.b16 %v6244
    %v6316 = vpack.c.b16 %v6285, %v6284
    %v6317 = vpack.c.b16 %v6287, %v6286
    %v6318 = vpack.c.b16 %v6289, %v6288
    %v6319 = vpack.c.b16 %v6291, %v6290
    %v6320 = vpack.c.b16 %v6293, %v6292
    %v6321 = vpack.c.b16 %v6295, %v6294
    %v6322 = vpack.c.b16 %v6297, %v6296
    %v6323 = vpack.c.b16 %v6299, %v6298
    %v6324 = vpack.c.b16 %v6301, %v6300
    %v6325 = vpack.c.b16 %v6303, %v6302
    %v6326 = vpack.c.b16 %v6305, %v6304
    %v6327 = vpack.c.b16 %v6307, %v6306
    %v6328 = vpack.c.b16 %v6309, %v6308
    %v6329 = vpack.c.b16 %v6311, %v6310
    %v6330 = vpack.c.b16 %v6313, %v6312
    %v6331 = vpack.c.b16 %v6315, %v6314
    %6348 = vmatprep.subr.bf16.mxu0 0
    %6349 = vmatpush1.bf16.msra.mxu0 %v6323
    %6350 = vmatprep.subr.bf16.mxu0 0
    %6351 = vmatpush1.bf16.msra.mxu0 %v6322
    %6352 = vmatprep.subr.bf16.mxu0 0
    %6353 = vmatpush1.bf16.msra.mxu0 %v6321
    %6354 = vmatprep.subr.bf16.mxu0 0
    %6355 = vmatpush1.bf16.msra.mxu0 %v6320
    %6356 = vmatprep.subr.bf16.mxu0 0
    %6357 = vmatpush1.bf16.msra.mxu0 %v6319
    %6358 = vmatprep.subr.bf16.mxu0 0
    %6359 = vmatpush1.bf16.msra.mxu0 %v6318
    %6360 = vmatprep.subr.bf16.mxu0 0
    %6361 = vmatpush1.bf16.msra.mxu0 %v6317
    %6362 = vmatprep.subr.bf16.mxu0 0
    %6363 = vmatpush1.bf16.msra.mxu0 %v6316
    %6364 = vmatprep.subr.bf16.mxu0 0
    %6365 = vmatpush2.bf16.msra.mxu0 %v6331
    %6366 = vmatprep.subr.bf16.mxu0 0
    %6367 = vmatpush2.bf16.msra.mxu0 %v6330
    %6368 = vmatprep.subr.bf16.mxu0 0
    %6369 = vmatpush2.bf16.msra.mxu0 %v6329
    %6370 = vmatprep.subr.bf16.mxu0 0
    %6371 = vmatpush2.bf16.msra.mxu0 %v6328
    %6372 = vmatprep.subr.bf16.mxu0 0
    %6373 = vmatpush2.bf16.msra.mxu0 %v6327
    %6374 = vmatprep.subr.bf16.mxu0 0
    %6375 = vmatpush2.bf16.msra.mxu0 %v6326
    %6376 = vmatprep.subr.bf16.mxu0 0
    %6377 = vmatpush2.bf16.msra.mxu0 %v6325
    %6378 = vmatprep.subr.bf16.mxu0 0
    %6379 = vmatpush2.bf16.msra.mxu0 %v6324
    %6380 = vmatprep.mubr.bf16.mxu0 %v6212
    %6381 = vmatmul.mubr.bf16.gmra.mxu0 %v6211
    %v6382 = vpop.f32.mrf.mxu0
    %v6383 = vadd.f32 %v6250, %v6382
    %v6384 = vpop.f32.mrf.mxu0
    %v6385 = vpop.f32.mrf.mxu0
    %v6386 = vpop.f32.mrf.mxu0
    %6387 = vdwg.mxu0
    %v6388 = vxor.u32 %v6383, 2147483648
    %v6389 = vmul.f32 %v6388, 1.442695
    %v6390 = vpow.pop %v6389
    %v6391 = vadd.f32 %v6390, 1.0
    %v6392 = vrcp.pop %v6391
    %v6393 = vmul.f32 1.0, %v6392
    %v6394 = vmul.f32 %v6393, 6.9077554
    %v6395 = vadd.f32 %v6394, 9.2103405
    %v6396 = vmul.f32 %v6395, 1.442695
    %v6397 = vpow.pop %v6396
    %v6398 = vtanh.pop %v6383
    %v6399 = vadd.f32 %v6398, 1.0
    %v6400 = vmul.f32 %v6399, 97.5
    %v6401 = vadd.f32 %v6400, 5.0
    %v6402 = vlaneseq
    %v6403 = vand.u32 %v6402, 127
    %vm6404 = vcmp.lt.s32.totalorder %v6403, 4
    %v6405 = vsel %vm6404, %v6397, %v6401
    %6406 = vst [vmem:[#allocation23] sm:$0xff] %v6405
    // Predicated region
    $region106: #{tpu_custom_call.1} parent=1 // pred_check
      _
    $region107: #{tpu_custom_call.1} parent=1 // pred_check_branch
      %6408 = sbr.rel (0) target = $region109
    $region108: #{tpu_custom_call.1} parent=1 // pred_region
      %s6410 = ssub.s32 128, 128
      %6411 = vsyncadd [#allocation4], %s6410
      %s6413 = sshll.u32 [#allocation23], 4
      %s6414 = int_to_ptr.vmem [resolvable:$true] %s6413
      %6416 = dma.vmem_to_hbm [thread:$0]  %s6414, 128, %s13, [#allocation4]
    $region109: #{tpu_custom_call.1} parent=1 // pred_fallthru
      _
    // Predicated region
    $region110: #{tpu_custom_call.1} parent=1 // pred_check
      _
    $region111: #{tpu_custom_call.1} parent=1 // pred_check_branch
      %6418 = sbr.rel (0) target = $region113
    $region112: #{tpu_custom_call.1} parent=1 // pred_region
      %6419 = dma.done [#allocation4], 128
    $region113: #{tpu_custom_call.1} parent=1 // pred_fallthru
      _
    %6420 = vsyncpa [#allocation3], 1
    %6421 = vsyncpa [#allocation6], 1
    %6422 = vsyncpa [#allocation9], 1
    %6423 = vsyncpa [#allocation12], 1
    %6424 = vsyncpa [#allocation15], 1
    %6425 = vsyncpa [#allocation18], 1
    %6426 = vsyncpa [#allocation21], 1
    %6427 = vsyncpa [#allocation4], 1

// kernel: tpu_custom_call.1
$region0: #{tpu_custom_call.1}
  #allocation0 [shape = 'u32[]', space=smem, size = 0x4, offset = 0x4, fixed_abs, tag = 'smem constant byte address 0x4 - core index']
  #allocation1 [shape = 'u32[144,128]{1,0:T(1,128)}', space=vmem, size = 0x12000, scoped, tag = 'internal scratch']
  %s0 = inlined_call_operand.hbm [shape: f32[8,256], index: 0, kind: input, shape index: {}]
  %s1 = inlined_call_operand.hbm [shape: f32[1,256], index: 1, kind: input, shape index: {}]
  %s2 = inlined_call_operand.hbm [shape: f32[1,256], index: 2, kind: input, shape index: {}]
  %s3 = inlined_call_operand.hbm [shape: bf16[256,1024], index: 3, kind: input, shape index: {}]
  %s4 = inlined_call_operand.hbm [shape: f32[1,1024], index: 4, kind: input, shape index: {}]
  %s5 = inlined_call_operand.hbm [shape: bf16[1024,1024], index: 5, kind: input, shape index: {}]
  %s6 = inlined_call_operand.hbm [shape: f32[1,1024], index: 6, kind: input, shape index: {}]
  %s7 = inlined_call_operand.hbm [shape: bf16[1024,256], index: 7, kind: input, shape index: {}]
  %s8 = inlined_call_operand.hbm [shape: f32[1,256], index: 8, kind: input, shape index: {}]
  %s9 = inlined_call_operand.hbm [shape: bf16[256,256], index: 9, kind: input, shape index: {}]
  %s10 = inlined_call_operand.hbm [shape: f32[1,256], index: 10, kind: input, shape index: {}]
  %s11 = inlined_call_operand.hbm [shape: bf16[256,128], index: 11, kind: input, shape index: {}]
  %s12 = inlined_call_operand.hbm [shape: f32[1,128], index: 12, kind: input, shape index: {}]
  %s13 = inlined_call_operand.hbm [shape: f32[8,128], index: 13, kind: output, shape index: {}]
  %s14 = sld [smem:[#allocation0]]
  $region114: #{tpu_custom_call.1} parent=0
    _
  %s16 = ssub.s32 1, %s14
  %s17 = scalar_select 0, %s16, %s14
  $region1: #{tpu_custom_call.1} parent=0
    #allocation2 [shape = 'u8[8192]{0}', space=vmem, size = 0x2000, scoped, tag = 'input window, operand 0, single buffered']
    #allocation3 [shape = 's32[1]{0}', space=sflag, size = 0x4, scoped, tag = 'scoped memory for tpu_custom_call.1']
    #allocation4 [shape = 's32[1]{0}', space=sflag, size = 0x4, scoped, tag = 'scoped memory for tpu_custom_call.1']
    #allocation5 [shape = 'u8[1024]{0}', space=vmem, size = 0x400, scoped, tag = 'input window, operand 1, single buffered']
    #allocation6 [shape = 's32[1]{0}', space=sflag, size = 0x4, scoped, tag = 'scoped memory for tpu_custom_call.1']
    #allocation7 [shape = 'u8[1024]{0}', space=vmem, size = 0x400, scoped, tag = 'input window, operand 2, single buffered']
    #allocation8 [shape = 'u8[524288]{0}', space=vmem, size = 0x80000, scoped, tag = 'input window, operand 3, single buffered']
    #allocation9 [shape = 's32[1]{0}', space=sflag, size = 0x4, scoped, tag = 'scoped memory for tpu_custom_call.1']
    #allocation10 [shape = 'u8[4096]{0}', space=vmem, size = 0x1000, scoped, tag = 'input window, operand 4, single buffered']
    #allocation11 [shape = 'u8[2097152]{0}', space=vmem, size = 0x200000, scoped, tag = 'input window, operand 5, single buffered']
    #allocation12 [shape = 's32[1]{0}', space=sflag, size = 0x4, scoped, tag = 'scoped memory for tpu_custom_call.1']
    #allocation13 [shape = 'u8[4096]{0}', space=vmem, size = 0x1000, scoped, tag = 'input window, operand 6, single buffered']
    #allocation14 [shape = 'u8[524288]{0}', space=vmem, size = 0x80000, scoped, tag = 'input window, operand 7, single buffered']
    #allocation15 [shape = 's32[1]{0}', space=sflag, size = 0x4, scoped, tag = 'scoped memory for tpu_custom_call.1']
    #allocation16 [shape = 'u8[1024]{0}', space=vmem, size = 0x400, scoped, tag = 'input window, operand 8, single buffered']
    #allocation17 [shape = 'u8[131072]{0}', space=vmem, size = 0x20000, scoped, tag = 'input window, operand 9, single buffered']
    #allocation18 [shape = 's32[1]{0}', space=sflag, size = 0x4, scoped, tag = 'scoped memory for tpu_custom_call.1']
    #allocation19 [shape = 'u8[1024]{0}', space=vmem, size = 0x400, scoped, tag = 'input window, operand 10, single buffered']
    #allocation20 [shape = 'u8[65536]{0}', space=vmem, size = 0x10000, scoped, tag = 'input window, operand 11, single buffered']
    #allocation21 [shape = 's32[1]{0}', space=sflag, size = 0x4, scoped, tag = 'scoped memory for tpu_custom_call.1']
    #allocation22 [shape = 'u8[512]{0}', space=vmem, size = 0x400, scoped, tag = 'input window, operand 12, single buffered']
    #allocation23 [shape = 'u8[4096]{0}', space=vmem, size = 0x1000, scoped, tag = 'output window, operand 0, single buffered']
    %18 = vsyncpa [#allocation3], 0
    %19 = vsyncpa [#allocation6], 0
    %20 = vsyncpa [#allocation9], 0
    %21 = vsyncpa [#allocation12], 0
    %22 = vsyncpa [#allocation15], 0
    %23 = vsyncpa [#allocation18], 0
    %24 = vsyncpa [#allocation21], 0
    %25 = vsyncpa [#allocation4], 0
    // Predicated region
    $region2: #{tpu_custom_call.1} parent=1 // pred_check
      _
    $region3: #{tpu_custom_call.1} parent=1 // pred_check_branch
      %27 = sbr.rel (0) target = $region5
    $region4: #{tpu_custom_call.1} parent=1 // pred_region
      %s29 = ssub.s32 256, 256
      %30 = vsyncadd [#allocation3], %s29
      %s32 = sshll.u32 [#allocation2], 4
      %s33 = int_to_ptr.vmem [resolvable:$true] %s32
      %35 = dma.hbm_to_vmem [thread:$0]  %s0, 256, %s33, [#allocation3]
    $region5: #{tpu_custom_call.1} parent=1 // pred_fallthru
      _
    // Predicated region
    $region6: #{tpu_custom_call.1} parent=1 // pred_check
      _
    $region7: #{tpu_custom_call.1} parent=1 // pred_check_branch
      %37 = sbr.rel (0) target = $region9
    $region8: #{tpu_custom_call.1} parent=1 // pred_region
      %s39 = ssub.s32 32, 32
      %40 = vsyncadd [#allocation6], %s39
      %s42 = sshll.u32 [#allocation5], 4
      %s43 = int_to_ptr.vmem [resolvable:$true] %s42
      %45 = dma.hbm_to_vmem [thread:$0]  %s1, 32, %s43, [#allocation6]
    $region9: #{tpu_custom_call.1} parent=1 // pred_fallthru
      _
    // Predicated region
    $region10: #{tpu_custom_call.1} parent=1 // pred_check
      _
    $region11: #{tpu_custom_call.1} parent=1 // pred_check_branch
      %47 = sbr.rel (0) target = $region13
    $region12: #{tpu_custom_call.1} parent=1 // pred_region
      %s49 = ssub.s32 32, 32
      %50 = vsyncadd [#allocation6], %s49
      %s52 = sshll.u32 [#allocation7], 4
      %s53 = int_to_ptr.vmem [resolvable:$true] %s52
      %55 = dma.hbm_to_vmem [thread:$0]  %s2, 32, %s53, [#allocation6]
    $region13: #{tpu_custom_call.1} parent=1 // pred_fallthru
      _
    // Predicated region
    $region14: #{tpu_custom_call.1} parent=1 // pred_check
      _
    $region15: #{tpu_custom_call.1} parent=1 // pred_check_branch
      %57 = sbr.rel (0) target = $region17
    $region16: #{tpu_custom_call.1} parent=1 // pred_region
      %s59 = ssub.s32 16384, 16384
      %60 = vsyncadd [#allocation9], %s59
      %s61 = sshll.u32 [#allocation8], 4
      %s62 = int_to_ptr.vmem [resolvable:$true] %s61
      %67 = dma.hbm_to_vmem [thread:$0]  %s3, 16384, %s62, [#allocation9], 512, 512, 32
    $region17: #{tpu_custom_call.1} parent=1 // pred_fallthru
      _
    // Predicated region
    $region18: #{tpu_custom_call.1} parent=1 // pred_check
      _
    $region19: #{tpu_custom_call.1} parent=1 // pred_check_branch
      %69 = sbr.rel (0) target = $region21
    $region20: #{tpu_custom_call.1} parent=1 // pred_region
      %s71 = ssub.s32 128, 128
      %72 = vsyncadd [#allocation9], %s71
      %s74 = sshll.u32 [#allocation10], 4
      %s75 = int_to_ptr.vmem [resolvable:$true] %s74
      %77 = dma.hbm_to_vmem [thread:$0]  %s4, 128, %s75, [#allocation9]
    $region21: #{tpu_custom_call.1} parent=1 // pred_fallthru
      _
    // Predicated region
    $region22: #{tpu_custom_call.1} parent=1 // pred_check
      _
    $region23: #{tpu_custom_call.1} parent=1 // pred_check_branch
      %79 = sbr.rel (0) target = $region25
    $region24: #{tpu_custom_call.1} parent=1 // pred_region
      %s81 = ssub.s32 65536, 65536
      %82 = vsyncadd [#allocation12], %s81
      %s83 = sshll.u32 [#allocation11], 4
      %s84 = int_to_ptr.vmem [resolvable:$true] %s83
      %89 = dma.hbm_to_vmem [thread:$0]  %s5, 65536, %s84, [#allocation12], 512, 512, 32
    $region25: #{tpu_custom_call.1} parent=1 // pred_fallthru
      _
    // Predicated region
    $region26: #{tpu_custom_call.1} parent=1 // pred_check
      _
    $region27: #{tpu_custom_call.1} parent=1 // pred_check_branch
      %91 = sbr.rel (0) target = $region29
    $region28: #{tpu_custom_call.1} parent=1 // pred_region
      %s93 = ssub.s32 128, 128
      %94 = vsyncadd [#allocation12], %s93
      %s96 = sshll.u32 [#allocation13], 4
      %s97 = int_to_ptr.vmem [resolvable:$true] %s96
      %99 = dma.hbm_to_vmem [thread:$0]  %s6, 128, %s97, [#allocation12]
    $region29: #{tpu_custom_call.1} parent=1 // pred_fallthru
      _
    // Predicated region
    $region30: #{tpu_custom_call.1} parent=1 // pred_check
      _
    $region31: #{tpu_custom_call.1} parent=1 // pred_check_branch
      %101 = sbr.rel (0) target = $region33
    $region32: #{tpu_custom_call.1} parent=1 // pred_region
      %s103 = ssub.s32 16384, 16384
      %104 = vsyncadd [#allocation15], %s103
      %s105 = sshll.u32 [#allocation14], 4
      %s106 = int_to_ptr.vmem [resolvable:$true] %s105
      %111 = dma.hbm_to_vmem [thread:$0]  %s7, 16384, %s106, [#allocation15], 128, 128, 8
    $region33: #{tpu_custom_call.1} parent=1 // pred_fallthru
      _
    // Predicated region
    $region34: #{tpu_custom_call.1} parent=1 // pred_check
      _
    $region35: #{tpu_custom_call.1} parent=1 // pred_check_branch
      %113 = sbr.rel (0) target = $region37
    $region36: #{tpu_custom_call.1} parent=1 // pred_region
      %s115 = ssub.s32 32, 32
      %116 = vsyncadd [#allocation15], %s115
      %s118 = sshll.u32 [#allocation16], 4
      %s119 = int_to_ptr.vmem [resolvable:$true] %s118
      %121 = dma.hbm_to_vmem [thread:$0]  %s8, 32, %s119, [#allocation15]
    $region37: #{tpu_custom_call.1} parent=1 // pred_fallthru
      _
    // Predicated region
    $region38: #{tpu_custom_call.1} parent=1 // pred_check
      _
    $region39: #{tpu_custom_call.1} parent=1 // pred_check_branch
      %123 = sbr.rel (0) target = $region41
    $region40: #{tpu_custom_call.1} parent=1 // pred_region
      %s125 = ssub.s32 4096, 4096
      %126 = vsyncadd [#allocation18], %s125
      %s127 = sshll.u32 [#allocation17], 4
      %s128 = int_to_ptr.vmem [resolvable:$true] %s127
      %133 = dma.hbm_to_vmem [thread:$0]  %s9, 4096, %s128, [#allocation18], 128, 128, 8
    $region41: #{tpu_custom_call.1} parent=1 // pred_fallthru
      _
    // Predicated region
    $region42: #{tpu_custom_call.1} parent=1 // pred_check
      _
    $region43: #{tpu_custom_call.1} parent=1 // pred_check_branch
      %135 = sbr.rel (0) target = $region45
    $region44: #{tpu_custom_call.1} parent=1 // pred_region
      %s137 = ssub.s32 32, 32
      %138 = vsyncadd [#allocation18], %s137
      %s140 = sshll.u32 [#allocation19], 4
      %s141 = int_to_ptr.vmem [resolvable:$true] %s140
      %143 = dma.hbm_to_vmem [thread:$0]  %s10, 32, %s141, [#allocation18]
    $region45: #{tpu_custom_call.1} parent=1 // pred_fallthru
      _
    // Predicated region
    $region46: #{tpu_custom_call.1} parent=1 // pred_check
      _
    $region47: #{tpu_custom_call.1} parent=1 // pred_check_branch
      %145 = sbr.rel (0) target = $region49
    $region48: #{tpu_custom_call.1} parent=1 // pred_region
      %s147 = ssub.s32 2048, 2048
      %148 = vsyncadd [#allocation21], %s147
      %s149 = sshll.u32 [#allocation20], 4
      %s150 = int_to_ptr.vmem [resolvable:$true] %s149
      %155 = dma.hbm_to_vmem [thread:$0]  %s11, 2048, %s150, [#allocation21], 64, 64, 4
    $region49: #{tpu_custom_call.1} parent=1 // pred_fallthru
      _
    // Predicated region
    $region50: #{tpu_custom_call.1} parent=1 // pred_check
      _
    $region51: #{tpu_custom_call.1} parent=1 // pred_check_branch
      %157 = sbr.rel (0) target = $region53
    $region52: #{tpu_custom_call.1} parent=1 // pred_region
      %s159 = ssub.s32 16, 16
      %160 = vsyncadd [#allocation21], %s159
      %s162 = sshll.u32 [#allocation22], 4
      %s163 = int_to_ptr.vmem [resolvable:$true] %s162
      %165 = dma.hbm_to_vmem [thread:$0]  %s12, 16, %s163, [#allocation21]
    $region53: #{tpu_custom_call.1} parent=1 // pred_fallthru
      _
    // Predicated region
    $region54: #{tpu_custom_call.1} parent=1 // pred_check
      _
    $region55: #{tpu_custom_call.1} parent=1 // pred_check_branch
      %167 = sbr.rel (0) target = $region57
    $region56: #{tpu_custom_call.1} parent=1 // pred_region
      %168 = dma.done [#allocation3], 256
    $region57: #{tpu_custom_call.1} parent=1 // pred_fallthru
      _
    // Predicated region
    $region58: #{tpu_custom_call.1} parent=1 // pred_check
      _
    $region59: #{tpu_custom_call.1} parent=1 // pred_check_branch
      %170 = sbr.rel (0) target = $region61
    $region60: #{tpu_custom_call.1} parent=1 // pred_region
      %171 = dma.done [#allocation6], 32
    $region61: #{tpu_custom_call.1} parent=1 // pred_fallthru
      _
    // Predicated region
    $region62: #{tpu_custom_call.1} parent=1 // pred_check
      _
    $region63: #{tpu_custom_call.1} parent=1 // pred_check_branch
      %173 = sbr.rel (0) target = $region65
    $region64: #{tpu_custom_call.1} parent=1 // pred_region
      %174 = dma.done [#allocation6], 32
    $region65: #{tpu_custom_call.1} parent=1 // pred_fallthru
      _
    // Predicated region
    $region66: #{tpu_custom_call.1} parent=1 // pred_check
      _
    $region67: #{tpu_custom_call.1} parent=1 // pred_check_branch
      %176 = sbr.rel (0) target = $region69
    $region68: #{tpu_custom_call.1} parent=1 // pred_region
      %177 = dma.done [#allocation9], 16384
    $region69: #{tpu_custom_call.1} parent=1 // pred_fallthru
      _
    // Predicated region
    $region70: #{tpu_custom_call.1} parent=1 // pred_check
      _
    $region71: #{tpu_custom_call.1} parent=1 // pred_check_branch
      %179 = sbr.rel (0) target = $region73
    $region72: #{tpu_custom_call.1} parent=1 // pred_region
      %180 = dma.done [#allocation9], 128
    $region73: #{tpu_custom_call.1} parent=1 // pred_fallthru
      _
    // Predicated region
    $region74: #{tpu_custom_call.1} parent=1 // pred_check
      _
    $region75: #{tpu_custom_call.1} parent=1 // pred_check_branch
      %182 = sbr.rel (0) target = $region77
    $region76: #{tpu_custom_call.1} parent=1 // pred_region
      %183 = dma.done [#allocation12], 65536
    $region77: #{tpu_custom_call.1} parent=1 // pred_fallthru
      _
    // Predicated region
    $region78: #{tpu_custom_call.1} parent=1 // pred_check
      _
    $region79: #{tpu_custom_call.1} parent=1 // pred_check_branch
      %185 = sbr.rel (0) target = $region81
    $region80: #{tpu_custom_call.1} parent=1 // pred_region
      %186 = dma.done [#allocation12], 128
    $region81: #{tpu_custom_call.1} parent=1 // pred_fallthru
      _
    // Predicated region
    $region82: #{tpu_custom_call.1} parent=1 // pred_check
      _
    $region83: #{tpu_custom_call.1} parent=1 // pred_check_branch
      %188 = sbr.rel (0) target = $region85
    $region84: #{tpu_custom_call.1} parent=1 // pred_region
      %189 = dma.done [#allocation15], 16384
    $region85: #{tpu_custom_call.1} parent=1 // pred_fallthru
      _
    // Predicated region
    $region86: #{tpu_custom_call.1} parent=1 // pred_check
      _
    $region87: #{tpu_custom_call.1} parent=1 // pred_check_branch
      %191 = sbr.rel (0) target = $region89
    $region88: #{tpu_custom_call.1} parent=1 // pred_region
      %192 = dma.done [#allocation15], 32
    $region89: #{tpu_custom_call.1} parent=1 // pred_fallthru
      _
    // Predicated region
    $region90: #{tpu_custom_call.1} parent=1 // pred_check
      _
    $region91: #{tpu_custom_call.1} parent=1 // pred_check_branch
      %194 = sbr.rel (0) target = $region93
    $region92: #{tpu_custom_call.1} parent=1 // pred_region
      %195 = dma.done [#allocation18], 4096
    $region93: #{tpu_custom_call.1} parent=1 // pred_fallthru
      _
    // Predicated region
    $region94: #{tpu_custom_call.1} parent=1 // pred_check
      _
    $region95: #{tpu_custom_call.1} parent=1 // pred_check_branch
      %197 = sbr.rel (0) target = $region97
    $region96: #{tpu_custom_call.1} parent=1 // pred_region
      %198 = dma.done [#allocation18], 32
    $region97: #{tpu_custom_call.1} parent=1 // pred_fallthru
      _
    // Predicated region
    $region98: #{tpu_custom_call.1} parent=1 // pred_check
      _
    $region99: #{tpu_custom_call.1} parent=1 // pred_check_branch
      %200 = sbr.rel (0) target = $region101
    $region100: #{tpu_custom_call.1} parent=1 // pred_region
      %201 = dma.done [#allocation21], 2048
    $region101: #{tpu_custom_call.1} parent=1 // pred_fallthru
      _
    // Predicated region
    $region102: #{tpu_custom_call.1} parent=1 // pred_check
      _
    $region103: #{tpu_custom_call.1} parent=1 // pred_check_branch
      %203 = sbr.rel (0) target = $region105
    $region104: #{tpu_custom_call.1} parent=1 // pred_region
      %204 = dma.done [#allocation21], 16
    $region105: #{tpu_custom_call.1} parent=1 // pred_fallthru
      _
    %v206 = vld [vmem:[#allocation2] sm:$0xff]
    %v207 = vld [vmem:[#allocation2 + $0x8] sm:$0xff]
    %v208 = vld [vmem:[#allocation5] sm:$0x3]
    %v210 = vlaneseq
    %v211 = vshrl.u32 %v210, 7
    %v212 = vsub.s32 0, %v211
    %v213 = vrot.slane %v208, %v212
    %v214 = vlaneseq
    %v215 = vshrl.u32 %v214, 7
    %v216 = vsub.s32 1, %v215
    %v217 = vrot.slane %v208, %v216
    %v220 = vsub.f32 %v206, %v213
    %v221 = vsub.f32 %v207, %v217
    %v222 = vld [vmem:[#allocation7] sm:$0x3]
    %v224 = vlaneseq
    %v225 = vshrl.u32 %v224, 7
    %v226 = vsub.s32 0, %v225
    %v227 = vrot.slane %v222, %v226
    %v228 = vlaneseq
    %v229 = vshrl.u32 %v228, 7
    %v230 = vsub.s32 1, %v229
    %v231 = vrot.slane %v222, %v230
    %v234 = vmul.f32 %v220, %v227
    %v235 = vmul.f32 %v221, %v231
    %v236 = vpack.c.bf16 %v234, %v234
    %v237 = vpack.c.bf16 %v235, %v235
    %v238 = vld [vmem:[#allocation8] sm:$0xff]
    %v239 = vld [vmem:[#allocation8 + $0x8] sm:$0xff]
    %v240 = vld [vmem:[#allocation8 + $0x10] sm:$0xff]
    %v241 = vld [vmem:[#allocation8 + $0x18] sm:$0xff]
    %v242 = vld [vmem:[#allocation8 + $0x20] sm:$0xff]
    %v243 = vld [vmem:[#allocation8 + $0x28] sm:$0xff]
    %v244 = vld [vmem:[#allocation8 + $0x30] sm:$0xff]
    %v245 = vld [vmem:[#allocation8 + $0x38] sm:$0xff]
    %v246 = vld [vmem:[#allocation8 + $0x40] sm:$0xff]
    %v247 = vld [vmem:[#allocation8 + $0x48] sm:$0xff]
    %v248 = vld [vmem:[#allocation8 + $0x50] sm:$0xff]
    %v249 = vld [vmem:[#allocation8 + $0x58] sm:$0xff]
    %v250 = vld [vmem:[#allocation8 + $0x60] sm:$0xff]
    %v251 = vld [vmem:[#allocation8 + $0x68] sm:$0xff]
    %v252 = vld [vmem:[#allocation8 + $0x70] sm:$0xff]
    %v253 = vld [vmem:[#allocation8 + $0x78] sm:$0xff]
    %v254 = vld [vmem:[#allocation8 + $0x80] sm:$0xff]
    %v255 = vld [vmem:[#allocation8 + $0x88] sm:$0xff]
    %v256 = vld [vmem:[#allocation8 + $0x90] sm:$0xff]
    %v257 = vld [vmem:[#allocation8 + $0x98] sm:$0xff]
    %v258 = vld [vmem:[#allocation8 + $0xa0] sm:$0xff]
    %v259 = vld [vmem:[#allocation8 + $0xa8] sm:$0xff]
    %v260 = vld [vmem:[#allocation8 + $0xb0] sm:$0xff]
    %v261 = vld [vmem:[#allocation8 + $0xb8] sm:$0xff]
    %v262 = vld [vmem:[#allocation8 + $0xc0] sm:$0xff]
    %v263 = vld [vmem:[#allocation8 + $0xc8] sm:$0xff]
    %v264 = vld [vmem:[#allocation8 + $0xd0] sm:$0xff]
    %v265 = vld [vmem:[#allocation8 + $0xd8] sm:$0xff]
    %v266 = vld [vmem:[#allocation8 + $0xe0] sm:$0xff]
    %v267 = vld [vmem:[#allocation8 + $0xe8] sm:$0xff]
    %v268 = vld [vmem:[#allocation8 + $0xf0] sm:$0xff]
    %v269 = vld [vmem:[#allocation8 + $0xf8] sm:$0xff]
    %v270 = vld [vmem:[#allocation8 + $0x100] sm:$0xff]
    %v271 = vld [vmem:[#allocation8 + $0x108] sm:$0xff]
    %v272 = vld [vmem:[#allocation8 + $0x110] sm:$0xff]
    %v273 = vld [vmem:[#allocation8 + $0x118] sm:$0xff]
    %v274 = vld [vmem:[#allocation8 + $0x120] sm:$0xff]
    %v275 = vld [vmem:[#allocation8 + $0x128] sm:$0xff]
    %v276 = vld [vmem:[#allocation8 + $0x130] sm:$0xff]
    %v277 = vld [vmem:[#allocation8 + $0x138] sm:$0xff]
    %v278 = vld [vmem:[#allocation8 + $0x140] sm:$0xff]
    %v279 = vld [vmem:[#allocation8 + $0x148] sm:$0xff]
    %v280 = vld [vmem:[#allocation8 + $0x150] sm:$0xff]
    %v281 = vld [vmem:[#allocation8 + $0x158] sm:$0xff]
    %v282 = vld [vmem:[#allocation8 + $0x160] sm:$0xff]
    %v283 = vld [vmem:[#allocation8 + $0x168] sm:$0xff]
    %v284 = vld [vmem:[#allocation8 + $0x170] sm:$0xff]
    %v285 = vld [vmem:[#allocation8 + $0x178] sm:$0xff]
    %v286 = vld [vmem:[#allocation8 + $0x180] sm:$0xff]
    %v287 = vld [vmem:[#allocation8 + $0x188] sm:$0xff]
    %v288 = vld [vmem:[#allocation8 + $0x190] sm:$0xff]
    %v289 = vld [vmem:[#allocation8 + $0x198] sm:$0xff]
    %v290 = vld [vmem:[#allocation8 + $0x1a0] sm:$0xff]
    %v291 = vld [vmem:[#allocation8 + $0x1a8] sm:$0xff]
    %v292 = vld [vmem:[#allocation8 + $0x1b0] sm:$0xff]
    %v293 = vld [vmem:[#allocation8 + $0x1b8] sm:$0xff]
    %v294 = vld [vmem:[#allocation8 + $0x1c0] sm:$0xff]
    %v295 = vld [vmem:[#allocation8 + $0x1c8] sm:$0xff]
    %v296 = vld [vmem:[#allocation8 + $0x1d0] sm:$0xff]
    %v297 = vld [vmem:[#allocation8 + $0x1d8] sm:$0xff]
    %v298 = vld [vmem:[#allocation8 + $0x1e0] sm:$0xff]
    %v299 = vld [vmem:[#allocation8 + $0x1e8] sm:$0xff]
    %v300 = vld [vmem:[#allocation8 + $0x1f0] sm:$0xff]
    %v301 = vld [vmem:[#allocation8 + $0x1f8] sm:$0xff]
    %v302 = vld [vmem:[#allocation8 + $0x200] sm:$0xff]
    %v303 = vld [vmem:[#allocation8 + $0x208] sm:$0xff]
    %v304 = vld [vmem:[#allocation8 + $0x210] sm:$0xff]
    %v305 = vld [vmem:[#allocation8 + $0x218] sm:$0xff]
    %v306 = vld [vmem:[#allocation8 + $0x220] sm:$0xff]
    %v307 = vld [vmem:[#allocation8 + $0x228] sm:$0xff]
    %v308 = vld [vmem:[#allocation8 + $0x230] sm:$0xff]
    %v309 = vld [vmem:[#allocation8 + $0x238] sm:$0xff]
    %v310 = vld [vmem:[#allocation8 + $0x240] sm:$0xff]
    %v311 = vld [vmem:[#allocation8 + $0x248] sm:$0xff]
    %v312 = vld [vmem:[#allocation8 + $0x250] sm:$0xff]
    %v313 = vld [vmem:[#allocation8 + $0x258] sm:$0xff]
    %v314 = vld [vmem:[#allocation8 + $0x260] sm:$0xff]
    %v315 = vld [vmem:[#allocation8 + $0x268] sm:$0xff]
    %v316 = vld [vmem:[#allocation8 + $0x270] sm:$0xff]
    %v317 = vld [vmem:[#allocation8 + $0x278] sm:$0xff]
    %v318 = vld [vmem:[#allocation8 + $0x280] sm:$0xff]
    %v319 = vld [vmem:[#allocation8 + $0x288] sm:$0xff]
    %v320 = vld [vmem:[#allocation8 + $0x290] sm:$0xff]
    %v321 = vld [vmem:[#allocation8 + $0x298] sm:$0xff]
    %v322 = vld [vmem:[#allocation8 + $0x2a0] sm:$0xff]
    %v323 = vld [vmem:[#allocation8 + $0x2a8] sm:$0xff]
    %v324 = vld [vmem:[#allocation8 + $0x2b0] sm:$0xff]
    %v325 = vld [vmem:[#allocation8 + $0x2b8] sm:$0xff]
    %v326 = vld [vmem:[#allocation8 + $0x2c0] sm:$0xff]
    %v327 = vld [vmem:[#allocation8 + $0x2c8] sm:$0xff]
    %v328 = vld [vmem:[#allocation8 + $0x2d0] sm:$0xff]
    %v329 = vld [vmem:[#allocation8 + $0x2d8] sm:$0xff]
    %v330 = vld [vmem:[#allocation8 + $0x2e0] sm:$0xff]
    %v331 = vld [vmem:[#allocation8 + $0x2e8] sm:$0xff]
    %v332 = vld [vmem:[#allocation8 + $0x2f0] sm:$0xff]
    %v333 = vld [vmem:[#allocation8 + $0x2f8] sm:$0xff]
    %v334 = vld [vmem:[#allocation8 + $0x300] sm:$0xff]
    %v335 = vld [vmem:[#allocation8 + $0x308] sm:$0xff]
    %v336 = vld [vmem:[#allocation8 + $0x310] sm:$0xff]
    %v337 = vld [vmem:[#allocation8 + $0x318] sm:$0xff]
    %v338 = vld [vmem:[#allocation8 + $0x320] sm:$0xff]
    %v339 = vld [vmem:[#allocation8 + $0x328] sm:$0xff]
    %v340 = vld [vmem:[#allocation8 + $0x330] sm:$0xff]
    %v341 = vld [vmem:[#allocation8 + $0x338] sm:$0xff]
    %v342 = vld [vmem:[#allocation8 + $0x340] sm:$0xff]
    %v343 = vld [vmem:[#allocation8 + $0x348] sm:$0xff]
    %v344 = vld [vmem:[#allocation8 + $0x350] sm:$0xff]
    %v345 = vld [vmem:[#allocation8 + $0x358] sm:$0xff]
    %v346 = vld [vmem:[#allocation8 + $0x360] sm:$0xff]
    %v347 = vld [vmem:[#allocation8 + $0x368] sm:$0xff]
    %v348 = vld [vmem:[#allocation8 + $0x370] sm:$0xff]
    %v349 = vld [vmem:[#allocation8 + $0x378] sm:$0xff]
    %v350 = vld [vmem:[#allocation8 + $0x380] sm:$0xff]
    %v351 = vld [vmem:[#allocation8 + $0x388] sm:$0xff]
    %v352 = vld [vmem:[#allocation8 + $0x390] sm:$0xff]
    %v353 = vld [vmem:[#allocation8 + $0x398] sm:$0xff]
    %v354 = vld [vmem:[#allocation8 + $0x3a0] sm:$0xff]
    %v355 = vld [vmem:[#allocation8 + $0x3a8] sm:$0xff]
    %v356 = vld [vmem:[#allocation8 + $0x3b0] sm:$0xff]
    %v357 = vld [vmem:[#allocation8 + $0x3b8] sm:$0xff]
    %v358 = vld [vmem:[#allocation8 + $0x3c0] sm:$0xff]
    %v359 = vld [vmem:[#allocation8 + $0x3c8] sm:$0xff]
    %v360 = vld [vmem:[#allocation8 + $0x3d0] sm:$0xff]
    %v361 = vld [vmem:[#allocation8 + $0x3d8] sm:$0xff]
    %v362 = vld [vmem:[#allocation8 + $0x3e0] sm:$0xff]
    %v363 = vld [vmem:[#allocation8 + $0x3e8] sm:$0xff]
    %v364 = vld [vmem:[#allocation8 + $0x3f0] sm:$0xff]
    %v365 = vld [vmem:[#allocation8 + $0x3f8] sm:$0xff]
    %v366 = vld [vmem:[#allocation10] sm:$0xff]
    %v368 = vlaneseq
    %v369 = vshrl.u32 %v368, 7
    %v370 = vsub.s32 0, %v369
    %v371 = vrot.slane %v366, %v370
    %v372 = vlaneseq
    %v373 = vshrl.u32 %v372, 7
    %v374 = vsub.s32 1, %v373
    %v375 = vrot.slane %v366, %v374
    %v376 = vlaneseq
    %v377 = vshrl.u32 %v376, 7
    %v378 = vsub.s32 2, %v377
    %v379 = vrot.slane %v366, %v378
    %v380 = vlaneseq
    %v381 = vshrl.u32 %v380, 7
    %v382 = vsub.s32 3, %v381
    %v383 = vrot.slane %v366, %v382
    %v384 = vlaneseq
    %v385 = vshrl.u32 %v384, 7
    %v386 = vsub.s32 4, %v385
    %v387 = vrot.slane %v366, %v386
    %v388 = vlaneseq
    %v389 = vshrl.u32 %v388, 7
    %v390 = vsub.s32 5, %v389
    %v391 = vrot.slane %v366, %v390
    %v392 = vlaneseq
    %v393 = vshrl.u32 %v392, 7
    %v394 = vsub.s32 6, %v393
    %v395 = vrot.slane %v366, %v394
    %v396 = vlaneseq
    %v397 = vshrl.u32 %v396, 7
    %v398 = vsub.s32 7, %v397
    %v399 = vrot.slane %v366, %v398
    %v536 = vunpack.c.l.b16 %v238
    %v537 = vunpack.c.h.b16 %v238
    %v538 = vunpack.c.l.b16 %v239
    %v539 = vunpack.c.h.b16 %v239
    %v540 = vunpack.c.l.b16 %v240
    %v541 = vunpack.c.h.b16 %v240
    %v542 = vunpack.c.l.b16 %v241
    %v543 = vunpack.c.h.b16 %v241
    %v544 = vunpack.c.l.b16 %v242
    %v545 = vunpack.c.h.b16 %v242
    %v546 = vunpack.c.l.b16 %v243
    %v547 = vunpack.c.h.b16 %v243
    %v548 = vunpack.c.l.b16 %v244
    %v549 = vunpack.c.h.b16 %v244
    %v550 = vunpack.c.l.b16 %v245
    %v551 = vunpack.c.h.b16 %v245
    %v552 = vunpack.c.l.b16 %v246
    %v553 = vunpack.c.h.b16 %v246
    %v554 = vunpack.c.l.b16 %v247
    %v555 = vunpack.c.h.b16 %v247
    %v556 = vunpack.c.l.b16 %v248
    %v557 = vunpack.c.h.b16 %v248
    %v558 = vunpack.c.l.b16 %v249
    %v559 = vunpack.c.h.b16 %v249
    %v560 = vunpack.c.l.b16 %v250
    %v561 = vunpack.c.h.b16 %v250
    %v562 = vunpack.c.l.b16 %v251
    %v563 = vunpack.c.h.b16 %v251
    %v564 = vunpack.c.l.b16 %v252
    %v565 = vunpack.c.h.b16 %v252
    %v566 = vunpack.c.l.b16 %v253
    %v567 = vunpack.c.h.b16 %v253
    %v568 = vunpack.c.l.b16 %v254
    %v569 = vunpack.c.h.b16 %v254
    %v570 = vunpack.c.l.b16 %v255
    %v571 = vunpack.c.h.b16 %v255
    %v572 = vunpack.c.l.b16 %v256
    %v573 = vunpack.c.h.b16 %v256
    %v574 = vunpack.c.l.b16 %v257
    %v575 = vunpack.c.h.b16 %v257
    %v576 = vunpack.c.l.b16 %v258
    %v577 = vunpack.c.h.b16 %v258
    %v578 = vunpack.c.l.b16 %v259
    %v579 = vunpack.c.h.b16 %v259
    %v580 = vunpack.c.l.b16 %v260
    %v581 = vunpack.c.h.b16 %v260
    %v582 = vunpack.c.l.b16 %v261
    %v583 = vunpack.c.h.b16 %v261
    %v584 = vunpack.c.l.b16 %v262
    %v585 = vunpack.c.h.b16 %v262
    %v586 = vunpack.c.l.b16 %v263
    %v587 = vunpack.c.h.b16 %v263
    %v588 = vunpack.c.l.b16 %v264
    %v589 = vunpack.c.h.b16 %v264
    %v590 = vunpack.c.l.b16 %v265
    %v591 = vunpack.c.h.b16 %v265
    %v592 = vunpack.c.l.b16 %v266
    %v593 = vunpack.c.h.b16 %v266
    %v594 = vunpack.c.l.b16 %v267
    %v595 = vunpack.c.h.b16 %v267
    %v596 = vunpack.c.l.b16 %v268
    %v597 = vunpack.c.h.b16 %v268
    %v598 = vunpack.c.l.b16 %v269
    %v599 = vunpack.c.h.b16 %v269
    %v600 = vunpack.c.l.b16 %v270
    %v601 = vunpack.c.h.b16 %v270
    %v602 = vunpack.c.l.b16 %v271
    %v603 = vunpack.c.h.b16 %v271
    %v604 = vunpack.c.l.b16 %v272
    %v605 = vunpack.c.h.b16 %v272
    %v606 = vunpack.c.l.b16 %v273
    %v607 = vunpack.c.h.b16 %v273
    %v608 = vunpack.c.l.b16 %v274
    %v609 = vunpack.c.h.b16 %v274
    %v610 = vunpack.c.l.b16 %v275
    %v611 = vunpack.c.h.b16 %v275
    %v612 = vunpack.c.l.b16 %v276
    %v613 = vunpack.c.h.b16 %v276
    %v614 = vunpack.c.l.b16 %v277
    %v615 = vunpack.c.h.b16 %v277
    %v616 = vunpack.c.l.b16 %v278
    %v617 = vunpack.c.h.b16 %v278
    %v618 = vunpack.c.l.b16 %v279
    %v619 = vunpack.c.h.b16 %v279
    %v620 = vunpack.c.l.b16 %v280
    %v621 = vunpack.c.h.b16 %v280
    %v622 = vunpack.c.l.b16 %v281
    %v623 = vunpack.c.h.b16 %v281
    %v624 = vunpack.c.l.b16 %v282
    %v625 = vunpack.c.h.b16 %v282
    %v626 = vunpack.c.l.b16 %v283
    %v627 = vunpack.c.h.b16 %v283
    %v628 = vunpack.c.l.b16 %v284
    %v629 = vunpack.c.h.b16 %v284
    %v630 = vunpack.c.l.b16 %v285
    %v631 = vunpack.c.h.b16 %v285
    %v632 = vunpack.c.l.b16 %v286
    %v633 = vunpack.c.h.b16 %v286
    %v634 = vunpack.c.l.b16 %v287
    %v635 = vunpack.c.h.b16 %v287
    %v636 = vunpack.c.l.b16 %v288
    %v637 = vunpack.c.h.b16 %v288
    %v638 = vunpack.c.l.b16 %v289
    %v639 = vunpack.c.h.b16 %v289
    %v640 = vunpack.c.l.b16 %v290
    %v641 = vunpack.c.h.b16 %v290
    %v642 = vunpack.c.l.b16 %v291
    %v643 = vunpack.c.h.b16 %v291
    %v644 = vunpack.c.l.b16 %v292
    %v645 = vunpack.c.h.b16 %v292
    %v646 = vunpack.c.l.b16 %v293
    %v647 = vunpack.c.h.b16 %v293
    %v648 = vunpack.c.l.b16 %v294
    %v649 = vunpack.c.h.b16 %v294
    %v650 = vunpack.c.l.b16 %v295
    %v651 = vunpack.c.h.b16 %v295
    %v652 = vunpack.c.l.b16 %v296
    %v653 = vunpack.c.h.b16 %v296
    %v654 = vunpack.c.l.b16 %v297
    %v655 = vunpack.c.h.b16 %v297
    %v656 = vunpack.c.l.b16 %v298
    %v657 = vunpack.c.h.b16 %v298
    %v658 = vunpack.c.l.b16 %v299
    %v659 = vunpack.c.h.b16 %v299
    %v660 = vunpack.c.l.b16 %v300
    %v661 = vunpack.c.h.b16 %v300
    %v662 = vunpack.c.l.b16 %v301
    %v663 = vunpack.c.h.b16 %v301
    %v664 = vunpack.c.l.b16 %v302
    %v665 = vunpack.c.h.b16 %v302
    %v666 = vunpack.c.l.b16 %v303
    %v667 = vunpack.c.h.b16 %v303
    %v668 = vunpack.c.l.b16 %v304
    %v669 = vunpack.c.h.b16 %v304
    %v670 = vunpack.c.l.b16 %v305
    %v671 = vunpack.c.h.b16 %v305
    %v672 = vunpack.c.l.b16 %v306
    %v673 = vunpack.c.h.b16 %v306
    %v674 = vunpack.c.l.b16 %v307
    %v675 = vunpack.c.h.b16 %v307
    %v676 = vunpack.c.l.b16 %v308
    %v677 = vunpack.c.h.b16 %v308
    %v678 = vunpack.c.l.b16 %v309
    %v679 = vunpack.c.h.b16 %v309
    %v680 = vunpack.c.l.b16 %v310
    %v681 = vunpack.c.h.b16 %v310
    %v682 = vunpack.c.l.b16 %v311
    %v683 = vunpack.c.h.b16 %v311
    %v684 = vunpack.c.l.b16 %v312
    %v685 = vunpack.c.h.b16 %v312
    %v686 = vunpack.c.l.b16 %v313
    %v687 = vunpack.c.h.b16 %v313
    %v688 = vunpack.c.l.b16 %v314
    %v689 = vunpack.c.h.b16 %v314
    %v690 = vunpack.c.l.b16 %v315
    %v691 = vunpack.c.h.b16 %v315
    %v692 = vunpack.c.l.b16 %v316
    %v693 = vunpack.c.h.b16 %v316
    %v694 = vunpack.c.l.b16 %v317
    %v695 = vunpack.c.h.b16 %v317
    %v696 = vunpack.c.l.b16 %v318
    %v697 = vunpack.c.h.b16 %v318
    %v698 = vunpack.c.l.b16 %v319
    %v699 = vunpack.c.h.b16 %v319
    %v700 = vunpack.c.l.b16 %v320
    %v701 = vunpack.c.h.b16 %v320
    %v702 = vunpack.c.l.b16 %v321
    %v703 = vunpack.c.h.b16 %v321
    %v704 = vunpack.c.l.b16 %v322
    %v705 = vunpack.c.h.b16 %v322
    %v706 = vunpack.c.l.b16 %v323
    %v707 = vunpack.c.h.b16 %v323
    %v708 = vunpack.c.l.b16 %v324
    %v709 = vunpack.c.h.b16 %v324
    %v710 = vunpack.c.l.b16 %v325
    %v711 = vunpack.c.h.b16 %v325
    %v712 = vunpack.c.l.b16 %v326
    %v713 = vunpack.c.h.b16 %v326
    %v714 = vunpack.c.l.b16 %v327
    %v715 = vunpack.c.h.b16 %v327
    %v716 = vunpack.c.l.b16 %v328
    %v717 = vunpack.c.h.b16 %v328
    %v718 = vunpack.c.l.b16 %v329
    %v719 = vunpack.c.h.b16 %v329
    %v720 = vunpack.c.l.b16 %v330
    %v721 = vunpack.c.h.b16 %v330
    %v722 = vunpack.c.l.b16 %v331
    %v723 = vunpack.c.h.b16 %v331
    %v724 = vunpack.c.l.b16 %v332
    %v725 = vunpack.c.h.b16 %v332
    %v726 = vunpack.c.l.b16 %v333
    %v727 = vunpack.c.h.b16 %v333
    %v728 = vunpack.c.l.b16 %v334
    %v729 = vunpack.c.h.b16 %v334
    %v730 = vunpack.c.l.b16 %v335
    %v731 = vunpack.c.h.b16 %v335
    %v732 = vunpack.c.l.b16 %v336
    %v733 = vunpack.c.h.b16 %v336
    %v734 = vunpack.c.l.b16 %v337
    %v735 = vunpack.c.h.b16 %v337
    %v736 = vunpack.c.l.b16 %v338
    %v737 = vunpack.c.h.b16 %v338
    %v738 = vunpack.c.l.b16 %v339
    %v739 = vunpack.c.h.b16 %v339
    %v740 = vunpack.c.l.b16 %v340
    %v741 = vunpack.c.h.b16 %v340
    %v742 = vunpack.c.l.b16 %v341
    %v743 = vunpack.c.h.b16 %v341
    %v744 = vunpack.c.l.b16 %v342
    %v745 = vunpack.c.h.b16 %v342
    %v746 = vunpack.c.l.b16 %v343
    %v747 = vunpack.c.h.b16 %v343
    %v748 = vunpack.c.l.b16 %v344
    %v749 = vunpack.c.h.b16 %v344
    %v750 = vunpack.c.l.b16 %v345
    %v751 = vunpack.c.h.b16 %v345
    %v752 = vunpack.c.l.b16 %v346
    %v753 = vunpack.c.h.b16 %v346
    %v754 = vunpack.c.l.b16 %v347
    %v755 = vunpack.c.h.b16 %v347
    %v756 = vunpack.c.l.b16 %v348
    %v757 = vunpack.c.h.b16 %v348
    %v758 = vunpack.c.l.b16 %v349
    %v759 = vunpack.c.h.b16 %v349
    %v760 = vunpack.c.l.b16 %v350
    %v761 = vunpack.c.h.b16 %v350
    %v762 = vunpack.c.l.b16 %v351
    %v763 = vunpack.c.h.b16 %v351
    %v764 = vunpack.c.l.b16 %v352
    %v765 = vunpack.c.h.b16 %v352
    %v766 = vunpack.c.l.b16 %v353
    %v767 = vunpack.c.h.b16 %v353
    %v768 = vunpack.c.l.b16 %v354
    %v769 = vunpack.c.h.b16 %v354
    %v770 = vunpack.c.l.b16 %v355
    %v771 = vunpack.c.h.b16 %v355
    %v772 = vunpack.c.l.b16 %v356
    %v773 = vunpack.c.h.b16 %v356
    %v774 = vunpack.c.l.b16 %v357
    %v775 = vunpack.c.h.b16 %v357
    %v776 = vunpack.c.l.b16 %v358
    %v777 = vunpack.c.h.b16 %v358
    %v778 = vunpack.c.l.b16 %v359
    %v779 = vunpack.c.h.b16 %v359
    %v780 = vunpack.c.l.b16 %v360
    %v781 = vunpack.c.h.b16 %v360
    %v782 = vunpack.c.l.b16 %v361
    %v783 = vunpack.c.h.b16 %v361
    %v784 = vunpack.c.l.b16 %v362
    %v785 = vunpack.c.h.b16 %v362
    %v786 = vunpack.c.l.b16 %v363
    %v787 = vunpack.c.h.b16 %v363
    %v788 = vunpack.c.l.b16 %v364
    %v789 = vunpack.c.h.b16 %v364
    %v790 = vunpack.c.l.b16 %v365
    %v791 = vunpack.c.h.b16 %v365
    %v792 = vpack.c.b16 %v544, %v536
    %v793 = vpack.c.b16 %v545, %v537
    %v794 = vpack.c.b16 %v546, %v538
    %v795 = vpack.c.b16 %v547, %v539
    %v796 = vpack.c.b16 %v548, %v540
    %v797 = vpack.c.b16 %v549, %v541
    %v798 = vpack.c.b16 %v550, %v542
    %v799 = vpack.c.b16 %v551, %v543
    %v800 = vpack.c.b16 %v560, %v552
    %v801 = vpack.c.b16 %v561, %v553
    %v802 = vpack.c.b16 %v562, %v554
    %v803 = vpack.c.b16 %v563, %v555
    %v804 = vpack.c.b16 %v564, %v556
    %v805 = vpack.c.b16 %v565, %v557
    %v806 = vpack.c.b16 %v566, %v558
    %v807 = vpack.c.b16 %v567, %v559
    %v808 = vpack.c.b16 %v576, %v568
    %v809 = vpack.c.b16 %v577, %v569
    %v810 = vpack.c.b16 %v578, %v570
    %v811 = vpack.c.b16 %v579, %v571
    %v812 = vpack.c.b16 %v580, %v572
    %v813 = vpack.c.b16 %v581, %v573
    %v814 = vpack.c.b16 %v582, %v574
    %v815 = vpack.c.b16 %v583, %v575
    %v816 = vpack.c.b16 %v592, %v584
    %v817 = vpack.c.b16 %v593, %v585
    %v818 = vpack.c.b16 %v594, %v586
    %v819 = vpack.c.b16 %v595, %v587
    %v820 = vpack.c.b16 %v596, %v588
    %v821 = vpack.c.b16 %v597, %v589
    %v822 = vpack.c.b16 %v598, %v590
    %v823 = vpack.c.b16 %v599, %v591
    %v824 = vpack.c.b16 %v608, %v600
    %v825 = vpack.c.b16 %v609, %v601
    %v826 = vpack.c.b16 %v610, %v602
    %v827 = vpack.c.b16 %v611, %v603
    %v828 = vpack.c.b16 %v612, %v604
    %v829 = vpack.c.b16 %v613, %v605
    %v830 = vpack.c.b16 %v614, %v606
    %v831 = vpack.c.b16 %v615, %v607
    %v832 = vpack.c.b16 %v624, %v616
    %v833 = vpack.c.b16 %v625, %v617
    %v834 = vpack.c.b16 %v626, %v618
    %v835 = vpack.c.b16 %v627, %v619
    %v836 = vpack.c.b16 %v628, %v620
    %v837 = vpack.c.b16 %v629, %v621
    %v838 = vpack.c.b16 %v630, %v622
    %v839 = vpack.c.b16 %v631, %v623
    %v840 = vpack.c.b16 %v640, %v632
    %v841 = vpack.c.b16 %v641, %v633
    %v842 = vpack.c.b16 %v642, %v634
    %v843 = vpack.c.b16 %v643, %v635
    %v844 = vpack.c.b16 %v644, %v636
    %v845 = vpack.c.b16 %v645, %v637
    %v846 = vpack.c.b16 %v646, %v638
    %v847 = vpack.c.b16 %v647, %v639
    %v848 = vpack.c.b16 %v656, %v648
    %v849 = vpack.c.b16 %v657, %v649
    %v850 = vpack.c.b16 %v658, %v650
    %v851 = vpack.c.b16 %v659, %v651
    %v852 = vpack.c.b16 %v660, %v652
    %v853 = vpack.c.b16 %v661, %v653
    %v854 = vpack.c.b16 %v662, %v654
    %v855 = vpack.c.b16 %v663, %v655
    %v856 = vpack.c.b16 %v672, %v664
    %v857 = vpack.c.b16 %v673, %v665
    %v858 = vpack.c.b16 %v674, %v666
    %v859 = vpack.c.b16 %v675, %v667
    %v860 = vpack.c.b16 %v676, %v668
    %v861 = vpack.c.b16 %v677, %v669
    %v862 = vpack.c.b16 %v678, %v670
    %v863 = vpack.c.b16 %v679, %v671
    %v864 = vpack.c.b16 %v688, %v680
    %v865 = vpack.c.b16 %v689, %v681
    %v866 = vpack.c.b16 %v690, %v682
    %v867 = vpack.c.b16 %v691, %v683
    %v868 = vpack.c.b16 %v692, %v684
    %v869 = vpack.c.b16 %v693, %v685
    %v870 = vpack.c.b16 %v694, %v686
    %v871 = vpack.c.b16 %v695, %v687
    %v872 = vpack.c.b16 %v704, %v696
    %v873 = vpack.c.b16 %v705, %v697
    %v874 = vpack.c.b16 %v706, %v698
    %v875 = vpack.c.b16 %v707, %v699
    %v876 = vpack.c.b16 %v708, %v700
    %v877 = vpack.c.b16 %v709, %v701
    %v878 = vpack.c.b16 %v710, %v702
    %v879 = vpack.c.b16 %v711, %v703
    %v880 = vpack.c.b16 %v720, %v712
    %v881 = vpack.c.b16 %v721, %v713
    %v882 = vpack.c.b16 %v722, %v714
    %v883 = vpack.c.b16 %v723, %v715
    %v884 = vpack.c.b16 %v724, %v716
    %v885 = vpack.c.b16 %v725, %v717
    %v886 = vpack.c.b16 %v726, %v718
    %v887 = vpack.c.b16 %v727, %v719
    %v888 = vpack.c.b16 %v736, %v728
    %v889 = vpack.c.b16 %v737, %v729
    %v890 = vpack.c.b16 %v738, %v730
    %v891 = vpack.c.b16 %v739, %v731
    %v892 = vpack.c.b16 %v740, %v732
    %v893 = vpack.c.b16 %v741, %v733
    %v894 = vpack.c.b16 %v742, %v734
    %v895 = vpack.c.b16 %v743, %v735
    %v896 = vpack.c.b16 %v752, %v744
    %v897 = vpack.c.b16 %v753, %v745
    %v898 = vpack.c.b16 %v754, %v746
    %v899 = vpack.c.b16 %v755, %v747
    %v900 = vpack.c.b16 %v756, %v748
    %v901 = vpack.c.b16 %v757, %v749
    %v902 = vpack.c.b16 %v758, %v750
    %v903 = vpack.c.b16 %v759, %v751
    %v904 = vpack.c.b16 %v768, %v760
    %v905 = vpack.c.b16 %v769, %v761
    %v906 = vpack.c.b16 %v770, %v762
    %v907 = vpack.c.b16 %v771, %v763
    %v908 = vpack.c.b16 %v772, %v764
    %v909 = vpack.c.b16 %v773, %v765
    %v910 = vpack.c.b16 %v774, %v766
    %v911 = vpack.c.b16 %v775, %v767
    %v912 = vpack.c.b16 %v784, %v776
    %v913 = vpack.c.b16 %v785, %v777
    %v914 = vpack.c.b16 %v786, %v778
    %v915 = vpack.c.b16 %v787, %v779
    %v916 = vpack.c.b16 %v788, %v780
    %v917 = vpack.c.b16 %v789, %v781
    %v918 = vpack.c.b16 %v790, %v782
    %v919 = vpack.c.b16 %v791, %v783
    %1048 = vmatprep.subr.bf16.mxu0 %v849
    %1049 = vmatpush1.bf16.msra.mxu0 %v848
    %1050 = vmatprep.subr.bf16.mxu0 %v841
    %1051 = vmatpush1.bf16.msra.mxu0 %v840
    %1052 = vmatprep.subr.bf16.mxu0 %v833
    %1053 = vmatpush1.bf16.msra.mxu0 %v832
    %1054 = vmatprep.subr.bf16.mxu0 %v825
    %1055 = vmatpush1.bf16.msra.mxu0 %v824
    %1056 = vmatprep.subr.bf16.mxu0 %v817
    %1057 = vmatpush1.bf16.msra.mxu0 %v816
    %1058 = vmatprep.subr.bf16.mxu0 %v809
    %1059 = vmatpush1.bf16.msra.mxu0 %v808
    %1060 = vmatprep.subr.bf16.mxu0 %v801
    %1061 = vmatpush1.bf16.msra.mxu0 %v800
    %1062 = vmatprep.subr.bf16.mxu0 %v793
    %1063 = vmatpush1.bf16.msra.mxu0 %v792
    %1064 = vmatprep.subr.bf16.mxu0 %v913
    %1065 = vmatpush2.bf16.msra.mxu0 %v912
    %1066 = vmatprep.subr.bf16.mxu0 %v905
    %1067 = vmatpush2.bf16.msra.mxu0 %v904
    %1068 = vmatprep.subr.bf16.mxu0 %v897
    %1069 = vmatpush2.bf16.msra.mxu0 %v896
    %1070 = vmatprep.subr.bf16.mxu0 %v889
    %1071 = vmatpush2.bf16.msra.mxu0 %v888
    %1072 = vmatprep.subr.bf16.mxu0 %v881
    %1073 = vmatpush2.bf16.msra.mxu0 %v880
    %1074 = vmatprep.subr.bf16.mxu0 %v873
    %1075 = vmatpush2.bf16.msra.mxu0 %v872
    %1076 = vmatprep.subr.bf16.mxu0 %v865
    %1077 = vmatpush2.bf16.msra.mxu0 %v864
    %1078 = vmatprep.subr.bf16.mxu0 %v857
    %1079 = vmatpush2.bf16.msra.mxu0 %v856
    %1080 = vmatprep.mubr.bf16.mxu0 %v237
    %1081 = vmatmul.mubr.bf16.gmra.mxu0 %v236
    %v1082 = vpop.f32.mrf.mxu0
    %v1083 = vadd.f32 %v371, %v1082
    %v1084 = vpop.f32.mrf.mxu0
    %v1085 = vadd.f32 %v375, %v1084
    %v1086 = vpop.f32.mrf.mxu0
    %v1087 = vpop.f32.mrf.mxu0
    %1088 = vdwg.mxu0
    %1089 = vmatprep.subr.bf16.mxu0 %v851
    %1090 = vmatpush1.bf16.msra.mxu0 %v850
    %1091 = vmatprep.subr.bf16.mxu0 %v843
    %1092 = vmatpush1.bf16.msra.mxu0 %v842
    %1093 = vmatprep.subr.bf16.mxu0 %v835
    %1094 = vmatpush1.bf16.msra.mxu0 %v834
    %1095 = vmatprep.subr.bf16.mxu0 %v827
    %1096 = vmatpush1.bf16.msra.mxu0 %v826
    %1097 = vmatprep.subr.bf16.mxu0 %v819
    %1098 = vmatpush1.bf16.msra.mxu0 %v818
    %1099 = vmatprep.subr.bf16.mxu0 %v811
    %1100 = vmatpush1.bf16.msra.mxu0 %v810
    %1101 = vmatprep.subr.bf16.mxu0 %v803
    %1102 = vmatpush1.bf16.msra.mxu0 %v802
    %1103 = vmatprep.subr.bf16.mxu0 %v795
    %1104 = vmatpush1.bf16.msra.mxu0 %v794
    %1105 = vmatprep.subr.bf16.mxu0 %v915
    %1106 = vmatpush2.bf16.msra.mxu0 %v914
    %1107 = vmatprep.subr.bf16.mxu0 %v907
    %1108 = vmatpush2.bf16.msra.mxu0 %v906
    %1109 = vmatprep.subr.bf16.mxu0 %v899
    %1110 = vmatpush2.bf16.msra.mxu0 %v898
    %1111 = vmatprep.subr.bf16.mxu0 %v891
    %1112 = vmatpush2.bf16.msra.mxu0 %v890
    %1113 = vmatprep.subr.bf16.mxu0 %v883
    %1114 = vmatpush2.bf16.msra.mxu0 %v882
    %1115 = vmatprep.subr.bf16.mxu0 %v875
    %1116 = vmatpush2.bf16.msra.mxu0 %v874
    %1117 = vmatprep.subr.bf16.mxu0 %v867
    %1118 = vmatpush2.bf16.msra.mxu0 %v866
    %1119 = vmatprep.subr.bf16.mxu0 %v859
    %1120 = vmatpush2.bf16.msra.mxu0 %v858
    %1121 = vmatprep.mubr.bf16.mxu0 %v237
    %1122 = vmatmul.mubr.bf16.gmra.mxu0 %v236
    %v1123 = vpop.f32.mrf.mxu0
    %v1124 = vadd.f32 %v379, %v1123
    %v1125 = vpop.f32.mrf.mxu0
    %v1126 = vadd.f32 %v383, %v1125
    %v1127 = vpop.f32.mrf.mxu0
    %v1128 = vpop.f32.mrf.mxu0
    %1129 = vdwg.mxu0
    %1130 = vmatprep.subr.bf16.mxu0 %v853
    %1131 = vmatpush1.bf16.msra.mxu0 %v852
    %1132 = vmatprep.subr.bf16.mxu0 %v845
    %1133 = vmatpush1.bf16.msra.mxu0 %v844
    %1134 = vmatprep.subr.bf16.mxu0 %v837
    %1135 = vmatpush1.bf16.msra.mxu0 %v836
    %1136 = vmatprep.subr.bf16.mxu0 %v829
    %1137 = vmatpush1.bf16.msra.mxu0 %v828
    %1138 = vmatprep.subr.bf16.mxu0 %v821
    %1139 = vmatpush1.bf16.msra.mxu0 %v820
    %1140 = vmatprep.subr.bf16.mxu0 %v813
    %1141 = vmatpush1.bf16.msra.mxu0 %v812
    %1142 = vmatprep.subr.bf16.mxu0 %v805
    %1143 = vmatpush1.bf16.msra.mxu0 %v804
    %1144 = vmatprep.subr.bf16.mxu0 %v797
    %1145 = vmatpush1.bf16.msra.mxu0 %v796
    %1146 = vmatprep.subr.bf16.mxu0 %v917
    %1147 = vmatpush2.bf16.msra.mxu0 %v916
    %1148 = vmatprep.subr.bf16.mxu0 %v909
    %1149 = vmatpush2.bf16.msra.mxu0 %v908
    %1150 = vmatprep.subr.bf16.mxu0 %v901
    %1151 = vmatpush2.bf16.msra.mxu0 %v900
    %1152 = vmatprep.subr.bf16.mxu0 %v893
    %1153 = vmatpush2.bf16.msra.mxu0 %v892
    %1154 = vmatprep.subr.bf16.mxu0 %v885
    %1155 = vmatpush2.bf16.msra.mxu0 %v884
    %1156 = vmatprep.subr.bf16.mxu0 %v877
    %1157 = vmatpush2.bf16.msra.mxu0 %v876
    %1158 = vmatprep.subr.bf16.mxu0 %v869
    %1159 = vmatpush2.bf16.msra.mxu0 %v868
    %1160 = vmatprep.subr.bf16.mxu0 %v861
    %1161 = vmatpush2.bf16.msra.mxu0 %v860
    %1162 = vmatprep.mubr.bf16.mxu0 %v237
    %1163 = vmatmul.mubr.bf16.gmra.mxu0 %v236
    %v1164 = vpop.f32.mrf.mxu0
    %v1165 = vadd.f32 %v387, %v1164
    %v1166 = vpop.f32.mrf.mxu0
    %v1167 = vadd.f32 %v391, %v1166
    %v1168 = vpop.f32.mrf.mxu0
    %v1169 = vpop.f32.mrf.mxu0
    %1170 = vdwg.mxu0
    %1171 = vmatprep.subr.bf16.mxu0 %v855
    %1172 = vmatpush1.bf16.msra.mxu0 %v854
    %1173 = vmatprep.subr.bf16.mxu0 %v847
    %1174 = vmatpush1.bf16.msra.mxu0 %v846
    %1175 = vmatprep.subr.bf16.mxu0 %v839
    %1176 = vmatpush1.bf16.msra.mxu0 %v838
    %1177 = vmatprep.subr.bf16.mxu0 %v831
    %1178 = vmatpush1.bf16.msra.mxu0 %v830
    %1179 = vmatprep.subr.bf16.mxu0 %v823
    %1180 = vmatpush1.bf16.msra.mxu0 %v822
    %1181 = vmatprep.subr.bf16.mxu0 %v815
    %1182 = vmatpush1.bf16.msra.mxu0 %v814
    %1183 = vmatprep.subr.bf16.mxu0 %v807
    %1184 = vmatpush1.bf16.msra.mxu0 %v806
    %1185 = vmatprep.subr.bf16.mxu0 %v799
    %1186 = vmatpush1.bf16.msra.mxu0 %v798
    %1187 = vmatprep.subr.bf16.mxu0 %v919
    %1188 = vmatpush2.bf16.msra.mxu0 %v918
    %1189 = vmatprep.subr.bf16.mxu0 %v911
    %1190 = vmatpush2.bf16.msra.mxu0 %v910
    %1191 = vmatprep.subr.bf16.mxu0 %v903
    %1192 = vmatpush2.bf16.msra.mxu0 %v902
    %1193 = vmatprep.subr.bf16.mxu0 %v895
    %1194 = vmatpush2.bf16.msra.mxu0 %v894
    %1195 = vmatprep.subr.bf16.mxu0 %v887
    %1196 = vmatpush2.bf16.msra.mxu0 %v886
    %1197 = vmatprep.subr.bf16.mxu0 %v879
    %1198 = vmatpush2.bf16.msra.mxu0 %v878
    %1199 = vmatprep.subr.bf16.mxu0 %v871
    %1200 = vmatpush2.bf16.msra.mxu0 %v870
    %1201 = vmatprep.subr.bf16.mxu0 %v863
    %1202 = vmatpush2.bf16.msra.mxu0 %v862
    %1203 = vmatprep.mubr.bf16.mxu0 %v237
    %1204 = vmatmul.mubr.bf16.gmra.mxu0 %v236
    %v1205 = vpop.f32.mrf.mxu0
    %v1206 = vadd.f32 %v395, %v1205
    %v1207 = vpop.f32.mrf.mxu0
    %v1208 = vadd.f32 %v399, %v1207
    %v1209 = vpop.f32.mrf.mxu0
    %v1210 = vpop.f32.mrf.mxu0
    %1211 = vdwg.mxu0
    %v1212 = vtanh.pop %v1083
    %v1213 = vtanh.pop %v1085
    %v1214 = vtanh.pop %v1124
    %v1215 = vtanh.pop %v1126
    %v1216 = vtanh.pop %v1165
    %v1217 = vtanh.pop %v1167
    %v1218 = vtanh.pop %v1206
    %v1219 = vtanh.pop %v1208
    %v1220 = vpack.c.bf16 %v1212, %v1212
    %v1221 = vpack.c.bf16 %v1213, %v1213
    %v1222 = vpack.c.bf16 %v1214, %v1214
    %v1223 = vpack.c.bf16 %v1215, %v1215
    %v1224 = vpack.c.bf16 %v1216, %v1216
    %v1225 = vpack.c.bf16 %v1217, %v1217
    %v1226 = vpack.c.bf16 %v1218, %v1218
    %v1227 = vpack.c.bf16 %v1219, %v1219
    %v1228 = vld [vmem:[#allocation11] sm:$0xff]
    %v1229 = vld [vmem:[#allocation11 + $0x8] sm:$0xff]
    %v1230 = vld [vmem:[#allocation11 + $0x10] sm:$0xff]
    %v1231 = vld [vmem:[#allocation11 + $0x18] sm:$0xff]
    %v1232 = vld [vmem:[#allocation11 + $0x20] sm:$0xff]
    %v1233 = vld [vmem:[#allocation11 + $0x28] sm:$0xff]
    %v1234 = vld [vmem:[#allocation11 + $0x30] sm:$0xff]
    %v1235 = vld [vmem:[#allocation11 + $0x38] sm:$0xff]
    %v1236 = vld [vmem:[#allocation11 + $0x40] sm:$0xff]
    %v1237 = vld [vmem:[#allocation11 + $0x48] sm:$0xff]
    %v1238 = vld [vmem:[#allocation11 + $0x50] sm:$0xff]
    %v1239 = vld [vmem:[#allocation11 + $0x58] sm:$0xff]
    %v1240 = vld [vmem:[#allocation11 + $0x60] sm:$0xff]
    %v1241 = vld [vmem:[#allocation11 + $0x68] sm:$0xff]
    %v1242 = vld [vmem:[#allocation11 + $0x70] sm:$0xff]
    %v1243 = vld [vmem:[#allocation11 + $0x78] sm:$0xff]
    %v1244 = vld [vmem:[#allocation11 + $0x80] sm:$0xff]
    %v1245 = vld [vmem:[#allocation11 + $0x88] sm:$0xff]
    %v1246 = vld [vmem:[#allocation11 + $0x90] sm:$0xff]
    %v1247 = vld [vmem:[#allocation11 + $0x98] sm:$0xff]
    %v1248 = vld [vmem:[#allocation11 + $0xa0] sm:$0xff]
    %v1249 = vld [vmem:[#allocation11 + $0xa8] sm:$0xff]
    %v1250 = vld [vmem:[#allocation11 + $0xb0] sm:$0xff]
    %v1251 = vld [vmem:[#allocation11 + $0xb8] sm:$0xff]
    %v1252 = vld [vmem:[#allocation11 + $0xc0] sm:$0xff]
    %v1253 = vld [vmem:[#allocation11 + $0xc8] sm:$0xff]
    %v1254 = vld [vmem:[#allocation11 + $0xd0] sm:$0xff]
    %v1255 = vld [vmem:[#allocation11 + $0xd8] sm:$0xff]
    %v1256 = vld [vmem:[#allocation11 + $0xe0] sm:$0xff]
    %v1257 = vld [vmem:[#allocation11 + $0xe8] sm:$0xff]
    %v1258 = vld [vmem:[#allocation11 + $0xf0] sm:$0xff]
    %v1259 = vld [vmem:[#allocation11 + $0xf8] sm:$0xff]
    %v1260 = vld [vmem:[#allocation11 + $0x100] sm:$0xff]
    %v1261 = vld [vmem:[#allocation11 + $0x108] sm:$0xff]
    %v1262 = vld [vmem:[#allocation11 + $0x110] sm:$0xff]
    %v1263 = vld [vmem:[#allocation11 + $0x118] sm:$0xff]
    %v1264 = vld [vmem:[#allocation11 + $0x120] sm:$0xff]
    %v1265 = vld [vmem:[#allocation11 + $0x128] sm:$0xff]
    %v1266 = vld [vmem:[#allocation11 + $0x130] sm:$0xff]
    %v1267 = vld [vmem:[#allocation11 + $0x138] sm:$0xff]
    %v1268 = vld [vmem:[#allocation11 + $0x140] sm:$0xff]
    %v1269 = vld [vmem:[#allocation11 + $0x148] sm:$0xff]
    %v1270 = vld [vmem:[#allocation11 + $0x150] sm:$0xff]
    %v1271 = vld [vmem:[#allocation11 + $0x158] sm:$0xff]
    %v1272 = vld [vmem:[#allocation11 + $0x160] sm:$0xff]
    %v1273 = vld [vmem:[#allocation11 + $0x168] sm:$0xff]
    %v1274 = vld [vmem:[#allocation11 + $0x170] sm:$0xff]
    %v1275 = vld [vmem:[#allocation11 + $0x178] sm:$0xff]
    %v1276 = vld [vmem:[#allocation11 + $0x180] sm:$0xff]
    %v1277 = vld [vmem:[#allocation11 + $0x188] sm:$0xff]
    %v1278 = vld [vmem:[#allocation11 + $0x190] sm:$0xff]
    %v1279 = vld [vmem:[#allocation11 + $0x198] sm:$0xff]
    %v1280 = vld [vmem:[#allocation11 + $0x1a0] sm:$0xff]
    %v1281 = vld [vmem:[#allocation11 + $0x1a8] sm:$0xff]
    %v1282 = vld [vmem:[#allocation11 + $0x1b0] sm:$0xff]
    %v1283 = vld [vmem:[#allocation11 + $0x1b8] sm:$0xff]
    %v1284 = vld [vmem:[#allocation11 + $0x1c0] sm:$0xff]
    %v1285 = vld [vmem:[#allocation11 + $0x1c8] sm:$0xff]
    %v1286 = vld [vmem:[#allocation11 + $0x1d0] sm:$0xff]
    %v1287 = vld [vmem:[#allocation11 + $0x1d8] sm:$0xff]
    %v1288 = vld [vmem:[#allocation11 + $0x1e0] sm:$0xff]
    %v1289 = vld [vmem:[#allocation11 + $0x1e8] sm:$0xff]
    %v1290 = vld [vmem:[#allocation11 + $0x1f0] sm:$0xff]
    %v1291 = vld [vmem:[#allocation11 + $0x1f8] sm:$0xff]
    %v1292 = vld [vmem:[#allocation11 + $0x200] sm:$0xff]
    %v1293 = vld [vmem:[#allocation11 + $0x208] sm:$0xff]
    %v1294 = vld [vmem:[#allocation11 + $0x210] sm:$0xff]
    %v1295 = vld [vmem:[#allocation11 + $0x218] sm:$0xff]
    %v1296 = vld [vmem:[#allocation11 + $0x220] sm:$0xff]
    %v1297 = vld [vmem:[#allocation11 + $0x228] sm:$0xff]
    %v1298 = vld [vmem:[#allocation11 + $0x230] sm:$0xff]
    %v1299 = vld [vmem:[#allocation11 + $0x238] sm:$0xff]
    %v1300 = vld [vmem:[#allocation11 + $0x240] sm:$0xff]
    %v1301 = vld [vmem:[#allocation11 + $0x248] sm:$0xff]
    %v1302 = vld [vmem:[#allocation11 + $0x250] sm:$0xff]
    %v1303 = vld [vmem:[#allocation11 + $0x258] sm:$0xff]
    %v1304 = vld [vmem:[#allocation11 + $0x260] sm:$0xff]
    %v1305 = vld [vmem:[#allocation11 + $0x268] sm:$0xff]
    %v1306 = vld [vmem:[#allocation11 + $0x270] sm:$0xff]
    %v1307 = vld [vmem:[#allocation11 + $0x278] sm:$0xff]
    %v1308 = vld [vmem:[#allocation11 + $0x280] sm:$0xff]
    %v1309 = vld [vmem:[#allocation11 + $0x288] sm:$0xff]
    %v1310 = vld [vmem:[#allocation11 + $0x290] sm:$0xff]
    %v1311 = vld [vmem:[#allocation11 + $0x298] sm:$0xff]
    %v1312 = vld [vmem:[#allocation11 + $0x2a0] sm:$0xff]
    %v1313 = vld [vmem:[#allocation11 + $0x2a8] sm:$0xff]
    %v1314 = vld [vmem:[#allocation11 + $0x2b0] sm:$0xff]
    %v1315 = vld [vmem:[#allocation11 + $0x2b8] sm:$0xff]
    %v1316 = vld [vmem:[#allocation11 + $0x2c0] sm:$0xff]
    %v1317 = vld [vmem:[#allocation11 + $0x2c8] sm:$0xff]
    %v1318 = vld [vmem:[#allocation11 + $0x2d0] sm:$0xff]
    %v1319 = vld [vmem:[#allocation11 + $0x2d8] sm:$0xff]
    %v1320 = vld [vmem:[#allocation11 + $0x2e0] sm:$0xff]
    %v1321 = vld [vmem:[#allocation11 + $0x2e8] sm:$0xff]
    %v1322 = vld [vmem:[#allocation11 + $0x2f0] sm:$0xff]
    %v1323 = vld [vmem:[#allocation11 + $0x2f8] sm:$0xff]
    %v1324 = vld [vmem:[#allocation11 + $0x300] sm:$0xff]
    %v1325 = vld [vmem:[#allocation11 + $0x308] sm:$0xff]
    %v1326 = vld [vmem:[#allocation11 + $0x310] sm:$0xff]
    %v1327 = vld [vmem:[#allocation11 + $0x318] sm:$0xff]
    %v1328 = vld [vmem:[#allocation11 + $0x320] sm:$0xff]
    %v1329 = vld [vmem:[#allocation11 + $0x328] sm:$0xff]
    %v1330 = vld [vmem:[#allocation11 + $0x330] sm:$0xff]
    %v1331 = vld [vmem:[#allocation11 + $0x338] sm:$0xff]
    %v1332 = vld [vmem:[#allocation11 + $0x340] sm:$0xff]
    %v1333 = vld [vmem:[#allocation11 + $0x348] sm:$0xff]
    %v1334 = vld [vmem:[#allocation11 + $0x350] sm:$0xff]
    %v1335 = vld [vmem:[#allocation11 + $0x358] sm:$0xff]
    %v1336 = vld [vmem:[#allocation11 + $0x360] sm:$0xff]
    %v1337 = vld [vmem:[#allocation11 + $0x368] sm:$0xff]
    %v1338 = vld [vmem:[#allocation11 + $0x370] sm:$0xff]
    %v1339 = vld [vmem:[#allocation11 + $0x378] sm:$0xff]
    %v1340 = vld [vmem:[#allocation11 + $0x380] sm:$0xff]
    %v1341 = vld [vmem:[#allocation11 + $0x388] sm:$0xff]
    %v1342 = vld [vmem:[#allocation11 + $0x390] sm:$0xff]
    %v1343 = vld [vmem:[#allocation11 + $0x398] sm:$0xff]
    %v1344 = vld [vmem:[#allocation11 + $0x3a0] sm:$0xff]
    %v1345 = vld [vmem:[#allocation11 + $0x3a8] sm:$0xff]
    %v1346 = vld [vmem:[#allocation11 + $0x3b0] sm:$0xff]
    %v1347 = vld [vmem:[#allocation11 + $0x3b8] sm:$0xff]
    %v1348 = vld [vmem:[#allocation11 + $0x3c0] sm:$0xff]
    %v1349 = vld [vmem:[#allocation11 + $0x3c8] sm:$0xff]
    %v1350 = vld [vmem:[#allocation11 + $0x3d0] sm:$0xff]
    %v1351 = vld [vmem:[#allocation11 + $0x3d8] sm:$0xff]
    %v1352 = vld [vmem:[#allocation11 + $0x3e0] sm:$0xff]
    %v1353 = vld [vmem:[#allocation11 + $0x3e8] sm:$0xff]
    %v1354 = vld [vmem:[#allocation11 + $0x3f0] sm:$0xff]
    %v1355 = vld [vmem:[#allocation11 + $0x3f8] sm:$0xff]
    %v1356 = vld [vmem:[#allocation11 + $0x400] sm:$0xff]
    %v1357 = vld [vmem:[#allocation11 + $0x408] sm:$0xff]
    %v1358 = vld [vmem:[#allocation11 + $0x410] sm:$0xff]
    %v1359 = vld [vmem:[#allocation11 + $0x418] sm:$0xff]
    %v1360 = vld [vmem:[#allocation11 + $0x420] sm:$0xff]
    %v1361 = vld [vmem:[#allocation11 + $0x428] sm:$0xff]
    %v1362 = vld [vmem:[#allocation11 + $0x430] sm:$0xff]
    %v1363 = vld [vmem:[#allocation11 + $0x438] sm:$0xff]
    %v1364 = vld [vmem:[#allocation11 + $0x440] sm:$0xff]
    %v1365 = vld [vmem:[#allocation11 + $0x448] sm:$0xff]
    %v1366 = vld [vmem:[#allocation11 + $0x450] sm:$0xff]
    %v1367 = vld [vmem:[#allocation11 + $0x458] sm:$0xff]
    %v1368 = vld [vmem:[#allocation11 + $0x460] sm:$0xff]
    %v1369 = vld [vmem:[#allocation11 + $0x468] sm:$0xff]
    %v1370 = vld [vmem:[#allocation11 + $0x470] sm:$0xff]
    %v1371 = vld [vmem:[#allocation11 + $0x478] sm:$0xff]
    %v1372 = vld [vmem:[#allocation11 + $0x480] sm:$0xff]
    %v1373 = vld [vmem:[#allocation11 + $0x488] sm:$0xff]
    %v1374 = vld [vmem:[#allocation11 + $0x490] sm:$0xff]
    %v1375 = vld [vmem:[#allocation11 + $0x498] sm:$0xff]
    %v1376 = vld [vmem:[#allocation11 + $0x4a0] sm:$0xff]
    %v1377 = vld [vmem:[#allocation11 + $0x4a8] sm:$0xff]
    %v1378 = vld [vmem:[#allocation11 + $0x4b0] sm:$0xff]
    %v1379 = vld [vmem:[#allocation11 + $0x4b8] sm:$0xff]
    %v1380 = vld [vmem:[#allocation11 + $0x4c0] sm:$0xff]
    %v1381 = vld [vmem:[#allocation11 + $0x4c8] sm:$0xff]
    %v1382 = vld [vmem:[#allocation11 + $0x4d0] sm:$0xff]
    %v1383 = vld [vmem:[#allocation11 + $0x4d8] sm:$0xff]
    %v1384 = vld [vmem:[#allocation11 + $0x4e0] sm:$0xff]
    %v1385 = vld [vmem:[#allocation11 + $0x4e8] sm:$0xff]
    %v1386 = vld [vmem:[#allocation11 + $0x4f0] sm:$0xff]
    %v1387 = vld [vmem:[#allocation11 + $0x4f8] sm:$0xff]
    %v1388 = vld [vmem:[#allocation11 + $0x500] sm:$0xff]
    %v1389 = vld [vmem:[#allocation11 + $0x508] sm:$0xff]
    %v1390 = vld [vmem:[#allocation11 + $0x510] sm:$0xff]
    %v1391 = vld [vmem:[#allocation11 + $0x518] sm:$0xff]
    %v1392 = vld [vmem:[#allocation11 + $0x520] sm:$0xff]
    %v1393 = vld [vmem:[#allocation11 + $0x528] sm:$0xff]
    %v1394 = vld [vmem:[#allocation11 + $0x530] sm:$0xff]
    %v1395 = vld [vmem:[#allocation11 + $0x538] sm:$0xff]
    %v1396 = vld [vmem:[#allocation11 + $0x540] sm:$0xff]
    %v1397 = vld [vmem:[#allocation11 + $0x548] sm:$0xff]
    %v1398 = vld [vmem:[#allocation11 + $0x550] sm:$0xff]
    %v1399 = vld [vmem:[#allocation11 + $0x558] sm:$0xff]
    %v1400 = vld [vmem:[#allocation11 + $0x560] sm:$0xff]
    %v1401 = vld [vmem:[#allocation11 + $0x568] sm:$0xff]
    %v1402 = vld [vmem:[#allocation11 + $0x570] sm:$0xff]
    %v1403 = vld [vmem:[#allocation11 + $0x578] sm:$0xff]
    %v1404 = vld [vmem:[#allocation11 + $0x580] sm:$0xff]
    %v1405 = vld [vmem:[#allocation11 + $0x588] sm:$0xff]
    %v1406 = vld [vmem:[#allocation11 + $0x590] sm:$0xff]
    %v1407 = vld [vmem:[#allocation11 + $0x598] sm:$0xff]
    %v1408 = vld [vmem:[#allocation11 + $0x5a0] sm:$0xff]
    %v1409 = vld [vmem:[#allocation11 + $0x5a8] sm:$0xff]
    %v1410 = vld [vmem:[#allocation11 + $0x5b0] sm:$0xff]
    %v1411 = vld [vmem:[#allocation11 + $0x5b8] sm:$0xff]
    %v1412 = vld [vmem:[#allocation11 + $0x5c0] sm:$0xff]
    %v1413 = vld [vmem:[#allocation11 + $0x5c8] sm:$0xff]
    %v1414 = vld [vmem:[#allocation11 + $0x5d0] sm:$0xff]
    %v1415 = vld [vmem:[#allocation11 + $0x5d8] sm:$0xff]
    %v1416 = vld [vmem:[#allocation11 + $0x5e0] sm:$0xff]
    %v1417 = vld [vmem:[#allocation11 + $0x5e8] sm:$0xff]
    %v1418 = vld [vmem:[#allocation11 + $0x5f0] sm:$0xff]
    %v1419 = vld [vmem:[#allocation11 + $0x5f8] sm:$0xff]
    %v1420 = vld [vmem:[#allocation11 + $0x600] sm:$0xff]
    %v1421 = vld [vmem:[#allocation11 + $0x608] sm:$0xff]
    %v1422 = vld [vmem:[#allocation11 + $0x610] sm:$0xff]
    %v1423 = vld [vmem:[#allocation11 + $0x618] sm:$0xff]
    %v1424 = vld [vmem:[#allocation11 + $0x620] sm:$0xff]
    %v1425 = vld [vmem:[#allocation11 + $0x628] sm:$0xff]
    %v1426 = vld [vmem:[#allocation11 + $0x630] sm:$0xff]
    %v1427 = vld [vmem:[#allocation11 + $0x638] sm:$0xff]
    %v1428 = vld [vmem:[#allocation11 + $0x640] sm:$0xff]
    %v1429 = vld [vmem:[#allocation11 + $0x648] sm:$0xff]
    %v1430 = vld [vmem:[#allocation11 + $0x650] sm:$0xff]
    %v1431 = vld [vmem:[#allocation11 + $0x658] sm:$0xff]
    %v1432 = vld [vmem:[#allocation11 + $0x660] sm:$0xff]
    %v1433 = vld [vmem:[#allocation11 + $0x668] sm:$0xff]
    %v1434 = vld [vmem:[#allocation11 + $0x670] sm:$0xff]
    %v1435 = vld [vmem:[#allocation11 + $0x678] sm:$0xff]
    %v1436 = vld [vmem:[#allocation11 + $0x680] sm:$0xff]
    %v1437 = vld [vmem:[#allocation11 + $0x688] sm:$0xff]
    %v1438 = vld [vmem:[#allocation11 + $0x690] sm:$0xff]
    %v1439 = vld [vmem:[#allocation11 + $0x698] sm:$0xff]
    %v1440 = vld [vmem:[#allocation11 + $0x6a0] sm:$0xff]
    %v1441 = vld [vmem:[#allocation11 + $0x6a8] sm:$0xff]
    %v1442 = vld [vmem:[#allocation11 + $0x6b0] sm:$0xff]
    %v1443 = vld [vmem:[#allocation11 + $0x6b8] sm:$0xff]
    %v1444 = vld [vmem:[#allocation11 + $0x6c0] sm:$0xff]
    %v1445 = vld [vmem:[#allocation11 + $0x6c8] sm:$0xff]
    %v1446 = vld [vmem:[#allocation11 + $0x6d0] sm:$0xff]
    %v1447 = vld [vmem:[#allocation11 + $0x6d8] sm:$0xff]
    %v1448 = vld [vmem:[#allocation11 + $0x6e0] sm:$0xff]
    %v1449 = vld [vmem:[#allocation11 + $0x6e8] sm:$0xff]
    %v1450 = vld [vmem:[#allocation11 + $0x6f0] sm:$0xff]
    %v1451 = vld [vmem:[#allocation11 + $0x6f8] sm:$0xff]
    %v1452 = vld [vmem:[#allocation11 + $0x700] sm:$0xff]
    %v1453 = vld [vmem:[#allocation11 + $0x708] sm:$0xff]
    %v1454 = vld [vmem:[#allocation11 + $0x710] sm:$0xff]
    %v1455 = vld [vmem:[#allocation11 + $0x718] sm:$0xff]
    %v1456 = vld [vmem:[#allocation11 + $0x720] sm:$0xff]
    %v1457 = vld [vmem:[#allocation11 + $0x728] sm:$0xff]
    %v1458 = vld [vmem:[#allocation11 + $0x730] sm:$0xff]
    %v1459 = vld [vmem:[#allocation11 + $0x738] sm:$0xff]
    %v1460 = vld [vmem:[#allocation11 + $0x740] sm:$0xff]
    %v1461 = vld [vmem:[#allocation11 + $0x748] sm:$0xff]
    %v1462 = vld [vmem:[#allocation11 + $0x750] sm:$0xff]
    %v1463 = vld [vmem:[#allocation11 + $0x758] sm:$0xff]
    %v1464 = vld [vmem:[#allocation11 + $0x760] sm:$0xff]
    %v1465 = vld [vmem:[#allocation11 + $0x768] sm:$0xff]
    %v1466 = vld [vmem:[#allocation11 + $0x770] sm:$0xff]
    %v1467 = vld [vmem:[#allocation11 + $0x778] sm:$0xff]
    %v1468 = vld [vmem:[#allocation11 + $0x780] sm:$0xff]
    %v1469 = vld [vmem:[#allocation11 + $0x788] sm:$0xff]
    %v1470 = vld [vmem:[#allocation11 + $0x790] sm:$0xff]
    %v1471 = vld [vmem:[#allocation11 + $0x798] sm:$0xff]
    %v1472 = vld [vmem:[#allocation11 + $0x7a0] sm:$0xff]
    %v1473 = vld [vmem:[#allocation11 + $0x7a8] sm:$0xff]
    %v1474 = vld [vmem:[#allocation11 + $0x7b0] sm:$0xff]
    %v1475 = vld [vmem:[#allocation11 + $0x7b8] sm:$0xff]
    %v1476 = vld [vmem:[#allocation11 + $0x7c0] sm:$0xff]
    %v1477 = vld [vmem:[#allocation11 + $0x7c8] sm:$0xff]
    %v1478 = vld [vmem:[#allocation11 + $0x7d0] sm:$0xff]
    %v1479 = vld [vmem:[#allocation11 + $0x7d8] sm:$0xff]
    %v1480 = vld [vmem:[#allocation11 + $0x7e0] sm:$0xff]
    %v1481 = vld [vmem:[#allocation11 + $0x7e8] sm:$0xff]
    %v1482 = vld [vmem:[#allocation11 + $0x7f0] sm:$0xff]
    %v1483 = vld [vmem:[#allocation11 + $0x7f8] sm:$0xff]
    %v1484 = vld [vmem:[#allocation11 + $0x800] sm:$0xff]
    %v1485 = vld [vmem:[#allocation11 + $0x808] sm:$0xff]
    %v1486 = vld [vmem:[#allocation11 + $0x810] sm:$0xff]
    %v1487 = vld [vmem:[#allocation11 + $0x818] sm:$0xff]
    %v1488 = vld [vmem:[#allocation11 + $0x820] sm:$0xff]
    %v1489 = vld [vmem:[#allocation11 + $0x828] sm:$0xff]
    %v1490 = vld [vmem:[#allocation11 + $0x830] sm:$0xff]
    %v1491 = vld [vmem:[#allocation11 + $0x838] sm:$0xff]
    %v1492 = vld [vmem:[#allocation11 + $0x840] sm:$0xff]
    %v1493 = vld [vmem:[#allocation11 + $0x848] sm:$0xff]
    %v1494 = vld [vmem:[#allocation11 + $0x850] sm:$0xff]
    %v1495 = vld [vmem:[#allocation11 + $0x858] sm:$0xff]
    %v1496 = vld [vmem:[#allocation11 + $0x860] sm:$0xff]
    %v1497 = vld [vmem:[#allocation11 + $0x868] sm:$0xff]
    %v1498 = vld [vmem:[#allocation11 + $0x870] sm:$0xff]
    %v1499 = vld [vmem:[#allocation11 + $0x878] sm:$0xff]
    %v1500 = vld [vmem:[#allocation11 + $0x880] sm:$0xff]
    %v1501 = vld [vmem:[#allocation11 + $0x888] sm:$0xff]
    %v1502 = vld [vmem:[#allocation11 + $0x890] sm:$0xff]
    %v1503 = vld [vmem:[#allocation11 + $0x898] sm:$0xff]
    %v1504 = vld [vmem:[#allocation11 + $0x8a0] sm:$0xff]
    %v1505 = vld [vmem:[#allocation11 + $0x8a8] sm:$0xff]
    %v1506 = vld [vmem:[#allocation11 + $0x8b0] sm:$0xff]
    %v1507 = vld [vmem:[#allocation11 + $0x8b8] sm:$0xff]
    %v1508 = vld [vmem:[#allocation11 + $0x8c0] sm:$0xff]
    %v1509 = vld [vmem:[#allocation11 + $0x8c8] sm:$0xff]
    %v1510 = vld [vmem:[#allocation11 + $0x8d0] sm:$0xff]
    %v1511 = vld [vmem:[#allocation11 + $0x8d8] sm:$0xff]
    %v1512 = vld [vmem:[#allocation11 + $0x8e0] sm:$0xff]
    %v1513 = vld [vmem:[#allocation11 + $0x8e8] sm:$0xff]
    %v1514 = vld [vmem:[#allocation11 + $0x8f0] sm:$0xff]
    %v1515 = vld [vmem:[#allocation11 + $0x8f8] sm:$0xff]
    %v1516 = vld [vmem:[#allocation11 + $0x900] sm:$0xff]
    %v1517 = vld [vmem:[#allocation11 + $0x908] sm:$0xff]
    %v1518 = vld [vmem:[#allocation11 + $0x910] sm:$0xff]
    %v1519 = vld [vmem:[#allocation11 + $0x918] sm:$0xff]
    %v1520 = vld [vmem:[#allocation11 + $0x920] sm:$0xff]
    %v1521 = vld [vmem:[#allocation11 + $0x928] sm:$0xff]
    %v1522 = vld [vmem:[#allocation11 + $0x930] sm:$0xff]
    %v1523 = vld [vmem:[#allocation11 + $0x938] sm:$0xff]
    %v1524 = vld [vmem:[#allocation11 + $0x940] sm:$0xff]
    %v1525 = vld [vmem:[#allocation11 + $0x948] sm:$0xff]
    %v1526 = vld [vmem:[#allocation11 + $0x950] sm:$0xff]
    %v1527 = vld [vmem:[#allocation11 + $0x958] sm:$0xff]
    %v1528 = vld [vmem:[#allocation11 + $0x960] sm:$0xff]
    %v1529 = vld [vmem:[#allocation11 + $0x968] sm:$0xff]
    %v1530 = vld [vmem:[#allocation11 + $0x970] sm:$0xff]
    %v1531 = vld [vmem:[#allocation11 + $0x978] sm:$0xff]
    %v1532 = vld [vmem:[#allocation11 + $0x980] sm:$0xff]
    %v1533 = vld [vmem:[#allocation11 + $0x988] sm:$0xff]
    %v1534 = vld [vmem:[#allocation11 + $0x990] sm:$0xff]
    %v1535 = vld [vmem:[#allocation11 + $0x998] sm:$0xff]
    %v1536 = vld [vmem:[#allocation11 + $0x9a0] sm:$0xff]
    %v1537 = vld [vmem:[#allocation11 + $0x9a8] sm:$0xff]
    %v1538 = vld [vmem:[#allocation11 + $0x9b0] sm:$0xff]
    %v1539 = vld [vmem:[#allocation11 + $0x9b8] sm:$0xff]
    %v1540 = vld [vmem:[#allocation11 + $0x9c0] sm:$0xff]
    %v1541 = vld [vmem:[#allocation11 + $0x9c8] sm:$0xff]
    %v1542 = vld [vmem:[#allocation11 + $0x9d0] sm:$0xff]
    %v1543 = vld [vmem:[#allocation11 + $0x9d8] sm:$0xff]
    %v1544 = vld [vmem:[#allocation11 + $0x9e0] sm:$0xff]
    %v1545 = vld [vmem:[#allocation11 + $0x9e8] sm:$0xff]
    %v1546 = vld [vmem:[#allocation11 + $0x9f0] sm:$0xff]
    %v1547 = vld [vmem:[#allocation11 + $0x9f8] sm:$0xff]
    %v1548 = vld [vmem:[#allocation11 + $0xa00] sm:$0xff]
    %v1549 = vld [vmem:[#allocation11 + $0xa08] sm:$0xff]
    %v1550 = vld [vmem:[#allocation11 + $0xa10] sm:$0xff]
    %v1551 = vld [vmem:[#allocation11 + $0xa18] sm:$0xff]
    %v1552 = vld [vmem:[#allocation11 + $0xa20] sm:$0xff]
    %v1553 = vld [vmem:[#allocation11 + $0xa28] sm:$0xff]
    %v1554 = vld [vmem:[#allocation11 + $0xa30] sm:$0xff]
    %v1555 = vld [vmem:[#allocation11 + $0xa38] sm:$0xff]
    %v1556 = vld [vmem:[#allocation11 + $0xa40] sm:$0xff]
    %v1557 = vld [vmem:[#allocation11 + $0xa48] sm:$0xff]
    %v1558 = vld [vmem:[#allocation11 + $0xa50] sm:$0xff]
    %v1559 = vld [vmem:[#allocation11 + $0xa58] sm:$0xff]
    %v1560 = vld [vmem:[#allocation11 + $0xa60] sm:$0xff]
    %v1561 = vld [vmem:[#allocation11 + $0xa68] sm:$0xff]
    %v1562 = vld [vmem:[#allocation11 + $0xa70] sm:$0xff]
    %v1563 = vld [vmem:[#allocation11 + $0xa78] sm:$0xff]
    %v1564 = vld [vmem:[#allocation11 + $0xa80] sm:$0xff]
    %v1565 = vld [vmem:[#allocation11 + $0xa88] sm:$0xff]
    %v1566 = vld [vmem:[#allocation11 + $0xa90] sm:$0xff]
    %v1567 = vld [vmem:[#allocation11 + $0xa98] sm:$0xff]
    %v1568 = vld [vmem:[#allocation11 + $0xaa0] sm:$0xff]
    %v1569 = vld [vmem:[#allocation11 + $0xaa8] sm:$0xff]
    %v1570 = vld [vmem:[#allocation11 + $0xab0] sm:$0xff]
    %v1571 = vld [vmem:[#allocation11 + $0xab8] sm:$0xff]
    %v1572 = vld [vmem:[#allocation11 + $0xac0] sm:$0xff]
    %v1573 = vld [vmem:[#allocation11 + $0xac8] sm:$0xff]
    %v1574 = vld [vmem:[#allocation11 + $0xad0] sm:$0xff]
    %v1575 = vld [vmem:[#allocation11 + $0xad8] sm:$0xff]
    %v1576 = vld [vmem:[#allocation11 + $0xae0] sm:$0xff]
    %v1577 = vld [vmem:[#allocation11 + $0xae8] sm:$0xff]
    %v1578 = vld [vmem:[#allocation11 + $0xaf0] sm:$0xff]
    %v1579 = vld [vmem:[#allocation11 + $0xaf8] sm:$0xff]
    %v1580 = vld [vmem:[#allocation11 + $0xb00] sm:$0xff]
    %v1581 = vld [vmem:[#allocation11 + $0xb08] sm:$0xff]
    %v1582 = vld [vmem:[#allocation11 + $0xb10] sm:$0xff]
    %v1583 = vld [vmem:[#allocation11 + $0xb18] sm:$0xff]
    %v1584 = vld [vmem:[#allocation11 + $0xb20] sm:$0xff]
    %v1585 = vld [vmem:[#allocation11 + $0xb28] sm:$0xff]
    %v1586 = vld [vmem:[#allocation11 + $0xb30] sm:$0xff]
    %v1587 = vld [vmem:[#allocation11 + $0xb38] sm:$0xff]
    %v1588 = vld [vmem:[#allocation11 + $0xb40] sm:$0xff]
    %v1589 = vld [vmem:[#allocation11 + $0xb48] sm:$0xff]
    %v1590 = vld [vmem:[#allocation11 + $0xb50] sm:$0xff]
    %v1591 = vld [vmem:[#allocation11 + $0xb58] sm:$0xff]
    %v1592 = vld [vmem:[#allocation11 + $0xb60] sm:$0xff]
    %v1593 = vld [vmem:[#allocation11 + $0xb68] sm:$0xff]
    %v1594 = vld [vmem:[#allocation11 + $0xb70] sm:$0xff]
    %v1595 = vld [vmem:[#allocation11 + $0xb78] sm:$0xff]
    %v1596 = vld [vmem:[#allocation11 + $0xb80] sm:$0xff]
    %v1597 = vld [vmem:[#allocation11 + $0xb88] sm:$0xff]
    %v1598 = vld [vmem:[#allocation11 + $0xb90] sm:$0xff]
    %v1599 = vld [vmem:[#allocation11 + $0xb98] sm:$0xff]
    %v1600 = vld [vmem:[#allocation11 + $0xba0] sm:$0xff]
    %v1601 = vld [vmem:[#allocation11 + $0xba8] sm:$0xff]
    %v1602 = vld [vmem:[#allocation11 + $0xbb0] sm:$0xff]
    %v1603 = vld [vmem:[#allocation11 + $0xbb8] sm:$0xff]
    %v1604 = vld [vmem:[#allocation11 + $0xbc0] sm:$0xff]
    %v1605 = vld [vmem:[#allocation11 + $0xbc8] sm:$0xff]
    %v1606 = vld [vmem:[#allocation11 + $0xbd0] sm:$0xff]
    %v1607 = vld [vmem:[#allocation11 + $0xbd8] sm:$0xff]
    %v1608 = vld [vmem:[#allocation11 + $0xbe0] sm:$0xff]
    %v1609 = vld [vmem:[#allocation11 + $0xbe8] sm:$0xff]
    %v1610 = vld [vmem:[#allocation11 + $0xbf0] sm:$0xff]
    %v1611 = vld [vmem:[#allocation11 + $0xbf8] sm:$0xff]
    %v1612 = vld [vmem:[#allocation11 + $0xc00] sm:$0xff]
    %v1613 = vld [vmem:[#allocation11 + $0xc08] sm:$0xff]
    %v1614 = vld [vmem:[#allocation11 + $0xc10] sm:$0xff]
    %v1615 = vld [vmem:[#allocation11 + $0xc18] sm:$0xff]
    %v1616 = vld [vmem:[#allocation11 + $0xc20] sm:$0xff]
    %v1617 = vld [vmem:[#allocation11 + $0xc28] sm:$0xff]
    %v1618 = vld [vmem:[#allocation11 + $0xc30] sm:$0xff]
    %v1619 = vld [vmem:[#allocation11 + $0xc38] sm:$0xff]
    %v1620 = vld [vmem:[#allocation11 + $0xc40] sm:$0xff]
    %v1621 = vld [vmem:[#allocation11 + $0xc48] sm:$0xff]
    %v1622 = vld [vmem:[#allocation11 + $0xc50] sm:$0xff]
    %v1623 = vld [vmem:[#allocation11 + $0xc58] sm:$0xff]
    %v1624 = vld [vmem:[#allocation11 + $0xc60] sm:$0xff]
    %v1625 = vld [vmem:[#allocation11 + $0xc68] sm:$0xff]
    %v1626 = vld [vmem:[#allocation11 + $0xc70] sm:$0xff]
    %v1627 = vld [vmem:[#allocation11 + $0xc78] sm:$0xff]
    %v1628 = vld [vmem:[#allocation11 + $0xc80] sm:$0xff]
    %v1629 = vld [vmem:[#allocation11 + $0xc88] sm:$0xff]
    %v1630 = vld [vmem:[#allocation11 + $0xc90] sm:$0xff]
    %v1631 = vld [vmem:[#allocation11 + $0xc98] sm:$0xff]
    %v1632 = vld [vmem:[#allocation11 + $0xca0] sm:$0xff]
    %v1633 = vld [vmem:[#allocation11 + $0xca8] sm:$0xff]
    %v1634 = vld [vmem:[#allocation11 + $0xcb0] sm:$0xff]
    %v1635 = vld [vmem:[#allocation11 + $0xcb8] sm:$0xff]
    %v1636 = vld [vmem:[#allocation11 + $0xcc0] sm:$0xff]
    %v1637 = vld [vmem:[#allocation11 + $0xcc8] sm:$0xff]
    %v1638 = vld [vmem:[#allocation11 + $0xcd0] sm:$0xff]
    %v1639 = vld [vmem:[#allocation11 + $0xcd8] sm:$0xff]
    %v1640 = vld [vmem:[#allocation11 + $0xce0] sm:$0xff]
    %v1641 = vld [vmem:[#allocation11 + $0xce8] sm:$0xff]
    %v1642 = vld [vmem:[#allocation11 + $0xcf0] sm:$0xff]
    %v1643 = vld [vmem:[#allocation11 + $0xcf8] sm:$0xff]
    %v1644 = vld [vmem:[#allocation11 + $0xd00] sm:$0xff]
    %v1645 = vld [vmem:[#allocation11 + $0xd08] sm:$0xff]
    %v1646 = vld [vmem:[#allocation11 + $0xd10] sm:$0xff]
    %v1647 = vld [vmem:[#allocation11 + $0xd18] sm:$0xff]
    %v1648 = vld [vmem:[#allocation11 + $0xd20] sm:$0xff]
    %v1649 = vld [vmem:[#allocation11 + $0xd28] sm:$0xff]
    %v1650 = vld [vmem:[#allocation11 + $0xd30] sm:$0xff]
    %v1651 = vld [vmem:[#allocation11 + $0xd38] sm:$0xff]
    %v1652 = vld [vmem:[#allocation11 + $0xd40] sm:$0xff]
    %v1653 = vld [vmem:[#allocation11 + $0xd48] sm:$0xff]
    %v1654 = vld [vmem:[#allocation11 + $0xd50] sm:$0xff]
    %v1655 = vld [vmem:[#allocation11 + $0xd58] sm:$0xff]
    %v1656 = vld [vmem:[#allocation11 + $0xd60] sm:$0xff]
    %v1657 = vld [vmem:[#allocation11 + $0xd68] sm:$0xff]
    %v1658 = vld [vmem:[#allocation11 + $0xd70] sm:$0xff]
    %v1659 = vld [vmem:[#allocation11 + $0xd78] sm:$0xff]
    %v1660 = vld [vmem:[#allocation11 + $0xd80] sm:$0xff]
    %v1661 = vld [vmem:[#allocation11 + $0xd88] sm:$0xff]
    %v1662 = vld [vmem:[#allocation11 + $0xd90] sm:$0xff]
    %v1663 = vld [vmem:[#allocation11 + $0xd98] sm:$0xff]
    %v1664 = vld [vmem:[#allocation11 + $0xda0] sm:$0xff]
    %v1665 = vld [vmem:[#allocation11 + $0xda8] sm:$0xff]
    %v1666 = vld [vmem:[#allocation11 + $0xdb0] sm:$0xff]
    %v1667 = vld [vmem:[#allocation11 + $0xdb8] sm:$0xff]
    %v1668 = vld [vmem:[#allocation11 + $0xdc0] sm:$0xff]
    %v1669 = vld [vmem:[#allocation11 + $0xdc8] sm:$0xff]
    %v1670 = vld [vmem:[#allocation11 + $0xdd0] sm:$0xff]
    %v1671 = vld [vmem:[#allocation11 + $0xdd8] sm:$0xff]
    %v1672 = vld [vmem:[#allocation11 + $0xde0] sm:$0xff]
    %v1673 = vld [vmem:[#allocation11 + $0xde8] sm:$0xff]
    %v1674 = vld [vmem:[#allocation11 + $0xdf0] sm:$0xff]
    %v1675 = vld [vmem:[#allocation11 + $0xdf8] sm:$0xff]
    %v1676 = vld [vmem:[#allocation11 + $0xe00] sm:$0xff]
    %v1677 = vld [vmem:[#allocation11 + $0xe08] sm:$0xff]
    %v1678 = vld [vmem:[#allocation11 + $0xe10] sm:$0xff]
    %v1679 = vld [vmem:[#allocation11 + $0xe18] sm:$0xff]
    %v1680 = vld [vmem:[#allocation11 + $0xe20] sm:$0xff]
    %v1681 = vld [vmem:[#allocation11 + $0xe28] sm:$0xff]
    %v1682 = vld [vmem:[#allocation11 + $0xe30] sm:$0xff]
    %v1683 = vld [vmem:[#allocation11 + $0xe38] sm:$0xff]
    %v1684 = vld [vmem:[#allocation11 + $0xe40] sm:$0xff]
    %v1685 = vld [vmem:[#allocation11 + $0xe48] sm:$0xff]
    %v1686 = vld [vmem:[#allocation11 + $0xe50] sm:$0xff]
    %v1687 = vld [vmem:[#allocation11 + $0xe58] sm:$0xff]
    %v1688 = vld [vmem:[#allocation11 + $0xe60] sm:$0xff]
    %v1689 = vld [vmem:[#allocation11 + $0xe68] sm:$0xff]
    %v1690 = vld [vmem:[#allocation11 + $0xe70] sm:$0xff]
    %v1691 = vld [vmem:[#allocation11 + $0xe78] sm:$0xff]
    %v1692 = vld [vmem:[#allocation11 + $0xe80] sm:$0xff]
    %v1693 = vld [vmem:[#allocation11 + $0xe88] sm:$0xff]
    %v1694 = vld [vmem:[#allocation11 + $0xe90] sm:$0xff]
    %v1695 = vld [vmem:[#allocation11 + $0xe98] sm:$0xff]
    %v1696 = vld [vmem:[#allocation11 + $0xea0] sm:$0xff]
    %v1697 = vld [vmem:[#allocation11 + $0xea8] sm:$0xff]
    %v1698 = vld [vmem:[#allocation11 + $0xeb0] sm:$0xff]
    %v1699 = vld [vmem:[#allocation11 + $0xeb8] sm:$0xff]
    %v1700 = vld [vmem:[#allocation11 + $0xec0] sm:$0xff]
    %v1701 = vld [vmem:[#allocation11 + $0xec8] sm:$0xff]
    %v1702 = vld [vmem:[#allocation11 + $0xed0] sm:$0xff]
    %v1703 = vld [vmem:[#allocation11 + $0xed8] sm:$0xff]
    %v1704 = vld [vmem:[#allocation11 + $0xee0] sm:$0xff]
    %v1705 = vld [vmem:[#allocation11 + $0xee8] sm:$0xff]
    %v1706 = vld [vmem:[#allocation11 + $0xef0] sm:$0xff]
    %v1707 = vld [vmem:[#allocation11 + $0xef8] sm:$0xff]
    %v1708 = vld [vmem:[#allocation11 + $0xf00] sm:$0xff]
    %v1709 = vld [vmem:[#allocation11 + $0xf08] sm:$0xff]
    %v1710 = vld [vmem:[#allocation11 + $0xf10] sm:$0xff]
    %v1711 = vld [vmem:[#allocation11 + $0xf18] sm:$0xff]
    %v1712 = vld [vmem:[#allocation11 + $0xf20] sm:$0xff]
    %v1713 = vld [vmem:[#allocation11 + $0xf28] sm:$0xff]
    %v1714 = vld [vmem:[#allocation11 + $0xf30] sm:$0xff]
    %v1715 = vld [vmem:[#allocation11 + $0xf38] sm:$0xff]
    %v1716 = vld [vmem:[#allocation11 + $0xf40] sm:$0xff]
    %v1717 = vld [vmem:[#allocation11 + $0xf48] sm:$0xff]
    %v1718 = vld [vmem:[#allocation11 + $0xf50] sm:$0xff]
    %v1719 = vld [vmem:[#allocation11 + $0xf58] sm:$0xff]
    %v1720 = vld [vmem:[#allocation11 + $0xf60] sm:$0xff]
    %v1721 = vld [vmem:[#allocation11 + $0xf68] sm:$0xff]
    %v1722 = vld [vmem:[#allocation11 + $0xf70] sm:$0xff]
    %v1723 = vld [vmem:[#allocation11 + $0xf78] sm:$0xff]
    %v1724 = vld [vmem:[#allocation11 + $0xf80] sm:$0xff]
    %v1725 = vld [vmem:[#allocation11 + $0xf88] sm:$0xff]
    %v1726 = vld [vmem:[#allocation11 + $0xf90] sm:$0xff]
    %v1727 = vld [vmem:[#allocation11 + $0xf98] sm:$0xff]
    %v1728 = vld [vmem:[#allocation11 + $0xfa0] sm:$0xff]
    %v1729 = vld [vmem:[#allocation11 + $0xfa8] sm:$0xff]
    %v1730 = vld [vmem:[#allocation11 + $0xfb0] sm:$0xff]
    %v1731 = vld [vmem:[#allocation11 + $0xfb8] sm:$0xff]
    %v1732 = vld [vmem:[#allocation11 + $0xfc0] sm:$0xff]
    %v1733 = vld [vmem:[#allocation11 + $0xfc8] sm:$0xff]
    %v1734 = vld [vmem:[#allocation11 + $0xfd0] sm:$0xff]
    %v1735 = vld [vmem:[#allocation11 + $0xfd8] sm:$0xff]
    %v1736 = vld [vmem:[#allocation11 + $0xfe0] sm:$0xff]
    %v1737 = vld [vmem:[#allocation11 + $0xfe8] sm:$0xff]
    %v1738 = vld [vmem:[#allocation11 + $0xff0] sm:$0xff]
    %v1739 = vld [vmem:[#allocation11 + $0xff8] sm:$0xff]
    %v1740 = vld [vmem:[#allocation13] sm:$0xff]
    %v1742 = vlaneseq
    %v1743 = vshrl.u32 %v1742, 7
    %v1744 = vsub.s32 0, %v1743
    %v1745 = vrot.slane %v1740, %v1744
    %v1746 = vlaneseq
    %v1747 = vshrl.u32 %v1746, 7
    %v1748 = vsub.s32 1, %v1747
    %v1749 = vrot.slane %v1740, %v1748
    %v1750 = vlaneseq
    %v1751 = vshrl.u32 %v1750, 7
    %v1752 = vsub.s32 2, %v1751
    %v1753 = vrot.slane %v1740, %v1752
    %v1754 = vlaneseq
    %v1755 = vshrl.u32 %v1754, 7
    %v1756 = vsub.s32 3, %v1755
    %v1757 = vrot.slane %v1740, %v1756
    %v1758 = vlaneseq
    %v1759 = vshrl.u32 %v1758, 7
    %v1760 = vsub.s32 4, %v1759
    %v1761 = vrot.slane %v1740, %v1760
    %v1762 = vlaneseq
    %v1763 = vshrl.u32 %v1762, 7
    %v1764 = vsub.s32 5, %v1763
    %v1765 = vrot.slane %v1740, %v1764
    %v1766 = vlaneseq
    %v1767 = vshrl.u32 %v1766, 7
    %v1768 = vsub.s32 6, %v1767
    %v1769 = vrot.slane %v1740, %v1768
    %v1770 = vlaneseq
    %v1771 = vshrl.u32 %v1770, 7
    %v1772 = vsub.s32 7, %v1771
    %v1773 = vrot.slane %v1740, %v1772
    %v2294 = vunpack.c.l.b16 %v1228
    %v2295 = vunpack.c.h.b16 %v1228
    %v2296 = vunpack.c.l.b16 %v1229
    %v2297 = vunpack.c.h.b16 %v1229
    %v2298 = vunpack.c.l.b16 %v1230
    %v2299 = vunpack.c.h.b16 %v1230
    %v2300 = vunpack.c.l.b16 %v1231
    %v2301 = vunpack.c.h.b16 %v1231
    %v2302 = vunpack.c.l.b16 %v1232
    %v2303 = vunpack.c.h.b16 %v1232
    %v2304 = vunpack.c.l.b16 %v1233
    %v2305 = vunpack.c.h.b16 %v1233
    %v2306 = vunpack.c.l.b16 %v1234
    %v2307 = vunpack.c.h.b16 %v1234
    %v2308 = vunpack.c.l.b16 %v1235
    %v2309 = vunpack.c.h.b16 %v1235
    %v2310 = vunpack.c.l.b16 %v1236
    %v2311 = vunpack.c.h.b16 %v1236
    %v2312 = vunpack.c.l.b16 %v1237
    %v2313 = vunpack.c.h.b16 %v1237
    %v2314 = vunpack.c.l.b16 %v1238
    %v2315 = vunpack.c.h.b16 %v1238
    %v2316 = vunpack.c.l.b16 %v1239
    %v2317 = vunpack.c.h.b16 %v1239
    %v2318 = vunpack.c.l.b16 %v1240
    %v2319 = vunpack.c.h.b16 %v1240
    %v2320 = vunpack.c.l.b16 %v1241
    %v2321 = vunpack.c.h.b16 %v1241
    %v2322 = vunpack.c.l.b16 %v1242
    %v2323 = vunpack.c.h.b16 %v1242
    %v2324 = vunpack.c.l.b16 %v1243
    %v2325 = vunpack.c.h.b16 %v1243
    %v2326 = vunpack.c.l.b16 %v1244
    %v2327 = vunpack.c.h.b16 %v1244
    %v2328 = vunpack.c.l.b16 %v1245
    %v2329 = vunpack.c.h.b16 %v1245
    %v2330 = vunpack.c.l.b16 %v1246
    %v2331 = vunpack.c.h.b16 %v1246
    %v2332 = vunpack.c.l.b16 %v1247
    %v2333 = vunpack.c.h.b16 %v1247
    %v2334 = vunpack.c.l.b16 %v1248
    %v2335 = vunpack.c.h.b16 %v1248
    %v2336 = vunpack.c.l.b16 %v1249
    %v2337 = vunpack.c.h.b16 %v1249
    %v2338 = vunpack.c.l.b16 %v1250
    %v2339 = vunpack.c.h.b16 %v1250
    %v2340 = vunpack.c.l.b16 %v1251
    %v2341 = vunpack.c.h.b16 %v1251
    %v2342 = vunpack.c.l.b16 %v1252
    %v2343 = vunpack.c.h.b16 %v1252
    %v2344 = vunpack.c.l.b16 %v1253
    %v2345 = vunpack.c.h.b16 %v1253
    %v2346 = vunpack.c.l.b16 %v1254
    %v2347 = vunpack.c.h.b16 %v1254
    %v2348 = vunpack.c.l.b16 %v1255
    %v2349 = vunpack.c.h.b16 %v1255
    %v2350 = vunpack.c.l.b16 %v1256
    %v2351 = vunpack.c.h.b16 %v1256
    %v2352 = vunpack.c.l.b16 %v1257
    %v2353 = vunpack.c.h.b16 %v1257
    %v2354 = vunpack.c.l.b16 %v1258
    %v2355 = vunpack.c.h.b16 %v1258
    %v2356 = vunpack.c.l.b16 %v1259
    %v2357 = vunpack.c.h.b16 %v1259
    %v2358 = vunpack.c.l.b16 %v1260
    %v2359 = vunpack.c.h.b16 %v1260
    %v2360 = vunpack.c.l.b16 %v1261
    %v2361 = vunpack.c.h.b16 %v1261
    %v2362 = vunpack.c.l.b16 %v1262
    %v2363 = vunpack.c.h.b16 %v1262
    %v2364 = vunpack.c.l.b16 %v1263
    %v2365 = vunpack.c.h.b16 %v1263
    %v2366 = vunpack.c.l.b16 %v1264
    %v2367 = vunpack.c.h.b16 %v1264
    %v2368 = vunpack.c.l.b16 %v1265
    %v2369 = vunpack.c.h.b16 %v1265
    %v2370 = vunpack.c.l.b16 %v1266
    %v2371 = vunpack.c.h.b16 %v1266
    %v2372 = vunpack.c.l.b16 %v1267
    %v2373 = vunpack.c.h.b16 %v1267
    %v2374 = vunpack.c.l.b16 %v1268
    %v2375 = vunpack.c.h.b16 %v1268
    %v2376 = vunpack.c.l.b16 %v1269
    %v2377 = vunpack.c.h.b16 %v1269
    %v2378 = vunpack.c.l.b16 %v1270
    %v2379 = vunpack.c.h.b16 %v1270
    %v2380 = vunpack.c.l.b16 %v1271
    %v2381 = vunpack.c.h.b16 %v1271
    %v2382 = vunpack.c.l.b16 %v1272
    %v2383 = vunpack.c.h.b16 %v1272
    %v2384 = vunpack.c.l.b16 %v1273
    %v2385 = vunpack.c.h.b16 %v1273
    %v2386 = vunpack.c.l.b16 %v1274
    %v2387 = vunpack.c.h.b16 %v1274
    %v2388 = vunpack.c.l.b16 %v1275
    %v2389 = vunpack.c.h.b16 %v1275
    %v2390 = vunpack.c.l.b16 %v1276
    %v2391 = vunpack.c.h.b16 %v1276
    %v2392 = vunpack.c.l.b16 %v1277
    %v2393 = vunpack.c.h.b16 %v1277
    %v2394 = vunpack.c.l.b16 %v1278
    %v2395 = vunpack.c.h.b16 %v1278
    %v2396 = vunpack.c.l.b16 %v1279
    %v2397 = vunpack.c.h.b16 %v1279
    %v2398 = vunpack.c.l.b16 %v1280
    %v2399 = vunpack.c.h.b16 %v1280
    %v2400 = vunpack.c.l.b16 %v1281
    %v2401 = vunpack.c.h.b16 %v1281
    %v2402 = vunpack.c.l.b16 %v1282
    %v2403 = vunpack.c.h.b16 %v1282
    %v2404 = vunpack.c.l.b16 %v1283
    %v2405 = vunpack.c.h.b16 %v1283
    %v2406 = vunpack.c.l.b16 %v1284
    %v2407 = vunpack.c.h.b16 %v1284
    %v2408 = vunpack.c.l.b16 %v1285
    %v2409 = vunpack.c.h.b16 %v1285
    %v2410 = vunpack.c.l.b16 %v1286
    %v2411 = vunpack.c.h.b16 %v1286
    %v2412 = vunpack.c.l.b16 %v1287
    %v2413 = vunpack.c.h.b16 %v1287
    %v2414 = vunpack.c.l.b16 %v1288
    %v2415 = vunpack.c.h.b16 %v1288
    %v2416 = vunpack.c.l.b16 %v1289
    %v2417 = vunpack.c.h.b16 %v1289
    %v2418 = vunpack.c.l.b16 %v1290
    %v2419 = vunpack.c.h.b16 %v1290
    %v2420 = vunpack.c.l.b16 %v1291
    %v2421 = vunpack.c.h.b16 %v1291
    %v2422 = vunpack.c.l.b16 %v1292
    %v2423 = vunpack.c.h.b16 %v1292
    %v2424 = vunpack.c.l.b16 %v1293
    %v2425 = vunpack.c.h.b16 %v1293
    %v2426 = vunpack.c.l.b16 %v1294
    %v2427 = vunpack.c.h.b16 %v1294
    %v2428 = vunpack.c.l.b16 %v1295
    %v2429 = vunpack.c.h.b16 %v1295
    %v2430 = vunpack.c.l.b16 %v1296
    %v2431 = vunpack.c.h.b16 %v1296
    %v2432 = vunpack.c.l.b16 %v1297
    %v2433 = vunpack.c.h.b16 %v1297
    %v2434 = vunpack.c.l.b16 %v1298
    %v2435 = vunpack.c.h.b16 %v1298
    %v2436 = vunpack.c.l.b16 %v1299
    %v2437 = vunpack.c.h.b16 %v1299
    %v2438 = vunpack.c.l.b16 %v1300
    %v2439 = vunpack.c.h.b16 %v1300
    %v2440 = vunpack.c.l.b16 %v1301
    %v2441 = vunpack.c.h.b16 %v1301
    %v2442 = vunpack.c.l.b16 %v1302
    %v2443 = vunpack.c.h.b16 %v1302
    %v2444 = vunpack.c.l.b16 %v1303
    %v2445 = vunpack.c.h.b16 %v1303
    %v2446 = vunpack.c.l.b16 %v1304
    %v2447 = vunpack.c.h.b16 %v1304
    %v2448 = vunpack.c.l.b16 %v1305
    %v2449 = vunpack.c.h.b16 %v1305
    %v2450 = vunpack.c.l.b16 %v1306
    %v2451 = vunpack.c.h.b16 %v1306
    %v2452 = vunpack.c.l.b16 %v1307
    %v2453 = vunpack.c.h.b16 %v1307
    %v2454 = vunpack.c.l.b16 %v1308
    %v2455 = vunpack.c.h.b16 %v1308
    %v2456 = vunpack.c.l.b16 %v1309
    %v2457 = vunpack.c.h.b16 %v1309
    %v2458 = vunpack.c.l.b16 %v1310
    %v2459 = vunpack.c.h.b16 %v1310
    %v2460 = vunpack.c.l.b16 %v1311
    %v2461 = vunpack.c.h.b16 %v1311
    %v2462 = vunpack.c.l.b16 %v1312
    %v2463 = vunpack.c.h.b16 %v1312
    %v2464 = vunpack.c.l.b16 %v1313
    %v2465 = vunpack.c.h.b16 %v1313
    %v2466 = vunpack.c.l.b16 %v1314
    %v2467 = vunpack.c.h.b16 %v1314
    %v2468 = vunpack.c.l.b16 %v1315
    %v2469 = vunpack.c.h.b16 %v1315
    %v2470 = vunpack.c.l.b16 %v1316
    %v2471 = vunpack.c.h.b16 %v1316
    %v2472 = vunpack.c.l.b16 %v1317
    %v2473 = vunpack.c.h.b16 %v1317
    %v2474 = vunpack.c.l.b16 %v1318
    %v2475 = vunpack.c.h.b16 %v1318
    %v2476 = vunpack.c.l.b16 %v1319
    %v2477 = vunpack.c.h.b16 %v1319
    %v2478 = vunpack.c.l.b16 %v1320
    %v2479 = vunpack.c.h.b16 %v1320
    %v2480 = vunpack.c.l.b16 %v1321
    %v2481 = vunpack.c.h.b16 %v1321
    %v2482 = vunpack.c.l.b16 %v1322
    %v2483 = vunpack.c.h.b16 %v1322
    %v2484 = vunpack.c.l.b16 %v1323
    %v2485 = vunpack.c.h.b16 %v1323
    %v2486 = vunpack.c.l.b16 %v1324
    %v2487 = vunpack.c.h.b16 %v1324
    %v2488 = vunpack.c.l.b16 %v1325
    %v2489 = vunpack.c.h.b16 %v1325
    %v2490 = vunpack.c.l.b16 %v1326
    %v2491 = vunpack.c.h.b16 %v1326
    %v2492 = vunpack.c.l.b16 %v1327
    %v2493 = vunpack.c.h.b16 %v1327
    %v2494 = vunpack.c.l.b16 %v1328
    %v2495 = vunpack.c.h.b16 %v1328
    %v2496 = vunpack.c.l.b16 %v1329
    %v2497 = vunpack.c.h.b16 %v1329
    %v2498 = vunpack.c.l.b16 %v1330
    %v2499 = vunpack.c.h.b16 %v1330
    %v2500 = vunpack.c.l.b16 %v1331
    %v2501 = vunpack.c.h.b16 %v1331
    %v2502 = vunpack.c.l.b16 %v1332
    %v2503 = vunpack.c.h.b16 %v1332
    %v2504 = vunpack.c.l.b16 %v1333
    %v2505 = vunpack.c.h.b16 %v1333
    %v2506 = vunpack.c.l.b16 %v1334
    %v2507 = vunpack.c.h.b16 %v1334
    %v2508 = vunpack.c.l.b16 %v1335
    %v2509 = vunpack.c.h.b16 %v1335
    %v2510 = vunpack.c.l.b16 %v1336
    %v2511 = vunpack.c.h.b16 %v1336
    %v2512 = vunpack.c.l.b16 %v1337
    %v2513 = vunpack.c.h.b16 %v1337
    %v2514 = vunpack.c.l.b16 %v1338
    %v2515 = vunpack.c.h.b16 %v1338
    %v2516 = vunpack.c.l.b16 %v1339
    %v2517 = vunpack.c.h.b16 %v1339
    %v2518 = vunpack.c.l.b16 %v1340
    %v2519 = vunpack.c.h.b16 %v1340
    %v2520 = vunpack.c.l.b16 %v1341
    %v2521 = vunpack.c.h.b16 %v1341
    %v2522 = vunpack.c.l.b16 %v1342
    %v2523 = vunpack.c.h.b16 %v1342
    %v2524 = vunpack.c.l.b16 %v1343
    %v2525 = vunpack.c.h.b16 %v1343
    %v2526 = vunpack.c.l.b16 %v1344
    %v2527 = vunpack.c.h.b16 %v1344
    %v2528 = vunpack.c.l.b16 %v1345
    %v2529 = vunpack.c.h.b16 %v1345
    %v2530 = vunpack.c.l.b16 %v1346
    %v2531 = vunpack.c.h.b16 %v1346
    %v2532 = vunpack.c.l.b16 %v1347
    %v2533 = vunpack.c.h.b16 %v1347
    %v2534 = vunpack.c.l.b16 %v1348
    %v2535 = vunpack.c.h.b16 %v1348
    %v2536 = vunpack.c.l.b16 %v1349
    %v2537 = vunpack.c.h.b16 %v1349
    %v2538 = vunpack.c.l.b16 %v1350
    %v2539 = vunpack.c.h.b16 %v1350
    %v2540 = vunpack.c.l.b16 %v1351
    %v2541 = vunpack.c.h.b16 %v1351
    %v2542 = vunpack.c.l.b16 %v1352
    %v2543 = vunpack.c.h.b16 %v1352
    %v2544 = vunpack.c.l.b16 %v1353
    %v2545 = vunpack.c.h.b16 %v1353
    %v2546 = vunpack.c.l.b16 %v1354
    %v2547 = vunpack.c.h.b16 %v1354
    %v2548 = vunpack.c.l.b16 %v1355
    %v2549 = vunpack.c.h.b16 %v1355
    %v2550 = vunpack.c.l.b16 %v1356
    %v2551 = vunpack.c.h.b16 %v1356
    %v2552 = vunpack.c.l.b16 %v1357
    %v2553 = vunpack.c.h.b16 %v1357
    %v2554 = vunpack.c.l.b16 %v1358
    %v2555 = vunpack.c.h.b16 %v1358
    %v2556 = vunpack.c.l.b16 %v1359
    %v2557 = vunpack.c.h.b16 %v1359
    %v2558 = vunpack.c.l.b16 %v1360
    %v2559 = vunpack.c.h.b16 %v1360
    %v2560 = vunpack.c.l.b16 %v1361
    %v2561 = vunpack.c.h.b16 %v1361
    %v2562 = vunpack.c.l.b16 %v1362
    %v2563 = vunpack.c.h.b16 %v1362
    %v2564 = vunpack.c.l.b16 %v1363
    %v2565 = vunpack.c.h.b16 %v1363
    %v2566 = vunpack.c.l.b16 %v1364
    %v2567 = vunpack.c.h.b16 %v1364
    %v2568 = vunpack.c.l.b16 %v1365
    %v2569 = vunpack.c.h.b16 %v1365
    %v2570 = vunpack.c.l.b16 %v1366
    %v2571 = vunpack.c.h.b16 %v1366
    %v2572 = vunpack.c.l.b16 %v1367
    %v2573 = vunpack.c.h.b16 %v1367
    %v2574 = vunpack.c.l.b16 %v1368
    %v2575 = vunpack.c.h.b16 %v1368
    %v2576 = vunpack.c.l.b16 %v1369
    %v2577 = vunpack.c.h.b16 %v1369
    %v2578 = vunpack.c.l.b16 %v1370
    %v2579 = vunpack.c.h.b16 %v1370
    %v2580 = vunpack.c.l.b16 %v1371
    %v2581 = vunpack.c.h.b16 %v1371
    %v2582 = vunpack.c.l.b16 %v1372
    %v2583 = vunpack.c.h.b16 %v1372
    %v2584 = vunpack.c.l.b16 %v1373
    %v2585 = vunpack.c.h.b16 %v1373
    %v2586 = vunpack.c.l.b16 %v1374
    %v2587 = vunpack.c.h.b16 %v1374
    %v2588 = vunpack.c.l.b16 %v1375
    %v2589 = vunpack.c.h.b16 %v1375
    %v2590 = vunpack.c.l.b16 %v1376
    %v2591 = vunpack.c.h.b16 %v1376
    %v2592 = vunpack.c.l.b16 %v1377
    %v2593 = vunpack.c.h.b16 %v1377
    %v2594 = vunpack.c.l.b16 %v1378
    %v2595 = vunpack.c.h.b16 %v1378
    %v2596 = vunpack.c.l.b16 %v1379
    %v2597 = vunpack.c.h.b16 %v1379
    %v2598 = vunpack.c.l.b16 %v1380
    %v2599 = vunpack.c.h.b16 %v1380
    %v2600 = vunpack.c.l.b16 %v1381
    %v2601 = vunpack.c.h.b16 %v1381
    %v2602 = vunpack.c.l.b16 %v1382
    %v2603 = vunpack.c.h.b16 %v1382
    %v2604 = vunpack.c.l.b16 %v1383
    %v2605 = vunpack.c.h.b16 %v1383
    %v2606 = vunpack.c.l.b16 %v1384
    %v2607 = vunpack.c.h.b16 %v1384
    %v2608 = vunpack.c.l.b16 %v1385
    %v2609 = vunpack.c.h.b16 %v1385
    %v2610 = vunpack.c.l.b16 %v1386
    %v2611 = vunpack.c.h.b16 %v1386
    %v2612 = vunpack.c.l.b16 %v1387
    %v2613 = vunpack.c.h.b16 %v1387
    %v2614 = vunpack.c.l.b16 %v1388
    %v2615 = vunpack.c.h.b16 %v1388
    %v2616 = vunpack.c.l.b16 %v1389
    %v2617 = vunpack.c.h.b16 %v1389
    %v2618 = vunpack.c.l.b16 %v1390
    %v2619 = vunpack.c.h.b16 %v1390
    %v2620 = vunpack.c.l.b16 %v1391
    %v2621 = vunpack.c.h.b16 %v1391
    %v2622 = vunpack.c.l.b16 %v1392
    %v2623 = vunpack.c.h.b16 %v1392
    %v2624 = vunpack.c.l.b16 %v1393
    %v2625 = vunpack.c.h.b16 %v1393
    %v2626 = vunpack.c.l.b16 %v1394
    %v2627 = vunpack.c.h.b16 %v1394
    %v2628 = vunpack.c.l.b16 %v1395
    %v2629 = vunpack.c.h.b16 %v1395
    %v2630 = vunpack.c.l.b16 %v1396
    %v2631 = vunpack.c.h.b16 %v1396
    %v2632 = vunpack.c.l.b16 %v1397
    %v2633 = vunpack.c.h.b16 %v1397
    %v2634 = vunpack.c.l.b16 %v1398
    %v2635 = vunpack.c.h.b16 %v1398
    %v2636 = vunpack.c.l.b16 %v1399
    %v2637 = vunpack.c.h.b16 %v1399
    %v2638 = vunpack.c.l.b16 %v1400
    %v2639 = vunpack.c.h.b16 %v1400
    %v2640 = vunpack.c.l.b16 %v1401
    %v2641 = vunpack.c.h.b16 %v1401
    %v2642 = vunpack.c.l.b16 %v1402
    %v2643 = vunpack.c.h.b16 %v1402
    %v2644 = vunpack.c.l.b16 %v1403
    %v2645 = vunpack.c.h.b16 %v1403
    %v2646 = vunpack.c.l.b16 %v1404
    %v2647 = vunpack.c.h.b16 %v1404
    %v2648 = vunpack.c.l.b16 %v1405
    %v2649 = vunpack.c.h.b16 %v1405
    %v2650 = vunpack.c.l.b16 %v1406
    %v2651 = vunpack.c.h.b16 %v1406
    %v2652 = vunpack.c.l.b16 %v1407
    %v2653 = vunpack.c.h.b16 %v1407
    %v2654 = vunpack.c.l.b16 %v1408
    %v2655 = vunpack.c.h.b16 %v1408
    %v2656 = vunpack.c.l.b16 %v1409
    %v2657 = vunpack.c.h.b16 %v1409
    %v2658 = vunpack.c.l.b16 %v1410
    %v2659 = vunpack.c.h.b16 %v1410
    %v2660 = vunpack.c.l.b16 %v1411
    %v2661 = vunpack.c.h.b16 %v1411
    %v2662 = vunpack.c.l.b16 %v1412
    %v2663 = vunpack.c.h.b16 %v1412
    %v2664 = vunpack.c.l.b16 %v1413
    %v2665 = vunpack.c.h.b16 %v1413
    %v2666 = vunpack.c.l.b16 %v1414
    %v2667 = vunpack.c.h.b16 %v1414
    %v2668 = vunpack.c.l.b16 %v1415
    %v2669 = vunpack.c.h.b16 %v1415
    %v2670 = vunpack.c.l.b16 %v1416
    %v2671 = vunpack.c.h.b16 %v1416
    %v2672 = vunpack.c.l.b16 %v1417
    %v2673 = vunpack.c.h.b16 %v1417
    %v2674 = vunpack.c.l.b16 %v1418
    %v2675 = vunpack.c.h.b16 %v1418
    %v2676 = vunpack.c.l.b16 %v1419
    %v2677 = vunpack.c.h.b16 %v1419
    %v2678 = vunpack.c.l.b16 %v1420
    %v2679 = vunpack.c.h.b16 %v1420
    %v2680 = vunpack.c.l.b16 %v1421
    %v2681 = vunpack.c.h.b16 %v1421
    %v2682 = vunpack.c.l.b16 %v1422
    %v2683 = vunpack.c.h.b16 %v1422
    %v2684 = vunpack.c.l.b16 %v1423
    %v2685 = vunpack.c.h.b16 %v1423
    %v2686 = vunpack.c.l.b16 %v1424
    %v2687 = vunpack.c.h.b16 %v1424
    %v2688 = vunpack.c.l.b16 %v1425
    %v2689 = vunpack.c.h.b16 %v1425
    %v2690 = vunpack.c.l.b16 %v1426
    %v2691 = vunpack.c.h.b16 %v1426
    %v2692 = vunpack.c.l.b16 %v1427
    %v2693 = vunpack.c.h.b16 %v1427
    %v2694 = vunpack.c.l.b16 %v1428
    %v2695 = vunpack.c.h.b16 %v1428
    %v2696 = vunpack.c.l.b16 %v1429
    %v2697 = vunpack.c.h.b16 %v1429
    %v2698 = vunpack.c.l.b16 %v1430
    %v2699 = vunpack.c.h.b16 %v1430
    %v2700 = vunpack.c.l.b16 %v1431
    %v2701 = vunpack.c.h.b16 %v1431
    %v2702 = vunpack.c.l.b16 %v1432
    %v2703 = vunpack.c.h.b16 %v1432
    %v2704 = vunpack.c.l.b16 %v1433
    %v2705 = vunpack.c.h.b16 %v1433
    %v2706 = vunpack.c.l.b16 %v1434
    %v2707 = vunpack.c.h.b16 %v1434
    %v2708 = vunpack.c.l.b16 %v1435
    %v2709 = vunpack.c.h.b16 %v1435
    %v2710 = vunpack.c.l.b16 %v1436
    %v2711 = vunpack.c.h.b16 %v1436
    %v2712 = vunpack.c.l.b16 %v1437
    %v2713 = vunpack.c.h.b16 %v1437
    %v2714 = vunpack.c.l.b16 %v1438
    %v2715 = vunpack.c.h.b16 %v1438
    %v2716 = vunpack.c.l.b16 %v1439
    %v2717 = vunpack.c.h.b16 %v1439
    %v2718 = vunpack.c.l.b16 %v1440
    %v2719 = vunpack.c.h.b16 %v1440
    %v2720 = vunpack.c.l.b16 %v1441
    %v2721 = vunpack.c.h.b16 %v1441
    %v2722 = vunpack.c.l.b16 %v1442
    %v2723 = vunpack.c.h.b16 %v1442
    %v2724 = vunpack.c.l.b16 %v1443
    %v2725 = vunpack.c.h.b16 %v1443
    %v2726 = vunpack.c.l.b16 %v1444
    %v2727 = vunpack.c.h.b16 %v1444
    %v2728 = vunpack.c.l.b16 %v1445
    %v2729 = vunpack.c.h.b16 %v1445
    %v2730 = vunpack.c.l.b16 %v1446
    %v2731 = vunpack.c.h.b16 %v1446
    %v2732 = vunpack.c.l.b16 %v1447
    %v2733 = vunpack.c.h.b16 %v1447
    %v2734 = vunpack.c.l.b16 %v1448
    %v2735 = vunpack.c.h.b16 %v1448
    %v2736 = vunpack.c.l.b16 %v1449
    %v2737 = vunpack.c.h.b16 %v1449
    %v2738 = vunpack.c.l.b16 %v1450
    %v2739 = vunpack.c.h.b16 %v1450
    %v2740 = vunpack.c.l.b16 %v1451
    %v2741 = vunpack.c.h.b16 %v1451
    %v2742 = vunpack.c.l.b16 %v1452
    %v2743 = vunpack.c.h.b16 %v1452
    %v2744 = vunpack.c.l.b16 %v1453
    %v2745 = vunpack.c.h.b16 %v1453
    %v2746 = vunpack.c.l.b16 %v1454
    %v2747 = vunpack.c.h.b16 %v1454
    %v2748 = vunpack.c.l.b16 %v1455
    %v2749 = vunpack.c.h.b16 %v1455
    %v2750 = vunpack.c.l.b16 %v1456
    %v2751 = vunpack.c.h.b16 %v1456
    %v2752 = vunpack.c.l.b16 %v1457
    %v2753 = vunpack.c.h.b16 %v1457
    %v2754 = vunpack.c.l.b16 %v1458
    %v2755 = vunpack.c.h.b16 %v1458
    %v2756 = vunpack.c.l.b16 %v1459
    %v2757 = vunpack.c.h.b16 %v1459
    %v2758 = vunpack.c.l.b16 %v1460
    %v2759 = vunpack.c.h.b16 %v1460
    %v2760 = vunpack.c.l.b16 %v1461
    %v2761 = vunpack.c.h.b16 %v1461
    %v2762 = vunpack.c.l.b16 %v1462
    %v2763 = vunpack.c.h.b16 %v1462
    %v2764 = vunpack.c.l.b16 %v1463
    %v2765 = vunpack.c.h.b16 %v1463
    %v2766 = vunpack.c.l.b16 %v1464
    %v2767 = vunpack.c.h.b16 %v1464
    %v2768 = vunpack.c.l.b16 %v1465
    %v2769 = vunpack.c.h.b16 %v1465
    %v2770 = vunpack.c.l.b16 %v1466
    %v2771 = vunpack.c.h.b16 %v1466
    %v2772 = vunpack.c.l.b16 %v1467
    %v2773 = vunpack.c.h.b16 %v1467
    %v2774 = vunpack.c.l.b16 %v1468
    %v2775 = vunpack.c.h.b16 %v1468
    %v2776 = vunpack.c.l.b16 %v1469
    %v2777 = vunpack.c.h.b16 %v1469
    %v2778 = vunpack.c.l.b16 %v1470
    %v2779 = vunpack.c.h.b16 %v1470
    %v2780 = vunpack.c.l.b16 %v1471
    %v2781 = vunpack.c.h.b16 %v1471
    %v2782 = vunpack.c.l.b16 %v1472
    %v2783 = vunpack.c.h.b16 %v1472
    %v2784 = vunpack.c.l.b16 %v1473
    %v2785 = vunpack.c.h.b16 %v1473
    %v2786 = vunpack.c.l.b16 %v1474
    %v2787 = vunpack.c.h.b16 %v1474
    %v2788 = vunpack.c.l.b16 %v1475
    %v2789 = vunpack.c.h.b16 %v1475
    %v2790 = vunpack.c.l.b16 %v1476
    %v2791 = vunpack.c.h.b16 %v1476
    %v2792 = vunpack.c.l.b16 %v1477
    %v2793 = vunpack.c.h.b16 %v1477
    %v2794 = vunpack.c.l.b16 %v1478
    %v2795 = vunpack.c.h.b16 %v1478
    %v2796 = vunpack.c.l.b16 %v1479
    %v2797 = vunpack.c.h.b16 %v1479
    %v2798 = vunpack.c.l.b16 %v1480
    %v2799 = vunpack.c.h.b16 %v1480
    %v2800 = vunpack.c.l.b16 %v1481
    %v2801 = vunpack.c.h.b16 %v1481
    %v2802 = vunpack.c.l.b16 %v1482
    %v2803 = vunpack.c.h.b16 %v1482
    %v2804 = vunpack.c.l.b16 %v1483
    %v2805 = vunpack.c.h.b16 %v1483
    %v2806 = vunpack.c.l.b16 %v1484
    %v2807 = vunpack.c.h.b16 %v1484
    %v2808 = vunpack.c.l.b16 %v1485
    %v2809 = vunpack.c.h.b16 %v1485
    %v2810 = vunpack.c.l.b16 %v1486
    %v2811 = vunpack.c.h.b16 %v1486
    %v2812 = vunpack.c.l.b16 %v1487
    %v2813 = vunpack.c.h.b16 %v1487
    %v2814 = vunpack.c.l.b16 %v1488
    %v2815 = vunpack.c.h.b16 %v1488
    %v2816 = vunpack.c.l.b16 %v1489
    %v2817 = vunpack.c.h.b16 %v1489
    %v2818 = vunpack.c.l.b16 %v1490
    %v2819 = vunpack.c.h.b16 %v1490
    %v2820 = vunpack.c.l.b16 %v1491
    %v2821 = vunpack.c.h.b16 %v1491
    %v2822 = vunpack.c.l.b16 %v1492
    %v2823 = vunpack.c.h.b16 %v1492
    %v2824 = vunpack.c.l.b16 %v1493
    %v2825 = vunpack.c.h.b16 %v1493
    %v2826 = vunpack.c.l.b16 %v1494
    %v2827 = vunpack.c.h.b16 %v1494
    %v2828 = vunpack.c.l.b16 %v1495
    %v2829 = vunpack.c.h.b16 %v1495
    %v2830 = vunpack.c.l.b16 %v1496
    %v2831 = vunpack.c.h.b16 %v1496
    %v2832 = vunpack.c.l.b16 %v1497
    %v2833 = vunpack.c.h.b16 %v1497
    %v2834 = vunpack.c.l.b16 %v1498
    %v2835 = vunpack.c.h.b16 %v1498
    %v2836 = vunpack.c.l.b16 %v1499
    %v2837 = vunpack.c.h.b16 %v1499
    %v2838 = vunpack.c.l.b16 %v1500
    %v2839 = vunpack.c.h.b16 %v1500
    %v2840 = vunpack.c.l.b16 %v1501
    %v2841 = vunpack.c.h.b16 %v1501
    %v2842 = vunpack.c.l.b16 %v1502
    %v2843 = vunpack.c.h.b16 %v1502
    %v2844 = vunpack.c.l.b16 %v1503
    %v2845 = vunpack.c.h.b16 %v1503
    %v2846 = vunpack.c.l.b16 %v1504
    %v2847 = vunpack.c.h.b16 %v1504
    %v2848 = vunpack.c.l.b16 %v1505
    %v2849 = vunpack.c.h.b16 %v1505
    %v2850 = vunpack.c.l.b16 %v1506
    %v2851 = vunpack.c.h.b16 %v1506
    %v2852 = vunpack.c.l.b16 %v1507
    %v2853 = vunpack.c.h.b16 %v1507
    %v2854 = vunpack.c.l.b16 %v1508
    %v2855 = vunpack.c.h.b16 %v1508
    %v2856 = vunpack.c.l.b16 %v1509
    %v2857 = vunpack.c.h.b16 %v1509
    %v2858 = vunpack.c.l.b16 %v1510
    %v2859 = vunpack.c.h.b16 %v1510
    %v2860 = vunpack.c.l.b16 %v1511
    %v2861 = vunpack.c.h.b16 %v1511
    %v2862 = vunpack.c.l.b16 %v1512
    %v2863 = vunpack.c.h.b16 %v1512
    %v2864 = vunpack.c.l.b16 %v1513
    %v2865 = vunpack.c.h.b16 %v1513
    %v2866 = vunpack.c.l.b16 %v1514
    %v2867 = vunpack.c.h.b16 %v1514
    %v2868 = vunpack.c.l.b16 %v1515
    %v2869 = vunpack.c.h.b16 %v1515
    %v2870 = vunpack.c.l.b16 %v1516
    %v2871 = vunpack.c.h.b16 %v1516
    %v2872 = vunpack.c.l.b16 %v1517
    %v2873 = vunpack.c.h.b16 %v1517
    %v2874 = vunpack.c.l.b16 %v1518
    %v2875 = vunpack.c.h.b16 %v1518
    %v2876 = vunpack.c.l.b16 %v1519
    %v2877 = vunpack.c.h.b16 %v1519
    %v2878 = vunpack.c.l.b16 %v1520
    %v2879 = vunpack.c.h.b16 %v1520
    %v2880 = vunpack.c.l.b16 %v1521
    %v2881 = vunpack.c.h.b16 %v1521
    %v2882 = vunpack.c.l.b16 %v1522
    %v2883 = vunpack.c.h.b16 %v1522
    %v2884 = vunpack.c.l.b16 %v1523
    %v2885 = vunpack.c.h.b16 %v1523
    %v2886 = vunpack.c.l.b16 %v1524
    %v2887 = vunpack.c.h.b16 %v1524
    %v2888 = vunpack.c.l.b16 %v1525
    %v2889 = vunpack.c.h.b16 %v1525
    %v2890 = vunpack.c.l.b16 %v1526
    %v2891 = vunpack.c.h.b16 %v1526
    %v2892 = vunpack.c.l.b16 %v1527
    %v2893 = vunpack.c.h.b16 %v1527
    %v2894 = vunpack.c.l.b16 %v1528
    %v2895 = vunpack.c.h.b16 %v1528
    %v2896 = vunpack.c.l.b16 %v1529
    %v2897 = vunpack.c.h.b16 %v1529
    %v2898 = vunpack.c.l.b16 %v1530
    %v2899 = vunpack.c.h.b16 %v1530
    %v2900 = vunpack.c.l.b16 %v1531
    %v2901 = vunpack.c.h.b16 %v1531
    %v2902 = vunpack.c.l.b16 %v1532
    %v2903 = vunpack.c.h.b16 %v1532
    %v2904 = vunpack.c.l.b16 %v1533
    %v2905 = vunpack.c.h.b16 %v1533
    %v2906 = vunpack.c.l.b16 %v1534
    %v2907 = vunpack.c.h.b16 %v1534
    %v2908 = vunpack.c.l.b16 %v1535
    %v2909 = vunpack.c.h.b16 %v1535
    %v2910 = vunpack.c.l.b16 %v1536
    %v2911 = vunpack.c.h.b16 %v1536
    %v2912 = vunpack.c.l.b16 %v1537
    %v2913 = vunpack.c.h.b16 %v1537
    %v2914 = vunpack.c.l.b16 %v1538
    %v2915 = vunpack.c.h.b16 %v1538
    %v2916 = vunpack.c.l.b16 %v1539
    %v2917 = vunpack.c.h.b16 %v1539
    %v2918 = vunpack.c.l.b16 %v1540
    %v2919 = vunpack.c.h.b16 %v1540
    %v2920 = vunpack.c.l.b16 %v1541
    %v2921 = vunpack.c.h.b16 %v1541
    %v2922 = vunpack.c.l.b16 %v1542
    %v2923 = vunpack.c.h.b16 %v1542
    %v2924 = vunpack.c.l.b16 %v1543
    %v2925 = vunpack.c.h.b16 %v1543
    %v2926 = vunpack.c.l.b16 %v1544
    %v2927 = vunpack.c.h.b16 %v1544
    %v2928 = vunpack.c.l.b16 %v1545
    %v2929 = vunpack.c.h.b16 %v1545
    %v2930 = vunpack.c.l.b16 %v1546
    %v2931 = vunpack.c.h.b16 %v1546
    %v2932 = vunpack.c.l.b16 %v1547
    %v2933 = vunpack.c.h.b16 %v1547
    %v2934 = vunpack.c.l.b16 %v1548
    %v2935 = vunpack.c.h.b16 %v1548
    %v2936 = vunpack.c.l.b16 %v1549
    %v2937 = vunpack.c.h.b16 %v1549
    %v2938 = vunpack.c.l.b16 %v1550
    %v2939 = vunpack.c.h.b16 %v1550
    %v2940 = vunpack.c.l.b16 %v1551
    %v2941 = vunpack.c.h.b16 %v1551
    %v2942 = vunpack.c.l.b16 %v1552
    %v2943 = vunpack.c.h.b16 %v1552
    %v2944 = vunpack.c.l.b16 %v1553
    %v2945 = vunpack.c.h.b16 %v1553
    %v2946 = vunpack.c.l.b16 %v1554
    %v2947 = vunpack.c.h.b16 %v1554
    %v2948 = vunpack.c.l.b16 %v1555
    %v2949 = vunpack.c.h.b16 %v1555
    %v2950 = vunpack.c.l.b16 %v1556
    %v2951 = vunpack.c.h.b16 %v1556
    %v2952 = vunpack.c.l.b16 %v1557
    %v2953 = vunpack.c.h.b16 %v1557
    %v2954 = vunpack.c.l.b16 %v1558
    %v2955 = vunpack.c.h.b16 %v1558
    %v2956 = vunpack.c.l.b16 %v1559
    %v2957 = vunpack.c.h.b16 %v1559
    %v2958 = vunpack.c.l.b16 %v1560
    %v2959 = vunpack.c.h.b16 %v1560
    %v2960 = vunpack.c.l.b16 %v1561
    %v2961 = vunpack.c.h.b16 %v1561
    %v2962 = vunpack.c.l.b16 %v1562
    %v2963 = vunpack.c.h.b16 %v1562
    %v2964 = vunpack.c.l.b16 %v1563
    %v2965 = vunpack.c.h.b16 %v1563
    %v2966 = vunpack.c.l.b16 %v1564
    %v2967 = vunpack.c.h.b16 %v1564
    %v2968 = vunpack.c.l.b16 %v1565
    %v2969 = vunpack.c.h.b16 %v1565
    %v2970 = vunpack.c.l.b16 %v1566
    %v2971 = vunpack.c.h.b16 %v1566
    %v2972 = vunpack.c.l.b16 %v1567
    %v2973 = vunpack.c.h.b16 %v1567
    %v2974 = vunpack.c.l.b16 %v1568
    %v2975 = vunpack.c.h.b16 %v1568
    %v2976 = vunpack.c.l.b16 %v1569
    %v2977 = vunpack.c.h.b16 %v1569
    %v2978 = vunpack.c.l.b16 %v1570
    %v2979 = vunpack.c.h.b16 %v1570
    %v2980 = vunpack.c.l.b16 %v1571
    %v2981 = vunpack.c.h.b16 %v1571
    %v2982 = vunpack.c.l.b16 %v1572
    %v2983 = vunpack.c.h.b16 %v1572
    %v2984 = vunpack.c.l.b16 %v1573
    %v2985 = vunpack.c.h.b16 %v1573
    %v2986 = vunpack.c.l.b16 %v1574
    %v2987 = vunpack.c.h.b16 %v1574
    %v2988 = vunpack.c.l.b16 %v1575
    %v2989 = vunpack.c.h.b16 %v1575
    %v2990 = vunpack.c.l.b16 %v1576
    %v2991 = vunpack.c.h.b16 %v1576
    %v2992 = vunpack.c.l.b16 %v1577
    %v2993 = vunpack.c.h.b16 %v1577
    %v2994 = vunpack.c.l.b16 %v1578
    %v2995 = vunpack.c.h.b16 %v1578
    %v2996 = vunpack.c.l.b16 %v1579
    %v2997 = vunpack.c.h.b16 %v1579
    %v2998 = vunpack.c.l.b16 %v1580
    %v2999 = vunpack.c.h.b16 %v1580
    %v3000 = vunpack.c.l.b16 %v1581
    %v3001 = vunpack.c.h.b16 %v1581
    %v3002 = vunpack.c.l.b16 %v1582
    %v3003 = vunpack.c.h.b16 %v1582
    %v3004 = vunpack.c.l.b16 %v1583
    %v3005 = vunpack.c.h.b16 %v1583
    %v3006 = vunpack.c.l.b16 %v1584
    %v3007 = vunpack.c.h.b16 %v1584
    %v3008 = vunpack.c.l.b16 %v1585
    %v3009 = vunpack.c.h.b16 %v1585
    %v3010 = vunpack.c.l.b16 %v1586
    %v3011 = vunpack.c.h.b16 %v1586
    %v3012 = vunpack.c.l.b16 %v1587
    %v3013 = vunpack.c.h.b16 %v1587
    %v3014 = vunpack.c.l.b16 %v1588
    %v3015 = vunpack.c.h.b16 %v1588
    %v3016 = vunpack.c.l.b16 %v1589
    %v3017 = vunpack.c.h.b16 %v1589
    %v3018 = vunpack.c.l.b16 %v1590
    %v3019 = vunpack.c.h.b16 %v1590
    %v3020 = vunpack.c.l.b16 %v1591
    %v3021 = vunpack.c.h.b16 %v1591
    %v3022 = vunpack.c.l.b16 %v1592
    %v3023 = vunpack.c.h.b16 %v1592
    %v3024 = vunpack.c.l.b16 %v1593
    %v3025 = vunpack.c.h.b16 %v1593
    %v3026 = vunpack.c.l.b16 %v1594
    %v3027 = vunpack.c.h.b16 %v1594
    %v3028 = vunpack.c.l.b16 %v1595
    %v3029 = vunpack.c.h.b16 %v1595
    %v3030 = vunpack.c.l.b16 %v1596
    %v3031 = vunpack.c.h.b16 %v1596
    %v3032 = vunpack.c.l.b16 %v1597
    %v3033 = vunpack.c.h.b16 %v1597
    %v3034 = vunpack.c.l.b16 %v1598
    %v3035 = vunpack.c.h.b16 %v1598
    %v3036 = vunpack.c.l.b16 %v1599
    %v3037 = vunpack.c.h.b16 %v1599
    %v3038 = vunpack.c.l.b16 %v1600
    %v3039 = vunpack.c.h.b16 %v1600
    %v3040 = vunpack.c.l.b16 %v1601
    %v3041 = vunpack.c.h.b16 %v1601
    %v3042 = vunpack.c.l.b16 %v1602
    %v3043 = vunpack.c.h.b16 %v1602
    %v3044 = vunpack.c.l.b16 %v1603
    %v3045 = vunpack.c.h.b16 %v1603
    %v3046 = vunpack.c.l.b16 %v1604
    %v3047 = vunpack.c.h.b16 %v1604
    %v3048 = vunpack.c.l.b16 %v1605
    %v3049 = vunpack.c.h.b16 %v1605
    %v3050 = vunpack.c.l.b16 %v1606
    %v3051 = vunpack.c.h.b16 %v1606
    %v3052 = vunpack.c.l.b16 %v1607
    %v3053 = vunpack.c.h.b16 %v1607
    %v3054 = vunpack.c.l.b16 %v1608
    %v3055 = vunpack.c.h.b16 %v1608
    %v3056 = vunpack.c.l.b16 %v1609
    %v3057 = vunpack.c.h.b16 %v1609
    %v3058 = vunpack.c.l.b16 %v1610
    %v3059 = vunpack.c.h.b16 %v1610
    %v3060 = vunpack.c.l.b16 %v1611
    %v3061 = vunpack.c.h.b16 %v1611
    %v3062 = vunpack.c.l.b16 %v1612
    %v3063 = vunpack.c.h.b16 %v1612
    %v3064 = vunpack.c.l.b16 %v1613
    %v3065 = vunpack.c.h.b16 %v1613
    %v3066 = vunpack.c.l.b16 %v1614
    %v3067 = vunpack.c.h.b16 %v1614
    %v3068 = vunpack.c.l.b16 %v1615
    %v3069 = vunpack.c.h.b16 %v1615
    %v3070 = vunpack.c.l.b16 %v1616
    %v3071 = vunpack.c.h.b16 %v1616
    %v3072 = vunpack.c.l.b16 %v1617
    %v3073 = vunpack.c.h.b16 %v1617
    %v3074 = vunpack.c.l.b16 %v1618
    %v3075 = vunpack.c.h.b16 %v1618
    %v3076 = vunpack.c.l.b16 %v1619
    %v3077 = vunpack.c.h.b16 %v1619
    %v3078 = vunpack.c.l.b16 %v1620
    %v3079 = vunpack.c.h.b16 %v1620
    %v3080 = vunpack.c.l.b16 %v1621
    %v3081 = vunpack.c.h.b16 %v1621
    %v3082 = vunpack.c.l.b16 %v1622
    %v3083 = vunpack.c.h.b16 %v1622
    %v3084 = vunpack.c.l.b16 %v1623
    %v3085 = vunpack.c.h.b16 %v1623
    %v3086 = vunpack.c.l.b16 %v1624
    %v3087 = vunpack.c.h.b16 %v1624
    %v3088 = vunpack.c.l.b16 %v1625
    %v3089 = vunpack.c.h.b16 %v1625
    %v3090 = vunpack.c.l.b16 %v1626
    %v3091 = vunpack.c.h.b16 %v1626
    %v3092 = vunpack.c.l.b16 %v1627
    %v3093 = vunpack.c.h.b16 %v1627
    %v3094 = vunpack.c.l.b16 %v1628
    %v3095 = vunpack.c.h.b16 %v1628
    %v3096 = vunpack.c.l.b16 %v1629
    %v3097 = vunpack.c.h.b16 %v1629
    %v3098 = vunpack.c.l.b16 %v1630
    %v3099 = vunpack.c.h.b16 %v1630
    %v3100 = vunpack.c.l.b16 %v1631
    %v3101 = vunpack.c.h.b16 %v1631
    %v3102 = vunpack.c.l.b16 %v1632
    %v3103 = vunpack.c.h.b16 %v1632
    %v3104 = vunpack.c.l.b16 %v1633
    %v3105 = vunpack.c.h.b16 %v1633
    %v3106 = vunpack.c.l.b16 %v1634
    %v3107 = vunpack.c.h.b16 %v1634
    %v3108 = vunpack.c.l.b16 %v1635
    %v3109 = vunpack.c.h.b16 %v1635
    %v3110 = vunpack.c.l.b16 %v1636
    %v3111 = vunpack.c.h.b16 %v1636
    %v3112 = vunpack.c.l.b16 %v1637
    %v3113 = vunpack.c.h.b16 %v1637
    %v3114 = vunpack.c.l.b16 %v1638
    %v3115 = vunpack.c.h.b16 %v1638
    %v3116 = vunpack.c.l.b16 %v1639
    %v3117 = vunpack.c.h.b16 %v1639
    %v3118 = vunpack.c.l.b16 %v1640
    %v3119 = vunpack.c.h.b16 %v1640
    %v3120 = vunpack.c.l.b16 %v1641
    %v3121 = vunpack.c.h.b16 %v1641
    %v3122 = vunpack.c.l.b16 %v1642
    %v3123 = vunpack.c.h.b16 %v1642
    %v3124 = vunpack.c.l.b16 %v1643
    %v3125 = vunpack.c.h.b16 %v1643
    %v3126 = vunpack.c.l.b16 %v1644
    %v3127 = vunpack.c.h.b16 %v1644
    %v3128 = vunpack.c.l.b16 %v1645
    %v3129 = vunpack.c.h.b16 %v1645
    %v3130 = vunpack.c.l.b16 %v1646
    %v3131 = vunpack.c.h.b16 %v1646
    %v3132 = vunpack.c.l.b16 %v1647
    %v3133 = vunpack.c.h.b16 %v1647
    %v3134 = vunpack.c.l.b16 %v1648
    %v3135 = vunpack.c.h.b16 %v1648
    %v3136 = vunpack.c.l.b16 %v1649
    %v3137 = vunpack.c.h.b16 %v1649
    %v3138 = vunpack.c.l.b16 %v1650
    %v3139 = vunpack.c.h.b16 %v1650
    %v3140 = vunpack.c.l.b16 %v1651
    %v3141 = vunpack.c.h.b16 %v1651
    %v3142 = vunpack.c.l.b16 %v1652
    %v3143 = vunpack.c.h.b16 %v1652
    %v3144 = vunpack.c.l.b16 %v1653
    %v3145 = vunpack.c.h.b16 %v1653
    %v3146 = vunpack.c.l.b16 %v1654
    %v3147 = vunpack.c.h.b16 %v1654
    %v3148 = vunpack.c.l.b16 %v1655
    %v3149 = vunpack.c.h.b16 %v1655
    %v3150 = vunpack.c.l.b16 %v1656
    %v3151 = vunpack.c.h.b16 %v1656
    %v3152 = vunpack.c.l.b16 %v1657
    %v3153 = vunpack.c.h.b16 %v1657
    %v3154 = vunpack.c.l.b16 %v1658
    %v3155 = vunpack.c.h.b16 %v1658
    %v3156 = vunpack.c.l.b16 %v1659
    %v3157 = vunpack.c.h.b16 %v1659
    %v3158 = vunpack.c.l.b16 %v1660
    %v3159 = vunpack.c.h.b16 %v1660
    %v3160 = vunpack.c.l.b16 %v1661
    %v3161 = vunpack.c.h.b16 %v1661
    %v3162 = vunpack.c.l.b16 %v1662
    %v3163 = vunpack.c.h.b16 %v1662
    %v3164 = vunpack.c.l.b16 %v1663
    %v3165 = vunpack.c.h.b16 %v1663
    %v3166 = vunpack.c.l.b16 %v1664
    %v3167 = vunpack.c.h.b16 %v1664
    %v3168 = vunpack.c.l.b16 %v1665
    %v3169 = vunpack.c.h.b16 %v1665
    %v3170 = vunpack.c.l.b16 %v1666
    %v3171 = vunpack.c.h.b16 %v1666
    %v3172 = vunpack.c.l.b16 %v1667
    %v3173 = vunpack.c.h.b16 %v1667
    %v3174 = vunpack.c.l.b16 %v1668
    %v3175 = vunpack.c.h.b16 %v1668
    %v3176 = vunpack.c.l.b16 %v1669
    %v3177 = vunpack.c.h.b16 %v1669
    %v3178 = vunpack.c.l.b16 %v1670
    %v3179 = vunpack.c.h.b16 %v1670
    %v3180 = vunpack.c.l.b16 %v1671
    %v3181 = vunpack.c.h.b16 %v1671
    %v3182 = vunpack.c.l.b16 %v1672
    %v3183 = vunpack.c.h.b16 %v1672
    %v3184 = vunpack.c.l.b16 %v1673
    %v3185 = vunpack.c.h.b16 %v1673
    %v3186 = vunpack.c.l.b16 %v1674
    %v3187 = vunpack.c.h.b16 %v1674
    %v3188 = vunpack.c.l.b16 %v1675
    %v3189 = vunpack.c.h.b16 %v1675
    %v3190 = vunpack.c.l.b16 %v1676
    %v3191 = vunpack.c.h.b16 %v1676
    %v3192 = vunpack.c.l.b16 %v1677
    %v3193 = vunpack.c.h.b16 %v1677
    %v3194 = vunpack.c.l.b16 %v1678
    %v3195 = vunpack.c.h.b16 %v1678
    %v3196 = vunpack.c.l.b16 %v1679
    %v3197 = vunpack.c.h.b16 %v1679
    %v3198 = vunpack.c.l.b16 %v1680
    %v3199 = vunpack.c.h.b16 %v1680
    %v3200 = vunpack.c.l.b16 %v1681
    %v3201 = vunpack.c.h.b16 %v1681
    %v3202 = vunpack.c.l.b16 %v1682
    %v3203 = vunpack.c.h.b16 %v1682
    %v3204 = vunpack.c.l.b16 %v1683
    %v3205 = vunpack.c.h.b16 %v1683
    %v3206 = vunpack.c.l.b16 %v1684
    %v3207 = vunpack.c.h.b16 %v1684
    %v3208 = vunpack.c.l.b16 %v1685
    %v3209 = vunpack.c.h.b16 %v1685
    %v3210 = vunpack.c.l.b16 %v1686
    %v3211 = vunpack.c.h.b16 %v1686
    %v3212 = vunpack.c.l.b16 %v1687
    %v3213 = vunpack.c.h.b16 %v1687
    %v3214 = vunpack.c.l.b16 %v1688
    %v3215 = vunpack.c.h.b16 %v1688
    %v3216 = vunpack.c.l.b16 %v1689
    %v3217 = vunpack.c.h.b16 %v1689
    %v3218 = vunpack.c.l.b16 %v1690
    %v3219 = vunpack.c.h.b16 %v1690
    %v3220 = vunpack.c.l.b16 %v1691
    %v3221 = vunpack.c.h.b16 %v1691
    %v3222 = vunpack.c.l.b16 %v1692
    %v3223 = vunpack.c.h.b16 %v1692
    %v3224 = vunpack.c.l.b16 %v1693
    %v3225 = vunpack.c.h.b16 %v1693
    %v3226 = vunpack.c.l.b16 %v1694
    %v3227 = vunpack.c.h.b16 %v1694
    %v3228 = vunpack.c.l.b16 %v1695
    %v3229 = vunpack.c.h.b16 %v1695
    %v3230 = vunpack.c.l.b16 %v1696
    %v3231 = vunpack.c.h.b16 %v1696
    %v3232 = vunpack.c.l.b16 %v1697
    %v3233 = vunpack.c.h.b16 %v1697
    %v3234 = vunpack.c.l.b16 %v1698
    %v3235 = vunpack.c.h.b16 %v1698
    %v3236 = vunpack.c.l.b16 %v1699
    %v3237 = vunpack.c.h.b16 %v1699
    %v3238 = vunpack.c.l.b16 %v1700
    %v3239 = vunpack.c.h.b16 %v1700
    %v3240 = vunpack.c.l.b16 %v1701
    %v3241 = vunpack.c.h.b16 %v1701
    %v3242 = vunpack.c.l.b16 %v1702
    %v3243 = vunpack.c.h.b16 %v1702
    %v3244 = vunpack.c.l.b16 %v1703
    %v3245 = vunpack.c.h.b16 %v1703
    %v3246 = vunpack.c.l.b16 %v1704
    %v3247 = vunpack.c.h.b16 %v1704
    %v3248 = vunpack.c.l.b16 %v1705
    %v3249 = vunpack.c.h.b16 %v1705
    %v3250 = vunpack.c.l.b16 %v1706
    %v3251 = vunpack.c.h.b16 %v1706
    %v3252 = vunpack.c.l.b16 %v1707
    %v3253 = vunpack.c.h.b16 %v1707
    %v3254 = vunpack.c.l.b16 %v1708
    %v3255 = vunpack.c.h.b16 %v1708
    %v3256 = vunpack.c.l.b16 %v1709
    %v3257 = vunpack.c.h.b16 %v1709
    %v3258 = vunpack.c.l.b16 %v1710
    %v3259 = vunpack.c.h.b16 %v1710
    %v3260 = vunpack.c.l.b16 %v1711
    %v3261 = vunpack.c.h.b16 %v1711
    %v3262 = vunpack.c.l.b16 %v1712
    %v3263 = vunpack.c.h.b16 %v1712
    %v3264 = vunpack.c.l.b16 %v1713
    %v3265 = vunpack.c.h.b16 %v1713
    %v3266 = vunpack.c.l.b16 %v1714
    %v3267 = vunpack.c.h.b16 %v1714
    %v3268 = vunpack.c.l.b16 %v1715
    %v3269 = vunpack.c.h.b16 %v1715
    %v3270 = vunpack.c.l.b16 %v1716
    %v3271 = vunpack.c.h.b16 %v1716
    %v3272 = vunpack.c.l.b16 %v1717
    %v3273 = vunpack.c.h.b16 %v1717
    %v3274 = vunpack.c.l.b16 %v1718
    %v3275 = vunpack.c.h.b16 %v1718
    %v3276 = vunpack.c.l.b16 %v1719
    %v3277 = vunpack.c.h.b16 %v1719
    %v3278 = vunpack.c.l.b16 %v1720
    %v3279 = vunpack.c.h.b16 %v1720
    %v3280 = vunpack.c.l.b16 %v1721
    %v3281 = vunpack.c.h.b16 %v1721
    %v3282 = vunpack.c.l.b16 %v1722
    %v3283 = vunpack.c.h.b16 %v1722
    %v3284 = vunpack.c.l.b16 %v1723
    %v3285 = vunpack.c.h.b16 %v1723
    %v3286 = vunpack.c.l.b16 %v1724
    %v3287 = vunpack.c.h.b16 %v1724
    %v3288 = vunpack.c.l.b16 %v1725
    %v3289 = vunpack.c.h.b16 %v1725
    %v3290 = vunpack.c.l.b16 %v1726
    %v3291 = vunpack.c.h.b16 %v1726
    %v3292 = vunpack.c.l.b16 %v1727
    %v3293 = vunpack.c.h.b16 %v1727
    %v3294 = vunpack.c.l.b16 %v1728
    %v3295 = vunpack.c.h.b16 %v1728
    %v3296 = vunpack.c.l.b16 %v1729
    %v3297 = vunpack.c.h.b16 %v1729
    %v3298 = vunpack.c.l.b16 %v1730
    %v3299 = vunpack.c.h.b16 %v1730
    %v3300 = vunpack.c.l.b16 %v1731
    %v3301 = vunpack.c.h.b16 %v1731
    %v3302 = vunpack.c.l.b16 %v1732
    %v3303 = vunpack.c.h.b16 %v1732
    %v3304 = vunpack.c.l.b16 %v1733
    %v3305 = vunpack.c.h.b16 %v1733
    %v3306 = vunpack.c.l.b16 %v1734
    %v3307 = vunpack.c.h.b16 %v1734
    %v3308 = vunpack.c.l.b16 %v1735
    %v3309 = vunpack.c.h.b16 %v1735
    %v3310 = vunpack.c.l.b16 %v1736
    %v3311 = vunpack.c.h.b16 %v1736
    %v3312 = vunpack.c.l.b16 %v1737
    %v3313 = vunpack.c.h.b16 %v1737
    %v3314 = vunpack.c.l.b16 %v1738
    %v3315 = vunpack.c.h.b16 %v1738
    %v3316 = vunpack.c.l.b16 %v1739
    %v3317 = vunpack.c.h.b16 %v1739
    %v3318 = vpack.c.b16 %v2302, %v2294
    %v3319 = vpack.c.b16 %v2303, %v2295
    %v3320 = vpack.c.b16 %v2304, %v2296
    %v3321 = vpack.c.b16 %v2305, %v2297
    %v3322 = vpack.c.b16 %v2306, %v2298
    %v3323 = vpack.c.b16 %v2307, %v2299
    %v3324 = vpack.c.b16 %v2308, %v2300
    %v3325 = vpack.c.b16 %v2309, %v2301
    %v3326 = vpack.c.b16 %v2318, %v2310
    %v3327 = vpack.c.b16 %v2319, %v2311
    %v3328 = vpack.c.b16 %v2320, %v2312
    %v3329 = vpack.c.b16 %v2321, %v2313
    %v3330 = vpack.c.b16 %v2322, %v2314
    %v3331 = vpack.c.b16 %v2323, %v2315
    %v3332 = vpack.c.b16 %v2324, %v2316
    %v3333 = vpack.c.b16 %v2325, %v2317
    %v3334 = vpack.c.b16 %v2334, %v2326
    %v3335 = vpack.c.b16 %v2335, %v2327
    %v3336 = vpack.c.b16 %v2336, %v2328
    %v3337 = vpack.c.b16 %v2337, %v2329
    %v3338 = vpack.c.b16 %v2338, %v2330
    %v3339 = vpack.c.b16 %v2339, %v2331
    %v3340 = vpack.c.b16 %v2340, %v2332
    %v3341 = vpack.c.b16 %v2341, %v2333
    %v3342 = vpack.c.b16 %v2350, %v2342
    %v3343 = vpack.c.b16 %v2351, %v2343
    %v3344 = vpack.c.b16 %v2352, %v2344
    %v3345 = vpack.c.b16 %v2353, %v2345
    %v3346 = vpack.c.b16 %v2354, %v2346
    %v3347 = vpack.c.b16 %v2355, %v2347
    %v3348 = vpack.c.b16 %v2356, %v2348
    %v3349 = vpack.c.b16 %v2357, %v2349
    %v3350 = vpack.c.b16 %v2366, %v2358
    %v3351 = vpack.c.b16 %v2367, %v2359
    %v3352 = vpack.c.b16 %v2368, %v2360
    %v3353 = vpack.c.b16 %v2369, %v2361
    %v3354 = vpack.c.b16 %v2370, %v2362
    %v3355 = vpack.c.b16 %v2371, %v2363
    %v3356 = vpack.c.b16 %v2372, %v2364
    %v3357 = vpack.c.b16 %v2373, %v2365
    %v3358 = vpack.c.b16 %v2382, %v2374
    %v3359 = vpack.c.b16 %v2383, %v2375
    %v3360 = vpack.c.b16 %v2384, %v2376
    %v3361 = vpack.c.b16 %v2385, %v2377
    %v3362 = vpack.c.b16 %v2386, %v2378
    %v3363 = vpack.c.b16 %v2387, %v2379
    %v3364 = vpack.c.b16 %v2388, %v2380
    %v3365 = vpack.c.b16 %v2389, %v2381
    %v3366 = vpack.c.b16 %v2398, %v2390
    %v3367 = vpack.c.b16 %v2399, %v2391
    %v3368 = vpack.c.b16 %v2400, %v2392
    %v3369 = vpack.c.b16 %v2401, %v2393
    %v3370 = vpack.c.b16 %v2402, %v2394
    %v3371 = vpack.c.b16 %v2403, %v2395
    %v3372 = vpack.c.b16 %v2404, %v2396
    %v3373 = vpack.c.b16 %v2405, %v2397
    %v3374 = vpack.c.b16 %v2414, %v2406
    %v3375 = vpack.c.b16 %v2415, %v2407
    %v3376 = vpack.c.b16 %v2416, %v2408
    %v3377 = vpack.c.b16 %v2417, %v2409
    %v3378 = vpack.c.b16 %v2418, %v2410
    %v3379 = vpack.c.b16 %v2419, %v2411
    %v3380 = vpack.c.b16 %v2420, %v2412
    %v3381 = vpack.c.b16 %v2421, %v2413
    %v3382 = vpack.c.b16 %v2430, %v2422
    %v3383 = vpack.c.b16 %v2431, %v2423
    %v3384 = vpack.c.b16 %v2432, %v2424
    %v3385 = vpack.c.b16 %v2433, %v2425
    %v3386 = vpack.c.b16 %v2434, %v2426
    %v3387 = vpack.c.b16 %v2435, %v2427
    %v3388 = vpack.c.b16 %v2436, %v2428
    %v3389 = vpack.c.b16 %v2437, %v2429
    %v3390 = vpack.c.b16 %v2446, %v2438
    %v3391 = vpack.c.b16 %v2447, %v2439
    %v3392 = vpack.c.b16 %v2448, %v2440
    %v3393 = vpack.c.b16 %v2449, %v2441
    %v3394 = vpack.c.b16 %v2450, %v2442
    %v3395 = vpack.c.b16 %v2451, %v2443
    %v3396 = vpack.c.b16 %v2452, %v2444
    %v3397 = vpack.c.b16 %v2453, %v2445
    %v3398 = vpack.c.b16 %v2462, %v2454
    %v3399 = vpack.c.b16 %v2463, %v2455
    %v3400 = vpack.c.b16 %v2464, %v2456
    %v3401 = vpack.c.b16 %v2465, %v2457
    %v3402 = vpack.c.b16 %v2466, %v2458
    %v3403 = vpack.c.b16 %v2467, %v2459
    %v3404 = vpack.c.b16 %v2468, %v2460
    %v3405 = vpack.c.b16 %v2469, %v2461
    %v3406 = vpack.c.b16 %v2478, %v2470
    %v3407 = vpack.c.b16 %v2479, %v2471
    %v3408 = vpack.c.b16 %v2480, %v2472
    %v3409 = vpack.c.b16 %v2481, %v2473
    %v3410 = vpack.c.b16 %v2482, %v2474
    %v3411 = vpack.c.b16 %v2483, %v2475
    %v3412 = vpack.c.b16 %v2484, %v2476
    %v3413 = vpack.c.b16 %v2485, %v2477
    %v3414 = vpack.c.b16 %v2494, %v2486
    %v3415 = vpack.c.b16 %v2495, %v2487
    %v3416 = vpack.c.b16 %v2496, %v2488
    %v3417 = vpack.c.b16 %v2497, %v2489
    %v3418 = vpack.c.b16 %v2498, %v2490
    %v3419 = vpack.c.b16 %v2499, %v2491
    %v3420 = vpack.c.b16 %v2500, %v2492
    %v3421 = vpack.c.b16 %v2501, %v2493
    %v3422 = vpack.c.b16 %v2510, %v2502
    %v3423 = vpack.c.b16 %v2511, %v2503
    %v3424 = vpack.c.b16 %v2512, %v2504
    %v3425 = vpack.c.b16 %v2513, %v2505
    %v3426 = vpack.c.b16 %v2514, %v2506
    %v3427 = vpack.c.b16 %v2515, %v2507
    %v3428 = vpack.c.b16 %v2516, %v2508
    %v3429 = vpack.c.b16 %v2517, %v2509
    %v3430 = vpack.c.b16 %v2526, %v2518
    %v3431 = vpack.c.b16 %v2527, %v2519
    %v3432 = vpack.c.b16 %v2528, %v2520
    %v3433 = vpack.c.b16 %v2529, %v2521
    %v3434 = vpack.c.b16 %v2530, %v2522
    %v3435 = vpack.c.b16 %v2531, %v2523
    %v3436 = vpack.c.b16 %v2532, %v2524
    %v3437 = vpack.c.b16 %v2533, %v2525
    %v3438 = vpack.c.b16 %v2542, %v2534
    %v3439 = vpack.c.b16 %v2543, %v2535
    %v3440 = vpack.c.b16 %v2544, %v2536
    %v3441 = vpack.c.b16 %v2545, %v2537
    %v3442 = vpack.c.b16 %v2546, %v2538
    %v3443 = vpack.c.b16 %v2547, %v2539
    %v3444 = vpack.c.b16 %v2548, %v2540
    %v3445 = vpack.c.b16 %v2549, %v2541
    %v3446 = vpack.c.b16 %v2558, %v2550
    %v3447 = vpack.c.b16 %v2559, %v2551
    %v3448 = vpack.c.b16 %v2560, %v2552
    %v3449 = vpack.c.b16 %v2561, %v2553
    %v3450 = vpack.c.b16 %v2562, %v2554
    %v3451 = vpack.c.b16 %v2563, %v2555
    %v3452 = vpack.c.b16 %v2564, %v2556
    %v3453 = vpack.c.b16 %v2565, %v2557
    %v3454 = vpack.c.b16 %v2574, %v2566
    %v3455 = vpack.c.b16 %v2575, %v2567
    %v3456 = vpack.c.b16 %v2576, %v2568
    %v3457 = vpack.c.b16 %v2577, %v2569
    %v3458 = vpack.c.b16 %v2578, %v2570
    %v3459 = vpack.c.b16 %v2579, %v2571
    %v3460 = vpack.c.b16 %v2580, %v2572
    %v3461 = vpack.c.b16 %v2581, %v2573
    %v3462 = vpack.c.b16 %v2590, %v2582
    %v3463 = vpack.c.b16 %v2591, %v2583
    %v3464 = vpack.c.b16 %v2592, %v2584
    %v3465 = vpack.c.b16 %v2593, %v2585
    %v3466 = vpack.c.b16 %v2594, %v2586
    %v3467 = vpack.c.b16 %v2595, %v2587
    %v3468 = vpack.c.b16 %v2596, %v2588
    %v3469 = vpack.c.b16 %v2597, %v2589
    %v3470 = vpack.c.b16 %v2606, %v2598
    %v3471 = vpack.c.b16 %v2607, %v2599
    %v3472 = vpack.c.b16 %v2608, %v2600
    %v3473 = vpack.c.b16 %v2609, %v2601
    %v3474 = vpack.c.b16 %v2610, %v2602
    %v3475 = vpack.c.b16 %v2611, %v2603
    %v3476 = vpack.c.b16 %v2612, %v2604
    %v3477 = vpack.c.b16 %v2613, %v2605
    %v3478 = vpack.c.b16 %v2622, %v2614
    %v3479 = vpack.c.b16 %v2623, %v2615
    %v3480 = vpack.c.b16 %v2624, %v2616
    %v3481 = vpack.c.b16 %v2625, %v2617
    %v3482 = vpack.c.b16 %v2626, %v2618
    %v3483 = vpack.c.b16 %v2627, %v2619
    %v3484 = vpack.c.b16 %v2628, %v2620
    %v3485 = vpack.c.b16 %v2629, %v2621
    %v3486 = vpack.c.b16 %v2638, %v2630
    %v3487 = vpack.c.b16 %v2639, %v2631
    %v3488 = vpack.c.b16 %v2640, %v2632
    %v3489 = vpack.c.b16 %v2641, %v2633
    %v3490 = vpack.c.b16 %v2642, %v2634
    %v3491 = vpack.c.b16 %v2643, %v2635
    %v3492 = vpack.c.b16 %v2644, %v2636
    %v3493 = vpack.c.b16 %v2645, %v2637
    %v3494 = vpack.c.b16 %v2654, %v2646
    %v3495 = vpack.c.b16 %v2655, %v2647
    %v3496 = vpack.c.b16 %v2656, %v2648
    %v3497 = vpack.c.b16 %v2657, %v2649
    %v3498 = vpack.c.b16 %v2658, %v2650
    %v3499 = vpack.c.b16 %v2659, %v2651
    %v3500 = vpack.c.b16 %v2660, %v2652
    %v3501 = vpack.c.b16 %v2661, %v2653
    %v3502 = vpack.c.b16 %v2670, %v2662
    %v3503 = vpack.c.b16 %v2671, %v2663
    %v3504 = vpack.c.b16 %v2672, %v2664
    %v3505 = vpack.c.b16 %v2673, %v2665
    %v3506 = vpack.c.b16 %v2674, %v2666
    %v3507 = vpack.c.b16 %v2675, %v2667
    %v3508 = vpack.c.b16 %v2676, %v2668
    %v3509 = vpack.c.b16 %v2677, %v2669
    %v3510 = vpack.c.b16 %v2686, %v2678
    %v3511 = vpack.c.b16 %v2687, %v2679
    %v3512 = vpack.c.b16 %v2688, %v2680
    %v3513 = vpack.c.b16 %v2689, %v2681
    %v3514 = vpack.c.b16 %v2690, %v2682
    %v3515 = vpack.c.b16 %v2691, %v2683
    %v3516 = vpack.c.b16 %v2692, %v2684
    %v3517 = vpack.c.b16 %v2693, %v2685
    %v3518 = vpack.c.b16 %v2702, %v2694
    %v3519 = vpack.c.b16 %v2703, %v2695
    %v3520 = vpack.c.b16 %v2704, %v2696
    %v3521 = vpack.c.b16 %v2705, %v2697
    %v3522 = vpack.c.b16 %v2706, %v2698
    %v3523 = vpack.c.b16 %v2707, %v2699
    %v3524 = vpack.c.b16 %v2708, %v2700
    %v3525 = vpack.c.b16 %v2709, %v2701
    %v3526 = vpack.c.b16 %v2718, %v2710
    %v3527 = vpack.c.b16 %v2719, %v2711
    %v3528 = vpack.c.b16 %v2720, %v2712
    %v3529 = vpack.c.b16 %v2721, %v2713
    %v3530 = vpack.c.b16 %v2722, %v2714
    %v3531 = vpack.c.b16 %v2723, %v2715
    %v3532 = vpack.c.b16 %v2724, %v2716
    %v3533 = vpack.c.b16 %v2725, %v2717
    %v3534 = vpack.c.b16 %v2734, %v2726
    %v3535 = vpack.c.b16 %v2735, %v2727
    %v3536 = vpack.c.b16 %v2736, %v2728
    %v3537 = vpack.c.b16 %v2737, %v2729
    %v3538 = vpack.c.b16 %v2738, %v2730
    %v3539 = vpack.c.b16 %v2739, %v2731
    %v3540 = vpack.c.b16 %v2740, %v2732
    %v3541 = vpack.c.b16 %v2741, %v2733
    %v3542 = vpack.c.b16 %v2750, %v2742
    %v3543 = vpack.c.b16 %v2751, %v2743
    %v3544 = vpack.c.b16 %v2752, %v2744
    %v3545 = vpack.c.b16 %v2753, %v2745
    %v3546 = vpack.c.b16 %v2754, %v2746
    %v3547 = vpack.c.b16 %v2755, %v2747
    %v3548 = vpack.c.b16 %v2756, %v2748
    %v3549 = vpack.c.b16 %v2757, %v2749
    %v3550 = vpack.c.b16 %v2766, %v2758
    %v3551 = vpack.c.b16 %v2767, %v2759
    %v3552 = vpack.c.b16 %v2768, %v2760
    %v3553 = vpack.c.b16 %v2769, %v2761
    %v3554 = vpack.c.b16 %v2770, %v2762
    %v3555 = vpack.c.b16 %v2771, %v2763
    %v3556 = vpack.c.b16 %v2772, %v2764
    %v3557 = vpack.c.b16 %v2773, %v2765
    %v3558 = vpack.c.b16 %v2782, %v2774
    %v3559 = vpack.c.b16 %v2783, %v2775
    %v3560 = vpack.c.b16 %v2784, %v2776
    %v3561 = vpack.c.b16 %v2785, %v2777
    %v3562 = vpack.c.b16 %v2786, %v2778
    %v3563 = vpack.c.b16 %v2787, %v2779
    %v3564 = vpack.c.b16 %v2788, %v2780
    %v3565 = vpack.c.b16 %v2789, %v2781
    %v3566 = vpack.c.b16 %v2798, %v2790
    %v3567 = vpack.c.b16 %v2799, %v2791
    %v3568 = vpack.c.b16 %v2800, %v2792
    %v3569 = vpack.c.b16 %v2801, %v2793
    %v3570 = vpack.c.b16 %v2802, %v2794
    %v3571 = vpack.c.b16 %v2803, %v2795
    %v3572 = vpack.c.b16 %v2804, %v2796
    %v3573 = vpack.c.b16 %v2805, %v2797
    %v3574 = vpack.c.b16 %v2814, %v2806
    %v3575 = vpack.c.b16 %v2815, %v2807
    %v3576 = vpack.c.b16 %v2816, %v2808
    %v3577 = vpack.c.b16 %v2817, %v2809
    %v3578 = vpack.c.b16 %v2818, %v2810
    %v3579 = vpack.c.b16 %v2819, %v2811
    %v3580 = vpack.c.b16 %v2820, %v2812
    %v3581 = vpack.c.b16 %v2821, %v2813
    %v3582 = vpack.c.b16 %v2830, %v2822
    %v3583 = vpack.c.b16 %v2831, %v2823
    %v3584 = vpack.c.b16 %v2832, %v2824
    %v3585 = vpack.c.b16 %v2833, %v2825
    %v3586 = vpack.c.b16 %v2834, %v2826
    %v3587 = vpack.c.b16 %v2835, %v2827
    %v3588 = vpack.c.b16 %v2836, %v2828
    %v3589 = vpack.c.b16 %v2837, %v2829
    %v3590 = vpack.c.b16 %v2846, %v2838
    %v3591 = vpack.c.b16 %v2847, %v2839
    %v3592 = vpack.c.b16 %v2848, %v2840
    %v3593 = vpack.c.b16 %v2849, %v2841
    %v3594 = vpack.c.b16 %v2850, %v2842
    %v3595 = vpack.c.b16 %v2851, %v2843
    %v3596 = vpack.c.b16 %v2852, %v2844
    %v3597 = vpack.c.b16 %v2853, %v2845
    %v3598 = vpack.c.b16 %v2862, %v2854
    %v3599 = vpack.c.b16 %v2863, %v2855
    %v3600 = vpack.c.b16 %v2864, %v2856
    %v3601 = vpack.c.b16 %v2865, %v2857
    %v3602 = vpack.c.b16 %v2866, %v2858
    %v3603 = vpack.c.b16 %v2867, %v2859
    %v3604 = vpack.c.b16 %v2868, %v2860
    %v3605 = vpack.c.b16 %v2869, %v2861
    %v3606 = vpack.c.b16 %v2878, %v2870
    %v3607 = vpack.c.b16 %v2879, %v2871
    %v3608 = vpack.c.b16 %v2880, %v2872
    %v3609 = vpack.c.b16 %v2881, %v2873
    %v3610 = vpack.c.b16 %v2882, %v2874
    %v3611 = vpack.c.b16 %v2883, %v2875
    %v3612 = vpack.c.b16 %v2884, %v2876
    %v3613 = vpack.c.b16 %v2885, %v2877
    %v3614 = vpack.c.b16 %v2894, %v2886
    %v3615 = vpack.c.b16 %v2895, %v2887
    %v3616 = vpack.c.b16 %v2896, %v2888
    %v3617 = vpack.c.b16 %v2897, %v2889
    %v3618 = vpack.c.b16 %v2898, %v2890
    %v3619 = vpack.c.b16 %v2899, %v2891
    %v3620 = vpack.c.b16 %v2900, %v2892
    %v3621 = vpack.c.b16 %v2901, %v2893
    %v3622 = vpack.c.b16 %v2910, %v2902
    %v3623 = vpack.c.b16 %v2911, %v2903
    %v3624 = vpack.c.b16 %v2912, %v2904
    %v3625 = vpack.c.b16 %v2913, %v2905
    %v3626 = vpack.c.b16 %v2914, %v2906
    %v3627 = vpack.c.b16 %v2915, %v2907
    %v3628 = vpack.c.b16 %v2916, %v2908
    %v3629 = vpack.c.b16 %v2917, %v2909
    %v3630 = vpack.c.b16 %v2926, %v2918
    %v3631 = vpack.c.b16 %v2927, %v2919
    %v3632 = vpack.c.b16 %v2928, %v2920
    %v3633 = vpack.c.b16 %v2929, %v2921
    %v3634 = vpack.c.b16 %v2930, %v2922
    %v3635 = vpack.c.b16 %v2931, %v2923
    %v3636 = vpack.c.b16 %v2932, %v2924
    %v3637 = vpack.c.b16 %v2933, %v2925
    %v3638 = vpack.c.b16 %v2942, %v2934
    %v3639 = vpack.c.b16 %v2943, %v2935
    %v3640 = vpack.c.b16 %v2944, %v2936
    %v3641 = vpack.c.b16 %v2945, %v2937
    %v3642 = vpack.c.b16 %v2946, %v2938
    %v3643 = vpack.c.b16 %v2947, %v2939
    %v3644 = vpack.c.b16 %v2948, %v2940
    %v3645 = vpack.c.b16 %v2949, %v2941
    %v3646 = vpack.c.b16 %v2958, %v2950
    %v3647 = vpack.c.b16 %v2959, %v2951
    %v3648 = vpack.c.b16 %v2960, %v2952
    %v3649 = vpack.c.b16 %v2961, %v2953
    %v3650 = vpack.c.b16 %v2962, %v2954
    %v3651 = vpack.c.b16 %v2963, %v2955
    %v3652 = vpack.c.b16 %v2964, %v2956
    %v3653 = vpack.c.b16 %v2965, %v2957
    %v3654 = vpack.c.b16 %v2974, %v2966
    %v3655 = vpack.c.b16 %v2975, %v2967
    %v3656 = vpack.c.b16 %v2976, %v2968
    %v3657 = vpack.c.b16 %v2977, %v2969
    %v3658 = vpack.c.b16 %v2978, %v2970
    %v3659 = vpack.c.b16 %v2979, %v2971
    %v3660 = vpack.c.b16 %v2980, %v2972
    %v3661 = vpack.c.b16 %v2981, %v2973
    %v3662 = vpack.c.b16 %v2990, %v2982
    %v3663 = vpack.c.b16 %v2991, %v2983
    %v3664 = vpack.c.b16 %v2992, %v2984
    %v3665 = vpack.c.b16 %v2993, %v2985
    %v3666 = vpack.c.b16 %v2994, %v2986
    %v3667 = vpack.c.b16 %v2995, %v2987
    %v3668 = vpack.c.b16 %v2996, %v2988
    %v3669 = vpack.c.b16 %v2997, %v2989
    %v3670 = vpack.c.b16 %v3006, %v2998
    %v3671 = vpack.c.b16 %v3007, %v2999
    %v3672 = vpack.c.b16 %v3008, %v3000
    %v3673 = vpack.c.b16 %v3009, %v3001
    %v3674 = vpack.c.b16 %v3010, %v3002
    %v3675 = vpack.c.b16 %v3011, %v3003
    %v3676 = vpack.c.b16 %v3012, %v3004
    %v3677 = vpack.c.b16 %v3013, %v3005
    %v3678 = vpack.c.b16 %v3022, %v3014
    %v3679 = vpack.c.b16 %v3023, %v3015
    %v3680 = vpack.c.b16 %v3024, %v3016
    %v3681 = vpack.c.b16 %v3025, %v3017
    %v3682 = vpack.c.b16 %v3026, %v3018
    %v3683 = vpack.c.b16 %v3027, %v3019
    %v3684 = vpack.c.b16 %v3028, %v3020
    %v3685 = vpack.c.b16 %v3029, %v3021
    %v3686 = vpack.c.b16 %v3038, %v3030
    %v3687 = vpack.c.b16 %v3039, %v3031
    %v3688 = vpack.c.b16 %v3040, %v3032
    %v3689 = vpack.c.b16 %v3041, %v3033
    %v3690 = vpack.c.b16 %v3042, %v3034
    %v3691 = vpack.c.b16 %v3043, %v3035
    %v3692 = vpack.c.b16 %v3044, %v3036
    %v3693 = vpack.c.b16 %v3045, %v3037
    %v3694 = vpack.c.b16 %v3054, %v3046
    %v3695 = vpack.c.b16 %v3055, %v3047
    %v3696 = vpack.c.b16 %v3056, %v3048
    %v3697 = vpack.c.b16 %v3057, %v3049
    %v3698 = vpack.c.b16 %v3058, %v3050
    %v3699 = vpack.c.b16 %v3059, %v3051
    %v3700 = vpack.c.b16 %v3060, %v3052
    %v3701 = vpack.c.b16 %v3061, %v3053
    %v3702 = vpack.c.b16 %v3070, %v3062
    %v3703 = vpack.c.b16 %v3071, %v3063
    %v3704 = vpack.c.b16 %v3072, %v3064
    %v3705 = vpack.c.b16 %v3073, %v3065
    %v3706 = vpack.c.b16 %v3074, %v3066
    %v3707 = vpack.c.b16 %v3075, %v3067
    %v3708 = vpack.c.b16 %v3076, %v3068
    %v3709 = vpack.c.b16 %v3077, %v3069
    %v3710 = vpack.c.b16 %v3086, %v3078
    %v3711 = vpack.c.b16 %v3087, %v3079
    %v3712 = vpack.c.b16 %v3088, %v3080
    %v3713 = vpack.c.b16 %v3089, %v3081
    %v3714 = vpack.c.b16 %v3090, %v3082
    %v3715 = vpack.c.b16 %v3091, %v3083
    %v3716 = vpack.c.b16 %v3092, %v3084
    %v3717 = vpack.c.b16 %v3093, %v3085
    %v3718 = vpack.c.b16 %v3102, %v3094
    %v3719 = vpack.c.b16 %v3103, %v3095
    %v3720 = vpack.c.b16 %v3104, %v3096
    %v3721 = vpack.c.b16 %v3105, %v3097
    %v3722 = vpack.c.b16 %v3106, %v3098
    %v3723 = vpack.c.b16 %v3107, %v3099
    %v3724 = vpack.c.b16 %v3108, %v3100
    %v3725 = vpack.c.b16 %v3109, %v3101
    %v3726 = vpack.c.b16 %v3118, %v3110
    %v3727 = vpack.c.b16 %v3119, %v3111
    %v3728 = vpack.c.b16 %v3120, %v3112
    %v3729 = vpack.c.b16 %v3121, %v3113
    %v3730 = vpack.c.b16 %v3122, %v3114
    %v3731 = vpack.c.b16 %v3123, %v3115
    %v3732 = vpack.c.b16 %v3124, %v3116
    %v3733 = vpack.c.b16 %v3125, %v3117
    %v3734 = vpack.c.b16 %v3134, %v3126
    %v3735 = vpack.c.b16 %v3135, %v3127
    %v3736 = vpack.c.b16 %v3136, %v3128
    %v3737 = vpack.c.b16 %v3137, %v3129
    %v3738 = vpack.c.b16 %v3138, %v3130
    %v3739 = vpack.c.b16 %v3139, %v3131
    %v3740 = vpack.c.b16 %v3140, %v3132
    %v3741 = vpack.c.b16 %v3141, %v3133
    %v3742 = vpack.c.b16 %v3150, %v3142
    %v3743 = vpack.c.b16 %v3151, %v3143
    %v3744 = vpack.c.b16 %v3152, %v3144
    %v3745 = vpack.c.b16 %v3153, %v3145
    %v3746 = vpack.c.b16 %v3154, %v3146
    %v3747 = vpack.c.b16 %v3155, %v3147
    %v3748 = vpack.c.b16 %v3156, %v3148
    %v3749 = vpack.c.b16 %v3157, %v3149
    %v3750 = vpack.c.b16 %v3166, %v3158
    %v3751 = vpack.c.b16 %v3167, %v3159
    %v3752 = vpack.c.b16 %v3168, %v3160
    %v3753 = vpack.c.b16 %v3169, %v3161
    %v3754 = vpack.c.b16 %v3170, %v3162
    %v3755 = vpack.c.b16 %v3171, %v3163
    %v3756 = vpack.c.b16 %v3172, %v3164
    %v3757 = vpack.c.b16 %v3173, %v3165
    %v3758 = vpack.c.b16 %v3182, %v3174
    %v3759 = vpack.c.b16 %v3183, %v3175
    %v3760 = vpack.c.b16 %v3184, %v3176
    %v3761 = vpack.c.b16 %v3185, %v3177
    %v3762 = vpack.c.b16 %v3186, %v3178
    %v3763 = vpack.c.b16 %v3187, %v3179
    %v3764 = vpack.c.b16 %v3188, %v3180
    %v3765 = vpack.c.b16 %v3189, %v3181
    %v3766 = vpack.c.b16 %v3198, %v3190
    %v3767 = vpack.c.b16 %v3199, %v3191
    %v3768 = vpack.c.b16 %v3200, %v3192
    %v3769 = vpack.c.b16 %v3201, %v3193
    %v3770 = vpack.c.b16 %v3202, %v3194
    %v3771 = vpack.c.b16 %v3203, %v3195
    %v3772 = vpack.c.b16 %v3204, %v3196
    %v3773 = vpack.c.b16 %v3205, %v3197
    %v3774 = vpack.c.b16 %v3214, %v3206
    %v3775 = vpack.c.b16 %v3215, %v3207
    %v3776 = vpack.c.b16 %v3216, %v3208
    %v3777 = vpack.c.b16 %v3217, %v3209
    %v3778 = vpack.c.b16 %v3218, %v3210
    %v3779 = vpack.c.b16 %v3219, %v3211
    %v3780 = vpack.c.b16 %v3220, %v3212
    %v3781 = vpack.c.b16 %v3221, %v3213
    %v3782 = vpack.c.b16 %v3230, %v3222
    %v3783 = vpack.c.b16 %v3231, %v3223
    %v3784 = vpack.c.b16 %v3232, %v3224
    %v3785 = vpack.c.b16 %v3233, %v3225
    %v3786 = vpack.c.b16 %v3234, %v3226
    %v3787 = vpack.c.b16 %v3235, %v3227
    %v3788 = vpack.c.b16 %v3236, %v3228
    %v3789 = vpack.c.b16 %v3237, %v3229
    %v3790 = vpack.c.b16 %v3246, %v3238
    %v3791 = vpack.c.b16 %v3247, %v3239
    %v3792 = vpack.c.b16 %v3248, %v3240
    %v3793 = vpack.c.b16 %v3249, %v3241
    %v3794 = vpack.c.b16 %v3250, %v3242
    %v3795 = vpack.c.b16 %v3251, %v3243
    %v3796 = vpack.c.b16 %v3252, %v3244
    %v3797 = vpack.c.b16 %v3253, %v3245
    %v3798 = vpack.c.b16 %v3262, %v3254
    %v3799 = vpack.c.b16 %v3263, %v3255
    %v3800 = vpack.c.b16 %v3264, %v3256
    %v3801 = vpack.c.b16 %v3265, %v3257
    %v3802 = vpack.c.b16 %v3266, %v3258
    %v3803 = vpack.c.b16 %v3267, %v3259
    %v3804 = vpack.c.b16 %v3268, %v3260
    %v3805 = vpack.c.b16 %v3269, %v3261
    %v3806 = vpack.c.b16 %v3278, %v3270
    %v3807 = vpack.c.b16 %v3279, %v3271
    %v3808 = vpack.c.b16 %v3280, %v3272
    %v3809 = vpack.c.b16 %v3281, %v3273
    %v3810 = vpack.c.b16 %v3282, %v3274
    %v3811 = vpack.c.b16 %v3283, %v3275
    %v3812 = vpack.c.b16 %v3284, %v3276
    %v3813 = vpack.c.b16 %v3285, %v3277
    %v3814 = vpack.c.b16 %v3294, %v3286
    %v3815 = vpack.c.b16 %v3295, %v3287
    %v3816 = vpack.c.b16 %v3296, %v3288
    %v3817 = vpack.c.b16 %v3297, %v3289
    %v3818 = vpack.c.b16 %v3298, %v3290
    %v3819 = vpack.c.b16 %v3299, %v3291
    %v3820 = vpack.c.b16 %v3300, %v3292
    %v3821 = vpack.c.b16 %v3301, %v3293
    %v3822 = vpack.c.b16 %v3310, %v3302
    %v3823 = vpack.c.b16 %v3311, %v3303
    %v3824 = vpack.c.b16 %v3312, %v3304
    %v3825 = vpack.c.b16 %v3313, %v3305
    %v3826 = vpack.c.b16 %v3314, %v3306
    %v3827 = vpack.c.b16 %v3315, %v3307
    %v3828 = vpack.c.b16 %v3316, %v3308
    %v3829 = vpack.c.b16 %v3317, %v3309
    %4342 = vmatprep.subr.bf16.mxu0 %v3375
    %4343 = vmatpush1.bf16.msra.mxu0 %v3374
    %4344 = vmatprep.subr.bf16.mxu0 %v3367
    %4345 = vmatpush1.bf16.msra.mxu0 %v3366
    %4346 = vmatprep.subr.bf16.mxu0 %v3359
    %4347 = vmatpush1.bf16.msra.mxu0 %v3358
    %4348 = vmatprep.subr.bf16.mxu0 %v3351
    %4349 = vmatpush1.bf16.msra.mxu0 %v3350
    %4350 = vmatprep.subr.bf16.mxu0 %v3343
    %4351 = vmatpush1.bf16.msra.mxu0 %v3342
    %4352 = vmatprep.subr.bf16.mxu0 %v3335
    %4353 = vmatpush1.bf16.msra.mxu0 %v3334
    %4354 = vmatprep.subr.bf16.mxu0 %v3327
    %4355 = vmatpush1.bf16.msra.mxu0 %v3326
    %4356 = vmatprep.subr.bf16.mxu0 %v3319
    %4357 = vmatpush1.bf16.msra.mxu0 %v3318
    %4358 = vmatprep.subr.bf16.mxu0 %v3439
    %4359 = vmatpush2.bf16.msra.mxu0 %v3438
    %4360 = vmatprep.subr.bf16.mxu0 %v3431
    %4361 = vmatpush2.bf16.msra.mxu0 %v3430
    %4362 = vmatprep.subr.bf16.mxu0 %v3423
    %4363 = vmatpush2.bf16.msra.mxu0 %v3422
    %4364 = vmatprep.subr.bf16.mxu0 %v3415
    %4365 = vmatpush2.bf16.msra.mxu0 %v3414
    %4366 = vmatprep.subr.bf16.mxu0 %v3407
    %4367 = vmatpush2.bf16.msra.mxu0 %v3406
    %4368 = vmatprep.subr.bf16.mxu0 %v3399
    %4369 = vmatpush2.bf16.msra.mxu0 %v3398
    %4370 = vmatprep.subr.bf16.mxu0 %v3391
    %4371 = vmatpush2.bf16.msra.mxu0 %v3390
    %4372 = vmatprep.subr.bf16.mxu0 %v3383
    %4373 = vmatpush2.bf16.msra.mxu0 %v3382
    %4374 = vmatprep.mubr.bf16.mxu0 %v1221
    %4375 = vmatmul.mubr.bf16.gmra.mxu0 %v1220
    %v4376 = vpop.f32.mrf.mxu0
    %v4377 = vadd.f32 %v1745, %v4376
    %v4378 = vpop.f32.mrf.mxu0
    %v4379 = vadd.f32 %v1749, %v4378
    %v4380 = vpop.f32.mrf.mxu0
    %v4381 = vpop.f32.mrf.mxu0
    %4382 = vdwg.mxu0
    %4383 = vmatprep.subr.bf16.mxu0 %v3503
    %4384 = vmatpush1.bf16.msra.mxu0 %v3502
    %4385 = vmatprep.subr.bf16.mxu0 %v3495
    %4386 = vmatpush1.bf16.msra.mxu0 %v3494
    %4387 = vmatprep.subr.bf16.mxu0 %v3487
    %4388 = vmatpush1.bf16.msra.mxu0 %v3486
    %4389 = vmatprep.subr.bf16.mxu0 %v3479
    %4390 = vmatpush1.bf16.msra.mxu0 %v3478
    %4391 = vmatprep.subr.bf16.mxu0 %v3471
    %4392 = vmatpush1.bf16.msra.mxu0 %v3470
    %4393 = vmatprep.subr.bf16.mxu0 %v3463
    %4394 = vmatpush1.bf16.msra.mxu0 %v3462
    %4395 = vmatprep.subr.bf16.mxu0 %v3455
    %4396 = vmatpush1.bf16.msra.mxu0 %v3454
    %4397 = vmatprep.subr.bf16.mxu0 %v3447
    %4398 = vmatpush1.bf16.msra.mxu0 %v3446
    %4399 = vmatprep.subr.bf16.mxu0 %v3567
    %4400 = vmatpush2.bf16.msra.mxu0 %v3566
    %4401 = vmatprep.subr.bf16.mxu0 %v3559
    %4402 = vmatpush2.bf16.msra.mxu0 %v3558
    %4403 = vmatprep.subr.bf16.mxu0 %v3551
    %4404 = vmatpush2.bf16.msra.mxu0 %v3550
    %4405 = vmatprep.subr.bf16.mxu0 %v3543
    %4406 = vmatpush2.bf16.msra.mxu0 %v3542
    %4407 = vmatprep.subr.bf16.mxu0 %v3535
    %4408 = vmatpush2.bf16.msra.mxu0 %v3534
    %4409 = vmatprep.subr.bf16.mxu0 %v3527
    %4410 = vmatpush2.bf16.msra.mxu0 %v3526
    %4411 = vmatprep.subr.bf16.mxu0 %v3519
    %4412 = vmatpush2.bf16.msra.mxu0 %v3518
    %4413 = vmatprep.subr.bf16.mxu0 %v3511
    %4414 = vmatpush2.bf16.msra.mxu0 %v3510
    %4415 = vmatprep.mubr.bf16.mxu0 %v1223
    %4416 = vmatmul.mubr.bf16.gmra.mxu0 %v1222
    %v4417 = vpop.f32.mrf.mxu0
    %v4418 = vadd.f32 %v4377, %v4417
    %v4419 = vpop.f32.mrf.mxu0
    %v4420 = vadd.f32 %v4379, %v4419
    %v4421 = vpop.f32.mrf.mxu0
    %v4422 = vpop.f32.mrf.mxu0
    %4423 = vdwg.mxu0
    %4424 = vmatprep.subr.bf16.mxu0 %v3631
    %4425 = vmatpush1.bf16.msra.mxu0 %v3630
    %4426 = vmatprep.subr.bf16.mxu0 %v3623
    %4427 = vmatpush1.bf16.msra.mxu0 %v3622
    %4428 = vmatprep.subr.bf16.mxu0 %v3615
    %4429 = vmatpush1.bf16.msra.mxu0 %v3614
    %4430 = vmatprep.subr.bf16.mxu0 %v3607
    %4431 = vmatpush1.bf16.msra.mxu0 %v3606
    %4432 = vmatprep.subr.bf16.mxu0 %v3599
    %4433 = vmatpush1.bf16.msra.mxu0 %v3598
    %4434 = vmatprep.subr.bf16.mxu0 %v3591
    %4435 = vmatpush1.bf16.msra.mxu0 %v3590
    %4436 = vmatprep.subr.bf16.mxu0 %v3583
    %4437 = vmatpush1.bf16.msra.mxu0 %v3582
    %4438 = vmatprep.subr.bf16.mxu0 %v3575
    %4439 = vmatpush1.bf16.msra.mxu0 %v3574
    %4440 = vmatprep.subr.bf16.mxu0 %v3695
    %4441 = vmatpush2.bf16.msra.mxu0 %v3694
    %4442 = vmatprep.subr.bf16.mxu0 %v3687
    %4443 = vmatpush2.bf16.msra.mxu0 %v3686
    %4444 = vmatprep.subr.bf16.mxu0 %v3679
    %4445 = vmatpush2.bf16.msra.mxu0 %v3678
    %4446 = vmatprep.subr.bf16.mxu0 %v3671
    %4447 = vmatpush2.bf16.msra.mxu0 %v3670
    %4448 = vmatprep.subr.bf16.mxu0 %v3663
    %4449 = vmatpush2.bf16.msra.mxu0 %v3662
    %4450 = vmatprep.subr.bf16.mxu0 %v3655
    %4451 = vmatpush2.bf16.msra.mxu0 %v3654
    %4452 = vmatprep.subr.bf16.mxu0 %v3647
    %4453 = vmatpush2.bf16.msra.mxu0 %v3646
    %4454 = vmatprep.subr.bf16.mxu0 %v3639
    %4455 = vmatpush2.bf16.msra.mxu0 %v3638
    %4456 = vmatprep.mubr.bf16.mxu0 %v1225
    %4457 = vmatmul.mubr.bf16.gmra.mxu0 %v1224
    %v4458 = vpop.f32.mrf.mxu0
    %v4459 = vadd.f32 %v4418, %v4458
    %v4460 = vpop.f32.mrf.mxu0
    %v4461 = vadd.f32 %v4420, %v4460
    %v4462 = vpop.f32.mrf.mxu0
    %v4463 = vpop.f32.mrf.mxu0
    %4464 = vdwg.mxu0
    %4465 = vmatprep.subr.bf16.mxu0 %v3759
    %4466 = vmatpush1.bf16.msra.mxu0 %v3758
    %4467 = vmatprep.subr.bf16.mxu0 %v3751
    %4468 = vmatpush1.bf16.msra.mxu0 %v3750
    %4469 = vmatprep.subr.bf16.mxu0 %v3743
    %4470 = vmatpush1.bf16.msra.mxu0 %v3742
    %4471 = vmatprep.subr.bf16.mxu0 %v3735
    %4472 = vmatpush1.bf16.msra.mxu0 %v3734
    %4473 = vmatprep.subr.bf16.mxu0 %v3727
    %4474 = vmatpush1.bf16.msra.mxu0 %v3726
    %4475 = vmatprep.subr.bf16.mxu0 %v3719
    %4476 = vmatpush1.bf16.msra.mxu0 %v3718
    %4477 = vmatprep.subr.bf16.mxu0 %v3711
    %4478 = vmatpush1.bf16.msra.mxu0 %v3710
    %4479 = vmatprep.subr.bf16.mxu0 %v3703
    %4480 = vmatpush1.bf16.msra.mxu0 %v3702
    %4481 = vmatprep.subr.bf16.mxu0 %v3823
    %4482 = vmatpush2.bf16.msra.mxu0 %v3822
    %4483 = vmatprep.subr.bf16.mxu0 %v3815
    %4484 = vmatpush2.bf16.msra.mxu0 %v3814
    %4485 = vmatprep.subr.bf16.mxu0 %v3807
    %4486 = vmatpush2.bf16.msra.mxu0 %v3806
    %4487 = vmatprep.subr.bf16.mxu0 %v3799
    %4488 = vmatpush2.bf16.msra.mxu0 %v3798
    %4489 = vmatprep.subr.bf16.mxu0 %v3791
    %4490 = vmatpush2.bf16.msra.mxu0 %v3790
    %4491 = vmatprep.subr.bf16.mxu0 %v3783
    %4492 = vmatpush2.bf16.msra.mxu0 %v3782
    %4493 = vmatprep.subr.bf16.mxu0 %v3775
    %4494 = vmatpush2.bf16.msra.mxu0 %v3774
    %4495 = vmatprep.subr.bf16.mxu0 %v3767
    %4496 = vmatpush2.bf16.msra.mxu0 %v3766
    %4497 = vmatprep.mubr.bf16.mxu0 %v1227
    %4498 = vmatmul.mubr.bf16.gmra.mxu0 %v1226
    %v4499 = vpop.f32.mrf.mxu0
    %v4500 = vadd.f32 %v4459, %v4499
    %v4501 = vpop.f32.mrf.mxu0
    %v4502 = vadd.f32 %v4461, %v4501
    %v4503 = vpop.f32.mrf.mxu0
    %v4504 = vpop.f32.mrf.mxu0
    %4505 = vdwg.mxu0
    %4506 = vmatprep.subr.bf16.mxu0 %v3377
    %4507 = vmatpush1.bf16.msra.mxu0 %v3376
    %4508 = vmatprep.subr.bf16.mxu0 %v3369
    %4509 = vmatpush1.bf16.msra.mxu0 %v3368
    %4510 = vmatprep.subr.bf16.mxu0 %v3361
    %4511 = vmatpush1.bf16.msra.mxu0 %v3360
    %4512 = vmatprep.subr.bf16.mxu0 %v3353
    %4513 = vmatpush1.bf16.msra.mxu0 %v3352
    %4514 = vmatprep.subr.bf16.mxu0 %v3345
    %4515 = vmatpush1.bf16.msra.mxu0 %v3344
    %4516 = vmatprep.subr.bf16.mxu0 %v3337
    %4517 = vmatpush1.bf16.msra.mxu0 %v3336
    %4518 = vmatprep.subr.bf16.mxu0 %v3329
    %4519 = vmatpush1.bf16.msra.mxu0 %v3328
    %4520 = vmatprep.subr.bf16.mxu0 %v3321
    %4521 = vmatpush1.bf16.msra.mxu0 %v3320
    %4522 = vmatprep.subr.bf16.mxu0 %v3441
    %4523 = vmatpush2.bf16.msra.mxu0 %v3440
    %4524 = vmatprep.subr.bf16.mxu0 %v3433
    %4525 = vmatpush2.bf16.msra.mxu0 %v3432
    %4526 = vmatprep.subr.bf16.mxu0 %v3425
    %4527 = vmatpush2.bf16.msra.mxu0 %v3424
    %4528 = vmatprep.subr.bf16.mxu0 %v3417
    %4529 = vmatpush2.bf16.msra.mxu0 %v3416
    %4530 = vmatprep.subr.bf16.mxu0 %v3409
    %4531 = vmatpush2.bf16.msra.mxu0 %v3408
    %4532 = vmatprep.subr.bf16.mxu0 %v3401
    %4533 = vmatpush2.bf16.msra.mxu0 %v3400
    %4534 = vmatprep.subr.bf16.mxu0 %v3393
    %4535 = vmatpush2.bf16.msra.mxu0 %v3392
    %4536 = vmatprep.subr.bf16.mxu0 %v3385
    %4537 = vmatpush2.bf16.msra.mxu0 %v3384
    %4538 = vmatprep.mubr.bf16.mxu0 %v1221
    %4539 = vmatmul.mubr.bf16.gmra.mxu0 %v1220
    %v4540 = vpop.f32.mrf.mxu0
    %v4541 = vadd.f32 %v1753, %v4540
    %v4542 = vpop.f32.mrf.mxu0
    %v4543 = vadd.f32 %v1757, %v4542
    %v4544 = vpop.f32.mrf.mxu0
    %v4545 = vpop.f32.mrf.mxu0
    %4546 = vdwg.mxu0
    %4547 = vmatprep.subr.bf16.mxu0 %v3505
    %4548 = vmatpush1.bf16.msra.mxu0 %v3504
    %4549 = vmatprep.subr.bf16.mxu0 %v3497
    %4550 = vmatpush1.bf16.msra.mxu0 %v3496
    %4551 = vmatprep.subr.bf16.mxu0 %v3489
    %4552 = vmatpush1.bf16.msra.mxu0 %v3488
    %4553 = vmatprep.subr.bf16.mxu0 %v3481
    %4554 = vmatpush1.bf16.msra.mxu0 %v3480
    %4555 = vmatprep.subr.bf16.mxu0 %v3473
    %4556 = vmatpush1.bf16.msra.mxu0 %v3472
    %4557 = vmatprep.subr.bf16.mxu0 %v3465
    %4558 = vmatpush1.bf16.msra.mxu0 %v3464
    %4559 = vmatprep.subr.bf16.mxu0 %v3457
    %4560 = vmatpush1.bf16.msra.mxu0 %v3456
    %4561 = vmatprep.subr.bf16.mxu0 %v3449
    %4562 = vmatpush1.bf16.msra.mxu0 %v3448
    %4563 = vmatprep.subr.bf16.mxu0 %v3569
    %4564 = vmatpush2.bf16.msra.mxu0 %v3568
    %4565 = vmatprep.subr.bf16.mxu0 %v3561
    %4566 = vmatpush2.bf16.msra.mxu0 %v3560
    %4567 = vmatprep.subr.bf16.mxu0 %v3553
    %4568 = vmatpush2.bf16.msra.mxu0 %v3552
    %4569 = vmatprep.subr.bf16.mxu0 %v3545
    %4570 = vmatpush2.bf16.msra.mxu0 %v3544
    %4571 = vmatprep.subr.bf16.mxu0 %v3537
    %4572 = vmatpush2.bf16.msra.mxu0 %v3536
    %4573 = vmatprep.subr.bf16.mxu0 %v3529
    %4574 = vmatpush2.bf16.msra.mxu0 %v3528
    %4575 = vmatprep.subr.bf16.mxu0 %v3521
    %4576 = vmatpush2.bf16.msra.mxu0 %v3520
    %4577 = vmatprep.subr.bf16.mxu0 %v3513
    %4578 = vmatpush2.bf16.msra.mxu0 %v3512
    %4579 = vmatprep.mubr.bf16.mxu0 %v1223
    %4580 = vmatmul.mubr.bf16.gmra.mxu0 %v1222
    %v4581 = vpop.f32.mrf.mxu0
    %v4582 = vadd.f32 %v4541, %v4581
    %v4583 = vpop.f32.mrf.mxu0
    %v4584 = vadd.f32 %v4543, %v4583
    %v4585 = vpop.f32.mrf.mxu0
    %v4586 = vpop.f32.mrf.mxu0
    %4587 = vdwg.mxu0
    %4588 = vmatprep.subr.bf16.mxu0 %v3633
    %4589 = vmatpush1.bf16.msra.mxu0 %v3632
    %4590 = vmatprep.subr.bf16.mxu0 %v3625
    %4591 = vmatpush1.bf16.msra.mxu0 %v3624
    %4592 = vmatprep.subr.bf16.mxu0 %v3617
    %4593 = vmatpush1.bf16.msra.mxu0 %v3616
    %4594 = vmatprep.subr.bf16.mxu0 %v3609
    %4595 = vmatpush1.bf16.msra.mxu0 %v3608
    %4596 = vmatprep.subr.bf16.mxu0 %v3601
    %4597 = vmatpush1.bf16.msra.mxu0 %v3600
    %4598 = vmatprep.subr.bf16.mxu0 %v3593
    %4599 = vmatpush1.bf16.msra.mxu0 %v3592
    %4600 = vmatprep.subr.bf16.mxu0 %v3585
    %4601 = vmatpush1.bf16.msra.mxu0 %v3584
    %4602 = vmatprep.subr.bf16.mxu0 %v3577
    %4603 = vmatpush1.bf16.msra.mxu0 %v3576
    %4604 = vmatprep.subr.bf16.mxu0 %v3697
    %4605 = vmatpush2.bf16.msra.mxu0 %v3696
    %4606 = vmatprep.subr.bf16.mxu0 %v3689
    %4607 = vmatpush2.bf16.msra.mxu0 %v3688
    %4608 = vmatprep.subr.bf16.mxu0 %v3681
    %4609 = vmatpush2.bf16.msra.mxu0 %v3680
    %4610 = vmatprep.subr.bf16.mxu0 %v3673
    %4611 = vmatpush2.bf16.msra.mxu0 %v3672
    %4612 = vmatprep.subr.bf16.mxu0 %v3665
    %4613 = vmatpush2.bf16.msra.mxu0 %v3664
    %4614 = vmatprep.subr.bf16.mxu0 %v3657
    %4615 = vmatpush2.bf16.msra.mxu0 %v3656
    %4616 = vmatprep.subr.bf16.mxu0 %v3649
    %4617 = vmatpush2.bf16.msra.mxu0 %v3648
    %4618 = vmatprep.subr.bf16.mxu0 %v3641
    %4619 = vmatpush2.bf16.msra.mxu0 %v3640
    %4620 = vmatprep.mubr.bf16.mxu0 %v1225
    %4621 = vmatmul.mubr.bf16.gmra.mxu0 %v1224
    %v4622 = vpop.f32.mrf.mxu0
    %v4623 = vadd.f32 %v4582, %v4622
    %v4624 = vpop.f32.mrf.mxu0
    %v4625 = vadd.f32 %v4584, %v4624
    %v4626 = vpop.f32.mrf.mxu0
    %v4627 = vpop.f32.mrf.mxu0
    %4628 = vdwg.mxu0
    %4629 = vmatprep.subr.bf16.mxu0 %v3761
    %4630 = vmatpush1.bf16.msra.mxu0 %v3760
    %4631 = vmatprep.subr.bf16.mxu0 %v3753
    %4632 = vmatpush1.bf16.msra.mxu0 %v3752
    %4633 = vmatprep.subr.bf16.mxu0 %v3745
    %4634 = vmatpush1.bf16.msra.mxu0 %v3744
    %4635 = vmatprep.subr.bf16.mxu0 %v3737
    %4636 = vmatpush1.bf16.msra.mxu0 %v3736
    %4637 = vmatprep.subr.bf16.mxu0 %v3729
    %4638 = vmatpush1.bf16.msra.mxu0 %v3728
    %4639 = vmatprep.subr.bf16.mxu0 %v3721
    %4640 = vmatpush1.bf16.msra.mxu0 %v3720
    %4641 = vmatprep.subr.bf16.mxu0 %v3713
    %4642 = vmatpush1.bf16.msra.mxu0 %v3712
    %4643 = vmatprep.subr.bf16.mxu0 %v3705
    %4644 = vmatpush1.bf16.msra.mxu0 %v3704
    %4645 = vmatprep.subr.bf16.mxu0 %v3825
    %4646 = vmatpush2.bf16.msra.mxu0 %v3824
    %4647 = vmatprep.subr.bf16.mxu0 %v3817
    %4648 = vmatpush2.bf16.msra.mxu0 %v3816
    %4649 = vmatprep.subr.bf16.mxu0 %v3809
    %4650 = vmatpush2.bf16.msra.mxu0 %v3808
    %4651 = vmatprep.subr.bf16.mxu0 %v3801
    %4652 = vmatpush2.bf16.msra.mxu0 %v3800
    %4653 = vmatprep.subr.bf16.mxu0 %v3793
    %4654 = vmatpush2.bf16.msra.mxu0 %v3792
    %4655 = vmatprep.subr.bf16.mxu0 %v3785
    %4656 = vmatpush2.bf16.msra.mxu0 %v3784
    %4657 = vmatprep.subr.bf16.mxu0 %v3777
    %4658 = vmatpush2.bf16.msra.mxu0 %v3776
    %4659 = vmatprep.subr.bf16.mxu0 %v3769
    %4660 = vmatpush2.bf16.msra.mxu0 %v3768
    %4661 = vmatprep.mubr.bf16.mxu0 %v1227
    %4662 = vmatmul.mubr.bf16.gmra.mxu0 %v1226
    %v4663 = vpop.f32.mrf.mxu0
    %v4664 = vadd.f32 %v4623, %v4663
    %v4665 = vpop.f32.mrf.mxu0
    %v4666 = vadd.f32 %v4625, %v4665
    %v4667 = vpop.f32.mrf.mxu0
    %v4668 = vpop.f32.mrf.mxu0
    %4669 = vdwg.mxu0
    %4670 = vmatprep.subr.bf16.mxu0 %v3379
    %4671 = vmatpush1.bf16.msra.mxu0 %v3378
    %4672 = vmatprep.subr.bf16.mxu0 %v3371
    %4673 = vmatpush1.bf16.msra.mxu0 %v3370
    %4674 = vmatprep.subr.bf16.mxu0 %v3363
    %4675 = vmatpush1.bf16.msra.mxu0 %v3362
    %4676 = vmatprep.subr.bf16.mxu0 %v3355
    %4677 = vmatpush1.bf16.msra.mxu0 %v3354
    %4678 = vmatprep.subr.bf16.mxu0 %v3347
    %4679 = vmatpush1.bf16.msra.mxu0 %v3346
    %4680 = vmatprep.subr.bf16.mxu0 %v3339
    %4681 = vmatpush1.bf16.msra.mxu0 %v3338
    %4682 = vmatprep.subr.bf16.mxu0 %v3331
    %4683 = vmatpush1.bf16.msra.mxu0 %v3330
    %4684 = vmatprep.subr.bf16.mxu0 %v3323
    %4685 = vmatpush1.bf16.msra.mxu0 %v3322
    %4686 = vmatprep.subr.bf16.mxu0 %v3443
    %4687 = vmatpush2.bf16.msra.mxu0 %v3442
    %4688 = vmatprep.subr.bf16.mxu0 %v3435
    %4689 = vmatpush2.bf16.msra.mxu0 %v3434
    %4690 = vmatprep.subr.bf16.mxu0 %v3427
    %4691 = vmatpush2.bf16.msra.mxu0 %v3426
    %4692 = vmatprep.subr.bf16.mxu0 %v3419
    %4693 = vmatpush2.bf16.msra.mxu0 %v3418
    %4694 = vmatprep.subr.bf16.mxu0 %v3411
    %4695 = vmatpush2.bf16.msra.mxu0 %v3410
    %4696 = vmatprep.subr.bf16.mxu0 %v3403
    %4697 = vmatpush2.bf16.msra.mxu0 %v3402
    %4698 = vmatprep.subr.bf16.mxu0 %v3395
    %4699 = vmatpush2.bf16.msra.mxu0 %v3394
    %4700 = vmatprep.subr.bf16.mxu0 %v3387
    %4701 = vmatpush2.bf16.msra.mxu0 %v3386
    %4702 = vmatprep.mubr.bf16.mxu0 %v1221
    %4703 = vmatmul.mubr.bf16.gmra.mxu0 %v1220
    %v4704 = vpop.f32.mrf.mxu0
    %v4705 = vadd.f32 %v1761, %v4704
    %v4706 = vpop.f32.mrf.mxu0
    %v4707 = vadd.f32 %v1765, %v4706
    %v4708 = vpop.f32.mrf.mxu0
    %v4709 = vpop.f32.mrf.mxu0
    %4710 = vdwg.mxu0
    %4711 = vmatprep.subr.bf16.mxu0 %v3507
    %4712 = vmatpush1.bf16.msra.mxu0 %v3506
    %4713 = vmatprep.subr.bf16.mxu0 %v3499
    %4714 = vmatpush1.bf16.msra.mxu0 %v3498
    %4715 = vmatprep.subr.bf16.mxu0 %v3491
    %4716 = vmatpush1.bf16.msra.mxu0 %v3490
    %4717 = vmatprep.subr.bf16.mxu0 %v3483
    %4718 = vmatpush1.bf16.msra.mxu0 %v3482
    %4719 = vmatprep.subr.bf16.mxu0 %v3475
    %4720 = vmatpush1.bf16.msra.mxu0 %v3474
    %4721 = vmatprep.subr.bf16.mxu0 %v3467
    %4722 = vmatpush1.bf16.msra.mxu0 %v3466
    %4723 = vmatprep.subr.bf16.mxu0 %v3459
    %4724 = vmatpush1.bf16.msra.mxu0 %v3458
    %4725 = vmatprep.subr.bf16.mxu0 %v3451
    %4726 = vmatpush1.bf16.msra.mxu0 %v3450
    %4727 = vmatprep.subr.bf16.mxu0 %v3571
    %4728 = vmatpush2.bf16.msra.mxu0 %v3570
    %4729 = vmatprep.subr.bf16.mxu0 %v3563
    %4730 = vmatpush2.bf16.msra.mxu0 %v3562
    %4731 = vmatprep.subr.bf16.mxu0 %v3555
    %4732 = vmatpush2.bf16.msra.mxu0 %v3554
    %4733 = vmatprep.subr.bf16.mxu0 %v3547
    %4734 = vmatpush2.bf16.msra.mxu0 %v3546
    %4735 = vmatprep.subr.bf16.mxu0 %v3539
    %4736 = vmatpush2.bf16.msra.mxu0 %v3538
    %4737 = vmatprep.subr.bf16.mxu0 %v3531
    %4738 = vmatpush2.bf16.msra.mxu0 %v3530
    %4739 = vmatprep.subr.bf16.mxu0 %v3523
    %4740 = vmatpush2.bf16.msra.mxu0 %v3522
    %4741 = vmatprep.subr.bf16.mxu0 %v3515
    %4742 = vmatpush2.bf16.msra.mxu0 %v3514
    %4743 = vmatprep.mubr.bf16.mxu0 %v1223
    %4744 = vmatmul.mubr.bf16.gmra.mxu0 %v1222
    %v4745 = vpop.f32.mrf.mxu0
    %v4746 = vadd.f32 %v4705, %v4745
    %v4747 = vpop.f32.mrf.mxu0
    %v4748 = vadd.f32 %v4707, %v4747
    %v4749 = vpop.f32.mrf.mxu0
    %v4750 = vpop.f32.mrf.mxu0
    %4751 = vdwg.mxu0
    %4752 = vmatprep.subr.bf16.mxu0 %v3635
    %4753 = vmatpush1.bf16.msra.mxu0 %v3634
    %4754 = vmatprep.subr.bf16.mxu0 %v3627
    %4755 = vmatpush1.bf16.msra.mxu0 %v3626
    %4756 = vmatprep.subr.bf16.mxu0 %v3619
    %4757 = vmatpush1.bf16.msra.mxu0 %v3618
    %4758 = vmatprep.subr.bf16.mxu0 %v3611
    %4759 = vmatpush1.bf16.msra.mxu0 %v3610
    %4760 = vmatprep.subr.bf16.mxu0 %v3603
    %4761 = vmatpush1.bf16.msra.mxu0 %v3602
    %4762 = vmatprep.subr.bf16.mxu0 %v3595
    %4763 = vmatpush1.bf16.msra.mxu0 %v3594
    %4764 = vmatprep.subr.bf16.mxu0 %v3587
    %4765 = vmatpush1.bf16.msra.mxu0 %v3586
    %4766 = vmatprep.subr.bf16.mxu0 %v3579
    %4767 = vmatpush1.bf16.msra.mxu0 %v3578
    %4768 = vmatprep.subr.bf16.mxu0 %v3699
    %4769 = vmatpush2.bf16.msra.mxu0 %v3698
    %4770 = vmatprep.subr.bf16.mxu0 %v3691
    %4771 = vmatpush2.bf16.msra.mxu0 %v3690
    %4772 = vmatprep.subr.bf16.mxu0 %v3683
    %4773 = vmatpush2.bf16.msra.mxu0 %v3682
    %4774 = vmatprep.subr.bf16.mxu0 %v3675
    %4775 = vmatpush2.bf16.msra.mxu0 %v3674
    %4776 = vmatprep.subr.bf16.mxu0 %v3667
    %4777 = vmatpush2.bf16.msra.mxu0 %v3666
    %4778 = vmatprep.subr.bf16.mxu0 %v3659
    %4779 = vmatpush2.bf16.msra.mxu0 %v3658
    %4780 = vmatprep.subr.bf16.mxu0 %v3651
    %4781 = vmatpush2.bf16.msra.mxu0 %v3650
    %4782 = vmatprep.subr.bf16.mxu0 %v3643
    %4783 = vmatpush2.bf16.msra.mxu0 %v3642
    %4784 = vmatprep.mubr.bf16.mxu0 %v1225
    %4785 = vmatmul.mubr.bf16.gmra.mxu0 %v1224
    %v4786 = vpop.f32.mrf.mxu0
    %v4787 = vadd.f32 %v4746, %v4786
    %v4788 = vpop.f32.mrf.mxu0
    %v4789 = vadd.f32 %v4748, %v4788
    %v4790 = vpop.f32.mrf.mxu0
    %v4791 = vpop.f32.mrf.mxu0
    %4792 = vdwg.mxu0
    %4793 = vmatprep.subr.bf16.mxu0 %v3763
    %4794 = vmatpush1.bf16.msra.mxu0 %v3762
    %4795 = vmatprep.subr.bf16.mxu0 %v3755
    %4796 = vmatpush1.bf16.msra.mxu0 %v3754
    %4797 = vmatprep.subr.bf16.mxu0 %v3747
    %4798 = vmatpush1.bf16.msra.mxu0 %v3746
    %4799 = vmatprep.subr.bf16.mxu0 %v3739
    %4800 = vmatpush1.bf16.msra.mxu0 %v3738
    %4801 = vmatprep.subr.bf16.mxu0 %v3731
    %4802 = vmatpush1.bf16.msra.mxu0 %v3730
    %4803 = vmatprep.subr.bf16.mxu0 %v3723
    %4804 = vmatpush1.bf16.msra.mxu0 %v3722
    %4805 = vmatprep.subr.bf16.mxu0 %v3715
    %4806 = vmatpush1.bf16.msra.mxu0 %v3714
    %4807 = vmatprep.subr.bf16.mxu0 %v3707
    %4808 = vmatpush1.bf16.msra.mxu0 %v3706
    %4809 = vmatprep.subr.bf16.mxu0 %v3827
    %4810 = vmatpush2.bf16.msra.mxu0 %v3826
    %4811 = vmatprep.subr.bf16.mxu0 %v3819
    %4812 = vmatpush2.bf16.msra.mxu0 %v3818
    %4813 = vmatprep.subr.bf16.mxu0 %v3811
    %4814 = vmatpush2.bf16.msra.mxu0 %v3810
    %4815 = vmatprep.subr.bf16.mxu0 %v3803
    %4816 = vmatpush2.bf16.msra.mxu0 %v3802
    %4817 = vmatprep.subr.bf16.mxu0 %v3795
    %4818 = vmatpush2.bf16.msra.mxu0 %v3794
    %4819 = vmatprep.subr.bf16.mxu0 %v3787
    %4820 = vmatpush2.bf16.msra.mxu0 %v3786
    %4821 = vmatprep.subr.bf16.mxu0 %v3779
    %4822 = vmatpush2.bf16.msra.mxu0 %v3778
    %4823 = vmatprep.subr.bf16.mxu0 %v3771
    %4824 = vmatpush2.bf16.msra.mxu0 %v3770
    %4825 = vmatprep.mubr.bf16.mxu0 %v1227
    %4826 = vmatmul.mubr.bf16.gmra.mxu0 %v1226
    %v4827 = vpop.f32.mrf.mxu0
    %v4828 = vadd.f32 %v4787, %v4827
    %v4829 = vpop.f32.mrf.mxu0
    %v4830 = vadd.f32 %v4789, %v4829
    %v4831 = vpop.f32.mrf.mxu0
    %v4832 = vpop.f32.mrf.mxu0
    %4833 = vdwg.mxu0
    %4834 = vmatprep.subr.bf16.mxu0 %v3381
    %4835 = vmatpush1.bf16.msra.mxu0 %v3380
    %4836 = vmatprep.subr.bf16.mxu0 %v3373
    %4837 = vmatpush1.bf16.msra.mxu0 %v3372
    %4838 = vmatprep.subr.bf16.mxu0 %v3365
    %4839 = vmatpush1.bf16.msra.mxu0 %v3364
    %4840 = vmatprep.subr.bf16.mxu0 %v3357
    %4841 = vmatpush1.bf16.msra.mxu0 %v3356
    %4842 = vmatprep.subr.bf16.mxu0 %v3349
    %4843 = vmatpush1.bf16.msra.mxu0 %v3348
    %4844 = vmatprep.subr.bf16.mxu0 %v3341
    %4845 = vmatpush1.bf16.msra.mxu0 %v3340
    %4846 = vmatprep.subr.bf16.mxu0 %v3333
    %4847 = vmatpush1.bf16.msra.mxu0 %v3332
    %4848 = vmatprep.subr.bf16.mxu0 %v3325
    %4849 = vmatpush1.bf16.msra.mxu0 %v3324
    %4850 = vmatprep.subr.bf16.mxu0 %v3445
    %4851 = vmatpush2.bf16.msra.mxu0 %v3444
    %4852 = vmatprep.subr.bf16.mxu0 %v3437
    %4853 = vmatpush2.bf16.msra.mxu0 %v3436
    %4854 = vmatprep.subr.bf16.mxu0 %v3429
    %4855 = vmatpush2.bf16.msra.mxu0 %v3428
    %4856 = vmatprep.subr.bf16.mxu0 %v3421
    %4857 = vmatpush2.bf16.msra.mxu0 %v3420
    %4858 = vmatprep.subr.bf16.mxu0 %v3413
    %4859 = vmatpush2.bf16.msra.mxu0 %v3412
    %4860 = vmatprep.subr.bf16.mxu0 %v3405
    %4861 = vmatpush2.bf16.msra.mxu0 %v3404
    %4862 = vmatprep.subr.bf16.mxu0 %v3397
    %4863 = vmatpush2.bf16.msra.mxu0 %v3396
    %4864 = vmatprep.subr.bf16.mxu0 %v3389
    %4865 = vmatpush2.bf16.msra.mxu0 %v3388
    %4866 = vmatprep.mubr.bf16.mxu0 %v1221
    %4867 = vmatmul.mubr.bf16.gmra.mxu0 %v1220
    %v4868 = vpop.f32.mrf.mxu0
    %v4869 = vadd.f32 %v1769, %v4868
    %v4870 = vpop.f32.mrf.mxu0
    %v4871 = vadd.f32 %v1773, %v4870
    %v4872 = vpop.f32.mrf.mxu0
    %v4873 = vpop.f32.mrf.mxu0
    %4874 = vdwg.mxu0
    %4875 = vmatprep.subr.bf16.mxu0 %v3509
    %4876 = vmatpush1.bf16.msra.mxu0 %v3508
    %4877 = vmatprep.subr.bf16.mxu0 %v3501
    %4878 = vmatpush1.bf16.msra.mxu0 %v3500
    %4879 = vmatprep.subr.bf16.mxu0 %v3493
    %4880 = vmatpush1.bf16.msra.mxu0 %v3492
    %4881 = vmatprep.subr.bf16.mxu0 %v3485
    %4882 = vmatpush1.bf16.msra.mxu0 %v3484
    %4883 = vmatprep.subr.bf16.mxu0 %v3477
    %4884 = vmatpush1.bf16.msra.mxu0 %v3476
    %4885 = vmatprep.subr.bf16.mxu0 %v3469
    %4886 = vmatpush1.bf16.msra.mxu0 %v3468
    %4887 = vmatprep.subr.bf16.mxu0 %v3461
    %4888 = vmatpush1.bf16.msra.mxu0 %v3460
    %4889 = vmatprep.subr.bf16.mxu0 %v3453
    %4890 = vmatpush1.bf16.msra.mxu0 %v3452
    %4891 = vmatprep.subr.bf16.mxu0 %v3573
    %4892 = vmatpush2.bf16.msra.mxu0 %v3572
    %4893 = vmatprep.subr.bf16.mxu0 %v3565
    %4894 = vmatpush2.bf16.msra.mxu0 %v3564
    %4895 = vmatprep.subr.bf16.mxu0 %v3557
    %4896 = vmatpush2.bf16.msra.mxu0 %v3556
    %4897 = vmatprep.subr.bf16.mxu0 %v3549
    %4898 = vmatpush2.bf16.msra.mxu0 %v3548
    %4899 = vmatprep.subr.bf16.mxu0 %v3541
    %4900 = vmatpush2.bf16.msra.mxu0 %v3540
    %4901 = vmatprep.subr.bf16.mxu0 %v3533
    %4902 = vmatpush2.bf16.msra.mxu0 %v3532
    %4903 = vmatprep.subr.bf16.mxu0 %v3525
    %4904 = vmatpush2.bf16.msra.mxu0 %v3524
    %4905 = vmatprep.subr.bf16.mxu0 %v3517
    %4906 = vmatpush2.bf16.msra.mxu0 %v3516
    %4907 = vmatprep.mubr.bf16.mxu0 %v1223
    %4908 = vmatmul.mubr.bf16.gmra.mxu0 %v1222
    %v4909 = vpop.f32.mrf.mxu0
    %v4910 = vadd.f32 %v4869, %v4909
    %v4911 = vpop.f32.mrf.mxu0
    %v4912 = vadd.f32 %v4871, %v4911
    %v4913 = vpop.f32.mrf.mxu0
    %v4914 = vpop.f32.mrf.mxu0
    %4915 = vdwg.mxu0
    %4916 = vmatprep.subr.bf16.mxu0 %v3637
    %4917 = vmatpush1.bf16.msra.mxu0 %v3636
    %4918 = vmatprep.subr.bf16.mxu0 %v3629
    %4919 = vmatpush1.bf16.msra.mxu0 %v3628
    %4920 = vmatprep.subr.bf16.mxu0 %v3621
    %4921 = vmatpush1.bf16.msra.mxu0 %v3620
    %4922 = vmatprep.subr.bf16.mxu0 %v3613
    %4923 = vmatpush1.bf16.msra.mxu0 %v3612
    %4924 = vmatprep.subr.bf16.mxu0 %v3605
    %4925 = vmatpush1.bf16.msra.mxu0 %v3604
    %4926 = vmatprep.subr.bf16.mxu0 %v3597
    %4927 = vmatpush1.bf16.msra.mxu0 %v3596
    %4928 = vmatprep.subr.bf16.mxu0 %v3589
    %4929 = vmatpush1.bf16.msra.mxu0 %v3588
    %4930 = vmatprep.subr.bf16.mxu0 %v3581
    %4931 = vmatpush1.bf16.msra.mxu0 %v3580
    %4932 = vmatprep.subr.bf16.mxu0 %v3701
    %4933 = vmatpush2.bf16.msra.mxu0 %v3700
    %4934 = vmatprep.subr.bf16.mxu0 %v3693
    %4935 = vmatpush2.bf16.msra.mxu0 %v3692
    %4936 = vmatprep.subr.bf16.mxu0 %v3685
    %4937 = vmatpush2.bf16.msra.mxu0 %v3684
    %4938 = vmatprep.subr.bf16.mxu0 %v3677
    %4939 = vmatpush2.bf16.msra.mxu0 %v3676
    %4940 = vmatprep.subr.bf16.mxu0 %v3669
    %4941 = vmatpush2.bf16.msra.mxu0 %v3668
    %4942 = vmatprep.subr.bf16.mxu0 %v3661
    %4943 = vmatpush2.bf16.msra.mxu0 %v3660
    %4944 = vmatprep.subr.bf16.mxu0 %v3653
    %4945 = vmatpush2.bf16.msra.mxu0 %v3652
    %4946 = vmatprep.subr.bf16.mxu0 %v3645
    %4947 = vmatpush2.bf16.msra.mxu0 %v3644
    %4948 = vmatprep.mubr.bf16.mxu0 %v1225
    %4949 = vmatmul.mubr.bf16.gmra.mxu0 %v1224
    %v4950 = vpop.f32.mrf.mxu0
    %v4951 = vadd.f32 %v4910, %v4950
    %v4952 = vpop.f32.mrf.mxu0
    %v4953 = vadd.f32 %v4912, %v4952
    %v4954 = vpop.f32.mrf.mxu0
    %v4955 = vpop.f32.mrf.mxu0
    %4956 = vdwg.mxu0
    %4957 = vmatprep.subr.bf16.mxu0 %v3765
    %4958 = vmatpush1.bf16.msra.mxu0 %v3764
    %4959 = vmatprep.subr.bf16.mxu0 %v3757
    %4960 = vmatpush1.bf16.msra.mxu0 %v3756
    %4961 = vmatprep.subr.bf16.mxu0 %v3749
    %4962 = vmatpush1.bf16.msra.mxu0 %v3748
    %4963 = vmatprep.subr.bf16.mxu0 %v3741
    %4964 = vmatpush1.bf16.msra.mxu0 %v3740
    %4965 = vmatprep.subr.bf16.mxu0 %v3733
    %4966 = vmatpush1.bf16.msra.mxu0 %v3732
    %4967 = vmatprep.subr.bf16.mxu0 %v3725
    %4968 = vmatpush1.bf16.msra.mxu0 %v3724
    %4969 = vmatprep.subr.bf16.mxu0 %v3717
    %4970 = vmatpush1.bf16.msra.mxu0 %v3716
    %4971 = vmatprep.subr.bf16.mxu0 %v3709
    %4972 = vmatpush1.bf16.msra.mxu0 %v3708
    %4973 = vmatprep.subr.bf16.mxu0 %v3829
    %4974 = vmatpush2.bf16.msra.mxu0 %v3828
    %4975 = vmatprep.subr.bf16.mxu0 %v3821
    %4976 = vmatpush2.bf16.msra.mxu0 %v3820
    %4977 = vmatprep.subr.bf16.mxu0 %v3813
    %4978 = vmatpush2.bf16.msra.mxu0 %v3812
    %4979 = vmatprep.subr.bf16.mxu0 %v3805
    %4980 = vmatpush2.bf16.msra.mxu0 %v3804
    %4981 = vmatprep.subr.bf16.mxu0 %v3797
    %4982 = vmatpush2.bf16.msra.mxu0 %v3796
    %4983 = vmatprep.subr.bf16.mxu0 %v3789
    %4984 = vmatpush2.bf16.msra.mxu0 %v3788
    %4985 = vmatprep.subr.bf16.mxu0 %v3781
    %4986 = vmatpush2.bf16.msra.mxu0 %v3780
    %4987 = vmatprep.subr.bf16.mxu0 %v3773
    %4988 = vmatpush2.bf16.msra.mxu0 %v3772
    %4989 = vmatprep.mubr.bf16.mxu0 %v1227
    %4990 = vmatmul.mubr.bf16.gmra.mxu0 %v1226
    %v4991 = vpop.f32.mrf.mxu0
    %v4992 = vadd.f32 %v4951, %v4991
    %v4993 = vpop.f32.mrf.mxu0
    %v4994 = vadd.f32 %v4953, %v4993
    %v4995 = vpop.f32.mrf.mxu0
    %v4996 = vpop.f32.mrf.mxu0
    %4997 = vdwg.mxu0
    %v4998 = vtanh.pop %v4500
    %v4999 = vtanh.pop %v4502
    %v5000 = vtanh.pop %v4664
    %v5001 = vtanh.pop %v4666
    %v5002 = vtanh.pop %v4828
    %v5003 = vtanh.pop %v4830
    %v5004 = vtanh.pop %v4992
    %v5005 = vtanh.pop %v4994
    %v5006 = vpack.c.bf16 %v4998, %v4998
    %v5007 = vpack.c.bf16 %v4999, %v4999
    %v5008 = vpack.c.bf16 %v5000, %v5000
    %v5009 = vpack.c.bf16 %v5001, %v5001
    %v5010 = vpack.c.bf16 %v5002, %v5002
    %v5011 = vpack.c.bf16 %v5003, %v5003
    %v5012 = vpack.c.bf16 %v5004, %v5004
    %v5013 = vpack.c.bf16 %v5005, %v5005
    %v5014 = vld [vmem:[#allocation14] sm:$0xff]
    %v5015 = vld [vmem:[#allocation14 + $0x8] sm:$0xff]
    %v5016 = vld [vmem:[#allocation14 + $0x10] sm:$0xff]
    %v5017 = vld [vmem:[#allocation14 + $0x18] sm:$0xff]
    %v5018 = vld [vmem:[#allocation14 + $0x20] sm:$0xff]
    %v5019 = vld [vmem:[#allocation14 + $0x28] sm:$0xff]
    %v5020 = vld [vmem:[#allocation14 + $0x30] sm:$0xff]
    %v5021 = vld [vmem:[#allocation14 + $0x38] sm:$0xff]
    %v5022 = vld [vmem:[#allocation14 + $0x40] sm:$0xff]
    %v5023 = vld [vmem:[#allocation14 + $0x48] sm:$0xff]
    %v5024 = vld [vmem:[#allocation14 + $0x50] sm:$0xff]
    %v5025 = vld [vmem:[#allocation14 + $0x58] sm:$0xff]
    %v5026 = vld [vmem:[#allocation14 + $0x60] sm:$0xff]
    %v5027 = vld [vmem:[#allocation14 + $0x68] sm:$0xff]
    %v5028 = vld [vmem:[#allocation14 + $0x70] sm:$0xff]
    %v5029 = vld [vmem:[#allocation14 + $0x78] sm:$0xff]
    %v5030 = vld [vmem:[#allocation14 + $0x80] sm:$0xff]
    %v5031 = vld [vmem:[#allocation14 + $0x88] sm:$0xff]
    %v5032 = vld [vmem:[#allocation14 + $0x90] sm:$0xff]
    %v5033 = vld [vmem:[#allocation14 + $0x98] sm:$0xff]
    %v5034 = vld [vmem:[#allocation14 + $0xa0] sm:$0xff]
    %v5035 = vld [vmem:[#allocation14 + $0xa8] sm:$0xff]
    %v5036 = vld [vmem:[#allocation14 + $0xb0] sm:$0xff]
    %v5037 = vld [vmem:[#allocation14 + $0xb8] sm:$0xff]
    %v5038 = vld [vmem:[#allocation14 + $0xc0] sm:$0xff]
    %v5039 = vld [vmem:[#allocation14 + $0xc8] sm:$0xff]
    %v5040 = vld [vmem:[#allocation14 + $0xd0] sm:$0xff]
    %v5041 = vld [vmem:[#allocation14 + $0xd8] sm:$0xff]
    %v5042 = vld [vmem:[#allocation14 + $0xe0] sm:$0xff]
    %v5043 = vld [vmem:[#allocation14 + $0xe8] sm:$0xff]
    %v5044 = vld [vmem:[#allocation14 + $0xf0] sm:$0xff]
    %v5045 = vld [vmem:[#allocation14 + $0xf8] sm:$0xff]
    %v5046 = vld [vmem:[#allocation14 + $0x100] sm:$0xff]
    %v5047 = vld [vmem:[#allocation14 + $0x108] sm:$0xff]
    %v5048 = vld [vmem:[#allocation14 + $0x110] sm:$0xff]
    %v5049 = vld [vmem:[#allocation14 + $0x118] sm:$0xff]
    %v5050 = vld [vmem:[#allocation14 + $0x120] sm:$0xff]
    %v5051 = vld [vmem:[#allocation14 + $0x128] sm:$0xff]
    %v5052 = vld [vmem:[#allocation14 + $0x130] sm:$0xff]
    %v5053 = vld [vmem:[#allocation14 + $0x138] sm:$0xff]
    %v5054 = vld [vmem:[#allocation14 + $0x140] sm:$0xff]
    %v5055 = vld [vmem:[#allocation14 + $0x148] sm:$0xff]
    %v5056 = vld [vmem:[#allocation14 + $0x150] sm:$0xff]
    %v5057 = vld [vmem:[#allocation14 + $0x158] sm:$0xff]
    %v5058 = vld [vmem:[#allocation14 + $0x160] sm:$0xff]
    %v5059 = vld [vmem:[#allocation14 + $0x168] sm:$0xff]
    %v5060 = vld [vmem:[#allocation14 + $0x170] sm:$0xff]
    %v5061 = vld [vmem:[#allocation14 + $0x178] sm:$0xff]
    %v5062 = vld [vmem:[#allocation14 + $0x180] sm:$0xff]
    %v5063 = vld [vmem:[#allocation14 + $0x188] sm:$0xff]
    %v5064 = vld [vmem:[#allocation14 + $0x190] sm:$0xff]
    %v5065 = vld [vmem:[#allocation14 + $0x198] sm:$0xff]
    %v5066 = vld [vmem:[#allocation14 + $0x1a0] sm:$0xff]
    %v5067 = vld [vmem:[#allocation14 + $0x1a8] sm:$0xff]
    %v5068 = vld [vmem:[#allocation14 + $0x1b0] sm:$0xff]
    %v5069 = vld [vmem:[#allocation14 + $0x1b8] sm:$0xff]
    %v5070 = vld [vmem:[#allocation14 + $0x1c0] sm:$0xff]
    %v5071 = vld [vmem:[#allocation14 + $0x1c8] sm:$0xff]
    %v5072 = vld [vmem:[#allocation14 + $0x1d0] sm:$0xff]
    %v5073 = vld [vmem:[#allocation14 + $0x1d8] sm:$0xff]
    %v5074 = vld [vmem:[#allocation14 + $0x1e0] sm:$0xff]
    %v5075 = vld [vmem:[#allocation14 + $0x1e8] sm:$0xff]
    %v5076 = vld [vmem:[#allocation14 + $0x1f0] sm:$0xff]
    %v5077 = vld [vmem:[#allocation14 + $0x1f8] sm:$0xff]
    %v5078 = vld [vmem:[#allocation14 + $0x200] sm:$0xff]
    %v5079 = vld [vmem:[#allocation14 + $0x208] sm:$0xff]
    %v5080 = vld [vmem:[#allocation14 + $0x210] sm:$0xff]
    %v5081 = vld [vmem:[#allocation14 + $0x218] sm:$0xff]
    %v5082 = vld [vmem:[#allocation14 + $0x220] sm:$0xff]
    %v5083 = vld [vmem:[#allocation14 + $0x228] sm:$0xff]
    %v5084 = vld [vmem:[#allocation14 + $0x230] sm:$0xff]
    %v5085 = vld [vmem:[#allocation14 + $0x238] sm:$0xff]
    %v5086 = vld [vmem:[#allocation14 + $0x240] sm:$0xff]
    %v5087 = vld [vmem:[#allocation14 + $0x248] sm:$0xff]
    %v5088 = vld [vmem:[#allocation14 + $0x250] sm:$0xff]
    %v5089 = vld [vmem:[#allocation14 + $0x258] sm:$0xff]
    %v5090 = vld [vmem:[#allocation14 + $0x260] sm:$0xff]
    %v5091 = vld [vmem:[#allocation14 + $0x268] sm:$0xff]
    %v5092 = vld [vmem:[#allocation14 + $0x270] sm:$0xff]
    %v5093 = vld [vmem:[#allocation14 + $0x278] sm:$0xff]
    %v5094 = vld [vmem:[#allocation14 + $0x280] sm:$0xff]
    %v5095 = vld [vmem:[#allocation14 + $0x288] sm:$0xff]
    %v5096 = vld [vmem:[#allocation14 + $0x290] sm:$0xff]
    %v5097 = vld [vmem:[#allocation14 + $0x298] sm:$0xff]
    %v5098 = vld [vmem:[#allocation14 + $0x2a0] sm:$0xff]
    %v5099 = vld [vmem:[#allocation14 + $0x2a8] sm:$0xff]
    %v5100 = vld [vmem:[#allocation14 + $0x2b0] sm:$0xff]
    %v5101 = vld [vmem:[#allocation14 + $0x2b8] sm:$0xff]
    %v5102 = vld [vmem:[#allocation14 + $0x2c0] sm:$0xff]
    %v5103 = vld [vmem:[#allocation14 + $0x2c8] sm:$0xff]
    %v5104 = vld [vmem:[#allocation14 + $0x2d0] sm:$0xff]
    %v5105 = vld [vmem:[#allocation14 + $0x2d8] sm:$0xff]
    %v5106 = vld [vmem:[#allocation14 + $0x2e0] sm:$0xff]
    %v5107 = vld [vmem:[#allocation14 + $0x2e8] sm:$0xff]
    %v5108 = vld [vmem:[#allocation14 + $0x2f0] sm:$0xff]
    %v5109 = vld [vmem:[#allocation14 + $0x2f8] sm:$0xff]
    %v5110 = vld [vmem:[#allocation14 + $0x300] sm:$0xff]
    %v5111 = vld [vmem:[#allocation14 + $0x308] sm:$0xff]
    %v5112 = vld [vmem:[#allocation14 + $0x310] sm:$0xff]
    %v5113 = vld [vmem:[#allocation14 + $0x318] sm:$0xff]
    %v5114 = vld [vmem:[#allocation14 + $0x320] sm:$0xff]
    %v5115 = vld [vmem:[#allocation14 + $0x328] sm:$0xff]
    %v5116 = vld [vmem:[#allocation14 + $0x330] sm:$0xff]
    %v5117 = vld [vmem:[#allocation14 + $0x338] sm:$0xff]
    %v5118 = vld [vmem:[#allocation14 + $0x340] sm:$0xff]
    %v5119 = vld [vmem:[#allocation14 + $0x348] sm:$0xff]
    %v5120 = vld [vmem:[#allocation14 + $0x350] sm:$0xff]
    %v5121 = vld [vmem:[#allocation14 + $0x358] sm:$0xff]
    %v5122 = vld [vmem:[#allocation14 + $0x360] sm:$0xff]
    %v5123 = vld [vmem:[#allocation14 + $0x368] sm:$0xff]
    %v5124 = vld [vmem:[#allocation14 + $0x370] sm:$0xff]
    %v5125 = vld [vmem:[#allocation14 + $0x378] sm:$0xff]
    %v5126 = vld [vmem:[#allocation14 + $0x380] sm:$0xff]
    %v5127 = vld [vmem:[#allocation14 + $0x388] sm:$0xff]
    %v5128 = vld [vmem:[#allocation14 + $0x390] sm:$0xff]
    %v5129 = vld [vmem:[#allocation14 + $0x398] sm:$0xff]
    %v5130 = vld [vmem:[#allocation14 + $0x3a0] sm:$0xff]
    %v5131 = vld [vmem:[#allocation14 + $0x3a8] sm:$0xff]
    %v5132 = vld [vmem:[#allocation14 + $0x3b0] sm:$0xff]
    %v5133 = vld [vmem:[#allocation14 + $0x3b8] sm:$0xff]
    %v5134 = vld [vmem:[#allocation14 + $0x3c0] sm:$0xff]
    %v5135 = vld [vmem:[#allocation14 + $0x3c8] sm:$0xff]
    %v5136 = vld [vmem:[#allocation14 + $0x3d0] sm:$0xff]
    %v5137 = vld [vmem:[#allocation14 + $0x3d8] sm:$0xff]
    %v5138 = vld [vmem:[#allocation14 + $0x3e0] sm:$0xff]
    %v5139 = vld [vmem:[#allocation14 + $0x3e8] sm:$0xff]
    %v5140 = vld [vmem:[#allocation14 + $0x3f0] sm:$0xff]
    %v5141 = vld [vmem:[#allocation14 + $0x3f8] sm:$0xff]
    %v5142 = vld [vmem:[#allocation16] sm:$0x3]
    %v5144 = vlaneseq
    %v5145 = vshrl.u32 %v5144, 7
    %v5146 = vsub.s32 0, %v5145
    %v5147 = vrot.slane %v5142, %v5146
    %v5148 = vlaneseq
    %v5149 = vshrl.u32 %v5148, 7
    %v5150 = vsub.s32 1, %v5149
    %v5151 = vrot.slane %v5142, %v5150
    %v5282 = vunpack.c.l.b16 %v5014
    %v5283 = vunpack.c.h.b16 %v5014
    %v5284 = vunpack.c.l.b16 %v5015
    %v5285 = vunpack.c.h.b16 %v5015
    %v5286 = vunpack.c.l.b16 %v5016
    %v5287 = vunpack.c.h.b16 %v5016
    %v5288 = vunpack.c.l.b16 %v5017
    %v5289 = vunpack.c.h.b16 %v5017
    %v5290 = vunpack.c.l.b16 %v5018
    %v5291 = vunpack.c.h.b16 %v5018
    %v5292 = vunpack.c.l.b16 %v5019
    %v5293 = vunpack.c.h.b16 %v5019
    %v5294 = vunpack.c.l.b16 %v5020
    %v5295 = vunpack.c.h.b16 %v5020
    %v5296 = vunpack.c.l.b16 %v5021
    %v5297 = vunpack.c.h.b16 %v5021
    %v5298 = vunpack.c.l.b16 %v5022
    %v5299 = vunpack.c.h.b16 %v5022
    %v5300 = vunpack.c.l.b16 %v5023
    %v5301 = vunpack.c.h.b16 %v5023
    %v5302 = vunpack.c.l.b16 %v5024
    %v5303 = vunpack.c.h.b16 %v5024
    %v5304 = vunpack.c.l.b16 %v5025
    %v5305 = vunpack.c.h.b16 %v5025
    %v5306 = vunpack.c.l.b16 %v5026
    %v5307 = vunpack.c.h.b16 %v5026
    %v5308 = vunpack.c.l.b16 %v5027
    %v5309 = vunpack.c.h.b16 %v5027
    %v5310 = vunpack.c.l.b16 %v5028
    %v5311 = vunpack.c.h.b16 %v5028
    %v5312 = vunpack.c.l.b16 %v5029
    %v5313 = vunpack.c.h.b16 %v5029
    %v5314 = vunpack.c.l.b16 %v5030
    %v5315 = vunpack.c.h.b16 %v5030
    %v5316 = vunpack.c.l.b16 %v5031
    %v5317 = vunpack.c.h.b16 %v5031
    %v5318 = vunpack.c.l.b16 %v5032
    %v5319 = vunpack.c.h.b16 %v5032
    %v5320 = vunpack.c.l.b16 %v5033
    %v5321 = vunpack.c.h.b16 %v5033
    %v5322 = vunpack.c.l.b16 %v5034
    %v5323 = vunpack.c.h.b16 %v5034
    %v5324 = vunpack.c.l.b16 %v5035
    %v5325 = vunpack.c.h.b16 %v5035
    %v5326 = vunpack.c.l.b16 %v5036
    %v5327 = vunpack.c.h.b16 %v5036
    %v5328 = vunpack.c.l.b16 %v5037
    %v5329 = vunpack.c.h.b16 %v5037
    %v5330 = vunpack.c.l.b16 %v5038
    %v5331 = vunpack.c.h.b16 %v5038
    %v5332 = vunpack.c.l.b16 %v5039
    %v5333 = vunpack.c.h.b16 %v5039
    %v5334 = vunpack.c.l.b16 %v5040
    %v5335 = vunpack.c.h.b16 %v5040
    %v5336 = vunpack.c.l.b16 %v5041
    %v5337 = vunpack.c.h.b16 %v5041
    %v5338 = vunpack.c.l.b16 %v5042
    %v5339 = vunpack.c.h.b16 %v5042
    %v5340 = vunpack.c.l.b16 %v5043
    %v5341 = vunpack.c.h.b16 %v5043
    %v5342 = vunpack.c.l.b16 %v5044
    %v5343 = vunpack.c.h.b16 %v5044
    %v5344 = vunpack.c.l.b16 %v5045
    %v5345 = vunpack.c.h.b16 %v5045
    %v5346 = vunpack.c.l.b16 %v5046
    %v5347 = vunpack.c.h.b16 %v5046
    %v5348 = vunpack.c.l.b16 %v5047
    %v5349 = vunpack.c.h.b16 %v5047
    %v5350 = vunpack.c.l.b16 %v5048
    %v5351 = vunpack.c.h.b16 %v5048
    %v5352 = vunpack.c.l.b16 %v5049
    %v5353 = vunpack.c.h.b16 %v5049
    %v5354 = vunpack.c.l.b16 %v5050
    %v5355 = vunpack.c.h.b16 %v5050
    %v5356 = vunpack.c.l.b16 %v5051
    %v5357 = vunpack.c.h.b16 %v5051
    %v5358 = vunpack.c.l.b16 %v5052
    %v5359 = vunpack.c.h.b16 %v5052
    %v5360 = vunpack.c.l.b16 %v5053
    %v5361 = vunpack.c.h.b16 %v5053
    %v5362 = vunpack.c.l.b16 %v5054
    %v5363 = vunpack.c.h.b16 %v5054
    %v5364 = vunpack.c.l.b16 %v5055
    %v5365 = vunpack.c.h.b16 %v5055
    %v5366 = vunpack.c.l.b16 %v5056
    %v5367 = vunpack.c.h.b16 %v5056
    %v5368 = vunpack.c.l.b16 %v5057
    %v5369 = vunpack.c.h.b16 %v5057
    %v5370 = vunpack.c.l.b16 %v5058
    %v5371 = vunpack.c.h.b16 %v5058
    %v5372 = vunpack.c.l.b16 %v5059
    %v5373 = vunpack.c.h.b16 %v5059
    %v5374 = vunpack.c.l.b16 %v5060
    %v5375 = vunpack.c.h.b16 %v5060
    %v5376 = vunpack.c.l.b16 %v5061
    %v5377 = vunpack.c.h.b16 %v5061
    %v5378 = vunpack.c.l.b16 %v5062
    %v5379 = vunpack.c.h.b16 %v5062
    %v5380 = vunpack.c.l.b16 %v5063
    %v5381 = vunpack.c.h.b16 %v5063
    %v5382 = vunpack.c.l.b16 %v5064
    %v5383 = vunpack.c.h.b16 %v5064
    %v5384 = vunpack.c.l.b16 %v5065
    %v5385 = vunpack.c.h.b16 %v5065
    %v5386 = vunpack.c.l.b16 %v5066
    %v5387 = vunpack.c.h.b16 %v5066
    %v5388 = vunpack.c.l.b16 %v5067
    %v5389 = vunpack.c.h.b16 %v5067
    %v5390 = vunpack.c.l.b16 %v5068
    %v5391 = vunpack.c.h.b16 %v5068
    %v5392 = vunpack.c.l.b16 %v5069
    %v5393 = vunpack.c.h.b16 %v5069
    %v5394 = vunpack.c.l.b16 %v5070
    %v5395 = vunpack.c.h.b16 %v5070
    %v5396 = vunpack.c.l.b16 %v5071
    %v5397 = vunpack.c.h.b16 %v5071
    %v5398 = vunpack.c.l.b16 %v5072
    %v5399 = vunpack.c.h.b16 %v5072
    %v5400 = vunpack.c.l.b16 %v5073
    %v5401 = vunpack.c.h.b16 %v5073
    %v5402 = vunpack.c.l.b16 %v5074
    %v5403 = vunpack.c.h.b16 %v5074
    %v5404 = vunpack.c.l.b16 %v5075
    %v5405 = vunpack.c.h.b16 %v5075
    %v5406 = vunpack.c.l.b16 %v5076
    %v5407 = vunpack.c.h.b16 %v5076
    %v5408 = vunpack.c.l.b16 %v5077
    %v5409 = vunpack.c.h.b16 %v5077
    %v5410 = vunpack.c.l.b16 %v5078
    %v5411 = vunpack.c.h.b16 %v5078
    %v5412 = vunpack.c.l.b16 %v5079
    %v5413 = vunpack.c.h.b16 %v5079
    %v5414 = vunpack.c.l.b16 %v5080
    %v5415 = vunpack.c.h.b16 %v5080
    %v5416 = vunpack.c.l.b16 %v5081
    %v5417 = vunpack.c.h.b16 %v5081
    %v5418 = vunpack.c.l.b16 %v5082
    %v5419 = vunpack.c.h.b16 %v5082
    %v5420 = vunpack.c.l.b16 %v5083
    %v5421 = vunpack.c.h.b16 %v5083
    %v5422 = vunpack.c.l.b16 %v5084
    %v5423 = vunpack.c.h.b16 %v5084
    %v5424 = vunpack.c.l.b16 %v5085
    %v5425 = vunpack.c.h.b16 %v5085
    %v5426 = vunpack.c.l.b16 %v5086
    %v5427 = vunpack.c.h.b16 %v5086
    %v5428 = vunpack.c.l.b16 %v5087
    %v5429 = vunpack.c.h.b16 %v5087
    %v5430 = vunpack.c.l.b16 %v5088
    %v5431 = vunpack.c.h.b16 %v5088
    %v5432 = vunpack.c.l.b16 %v5089
    %v5433 = vunpack.c.h.b16 %v5089
    %v5434 = vunpack.c.l.b16 %v5090
    %v5435 = vunpack.c.h.b16 %v5090
    %v5436 = vunpack.c.l.b16 %v5091
    %v5437 = vunpack.c.h.b16 %v5091
    %v5438 = vunpack.c.l.b16 %v5092
    %v5439 = vunpack.c.h.b16 %v5092
    %v5440 = vunpack.c.l.b16 %v5093
    %v5441 = vunpack.c.h.b16 %v5093
    %v5442 = vunpack.c.l.b16 %v5094
    %v5443 = vunpack.c.h.b16 %v5094
    %v5444 = vunpack.c.l.b16 %v5095
    %v5445 = vunpack.c.h.b16 %v5095
    %v5446 = vunpack.c.l.b16 %v5096
    %v5447 = vunpack.c.h.b16 %v5096
    %v5448 = vunpack.c.l.b16 %v5097
    %v5449 = vunpack.c.h.b16 %v5097
    %v5450 = vunpack.c.l.b16 %v5098
    %v5451 = vunpack.c.h.b16 %v5098
    %v5452 = vunpack.c.l.b16 %v5099
    %v5453 = vunpack.c.h.b16 %v5099
    %v5454 = vunpack.c.l.b16 %v5100
    %v5455 = vunpack.c.h.b16 %v5100
    %v5456 = vunpack.c.l.b16 %v5101
    %v5457 = vunpack.c.h.b16 %v5101
    %v5458 = vunpack.c.l.b16 %v5102
    %v5459 = vunpack.c.h.b16 %v5102
    %v5460 = vunpack.c.l.b16 %v5103
    %v5461 = vunpack.c.h.b16 %v5103
    %v5462 = vunpack.c.l.b16 %v5104
    %v5463 = vunpack.c.h.b16 %v5104
    %v5464 = vunpack.c.l.b16 %v5105
    %v5465 = vunpack.c.h.b16 %v5105
    %v5466 = vunpack.c.l.b16 %v5106
    %v5467 = vunpack.c.h.b16 %v5106
    %v5468 = vunpack.c.l.b16 %v5107
    %v5469 = vunpack.c.h.b16 %v5107
    %v5470 = vunpack.c.l.b16 %v5108
    %v5471 = vunpack.c.h.b16 %v5108
    %v5472 = vunpack.c.l.b16 %v5109
    %v5473 = vunpack.c.h.b16 %v5109
    %v5474 = vunpack.c.l.b16 %v5110
    %v5475 = vunpack.c.h.b16 %v5110
    %v5476 = vunpack.c.l.b16 %v5111
    %v5477 = vunpack.c.h.b16 %v5111
    %v5478 = vunpack.c.l.b16 %v5112
    %v5479 = vunpack.c.h.b16 %v5112
    %v5480 = vunpack.c.l.b16 %v5113
    %v5481 = vunpack.c.h.b16 %v5113
    %v5482 = vunpack.c.l.b16 %v5114
    %v5483 = vunpack.c.h.b16 %v5114
    %v5484 = vunpack.c.l.b16 %v5115
    %v5485 = vunpack.c.h.b16 %v5115
    %v5486 = vunpack.c.l.b16 %v5116
    %v5487 = vunpack.c.h.b16 %v5116
    %v5488 = vunpack.c.l.b16 %v5117
    %v5489 = vunpack.c.h.b16 %v5117
    %v5490 = vunpack.c.l.b16 %v5118
    %v5491 = vunpack.c.h.b16 %v5118
    %v5492 = vunpack.c.l.b16 %v5119
    %v5493 = vunpack.c.h.b16 %v5119
    %v5494 = vunpack.c.l.b16 %v5120
    %v5495 = vunpack.c.h.b16 %v5120
    %v5496 = vunpack.c.l.b16 %v5121
    %v5497 = vunpack.c.h.b16 %v5121
    %v5498 = vunpack.c.l.b16 %v5122
    %v5499 = vunpack.c.h.b16 %v5122
    %v5500 = vunpack.c.l.b16 %v5123
    %v5501 = vunpack.c.h.b16 %v5123
    %v5502 = vunpack.c.l.b16 %v5124
    %v5503 = vunpack.c.h.b16 %v5124
    %v5504 = vunpack.c.l.b16 %v5125
    %v5505 = vunpack.c.h.b16 %v5125
    %v5506 = vunpack.c.l.b16 %v5126
    %v5507 = vunpack.c.h.b16 %v5126
    %v5508 = vunpack.c.l.b16 %v5127
    %v5509 = vunpack.c.h.b16 %v5127
    %v5510 = vunpack.c.l.b16 %v5128
    %v5511 = vunpack.c.h.b16 %v5128
    %v5512 = vunpack.c.l.b16 %v5129
    %v5513 = vunpack.c.h.b16 %v5129
    %v5514 = vunpack.c.l.b16 %v5130
    %v5515 = vunpack.c.h.b16 %v5130
    %v5516 = vunpack.c.l.b16 %v5131
    %v5517 = vunpack.c.h.b16 %v5131
    %v5518 = vunpack.c.l.b16 %v5132
    %v5519 = vunpack.c.h.b16 %v5132
    %v5520 = vunpack.c.l.b16 %v5133
    %v5521 = vunpack.c.h.b16 %v5133
    %v5522 = vunpack.c.l.b16 %v5134
    %v5523 = vunpack.c.h.b16 %v5134
    %v5524 = vunpack.c.l.b16 %v5135
    %v5525 = vunpack.c.h.b16 %v5135
    %v5526 = vunpack.c.l.b16 %v5136
    %v5527 = vunpack.c.h.b16 %v5136
    %v5528 = vunpack.c.l.b16 %v5137
    %v5529 = vunpack.c.h.b16 %v5137
    %v5530 = vunpack.c.l.b16 %v5138
    %v5531 = vunpack.c.h.b16 %v5138
    %v5532 = vunpack.c.l.b16 %v5139
    %v5533 = vunpack.c.h.b16 %v5139
    %v5534 = vunpack.c.l.b16 %v5140
    %v5535 = vunpack.c.h.b16 %v5140
    %v5536 = vunpack.c.l.b16 %v5141
    %v5537 = vunpack.c.h.b16 %v5141
    %v5538 = vpack.c.b16 %v5284, %v5282
    %v5539 = vpack.c.b16 %v5285, %v5283
    %v5540 = vpack.c.b16 %v5288, %v5286
    %v5541 = vpack.c.b16 %v5289, %v5287
    %v5542 = vpack.c.b16 %v5292, %v5290
    %v5543 = vpack.c.b16 %v5293, %v5291
    %v5544 = vpack.c.b16 %v5296, %v5294
    %v5545 = vpack.c.b16 %v5297, %v5295
    %v5546 = vpack.c.b16 %v5300, %v5298
    %v5547 = vpack.c.b16 %v5301, %v5299
    %v5548 = vpack.c.b16 %v5304, %v5302
    %v5549 = vpack.c.b16 %v5305, %v5303
    %v5550 = vpack.c.b16 %v5308, %v5306
    %v5551 = vpack.c.b16 %v5309, %v5307
    %v5552 = vpack.c.b16 %v5312, %v5310
    %v5553 = vpack.c.b16 %v5313, %v5311
    %v5554 = vpack.c.b16 %v5316, %v5314
    %v5555 = vpack.c.b16 %v5317, %v5315
    %v5556 = vpack.c.b16 %v5320, %v5318
    %v5557 = vpack.c.b16 %v5321, %v5319
    %v5558 = vpack.c.b16 %v5324, %v5322
    %v5559 = vpack.c.b16 %v5325, %v5323
    %v5560 = vpack.c.b16 %v5328, %v5326
    %v5561 = vpack.c.b16 %v5329, %v5327
    %v5562 = vpack.c.b16 %v5332, %v5330
    %v5563 = vpack.c.b16 %v5333, %v5331
    %v5564 = vpack.c.b16 %v5336, %v5334
    %v5565 = vpack.c.b16 %v5337, %v5335
    %v5566 = vpack.c.b16 %v5340, %v5338
    %v5567 = vpack.c.b16 %v5341, %v5339
    %v5568 = vpack.c.b16 %v5344, %v5342
    %v5569 = vpack.c.b16 %v5345, %v5343
    %v5570 = vpack.c.b16 %v5348, %v5346
    %v5571 = vpack.c.b16 %v5349, %v5347
    %v5572 = vpack.c.b16 %v5352, %v5350
    %v5573 = vpack.c.b16 %v5353, %v5351
    %v5574 = vpack.c.b16 %v5356, %v5354
    %v5575 = vpack.c.b16 %v5357, %v5355
    %v5576 = vpack.c.b16 %v5360, %v5358
    %v5577 = vpack.c.b16 %v5361, %v5359
    %v5578 = vpack.c.b16 %v5364, %v5362
    %v5579 = vpack.c.b16 %v5365, %v5363
    %v5580 = vpack.c.b16 %v5368, %v5366
    %v5581 = vpack.c.b16 %v5369, %v5367
    %v5582 = vpack.c.b16 %v5372, %v5370
    %v5583 = vpack.c.b16 %v5373, %v5371
    %v5584 = vpack.c.b16 %v5376, %v5374
    %v5585 = vpack.c.b16 %v5377, %v5375
    %v5586 = vpack.c.b16 %v5380, %v5378
    %v5587 = vpack.c.b16 %v5381, %v5379
    %v5588 = vpack.c.b16 %v5384, %v5382
    %v5589 = vpack.c.b16 %v5385, %v5383
    %v5590 = vpack.c.b16 %v5388, %v5386
    %v5591 = vpack.c.b16 %v5389, %v5387
    %v5592 = vpack.c.b16 %v5392, %v5390
    %v5593 = vpack.c.b16 %v5393, %v5391
    %v5594 = vpack.c.b16 %v5396, %v5394
    %v5595 = vpack.c.b16 %v5397, %v5395
    %v5596 = vpack.c.b16 %v5400, %v5398
    %v5597 = vpack.c.b16 %v5401, %v5399
    %v5598 = vpack.c.b16 %v5404, %v5402
    %v5599 = vpack.c.b16 %v5405, %v5403
    %v5600 = vpack.c.b16 %v5408, %v5406
    %v5601 = vpack.c.b16 %v5409, %v5407
    %v5602 = vpack.c.b16 %v5412, %v5410
    %v5603 = vpack.c.b16 %v5413, %v5411
    %v5604 = vpack.c.b16 %v5416, %v5414
    %v5605 = vpack.c.b16 %v5417, %v5415
    %v5606 = vpack.c.b16 %v5420, %v5418
    %v5607 = vpack.c.b16 %v5421, %v5419
    %v5608 = vpack.c.b16 %v5424, %v5422
    %v5609 = vpack.c.b16 %v5425, %v5423
    %v5610 = vpack.c.b16 %v5428, %v5426
    %v5611 = vpack.c.b16 %v5429, %v5427
    %v5612 = vpack.c.b16 %v5432, %v5430
    %v5613 = vpack.c.b16 %v5433, %v5431
    %v5614 = vpack.c.b16 %v5436, %v5434
    %v5615 = vpack.c.b16 %v5437, %v5435
    %v5616 = vpack.c.b16 %v5440, %v5438
    %v5617 = vpack.c.b16 %v5441, %v5439
    %v5618 = vpack.c.b16 %v5444, %v5442
    %v5619 = vpack.c.b16 %v5445, %v5443
    %v5620 = vpack.c.b16 %v5448, %v5446
    %v5621 = vpack.c.b16 %v5449, %v5447
    %v5622 = vpack.c.b16 %v5452, %v5450
    %v5623 = vpack.c.b16 %v5453, %v5451
    %v5624 = vpack.c.b16 %v5456, %v5454
    %v5625 = vpack.c.b16 %v5457, %v5455
    %v5626 = vpack.c.b16 %v5460, %v5458
    %v5627 = vpack.c.b16 %v5461, %v5459
    %v5628 = vpack.c.b16 %v5464, %v5462
    %v5629 = vpack.c.b16 %v5465, %v5463
    %v5630 = vpack.c.b16 %v5468, %v5466
    %v5631 = vpack.c.b16 %v5469, %v5467
    %v5632 = vpack.c.b16 %v5472, %v5470
    %v5633 = vpack.c.b16 %v5473, %v5471
    %v5634 = vpack.c.b16 %v5476, %v5474
    %v5635 = vpack.c.b16 %v5477, %v5475
    %v5636 = vpack.c.b16 %v5480, %v5478
    %v5637 = vpack.c.b16 %v5481, %v5479
    %v5638 = vpack.c.b16 %v5484, %v5482
    %v5639 = vpack.c.b16 %v5485, %v5483
    %v5640 = vpack.c.b16 %v5488, %v5486
    %v5641 = vpack.c.b16 %v5489, %v5487
    %v5642 = vpack.c.b16 %v5492, %v5490
    %v5643 = vpack.c.b16 %v5493, %v5491
    %v5644 = vpack.c.b16 %v5496, %v5494
    %v5645 = vpack.c.b16 %v5497, %v5495
    %v5646 = vpack.c.b16 %v5500, %v5498
    %v5647 = vpack.c.b16 %v5501, %v5499
    %v5648 = vpack.c.b16 %v5504, %v5502
    %v5649 = vpack.c.b16 %v5505, %v5503
    %v5650 = vpack.c.b16 %v5508, %v5506
    %v5651 = vpack.c.b16 %v5509, %v5507
    %v5652 = vpack.c.b16 %v5512, %v5510
    %v5653 = vpack.c.b16 %v5513, %v5511
    %v5654 = vpack.c.b16 %v5516, %v5514
    %v5655 = vpack.c.b16 %v5517, %v5515
    %v5656 = vpack.c.b16 %v5520, %v5518
    %v5657 = vpack.c.b16 %v5521, %v5519
    %v5658 = vpack.c.b16 %v5524, %v5522
    %v5659 = vpack.c.b16 %v5525, %v5523
    %v5660 = vpack.c.b16 %v5528, %v5526
    %v5661 = vpack.c.b16 %v5529, %v5527
    %v5662 = vpack.c.b16 %v5532, %v5530
    %v5663 = vpack.c.b16 %v5533, %v5531
    %v5664 = vpack.c.b16 %v5536, %v5534
    %v5665 = vpack.c.b16 %v5537, %v5535
    %5794 = vmatprep.subr.bf16.mxu0 %v5553
    %5795 = vmatpush1.bf16.msra.mxu0 %v5552
    %5796 = vmatprep.subr.bf16.mxu0 %v5551
    %5797 = vmatpush1.bf16.msra.mxu0 %v5550
    %5798 = vmatprep.subr.bf16.mxu0 %v5549
    %5799 = vmatpush1.bf16.msra.mxu0 %v5548
    %5800 = vmatprep.subr.bf16.mxu0 %v5547
    %5801 = vmatpush1.bf16.msra.mxu0 %v5546
    %5802 = vmatprep.subr.bf16.mxu0 %v5545
    %5803 = vmatpush1.bf16.msra.mxu0 %v5544
    %5804 = vmatprep.subr.bf16.mxu0 %v5543
    %5805 = vmatpush1.bf16.msra.mxu0 %v5542
    %5806 = vmatprep.subr.bf16.mxu0 %v5541
    %5807 = vmatpush1.bf16.msra.mxu0 %v5540
    %5808 = vmatprep.subr.bf16.mxu0 %v5539
    %5809 = vmatpush1.bf16.msra.mxu0 %v5538
    %5810 = vmatprep.subr.bf16.mxu0 %v5569
    %5811 = vmatpush2.bf16.msra.mxu0 %v5568
    %5812 = vmatprep.subr.bf16.mxu0 %v5567
    %5813 = vmatpush2.bf16.msra.mxu0 %v5566
    %5814 = vmatprep.subr.bf16.mxu0 %v5565
    %5815 = vmatpush2.bf16.msra.mxu0 %v5564
    %5816 = vmatprep.subr.bf16.mxu0 %v5563
    %5817 = vmatpush2.bf16.msra.mxu0 %v5562
    %5818 = vmatprep.subr.bf16.mxu0 %v5561
    %5819 = vmatpush2.bf16.msra.mxu0 %v5560
    %5820 = vmatprep.subr.bf16.mxu0 %v5559
    %5821 = vmatpush2.bf16.msra.mxu0 %v5558
    %5822 = vmatprep.subr.bf16.mxu0 %v5557
    %5823 = vmatpush2.bf16.msra.mxu0 %v5556
    %5824 = vmatprep.subr.bf16.mxu0 %v5555
    %5825 = vmatpush2.bf16.msra.mxu0 %v5554
    %5826 = vmatprep.mubr.bf16.mxu0 %v5007
    %5827 = vmatmul.mubr.bf16.gmra.mxu0 %v5006
    %v5828 = vpop.f32.mrf.mxu0
    %v5829 = vadd.f32 %v5147, %v5828
    %v5830 = vpop.f32.mrf.mxu0
    %v5831 = vadd.f32 %v5151, %v5830
    %v5832 = vpop.f32.mrf.mxu0
    %v5833 = vpop.f32.mrf.mxu0
    %5834 = vdwg.mxu0
    %5835 = vmatprep.subr.bf16.mxu0 %v5585
    %5836 = vmatpush1.bf16.msra.mxu0 %v5584
    %5837 = vmatprep.subr.bf16.mxu0 %v5583
    %5838 = vmatpush1.bf16.msra.mxu0 %v5582
    %5839 = vmatprep.subr.bf16.mxu0 %v5581
    %5840 = vmatpush1.bf16.msra.mxu0 %v5580
    %5841 = vmatprep.subr.bf16.mxu0 %v5579
    %5842 = vmatpush1.bf16.msra.mxu0 %v5578
    %5843 = vmatprep.subr.bf16.mxu0 %v5577
    %5844 = vmatpush1.bf16.msra.mxu0 %v5576
    %5845 = vmatprep.subr.bf16.mxu0 %v5575
    %5846 = vmatpush1.bf16.msra.mxu0 %v5574
    %5847 = vmatprep.subr.bf16.mxu0 %v5573
    %5848 = vmatpush1.bf16.msra.mxu0 %v5572
    %5849 = vmatprep.subr.bf16.mxu0 %v5571
    %5850 = vmatpush1.bf16.msra.mxu0 %v5570
    %5851 = vmatprep.subr.bf16.mxu0 %v5601
    %5852 = vmatpush2.bf16.msra.mxu0 %v5600
    %5853 = vmatprep.subr.bf16.mxu0 %v5599
    %5854 = vmatpush2.bf16.msra.mxu0 %v5598
    %5855 = vmatprep.subr.bf16.mxu0 %v5597
    %5856 = vmatpush2.bf16.msra.mxu0 %v5596
    %5857 = vmatprep.subr.bf16.mxu0 %v5595
    %5858 = vmatpush2.bf16.msra.mxu0 %v5594
    %5859 = vmatprep.subr.bf16.mxu0 %v5593
    %5860 = vmatpush2.bf16.msra.mxu0 %v5592
    %5861 = vmatprep.subr.bf16.mxu0 %v5591
    %5862 = vmatpush2.bf16.msra.mxu0 %v5590
    %5863 = vmatprep.subr.bf16.mxu0 %v5589
    %5864 = vmatpush2.bf16.msra.mxu0 %v5588
    %5865 = vmatprep.subr.bf16.mxu0 %v5587
    %5866 = vmatpush2.bf16.msra.mxu0 %v5586
    %5867 = vmatprep.mubr.bf16.mxu0 %v5009
    %5868 = vmatmul.mubr.bf16.gmra.mxu0 %v5008
    %v5869 = vpop.f32.mrf.mxu0
    %v5870 = vadd.f32 %v5829, %v5869
    %v5871 = vpop.f32.mrf.mxu0
    %v5872 = vadd.f32 %v5831, %v5871
    %v5873 = vpop.f32.mrf.mxu0
    %v5874 = vpop.f32.mrf.mxu0
    %5875 = vdwg.mxu0
    %5876 = vmatprep.subr.bf16.mxu0 %v5617
    %5877 = vmatpush1.bf16.msra.mxu0 %v5616
    %5878 = vmatprep.subr.bf16.mxu0 %v5615
    %5879 = vmatpush1.bf16.msra.mxu0 %v5614
    %5880 = vmatprep.subr.bf16.mxu0 %v5613
    %5881 = vmatpush1.bf16.msra.mxu0 %v5612
    %5882 = vmatprep.subr.bf16.mxu0 %v5611
    %5883 = vmatpush1.bf16.msra.mxu0 %v5610
    %5884 = vmatprep.subr.bf16.mxu0 %v5609
    %5885 = vmatpush1.bf16.msra.mxu0 %v5608
    %5886 = vmatprep.subr.bf16.mxu0 %v5607
    %5887 = vmatpush1.bf16.msra.mxu0 %v5606
    %5888 = vmatprep.subr.bf16.mxu0 %v5605
    %5889 = vmatpush1.bf16.msra.mxu0 %v5604
    %5890 = vmatprep.subr.bf16.mxu0 %v5603
    %5891 = vmatpush1.bf16.msra.mxu0 %v5602
    %5892 = vmatprep.subr.bf16.mxu0 %v5633
    %5893 = vmatpush2.bf16.msra.mxu0 %v5632
    %5894 = vmatprep.subr.bf16.mxu0 %v5631
    %5895 = vmatpush2.bf16.msra.mxu0 %v5630
    %5896 = vmatprep.subr.bf16.mxu0 %v5629
    %5897 = vmatpush2.bf16.msra.mxu0 %v5628
    %5898 = vmatprep.subr.bf16.mxu0 %v5627
    %5899 = vmatpush2.bf16.msra.mxu0 %v5626
    %5900 = vmatprep.subr.bf16.mxu0 %v5625
    %5901 = vmatpush2.bf16.msra.mxu0 %v5624
    %5902 = vmatprep.subr.bf16.mxu0 %v5623
    %5903 = vmatpush2.bf16.msra.mxu0 %v5622
    %5904 = vmatprep.subr.bf16.mxu0 %v5621
    %5905 = vmatpush2.bf16.msra.mxu0 %v5620
    %5906 = vmatprep.subr.bf16.mxu0 %v5619
    %5907 = vmatpush2.bf16.msra.mxu0 %v5618
    %5908 = vmatprep.mubr.bf16.mxu0 %v5011
    %5909 = vmatmul.mubr.bf16.gmra.mxu0 %v5010
    %v5910 = vpop.f32.mrf.mxu0
    %v5911 = vadd.f32 %v5870, %v5910
    %v5912 = vpop.f32.mrf.mxu0
    %v5913 = vadd.f32 %v5872, %v5912
    %v5914 = vpop.f32.mrf.mxu0
    %v5915 = vpop.f32.mrf.mxu0
    %5916 = vdwg.mxu0
    %5917 = vmatprep.subr.bf16.mxu0 %v5649
    %5918 = vmatpush1.bf16.msra.mxu0 %v5648
    %5919 = vmatprep.subr.bf16.mxu0 %v5647
    %5920 = vmatpush1.bf16.msra.mxu0 %v5646
    %5921 = vmatprep.subr.bf16.mxu0 %v5645
    %5922 = vmatpush1.bf16.msra.mxu0 %v5644
    %5923 = vmatprep.subr.bf16.mxu0 %v5643
    %5924 = vmatpush1.bf16.msra.mxu0 %v5642
    %5925 = vmatprep.subr.bf16.mxu0 %v5641
    %5926 = vmatpush1.bf16.msra.mxu0 %v5640
    %5927 = vmatprep.subr.bf16.mxu0 %v5639
    %5928 = vmatpush1.bf16.msra.mxu0 %v5638
    %5929 = vmatprep.subr.bf16.mxu0 %v5637
    %5930 = vmatpush1.bf16.msra.mxu0 %v5636
    %5931 = vmatprep.subr.bf16.mxu0 %v5635
    %5932 = vmatpush1.bf16.msra.mxu0 %v5634
    %5933 = vmatprep.subr.bf16.mxu0 %v5665
    %5934 = vmatpush2.bf16.msra.mxu0 %v5664
    %5935 = vmatprep.subr.bf16.mxu0 %v5663
    %5936 = vmatpush2.bf16.msra.mxu0 %v5662
    %5937 = vmatprep.subr.bf16.mxu0 %v5661
    %5938 = vmatpush2.bf16.msra.mxu0 %v5660
    %5939 = vmatprep.subr.bf16.mxu0 %v5659
    %5940 = vmatpush2.bf16.msra.mxu0 %v5658
    %5941 = vmatprep.subr.bf16.mxu0 %v5657
    %5942 = vmatpush2.bf16.msra.mxu0 %v5656
    %5943 = vmatprep.subr.bf16.mxu0 %v5655
    %5944 = vmatpush2.bf16.msra.mxu0 %v5654
    %5945 = vmatprep.subr.bf16.mxu0 %v5653
    %5946 = vmatpush2.bf16.msra.mxu0 %v5652
    %5947 = vmatprep.subr.bf16.mxu0 %v5651
    %5948 = vmatpush2.bf16.msra.mxu0 %v5650
    %5949 = vmatprep.mubr.bf16.mxu0 %v5013
    %5950 = vmatmul.mubr.bf16.gmra.mxu0 %v5012
    %v5951 = vpop.f32.mrf.mxu0
    %v5952 = vadd.f32 %v5911, %v5951
    %v5953 = vpop.f32.mrf.mxu0
    %v5954 = vadd.f32 %v5913, %v5953
    %v5955 = vpop.f32.mrf.mxu0
    %v5956 = vpop.f32.mrf.mxu0
    %5957 = vdwg.mxu0
    %v5958 = vadd.f32 %v5952, %v234
    %v5959 = vadd.f32 %v5954, %v235
    %v5960 = vtanh.pop %v5958
    %v5961 = vtanh.pop %v5959
    %v5962 = vpack.c.bf16 %v5960, %v5960
    %v5963 = vpack.c.bf16 %v5961, %v5961
    %v5964 = vld [vmem:[#allocation17] sm:$0xff]
    %v5965 = vld [vmem:[#allocation17 + $0x8] sm:$0xff]
    %v5966 = vld [vmem:[#allocation17 + $0x10] sm:$0xff]
    %v5967 = vld [vmem:[#allocation17 + $0x18] sm:$0xff]
    %v5968 = vld [vmem:[#allocation17 + $0x20] sm:$0xff]
    %v5969 = vld [vmem:[#allocation17 + $0x28] sm:$0xff]
    %v5970 = vld [vmem:[#allocation17 + $0x30] sm:$0xff]
    %v5971 = vld [vmem:[#allocation17 + $0x38] sm:$0xff]
    %v5972 = vld [vmem:[#allocation17 + $0x40] sm:$0xff]
    %v5973 = vld [vmem:[#allocation17 + $0x48] sm:$0xff]
    %v5974 = vld [vmem:[#allocation17 + $0x50] sm:$0xff]
    %v5975 = vld [vmem:[#allocation17 + $0x58] sm:$0xff]
    %v5976 = vld [vmem:[#allocation17 + $0x60] sm:$0xff]
    %v5977 = vld [vmem:[#allocation17 + $0x68] sm:$0xff]
    %v5978 = vld [vmem:[#allocation17 + $0x70] sm:$0xff]
    %v5979 = vld [vmem:[#allocation17 + $0x78] sm:$0xff]
    %v5980 = vld [vmem:[#allocation17 + $0x80] sm:$0xff]
    %v5981 = vld [vmem:[#allocation17 + $0x88] sm:$0xff]
    %v5982 = vld [vmem:[#allocation17 + $0x90] sm:$0xff]
    %v5983 = vld [vmem:[#allocation17 + $0x98] sm:$0xff]
    %v5984 = vld [vmem:[#allocation17 + $0xa0] sm:$0xff]
    %v5985 = vld [vmem:[#allocation17 + $0xa8] sm:$0xff]
    %v5986 = vld [vmem:[#allocation17 + $0xb0] sm:$0xff]
    %v5987 = vld [vmem:[#allocation17 + $0xb8] sm:$0xff]
    %v5988 = vld [vmem:[#allocation17 + $0xc0] sm:$0xff]
    %v5989 = vld [vmem:[#allocation17 + $0xc8] sm:$0xff]
    %v5990 = vld [vmem:[#allocation17 + $0xd0] sm:$0xff]
    %v5991 = vld [vmem:[#allocation17 + $0xd8] sm:$0xff]
    %v5992 = vld [vmem:[#allocation17 + $0xe0] sm:$0xff]
    %v5993 = vld [vmem:[#allocation17 + $0xe8] sm:$0xff]
    %v5994 = vld [vmem:[#allocation17 + $0xf0] sm:$0xff]
    %v5995 = vld [vmem:[#allocation17 + $0xf8] sm:$0xff]
    %v5996 = vld [vmem:[#allocation19] sm:$0x3]
    %v5998 = vlaneseq
    %v5999 = vshrl.u32 %v5998, 7
    %v6000 = vsub.s32 0, %v5999
    %v6001 = vrot.slane %v5996, %v6000
    %v6002 = vlaneseq
    %v6003 = vshrl.u32 %v6002, 7
    %v6004 = vsub.s32 1, %v6003
    %v6005 = vrot.slane %v5996, %v6004
    %v6040 = vunpack.c.l.b16 %v5964
    %v6041 = vunpack.c.h.b16 %v5964
    %v6042 = vunpack.c.l.b16 %v5965
    %v6043 = vunpack.c.h.b16 %v5965
    %v6044 = vunpack.c.l.b16 %v5966
    %v6045 = vunpack.c.h.b16 %v5966
    %v6046 = vunpack.c.l.b16 %v5967
    %v6047 = vunpack.c.h.b16 %v5967
    %v6048 = vunpack.c.l.b16 %v5968
    %v6049 = vunpack.c.h.b16 %v5968
    %v6050 = vunpack.c.l.b16 %v5969
    %v6051 = vunpack.c.h.b16 %v5969
    %v6052 = vunpack.c.l.b16 %v5970
    %v6053 = vunpack.c.h.b16 %v5970
    %v6054 = vunpack.c.l.b16 %v5971
    %v6055 = vunpack.c.h.b16 %v5971
    %v6056 = vunpack.c.l.b16 %v5972
    %v6057 = vunpack.c.h.b16 %v5972
    %v6058 = vunpack.c.l.b16 %v5973
    %v6059 = vunpack.c.h.b16 %v5973
    %v6060 = vunpack.c.l.b16 %v5974
    %v6061 = vunpack.c.h.b16 %v5974
    %v6062 = vunpack.c.l.b16 %v5975
    %v6063 = vunpack.c.h.b16 %v5975
    %v6064 = vunpack.c.l.b16 %v5976
    %v6065 = vunpack.c.h.b16 %v5976
    %v6066 = vunpack.c.l.b16 %v5977
    %v6067 = vunpack.c.h.b16 %v5977
    %v6068 = vunpack.c.l.b16 %v5978
    %v6069 = vunpack.c.h.b16 %v5978
    %v6070 = vunpack.c.l.b16 %v5979
    %v6071 = vunpack.c.h.b16 %v5979
    %v6072 = vunpack.c.l.b16 %v5980
    %v6073 = vunpack.c.h.b16 %v5980
    %v6074 = vunpack.c.l.b16 %v5981
    %v6075 = vunpack.c.h.b16 %v5981
    %v6076 = vunpack.c.l.b16 %v5982
    %v6077 = vunpack.c.h.b16 %v5982
    %v6078 = vunpack.c.l.b16 %v5983
    %v6079 = vunpack.c.h.b16 %v5983
    %v6080 = vunpack.c.l.b16 %v5984
    %v6081 = vunpack.c.h.b16 %v5984
    %v6082 = vunpack.c.l.b16 %v5985
    %v6083 = vunpack.c.h.b16 %v5985
    %v6084 = vunpack.c.l.b16 %v5986
    %v6085 = vunpack.c.h.b16 %v5986
    %v6086 = vunpack.c.l.b16 %v5987
    %v6087 = vunpack.c.h.b16 %v5987
    %v6088 = vunpack.c.l.b16 %v5988
    %v6089 = vunpack.c.h.b16 %v5988
    %v6090 = vunpack.c.l.b16 %v5989
    %v6091 = vunpack.c.h.b16 %v5989
    %v6092 = vunpack.c.l.b16 %v5990
    %v6093 = vunpack.c.h.b16 %v5990
    %v6094 = vunpack.c.l.b16 %v5991
    %v6095 = vunpack.c.h.b16 %v5991
    %v6096 = vunpack.c.l.b16 %v5992
    %v6097 = vunpack.c.h.b16 %v5992
    %v6098 = vunpack.c.l.b16 %v5993
    %v6099 = vunpack.c.h.b16 %v5993
    %v6100 = vunpack.c.l.b16 %v5994
    %v6101 = vunpack.c.h.b16 %v5994
    %v6102 = vunpack.c.l.b16 %v5995
    %v6103 = vunpack.c.h.b16 %v5995
    %v6104 = vpack.c.b16 %v6042, %v6040
    %v6105 = vpack.c.b16 %v6043, %v6041
    %v6106 = vpack.c.b16 %v6046, %v6044
    %v6107 = vpack.c.b16 %v6047, %v6045
    %v6108 = vpack.c.b16 %v6050, %v6048
    %v6109 = vpack.c.b16 %v6051, %v6049
    %v6110 = vpack.c.b16 %v6054, %v6052
    %v6111 = vpack.c.b16 %v6055, %v6053
    %v6112 = vpack.c.b16 %v6058, %v6056
    %v6113 = vpack.c.b16 %v6059, %v6057
    %v6114 = vpack.c.b16 %v6062, %v6060
    %v6115 = vpack.c.b16 %v6063, %v6061
    %v6116 = vpack.c.b16 %v6066, %v6064
    %v6117 = vpack.c.b16 %v6067, %v6065
    %v6118 = vpack.c.b16 %v6070, %v6068
    %v6119 = vpack.c.b16 %v6071, %v6069
    %v6120 = vpack.c.b16 %v6074, %v6072
    %v6121 = vpack.c.b16 %v6075, %v6073
    %v6122 = vpack.c.b16 %v6078, %v6076
    %v6123 = vpack.c.b16 %v6079, %v6077
    %v6124 = vpack.c.b16 %v6082, %v6080
    %v6125 = vpack.c.b16 %v6083, %v6081
    %v6126 = vpack.c.b16 %v6086, %v6084
    %v6127 = vpack.c.b16 %v6087, %v6085
    %v6128 = vpack.c.b16 %v6090, %v6088
    %v6129 = vpack.c.b16 %v6091, %v6089
    %v6130 = vpack.c.b16 %v6094, %v6092
    %v6131 = vpack.c.b16 %v6095, %v6093
    %v6132 = vpack.c.b16 %v6098, %v6096
    %v6133 = vpack.c.b16 %v6099, %v6097
    %v6134 = vpack.c.b16 %v6102, %v6100
    %v6135 = vpack.c.b16 %v6103, %v6101
    %6168 = vmatprep.subr.bf16.mxu0 %v6119
    %6169 = vmatpush1.bf16.msra.mxu0 %v6118
    %6170 = vmatprep.subr.bf16.mxu0 %v6117
    %6171 = vmatpush1.bf16.msra.mxu0 %v6116
    %6172 = vmatprep.subr.bf16.mxu0 %v6115
    %6173 = vmatpush1.bf16.msra.mxu0 %v6114
    %6174 = vmatprep.subr.bf16.mxu0 %v6113
    %6175 = vmatpush1.bf16.msra.mxu0 %v6112
    %6176 = vmatprep.subr.bf16.mxu0 %v6111
    %6177 = vmatpush1.bf16.msra.mxu0 %v6110
    %6178 = vmatprep.subr.bf16.mxu0 %v6109
    %6179 = vmatpush1.bf16.msra.mxu0 %v6108
    %6180 = vmatprep.subr.bf16.mxu0 %v6107
    %6181 = vmatpush1.bf16.msra.mxu0 %v6106
    %6182 = vmatprep.subr.bf16.mxu0 %v6105
    %6183 = vmatpush1.bf16.msra.mxu0 %v6104
    %6184 = vmatprep.subr.bf16.mxu0 %v6135
    %6185 = vmatpush2.bf16.msra.mxu0 %v6134
    %6186 = vmatprep.subr.bf16.mxu0 %v6133
    %6187 = vmatpush2.bf16.msra.mxu0 %v6132
    %6188 = vmatprep.subr.bf16.mxu0 %v6131
    %6189 = vmatpush2.bf16.msra.mxu0 %v6130
    %6190 = vmatprep.subr.bf16.mxu0 %v6129
    %6191 = vmatpush2.bf16.msra.mxu0 %v6128
    %6192 = vmatprep.subr.bf16.mxu0 %v6127
    %6193 = vmatpush2.bf16.msra.mxu0 %v6126
    %6194 = vmatprep.subr.bf16.mxu0 %v6125
    %6195 = vmatpush2.bf16.msra.mxu0 %v6124
    %6196 = vmatprep.subr.bf16.mxu0 %v6123
    %6197 = vmatpush2.bf16.msra.mxu0 %v6122
    %6198 = vmatprep.subr.bf16.mxu0 %v6121
    %6199 = vmatpush2.bf16.msra.mxu0 %v6120
    %6200 = vmatprep.mubr.bf16.mxu0 %v5963
    %6201 = vmatmul.mubr.bf16.gmra.mxu0 %v5962
    %v6202 = vpop.f32.mrf.mxu0
    %v6203 = vadd.f32 %v6001, %v6202
    %v6204 = vpop.f32.mrf.mxu0
    %v6205 = vadd.f32 %v6005, %v6204
    %v6206 = vpop.f32.mrf.mxu0
    %v6207 = vpop.f32.mrf.mxu0
    %6208 = vdwg.mxu0
    %v6209 = vmax.f32 %v6203, 0.0
    %v6210 = vmax.f32 %v6205, 0.0
    %v6211 = vpack.c.bf16 %v6209, %v6209
    %v6212 = vpack.c.bf16 %v6210, %v6210
    %v6213 = vld [vmem:[#allocation20] sm:$0xf]
    %v6214 = vld [vmem:[#allocation20 + $0x4] sm:$0xf]
    %v6215 = vld [vmem:[#allocation20 + $0x8] sm:$0xf]
    %v6216 = vld [vmem:[#allocation20 + $0xc] sm:$0xf]
    %v6217 = vld [vmem:[#allocation20 + $0x10] sm:$0xf]
    %v6218 = vld [vmem:[#allocation20 + $0x14] sm:$0xf]
    %v6219 = vld [vmem:[#allocation20 + $0x18] sm:$0xf]
    %v6220 = vld [vmem:[#allocation20 + $0x1c] sm:$0xf]
    %v6221 = vld [vmem:[#allocation20 + $0x20] sm:$0xf]
    %v6222 = vld [vmem:[#allocation20 + $0x24] sm:$0xf]
    %v6223 = vld [vmem:[#allocation20 + $0x28] sm:$0xf]
    %v6224 = vld [vmem:[#allocation20 + $0x2c] sm:$0xf]
    %v6225 = vld [vmem:[#allocation20 + $0x30] sm:$0xf]
    %v6226 = vld [vmem:[#allocation20 + $0x34] sm:$0xf]
    %v6227 = vld [vmem:[#allocation20 + $0x38] sm:$0xf]
    %v6228 = vld [vmem:[#allocation20 + $0x3c] sm:$0xf]
    %v6229 = vld [vmem:[#allocation20 + $0x40] sm:$0xf]
    %v6230 = vld [vmem:[#allocation20 + $0x44] sm:$0xf]
    %v6231 = vld [vmem:[#allocation20 + $0x48] sm:$0xf]
    %v6232 = vld [vmem:[#allocation20 + $0x4c] sm:$0xf]
    %v6233 = vld [vmem:[#allocation20 + $0x50] sm:$0xf]
    %v6234 = vld [vmem:[#allocation20 + $0x54] sm:$0xf]
    %v6235 = vld [vmem:[#allocation20 + $0x58] sm:$0xf]
    %v6236 = vld [vmem:[#allocation20 + $0x5c] sm:$0xf]
    %v6237 = vld [vmem:[#allocation20 + $0x60] sm:$0xf]
    %v6238 = vld [vmem:[#allocation20 + $0x64] sm:$0xf]
    %v6239 = vld [vmem:[#allocation20 + $0x68] sm:$0xf]
    %v6240 = vld [vmem:[#allocation20 + $0x6c] sm:$0xf]
    %v6241 = vld [vmem:[#allocation20 + $0x70] sm:$0xf]
    %v6242 = vld [vmem:[#allocation20 + $0x74] sm:$0xf]
    %v6243 = vld [vmem:[#allocation20 + $0x78] sm:$0xf]
    %v6244 = vld [vmem:[#allocation20 + $0x7c] sm:$0xf]
    %v6245 = vld [vmem:[#allocation22] sm:$0x1]
    %v6247 = vlaneseq
    %v6248 = vshrl.u32 %v6247, 7
    %v6249 = vsub.s32 0, %v6248
    %v6250 = vrot.slane %v6245, %v6249
    %v6284 = vunpack.c.l.b16 %v6213
    %v6285 = vunpack.c.l.b16 %v6214
    %v6286 = vunpack.c.l.b16 %v6215
    %v6287 = vunpack.c.l.b16 %v6216
    %v6288 = vunpack.c.l.b16 %v6217
    %v6289 = vunpack.c.l.b16 %v6218
    %v6290 = vunpack.c.l.b16 %v6219
    %v6291 = vunpack.c.l.b16 %v6220
    %v6292 = vunpack.c.l.b16 %v6221
    %v6293 = vunpack.c.l.b16 %v6222
    %v6294 = vunpack.c.l.b16 %v6223
    %v6295 = vunpack.c.l.b16 %v6224
    %v6296 = vunpack.c.l.b16 %v6225
    %v6297 = vunpack.c.l.b16 %v6226
    %v6298 = vunpack.c.l.b16 %v6227
    %v6299 = vunpack.c.l.b16 %v6228
    %v6300 = vunpack.c.l.b16 %v6229
    %v6301 = vunpack.c.l.b16 %v6230
    %v6302 = vunpack.c.l.b16 %v6231
    %v6303 = vunpack.c.l.b16 %v6232
    %v6304 = vunpack.c.l.b16 %v6233
    %v6305 = vunpack.c.l.b16 %v6234
    %v6306 = vunpack.c.l.b16 %v6235
    %v6307 = vunpack.c.l.b16 %v6236
    %v6308 = vunpack.c.l.b16 %v6237
    %v6309 = vunpack.c.l.b16 %v6238
    %v6310 = vunpack.c.l.b16 %v6239
    %v6311 = vunpack.c.l.b16 %v6240
    %v6312 = vunpack.c.l.b16 %v6241
    %v6313 = vunpack.c.l.b16 %v6242
    %v6314 = vunpack.c.l.b16 %v6243
    %v6315 = vunpack.c.l.b16 %v6244
    %v6316 = vpack.c.b16 %v6285, %v6284
    %v6317 = vpack.c.b16 %v6287, %v6286
    %v6318 = vpack.c.b16 %v6289, %v6288
    %v6319 = vpack.c.b16 %v6291, %v6290
    %v6320 = vpack.c.b16 %v6293, %v6292
    %v6321 = vpack.c.b16 %v6295, %v6294
    %v6322 = vpack.c.b16 %v6297, %v6296
    %v6323 = vpack.c.b16 %v6299, %v6298
    %v6324 = vpack.c.b16 %v6301, %v6300
    %v6325 = vpack.c.b16 %v6303, %v6302
    %v6326 = vpack.c.b16 %v6305, %v6304
    %v6327 = vpack.c.b16 %v6307, %v6306
    %v6328 = vpack.c.b16 %v6309, %v6308
    %v6329 = vpack.c.b16 %v6311, %v6310
    %v6330 = vpack.c.b16 %v6313, %v6312
    %v6331 = vpack.c.b16 %v6315, %v6314
    %6348 = vmatprep.subr.bf16.mxu0 0
    %6349 = vmatpush1.bf16.msra.mxu0 %v6323
    %6350 = vmatprep.subr.bf16.mxu0 0
    %6351 = vmatpush1.bf16.msra.mxu0 %v6322
    %6352 = vmatprep.subr.bf16.mxu0 0
    %6353 = vmatpush1.bf16.msra.mxu0 %v6321
    %6354 = vmatprep.subr.bf16.mxu0 0
    %6355 = vmatpush1.bf16.msra.mxu0 %v6320
    %6356 = vmatprep.subr.bf16.mxu0 0
    %6357 = vmatpush1.bf16.msra.mxu0 %v6319
    %6358 = vmatprep.subr.bf16.mxu0 0
    %6359 = vmatpush1.bf16.msra.mxu0 %v6318
    %6360 = vmatprep.subr.bf16.mxu0 0
    %6361 = vmatpush1.bf16.msra.mxu0 %v6317
    %6362 = vmatprep.subr.bf16.mxu0 0
    %6363 = vmatpush1.bf16.msra.mxu0 %v6316
    %6364 = vmatprep.subr.bf16.mxu0 0
    %6365 = vmatpush2.bf16.msra.mxu0 %v6331
    %6366 = vmatprep.subr.bf16.mxu0 0
    %6367 = vmatpush2.bf16.msra.mxu0 %v6330
    %6368 = vmatprep.subr.bf16.mxu0 0
    %6369 = vmatpush2.bf16.msra.mxu0 %v6329
    %6370 = vmatprep.subr.bf16.mxu0 0
    %6371 = vmatpush2.bf16.msra.mxu0 %v6328
    %6372 = vmatprep.subr.bf16.mxu0 0
    %6373 = vmatpush2.bf16.msra.mxu0 %v6327
    %6374 = vmatprep.subr.bf16.mxu0 0
    %6375 = vmatpush2.bf16.msra.mxu0 %v6326
    %6376 = vmatprep.subr.bf16.mxu0 0
    %6377 = vmatpush2.bf16.msra.mxu0 %v6325
    %6378 = vmatprep.subr.bf16.mxu0 0
    %6379 = vmatpush2.bf16.msra.mxu0 %v6324
    %6380 = vmatprep.mubr.bf16.mxu0 %v6212
    %6381 = vmatmul.mubr.bf16.gmra.mxu0 %v6211
    %v6382 = vpop.f32.mrf.mxu0
    %v6383 = vadd.f32 %v6250, %v6382
    %v6384 = vpop.f32.mrf.mxu0
    %v6385 = vpop.f32.mrf.mxu0
    %v6386 = vpop.f32.mrf.mxu0
    %6387 = vdwg.mxu0
    %v6388 = vxor.u32 %v6383, 2147483648
    %v6389 = vmul.f32 %v6388, 1.442695
    %v6390 = vpow.pop %v6389
    %v6391 = vadd.f32 %v6390, 1.0
    %v6392 = vrcp.pop %v6391
    %v6393 = vmul.f32 1.0, %v6392
    %v6394 = vmul.f32 %v6393, 6.9077554
    %v6395 = vadd.f32 %v6394, 9.2103405
    %v6396 = vmul.f32 %v6395, 1.442695
    %v6397 = vpow.pop %v6396
    %v6398 = vtanh.pop %v6383
    %v6399 = vadd.f32 %v6398, 1.0
    %v6400 = vmul.f32 %v6399, 97.5
    %v6401 = vadd.f32 %v6400, 5.0
    %v6402 = vlaneseq
    %v6403 = vand.u32 %v6402, 127
    %vm6404 = vcmp.lt.s32.totalorder %v6403, 4
    %v6405 = vsel %vm6404, %v6397, %v6401
    %6406 = vst [vmem:[#allocation23] sm:$0xff] %v6405
    // Predicated region
    $region106: #{tpu_custom_call.1} parent=1 // pred_check
      _
    $region107: #{tpu_custom_call.1} parent=1 // pred_check_branch
      %6408 = sbr.rel (0) target = $region109
    $region108: #{tpu_custom_call.1} parent=1 // pred_region
      %s6410 = ssub.s32 128, 128
      %6411 = vsyncadd [#allocation4], %s6410
      %s6413 = sshll.u32 [#allocation23], 4
      %s6414 = int_to_ptr.vmem [resolvable:$true] %s6413
      %6416 = dma.vmem_to_hbm [thread:$0]  %s6414, 128, %s13, [#allocation4]
    $region109: #{tpu_custom_call.1} parent=1 // pred_fallthru
      _
    // Predicated region
    $region110: #{tpu_custom_call.1} parent=1 // pred_check
      _
    $region111: #{tpu_custom_call.1} parent=1 // pred_check_branch
      %6418 = sbr.rel (0) target = $region113
    $region112: #{tpu_custom_call.1} parent=1 // pred_region
      %6419 = dma.done [#allocation4], 128
    $region113: #{tpu_custom_call.1} parent=1 // pred_fallthru
      _
    %6420 = vsyncpa [#allocation3], 1
    %6421 = vsyncpa [#allocation6], 1
    %6422 = vsyncpa [#allocation9], 1
    %6423 = vsyncpa [#allocation12], 1
    %6424 = vsyncpa [#allocation15], 1
    %6425 = vsyncpa [#allocation18], 1
    %6426 = vsyncpa [#allocation21], 1
    %6427 = vsyncpa [#allocation4], 1

</llo_original>
